<compile_context>
chip_gen: v7x
topology: tpu7x:2x2x1
jax: 0.10.0
libtpu: 0.0.40
codegen_flags: <defaults>
</compile_context>

<pallas_src>
import jax
import jax.numpy as jnp
from jax.experimental import pallas as pl
from jax.experimental.pallas import tpu as pltpu


_VMEM_LIMIT = 32 * 1024 * 1024  # matches v7x default scoped VMEM; safe on v5e/v6e


def _pick_tile(m, cap=512):
    """Largest tile <= cap dividing m that is a multiple of 16 (or m itself).

    For m <= cap, split in two when cleanly possible so v7x's two TensorCores
    both get a grid step.
    """
    if m <= cap:
        if m % 32 == 0:
            return m // 2
        return m
    for t in range(cap, 15, -1):
        if m % t == 0 and t % 16 == 0:
            return t
    return m


# ---------------------------------------------------------------------------
# Conv (as one full-K matmul over im2col patches) + bias + ReLU
# ---------------------------------------------------------------------------

def _matmul_bias_relu_kernel(a_ref, w_ref, b_ref, o_ref):
    """o = relu(a @ w + b); bf16 operands, f32 MXU accumulation, f32 epilogue."""
    acc = jnp.dot(a_ref[...], w_ref[...], preferred_element_type=jnp.float32)
    acc = jnp.maximum(acc + b_ref[...], 0.0)
    o_ref[...] = acc.astype(o_ref.dtype)


def conv5x5_relu(x_nhwc, w2d, b, *, out_dtype=jnp.bfloat16):
    """PyTorch Conv2d(k=5, padding=2, stride=1) + ReLU, NHWC activations.

    w2d: (25*Cin, Cout) with row order (dy, dx, cin) — to port trained PyTorch
    weights use w.permute(2, 3, 1, 0).reshape(25*Cin, Cout).
    The im2col patch extraction is done with XLA strided slices in this
    wrapper (tiny at these shapes); the Pallas kernel is a single K=25*Cin
    MXU dot per tile with fused bias + ReLU.
    """
    B, H, W, C = x_nhwc.shape
    k, pad = 5, 2
    K, N = w2d.shape
    assert K == k * k * C, (K, k * k * C)

    xp = jnp.pad(x_nhwc, ((0, 0), (pad, pad), (pad, pad), (0, 0)))
    # (B, H*W, 25*C), patch feature order (dy, dx, c) matching w2d rows.
    patches = jnp.concatenate(
        [xp[:, dy:dy + H, dx:dx + W, :] for dy in range(k) for dx in range(k)],
        axis=-1).reshape(B, H * W, K).astype(jnp.bfloat16)

    M = H * W
    tm = _pick_tile(M)
    grid = (B, M // tm)

    out = pl.pallas_call(
        _matmul_bias_relu_kernel,
        out_shape=jax.ShapeDtypeStruct((B, M, N), out_dtype),
        grid=grid,
        in_specs=[
            pl.BlockSpec((None, tm, K), lambda bi, mi: (bi, mi, 0)),
            pl.BlockSpec((K, N), lambda bi, mi: (0, 0)),
            pl.BlockSpec((1, N), lambda bi, mi: (0, 0)),
        ],
        out_specs=pl.BlockSpec((None, tm, N), lambda bi, mi: (bi, mi, 0)),
        compiler_params=pltpu.CompilerParams(
            dimension_semantics=("parallel", "parallel"),
            vmem_limit_bytes=_VMEM_LIMIT),
        cost_estimate=pl.CostEstimate(
            flops=2 * B * M * K * N,
            transcendentals=0,
            bytes_accessed=int(patches.size * 2 + K * N * 2 + N * 4
                               + B * M * N * jnp.dtype(out_dtype).itemsize)),
    )(patches, w2d.astype(jnp.bfloat16), b)
    return out.reshape(B, H, W, N)


# ---------------------------------------------------------------------------
# MaxPool2d(kernel=3, stride=2, padding=1), lane-dense 128-wide blocks
# ---------------------------------------------------------------------------

def _maxpool9_kernel(w_ref, o_ref):
    """w_ref: (9, TM, L) stacked pooling windows -> o_ref: (TM, L) max."""
    o_ref[...] = jnp.max(w_ref[...], axis=0)


def maxpool_3x3_s2_p1(x_nhwc, *, tm_cap=512):
    """PyTorch-equivalent MaxPool2d(3, 2, padding=1), NHWC.

    Input is post-ReLU (>= 0), so zero padding is equivalent to PyTorch's
    -inf border handling for the max.
    """
    B, H, W, C = x_nhwc.shape
    k, s, pad = 3, 2, 1
    Ho = (H + 2 * pad - k) // s + 1
    Wo = (W + 2 * pad - k) // s + 1

    xp = jnp.pad(x_nhwc, ((0, 0), (pad, pad), (pad, pad), (0, 0)))
    wins = [xp[:, dy:dy + s * Ho:s, dx:dx + s * Wo:s, :]
            for dy in range(k) for dx in range(k)]
    windows = jnp.stack(wins, axis=0)                     # (9, B, Ho, Wo, C)

    total = B * Ho * Wo * C
    if total % 128 == 0:                                  # lane-dense layout
        rows, lanes = total // 128, 128
    else:                                                 # fallback: (M, C)
        rows, lanes = B * Ho * Wo, C
    windows = windows.reshape(k * k, rows, lanes)

    tm = _pick_tile(rows, tm_cap)
    out = pl.pallas_call(
        _maxpool9_kernel,
        out_shape=jax.ShapeDtypeStruct((rows, lanes), x_nhwc.dtype),
        grid=(rows // tm,),
        in_specs=[pl.BlockSpec((k * k, tm, lanes), lambda i: (0, i, 0))],
        out_specs=pl.BlockSpec((tm, lanes), lambda i: (i, 0)),
        compiler_params=pltpu.CompilerParams(
            dimension_semantics=("parallel",),
            vmem_limit_bytes=_VMEM_LIMIT),
    )(windows)
    return out.reshape(B, Ho, Wo, C)


# ---------------------------------------------------------------------------
# Fused FC stack: 2304 -> 384 (ReLU) -> 192 (ReLU) -> 10, one kernel
# ---------------------------------------------------------------------------

def _fc_stack_kernel(a_ref, w1_ref, b1_ref, w2_ref, b2_ref, w3_ref, b3_ref,
                     o_ref):
    h = jnp.dot(a_ref[...], w1_ref[...], preferred_element_type=jnp.float32)
    h = jnp.maximum(h + b1_ref[...], 0.0).astype(w2_ref.dtype)
    h = jnp.dot(h, w2_ref[...], preferred_element_type=jnp.float32)
    h = jnp.maximum(h + b2_ref[...], 0.0).astype(w3_ref.dtype)
    out = jnp.dot(h, w3_ref[...], preferred_element_type=jnp.float32)
    o_ref[...] = (out + b3_ref[...]).astype(o_ref.dtype)


def fc_stack(a, w1, b1, w2, b2, w3, b3, *, out_dtype=jnp.float32):
    """All three Linear layers in one kernel; weights (~2 MB bf16) stay in VMEM."""
    B, K1 = a.shape
    N1, N2, N3 = w1.shape[1], w2.shape[1], w3.shape[1]
    tb = B if B <= 256 else 256
    grid = (pl.cdiv(B, tb),)
    flops = 2 * B * (K1 * N1 + N1 * N2 + N2 * N3)
    return pl.pallas_call(
        _fc_stack_kernel,
        out_shape=jax.ShapeDtypeStruct((B, N3), out_dtype),
        grid=grid,
        in_specs=[
            pl.BlockSpec((tb, K1), lambda i: (i, 0)),
            pl.BlockSpec(w1.shape, lambda i: (0, 0)),
            pl.BlockSpec(b1.shape, lambda i: (0, 0)),
            pl.BlockSpec(w2.shape, lambda i: (0, 0)),
            pl.BlockSpec(b2.shape, lambda i: (0, 0)),
            pl.BlockSpec(w3.shape, lambda i: (0, 0)),
            pl.BlockSpec(b3.shape, lambda i: (0, 0)),
        ],
        out_specs=pl.BlockSpec((tb, N3), lambda i: (i, 0)),
        compiler_params=pltpu.CompilerParams(
            dimension_semantics=("parallel",),
            vmem_limit_bytes=_VMEM_LIMIT),
        cost_estimate=pl.CostEstimate(
            flops=flops, transcendentals=0,
            bytes_accessed=int(a.size * a.dtype.itemsize
                               + (w1.size + w2.size + w3.size) * 2
                               + B * N3 * 4)),
    )(a, w1, b1, w2, b2, w3, b3)


# ---------------------------------------------------------------------------
# Model: parameters + forward
# ---------------------------------------------------------------------------

def init_params(key):
    ks = jax.random.split(key, 10)
    scale = 0.05
    f32, bf16 = jnp.float32, jnp.bfloat16
    return {
        # Conv weights stored as (25*Cin, Cout) in (dy, dx, cin) row order
        # (matching the wrapper's im2col feature order), bf16 for the MXU.
        "w_c1": (jax.random.normal(ks[0], (25 * 3, 64), f32) * scale).astype(bf16),
        "b_c1": (jax.random.normal(ks[1], (64,), f32) * scale).reshape(1, 64),
        "w_c2": (jax.random.normal(ks[2], (25 * 64, 64), f32) * scale).astype(bf16),
        "b_c2": (jax.random.normal(ks[3], (64,), f32) * scale).reshape(1, 64),
        # FC weights (in_features, out_features) bf16.  w_f1 rows are laid out
        # in NHWC flatten order (H, W, C); when porting trained PyTorch
        # weights, permute rows from the (C, H, W) .view() order.
        "w_f1": (jax.random.normal(ks[4], (64 * 6 * 6, 384), f32) * scale).astype(bf16),
        "b_f1": (jax.random.normal(ks[5], (384,), f32) * scale).reshape(1, 384),
        "w_f2": (jax.random.normal(ks[6], (384, 192), f32) * scale).astype(bf16),
        "b_f2": (jax.random.normal(ks[7], (192,), f32) * scale).reshape(1, 192),
        "w_f3": (jax.random.normal(ks[8], (192, 10), f32) * scale).astype(bf16),
        "b_f3": (jax.random.normal(ks[9], (10,), f32) * scale).reshape(1, 10),
    }


def cifar10_forward(x_nchw, p):
    """Equivalent of Cifar10Module.forward. x: (B, 3, 24, 24) float32 NCHW."""
    B = x_nchw.shape[0]
    x = jnp.transpose(x_nchw, (0, 2, 3, 1))                       # -> NHWC

    y = conv5x5_relu(x, p["w_c1"], p["b_c1"])                     # (B,24,24,64) bf16
    y = maxpool_3x3_s2_p1(y)                                      # (B,12,12,64) bf16
    y = conv5x5_relu(y, p["w_c2"], p["b_c2"])                     # (B,12,12,64) bf16
    y = maxpool_3x3_s2_p1(y)                                      # (B, 6, 6,64) bf16

    # NHWC flatten (w_f1 rows are defined in this order -> no transpose needed)
    flat = y.reshape(B, -1)                                       # (B, 2304) bf16

    out = fc_stack(flat, p["w_f1"], p["b_f1"], p["w_f2"], p["b_f2"],
                   p["w_f3"], p["b_f3"], out_dtype=jnp.float32)   # (B, 10)
    return out


# ---------------------------------------------------------------------------
# Main
# ---------------------------------------------------------------------------

if __name__ == "__main__":
    key = jax.random.PRNGKey(0)
    k_x, k_p = jax.random.split(key)

    # Small batch; 24x24 spatial is what the 64*6*6 fc layer implies.
    x = jax.random.normal(k_x, (2, 3, 24, 24), jnp.float32)       # NCHW
    params = init_params(k_p)

    fwd = jax.jit(cifar10_forward)
    out = fwd(x, params)
    jax.block_until_ready(out)

    assert out.shape == (2, 10), out.shape
    assert out.dtype == jnp.float32
    print("KERNEL_OK")
</pallas_src>

<mosaic_0001>
module attributes {stable_mosaic.version = 11 : i64} {
  func.func @_matmul_bias_relu_kernel(%arg0: i32, %arg1: i32, %arg2: memref<1x288x75xbf16, #tpu.memory_space<vmem>>, %arg3: memref<75x64xbf16, #tpu.memory_space<vmem>>, %arg4: memref<1x64xf32, #tpu.memory_space<vmem>>, %arg5: memref<1x288x64xbf16, #tpu.memory_space<vmem>>) attributes {dimension_semantics = [#tpu.dimension_semantics<parallel>, #tpu.dimension_semantics<parallel>], iteration_bounds = array<i64: 2, 2>, scalar_prefetch = 0 : i64, scratch_operands = 0 : i64, tpu.core_type = #tpu.core_type<tc>, window_params = [{transform_indices = @transform_0, window_bounds = array<i64: 1, 288, 75>}, {pipeline_mode = #tpu.pipeline_mode<synchronous>, transform_indices = @transform_1, window_bounds = array<i64: 75, 64>}, {pipeline_mode = #tpu.pipeline_mode<synchronous>, transform_indices = @transform_2, window_bounds = array<i64: 1, 64>}, {transform_indices = @transform_3, window_bounds = array<i64: 1, 288, 64>}]} {
    %c0 = arith.constant 0 : index
    %c0_0 = arith.constant 0 : index
    %c0_1 = arith.constant 0 : index
    %0 = vector.load %arg2[%c0, %c0_0, %c0_1] : memref<1x288x75xbf16, #tpu.memory_space<vmem>>, vector<1x288x75xbf16>
    %1 = vector.shape_cast %0 : vector<1x288x75xbf16> to vector<288x75xbf16>
    %c0_2 = arith.constant 0 : index
    %c0_3 = arith.constant 0 : index
    %2 = vector.load %arg3[%c0_2, %c0_3] : memref<75x64xbf16, #tpu.memory_space<vmem>>, vector<75x64xbf16>
    %cst = arith.constant dense<0.000000e+00> : vector<288x64xf32>
    %3 = tpu.matmul %1, %2, %cst {dimension_numbers = #tpu.dot_dimension_numbers<[1], [0], [0], [1], [0, 0, 1, 1], [], []>} : vector<288x75xbf16>, vector<75x64xbf16>, vector<288x64xf32> -> vector<288x64xf32>
    %c0_4 = arith.constant 0 : index
    %c0_5 = arith.constant 0 : index
    %4 = vector.load %arg4[%c0_4, %c0_5] : memref<1x64xf32, #tpu.memory_space<vmem>>, vector<1x64xf32>
    %5 = vector.broadcast %4 : vector<1x64xf32> to vector<288x64xf32>
    %6 = arith.addf %3, %5 : vector<288x64xf32>
    %cst_6 = arith.constant 0.000000e+00 : f32
    %7 = vector.broadcast %cst_6 : f32 to vector<288x64xf32>
    %8 = arith.maximumf %6, %7 : vector<288x64xf32>
    %9 = arith.truncf %8 : vector<288x64xf32> to vector<288x64xbf16>
    %c0_7 = arith.constant 0 : index
    %c0_8 = arith.constant 0 : index
    %c0_9 = arith.constant 0 : index
    %10 = vector.load %arg5[%c0_7, %c0_8, %c0_9] : memref<1x288x64xbf16, #tpu.memory_space<vmem>>, vector<1x288x64xbf16>
    %11 = vector.shape_cast %10 : vector<1x288x64xbf16> to vector<288x64xbf16>
    %12 = vector.shape_cast %9 : vector<288x64xbf16> to vector<1x288x64xbf16>
    tpu.vector_store %arg5[%c0_7, %c0_8, %c0_9], %12 {strides = array<i32>} : memref<1x288x64xbf16, #tpu.memory_space<vmem>>, vector<1x288x64xbf16>,
    return
  }
  func.func @transform_0(%arg0: i32, %arg1: i32) -> (i32, i32, i32) {
    %c0_i32 = arith.constant 0 : i32
    %c0_i32_0 = arith.constant 0 : i32
    return %arg0, %arg1, %c0_i32 : i32, i32, i32
  }
  func.func @transform_1(%arg0: i32, %arg1: i32) -> (i32, i32) {
    %c0_i32 = arith.constant 0 : i32
    %c0_i32_0 = arith.constant 0 : i32
    %c0_i32_1 = arith.constant 0 : i32
    return %c0_i32, %c0_i32_0 : i32, i32
  }
  func.func @transform_2(%arg0: i32, %arg1: i32) -> (i32, i32) {
    %c0_i32 = arith.constant 0 : i32
    %c0_i32_0 = arith.constant 0 : i32
    %c0_i32_1 = arith.constant 0 : i32
    return %c0_i32, %c0_i32_0 : i32, i32
  }
  func.func @transform_3(%arg0: i32, %arg1: i32) -> (i32, i32, i32) {
    %c0_i32 = arith.constant 0 : i32
    %c0_i32_0 = arith.constant 0 : i32
    return %arg0, %arg1, %c0_i32 : i32, i32, i32
  }
}

module attributes {stable_mosaic.version = 11 : i64} {
  func.func @_maxpool9_kernel(%arg0: i32, %arg1: memref<9x144x128xbf16, #tpu.memory_space<vmem>>, %arg2: memref<144x128xbf16, #tpu.memory_space<vmem>>) attributes {dimension_semantics = [#tpu.dimension_semantics<parallel>], iteration_bounds = array<i64: 1>, scalar_prefetch = 0 : i64, scratch_operands = 0 : i64, tpu.core_type = #tpu.core_type<tc>, window_params = [{transform_indices = @transform_0, window_bounds = array<i64: 9, 144, 128>}, {transform_indices = @transform_1, window_bounds = array<i64: 144, 128>}]} {
    %c0 = arith.constant 0 : index
    %c0_0 = arith.constant 0 : index
    %c0_1 = arith.constant 0 : index
    %0 = vector.load %arg1[%c0, %c0_0, %c0_1] : memref<9x144x128xbf16, #tpu.memory_space<vmem>>, vector<9x144x128xbf16>
    %cst = arith.constant dense<0xFF80> : vector<144x128xbf16>
    %1 = vector.multi_reduction <maximumf>, %0, %cst [0] : vector<9x144x128xbf16> to vector<144x128xbf16>
    %c0_2 = arith.constant 0 : index
    %c0_3 = arith.constant 0 : index
    %2 = vector.load %arg2[%c0_2, %c0_3] : memref<144x128xbf16, #tpu.memory_space<vmem>>, vector<144x128xbf16>
    tpu.vector_store %arg2[%c0_2, %c0_3], %1 {strides = array<i32>} : memref<144x128xbf16, #tpu.memory_space<vmem>>, vector<144x128xbf16>,
    return
  }
  func.func @transform_0(%arg0: i32) -> (i32, i32, i32) {
    %c0_i32 = arith.constant 0 : i32
    %c0_i32_0 = arith.constant 0 : i32
    %c0_i32_1 = arith.constant 0 : i32
    return %c0_i32, %arg0, %c0_i32_0 : i32, i32, i32
  }
  func.func @transform_1(%arg0: i32) -> (i32, i32) {
    %c0_i32 = arith.constant 0 : i32
    %c0_i32_0 = arith.constant 0 : i32
    return %arg0, %c0_i32 : i32, i32
  }
}

module attributes {stable_mosaic.version = 11 : i64} {
  func.func @_matmul_bias_relu_kernel(%arg0: i32, %arg1: i32, %arg2: memref<1x144x1600xbf16, #tpu.memory_space<vmem>>, %arg3: memref<1600x64xbf16, #tpu.memory_space<vmem>>, %arg4: memref<1x64xf32, #tpu.memory_space<vmem>>, %arg5: memref<1x144x64xbf16, #tpu.memory_space<vmem>>) attributes {dimension_semantics = [#tpu.dimension_semantics<parallel>, #tpu.dimension_semantics<parallel>], iteration_bounds = array<i64: 2, 1>, scalar_prefetch = 0 : i64, scratch_operands = 0 : i64, tpu.core_type = #tpu.core_type<tc>, window_params = [{transform_indices = @transform_0, window_bounds = array<i64: 1, 144, 1600>}, {pipeline_mode = #tpu.pipeline_mode<synchronous>, transform_indices = @transform_1, window_bounds = array<i64: 1600, 64>}, {pipeline_mode = #tpu.pipeline_mode<synchronous>, transform_indices = @transform_2, window_bounds = array<i64: 1, 64>}, {transform_indices = @transform_3, window_bounds = array<i64: 1, 144, 64>}]} {
    %c0 = arith.constant 0 : index
    %c0_0 = arith.constant 0 : index
    %c0_1 = arith.constant 0 : index
    %0 = vector.load %arg2[%c0, %c0_0, %c0_1] : memref<1x144x1600xbf16, #tpu.memory_space<vmem>>, vector<1x144x1600xbf16>
    %1 = vector.shape_cast %0 : vector<1x144x1600xbf16> to vector<144x1600xbf16>
    %c0_2 = arith.constant 0 : index
    %c0_3 = arith.constant 0 : index
    %2 = vector.load %arg3[%c0_2, %c0_3] : memref<1600x64xbf16, #tpu.memory_space<vmem>>, vector<1600x64xbf16>
    %cst = arith.constant dense<0.000000e+00> : vector<144x64xf32>
    %3 = tpu.matmul %1, %2, %cst {dimension_numbers = #tpu.dot_dimension_numbers<[1], [0], [0], [1], [0, 0, 1, 1], [], []>} : vector<144x1600xbf16>, vector<1600x64xbf16>, vector<144x64xf32> -> vector<144x64xf32>
    %c0_4 = arith.constant 0 : index
    %c0_5 = arith.constant 0 : index
    %4 = vector.load %arg4[%c0_4, %c0_5] : memref<1x64xf32, #tpu.memory_space<vmem>>, vector<1x64xf32>
    %5 = vector.broadcast %4 : vector<1x64xf32> to vector<144x64xf32>
    %6 = arith.addf %3, %5 : vector<144x64xf32>
    %cst_6 = arith.constant 0.000000e+00 : f32
    %7 = vector.broadcast %cst_6 : f32 to vector<144x64xf32>
    %8 = arith.maximumf %6, %7 : vector<144x64xf32>
    %9 = arith.truncf %8 : vector<144x64xf32> to vector<144x64xbf16>
    %c0_7 = arith.constant 0 : index
    %c0_8 = arith.constant 0 : index
    %c0_9 = arith.constant 0 : index
    %10 = vector.load %arg5[%c0_7, %c0_8, %c0_9] : memref<1x144x64xbf16, #tpu.memory_space<vmem>>, vector<1x144x64xbf16>
    %11 = vector.shape_cast %10 : vector<1x144x64xbf16> to vector<144x64xbf16>
    %12 = vector.shape_cast %9 : vector<144x64xbf16> to vector<1x144x64xbf16>
    tpu.vector_store %arg5[%c0_7, %c0_8, %c0_9], %12 {strides = array<i32>} : memref<1x144x64xbf16, #tpu.memory_space<vmem>>, vector<1x144x64xbf16>,
    return
  }
  func.func @transform_0(%arg0: i32, %arg1: i32) -> (i32, i32, i32) {
    %c0_i32 = arith.constant 0 : i32
    %c0_i32_0 = arith.constant 0 : i32
    return %arg0, %arg1, %c0_i32 : i32, i32, i32
  }
  func.func @transform_1(%arg0: i32, %arg1: i32) -> (i32, i32) {
    %c0_i32 = arith.constant 0 : i32
    %c0_i32_0 = arith.constant 0 : i32
    %c0_i32_1 = arith.constant 0 : i32
    return %c0_i32, %c0_i32_0 : i32, i32
  }
  func.func @transform_2(%arg0: i32, %arg1: i32) -> (i32, i32) {
    %c0_i32 = arith.constant 0 : i32
    %c0_i32_0 = arith.constant 0 : i32
    %c0_i32_1 = arith.constant 0 : i32
    return %c0_i32, %c0_i32_0 : i32, i32
  }
  func.func @transform_3(%arg0: i32, %arg1: i32) -> (i32, i32, i32) {
    %c0_i32 = arith.constant 0 : i32
    %c0_i32_0 = arith.constant 0 : i32
    return %arg0, %arg1, %c0_i32 : i32, i32, i32
  }
}

module attributes {stable_mosaic.version = 11 : i64} {
  func.func @_maxpool9_kernel(%arg0: i32, %arg1: memref<9x36x128xbf16, #tpu.memory_space<vmem>>, %arg2: memref<36x128xbf16, #tpu.memory_space<vmem>>) attributes {dimension_semantics = [#tpu.dimension_semantics<parallel>], iteration_bounds = array<i64: 1>, scalar_prefetch = 0 : i64, scratch_operands = 0 : i64, tpu.core_type = #tpu.core_type<tc>, window_params = [{transform_indices = @transform_0, window_bounds = array<i64: 9, 36, 128>}, {transform_indices = @transform_1, window_bounds = array<i64: 36, 128>}]} {
    %c0 = arith.constant 0 : index
    %c0_0 = arith.constant 0 : index
    %c0_1 = arith.constant 0 : index
    %0 = vector.load %arg1[%c0, %c0_0, %c0_1] : memref<9x36x128xbf16, #tpu.memory_space<vmem>>, vector<9x36x128xbf16>
    %cst = arith.constant dense<0xFF80> : vector<36x128xbf16>
    %1 = vector.multi_reduction <maximumf>, %0, %cst [0] : vector<9x36x128xbf16> to vector<36x128xbf16>
    %c0_2 = arith.constant 0 : index
    %c0_3 = arith.constant 0 : index
    %2 = vector.load %arg2[%c0_2, %c0_3] : memref<36x128xbf16, #tpu.memory_space<vmem>>, vector<36x128xbf16>
    tpu.vector_store %arg2[%c0_2, %c0_3], %1 {strides = array<i32>} : memref<36x128xbf16, #tpu.memory_space<vmem>>, vector<36x128xbf16>,
    return
  }
  func.func @transform_0(%arg0: i32) -> (i32, i32, i32) {
    %c0_i32 = arith.constant 0 : i32
    %c0_i32_0 = arith.constant 0 : i32
    %c0_i32_1 = arith.constant 0 : i32
    return %c0_i32, %arg0, %c0_i32_0 : i32, i32, i32
  }
  func.func @transform_1(%arg0: i32) -> (i32, i32) {
    %c0_i32 = arith.constant 0 : i32
    %c0_i32_0 = arith.constant 0 : i32
    return %arg0, %c0_i32 : i32, i32
  }
}

module attributes {stable_mosaic.version = 11 : i64} {
  func.func @_fc_stack_kernel(%arg0: i32, %arg1: memref<2x2304xbf16, #tpu.memory_space<vmem>>, %arg2: memref<2304x384xbf16, #tpu.memory_space<vmem>>, %arg3: memref<1x384xf32, #tpu.memory_space<vmem>>, %arg4: memref<384x192xbf16, #tpu.memory_space<vmem>>, %arg5: memref<1x192xf32, #tpu.memory_space<vmem>>, %arg6: memref<192x10xbf16, #tpu.memory_space<vmem>>, %arg7: memref<1x10xf32, #tpu.memory_space<vmem>>, %arg8: memref<2x10xf32, #tpu.memory_space<vmem>>) attributes {dimension_semantics = [#tpu.dimension_semantics<parallel>], iteration_bounds = array<i64: 1>, scalar_prefetch = 0 : i64, scratch_operands = 0 : i64, tpu.core_type = #tpu.core_type<tc>, window_params = [{transform_indices = @transform_0, window_bounds = array<i64: 2, 2304>}, {pipeline_mode = #tpu.pipeline_mode<synchronous>, transform_indices = @transform_1, window_bounds = array<i64: 2304, 384>}, {pipeline_mode = #tpu.pipeline_mode<synchronous>, transform_indices = @transform_2, window_bounds = array<i64: 1, 384>}, {pipeline_mode = #tpu.pipeline_mode<synchronous>, transform_indices = @transform_3, window_bounds = array<i64: 384, 192>}, {pipeline_mode = #tpu.pipeline_mode<synchronous>, transform_indices = @transform_4, window_bounds = array<i64: 1, 192>}, {pipeline_mode = #tpu.pipeline_mode<synchronous>, transform_indices = @transform_5, window_bounds = array<i64: 192, 10>}, {pipeline_mode = #tpu.pipeline_mode<synchronous>, transform_indices = @transform_6, window_bounds = array<i64: 1, 10>}, {transform_indices = @transform_7, window_bounds = array<i64: 2, 10>}]} {
    %c0 = arith.constant 0 : index
    %c0_0 = arith.constant 0 : index
    %0 = vector.load %arg1[%c0, %c0_0] : memref<2x2304xbf16, #tpu.memory_space<vmem>>, vector<2x2304xbf16>
    %c0_1 = arith.constant 0 : index
    %c0_2 = arith.constant 0 : index
    %1 = vector.load %arg2[%c0_1, %c0_2] : memref<2304x384xbf16, #tpu.memory_space<vmem>>, vector<2304x384xbf16>
    %cst = arith.constant dense<0.000000e+00> : vector<2x384xf32>
    %2 = tpu.matmul %0, %1, %cst {dimension_numbers = #tpu.dot_dimension_numbers<[1], [0], [0], [1], [0, 0, 1, 1], [], []>} : vector<2x2304xbf16>, vector<2304x384xbf16>, vector<2x384xf32> -> vector<2x384xf32>
    %c0_3 = arith.constant 0 : index
    %c0_4 = arith.constant 0 : index
    %3 = vector.load %arg3[%c0_3, %c0_4] : memref<1x384xf32, #tpu.memory_space<vmem>>, vector<1x384xf32>
    %4 = vector.broadcast %3 : vector<1x384xf32> to vector<2x384xf32>
    %5 = arith.addf %2, %4 : vector<2x384xf32>
    %cst_5 = arith.constant 0.000000e+00 : f32
    %6 = vector.broadcast %cst_5 : f32 to vector<2x384xf32>
    %7 = arith.maximumf %5, %6 : vector<2x384xf32>
    %8 = arith.truncf %7 : vector<2x384xf32> to vector<2x384xbf16>
    %c0_6 = arith.constant 0 : index
    %c0_7 = arith.constant 0 : index
    %9 = vector.load %arg4[%c0_6, %c0_7] : memref<384x192xbf16, #tpu.memory_space<vmem>>, vector<384x192xbf16>
    %cst_8 = arith.constant dense<0.000000e+00> : vector<2x192xf32>
    %10 = tpu.matmul %8, %9, %cst_8 {dimension_numbers = #tpu.dot_dimension_numbers<[1], [0], [0], [1], [0, 0, 1, 1], [], []>} : vector<2x384xbf16>, vector<384x192xbf16>, vector<2x192xf32> -> vector<2x192xf32>
    %c0_9 = arith.constant 0 : index
    %c0_10 = arith.constant 0 : index
    %11 = vector.load %arg5[%c0_9, %c0_10] : memref<1x192xf32, #tpu.memory_space<vmem>>, vector<1x192xf32>
    %12 = vector.broadcast %11 : vector<1x192xf32> to vector<2x192xf32>
    %13 = arith.addf %10, %12 : vector<2x192xf32>
    %cst_11 = arith.constant 0.000000e+00 : f32
    %14 = vector.broadcast %cst_11 : f32 to vector<2x192xf32>
    %15 = arith.maximumf %13, %14 : vector<2x192xf32>
    %16 = arith.truncf %15 : vector<2x192xf32> to vector<2x192xbf16>
    %c0_12 = arith.constant 0 : index
    %c0_13 = arith.constant 0 : index
    %17 = vector.load %arg6[%c0_12, %c0_13] : memref<192x10xbf16, #tpu.memory_space<vmem>>, vector<192x10xbf16>
    %cst_14 = arith.constant dense<0.000000e+00> : vector<2x10xf32>
    %18 = tpu.matmul %16, %17, %cst_14 {dimension_numbers = #tpu.dot_dimension_numbers<[1], [0], [0], [1], [0, 0, 1, 1], [], []>} : vector<2x192xbf16>, vector<192x10xbf16>, vector<2x10xf32> -> vector<2x10xf32>
    %c0_15 = arith.constant 0 : index
    %c0_16 = arith.constant 0 : index
    %19 = vector.load %arg7[%c0_15, %c0_16] : memref<1x10xf32, #tpu.memory_space<vmem>>, vector<1x10xf32>
    %20 = vector.broadcast %19 : vector<1x10xf32> to vector<2x10xf32>
    %21 = arith.addf %18, %20 : vector<2x10xf32>
    %c0_17 = arith.constant 0 : index
    %c0_18 = arith.constant 0 : index
    %22 = vector.load %arg8[%c0_17, %c0_18] : memref<2x10xf32, #tpu.memory_space<vmem>>, vector<2x10xf32>
    tpu.vector_store %arg8[%c0_17, %c0_18], %21 {strides = array<i32>} : memref<2x10xf32, #tpu.memory_space<vmem>>, vector<2x10xf32>,
    return
  }
  func.func @transform_0(%arg0: i32) -> (i32, i32) {
    %c0_i32 = arith.constant 0 : i32
    %c0_i32_0 = arith.constant 0 : i32
    return %arg0, %c0_i32 : i32, i32
  }
  func.func @transform_1(%arg0: i32) -> (i32, i32) {
    %c0_i32 = arith.constant 0 : i32
    %c0_i32_0 = arith.constant 0 : i32
    %c0_i32_1 = arith.constant 0 : i32
    return %c0_i32, %c0_i32_0 : i32, i32
  }
  func.func @transform_2(%arg0: i32) -> (i32, i32) {
    %c0_i32 = arith.constant 0 : i32
    %c0_i32_0 = arith.constant 0 : i32
    %c0_i32_1 = arith.constant 0 : i32
    return %c0_i32, %c0_i32_0 : i32, i32
  }
  func.func @transform_3(%arg0: i32) -> (i32, i32) {
    %c0_i32 = arith.constant 0 : i32
    %c0_i32_0 = arith.constant 0 : i32
    %c0_i32_1 = arith.constant 0 : i32
    return %c0_i32, %c0_i32_0 : i32, i32
  }
  func.func @transform_4(%arg0: i32) -> (i32, i32) {
    %c0_i32 = arith.constant 0 : i32
    %c0_i32_0 = arith.constant 0 : i32
    %c0_i32_1 = arith.constant 0 : i32
    return %c0_i32, %c0_i32_0 : i32, i32
  }
  func.func @transform_5(%arg0: i32) -> (i32, i32) {
    %c0_i32 = arith.constant 0 : i32
    %c0_i32_0 = arith.constant 0 : i32
    %c0_i32_1 = arith.constant 0 : i32
    return %c0_i32, %c0_i32_0 : i32, i32
  }
  func.func @transform_6(%arg0: i32) -> (i32, i32) {
    %c0_i32 = arith.constant 0 : i32
    %c0_i32_0 = arith.constant 0 : i32
    %c0_i32_1 = arith.constant 0 : i32
    return %c0_i32, %c0_i32_0 : i32, i32
  }
  func.func @transform_7(%arg0: i32) -> (i32, i32) {
    %c0_i32 = arith.constant 0 : i32
    %c0_i32_0 = arith.constant 0 : i32
    return %arg0, %c0_i32 : i32, i32
  }
}

</mosaic_0001>

<llo_original>
// kernel: cifar10_forward.5
$region0: #{cifar10_forward.5}
  #allocation0 [shape = 'u32[]', space=smem, size = 0x4, offset = 0x4, fixed_abs, tag = 'smem constant byte address 0x4 - core index']
  #allocation1 [shape = 'u32[144,128]{1,0:T(1,128)}', space=vmem, size = 0x12000, scoped, tag = 'internal scratch']
  %s0 = inlined_call_operand.vmem [shape: bf16[2,576,75], index: 0, kind: input, shape index: {}]
  %s1 = inlined_call_operand.vmem [shape: bf16[75,64], index: 1, kind: input, shape index: {}]
  %s2 = inlined_call_operand.vmem [shape: f32[1,64], index: 2, kind: input, shape index: {}]
  %s3 = inlined_call_operand.vmem [shape: bf16[2,576,64], index: 3, kind: output, shape index: {}]
  %s4 = sld [smem:[#allocation0]]
  $region45: #{cifar10_forward.5} parent=0
    _
  %s6 = ssub.s32 1, %s4
  %s7 = scalar_select 0, %s6, %s4
  loop: start=0, step=1, limit=6
  $region2: #{cifar10_forward.5} parent=0 // loop_pre_header
    _
  $region3: #{cifar10_forward.5} parent=0 // loop_header
    %s9 = sphi 0, %s13
    %p10 = scmp.ge.s32.totalorder %s9, 6
    %s16 = sphi 0, %s28
    %s17 = sphi 0, %s24
    %s18 = sphi 0, %s16
    %s19 = sphi 0, %s17
    %s20 = sphi 0, %s18
    %s21 = sphi 0, %s19
    %s33 = sphi 0, %s35
    %s36 = sphi 0, %s33
    %s37 = sphi 0, %s36
    %s53 = sphi 0, %s37
    %s57 = sphi 0, %s57
    %s59 = sphi 0, %s57
    %s60 = sphi 0, %s59
    %s74 = sphi 0, %s60
    %s78 = sphi 0, %s78
    %s80 = sphi 0, %s78
    %s81 = sphi 0, %s80
    %s95 = sphi 0, %s81
    %s103 = sphi 0, %s105
    %s106 = sphi 0, %s103
    %s107 = sphi 0, %s106
    %s123 = sphi 0, %s107
  $region4: #{cifar10_forward.5} parent=0 // loop_header_branch
    %12 = sbr.rel (%p10) target = $region8
  $region5: #{cifar10_forward.5} parent=0 // loop_body
    %s14 = ssub.s32 %s9, 1
    %s15 = ssub.s32 %s9, 2
    %s22 = sadd.s32 1, %s17
    %p23 = scmp.ge.s32.totalorder %s22, 2
    %s24 = scalar_select %p23, 0, %s22
    %s25 = sadd.s32 1, %s16
    %s26 = scalar_select %p23, %s25, %s16
    %p27 = scmp.ge.s32.totalorder %s26, 2
    %s28 = scalar_select %p27, 0, %s26
    %s29 = ssub.s32 %s16, %s28
    %s30 = ssub.s32 %s17, %s24
    %s31 = sor.u32 %s29, %s30
    %p32 = scmp.eq.s32.totalorder %s31, 0
    %s34 = sadd.s32 %s33, 1
    %s35 = scalar_select %p32, %s33, %s34
    %p38 = pneg %p32
    %p39 = scmp.eq.s32.totalorder %s9, 3
    %p40 = por %p38, %p39
    %p41 = scmp.ne.s32.totalorder %s33, %s36
    %p42 = scmp.eq.s32.totalorder %s9, 0
    %p43 = por %p41, %p42
    %p44 = scmp.ne.s32.totalorder %s33, %s36
    %p45 = scmp.eq.s32.totalorder %s14, 3
    %p46 = por %p44, %p45
    %p47 = scmp.ne.s32.totalorder %s36, %s37
    %p48 = scmp.eq.s32.totalorder %s14, 0
    %p49 = por %p47, %p48
    %p50 = scmp.ne.s32.totalorder %s36, %s37
    %p51 = scmp.eq.s32.totalorder %s15, 3
    %p52 = por %p50, %p51
    %p54 = scmp.ne.s32.totalorder %s37, %s53
    %p55 = scmp.eq.s32.totalorder %s15, 0
    %p56 = por %p54, %p55
    %s58 = sadd.s32 %s57, 1
    %p61 = scmp.eq.s32.totalorder %s9, 3
    %p62 = scmp.ne.s32.totalorder %s57, %s59
    %p63 = scmp.eq.s32.totalorder %s9, 0
    %p64 = por %p62, %p63
    %p65 = scmp.ne.s32.totalorder %s57, %s59
    %p66 = scmp.eq.s32.totalorder %s14, 3
    %p67 = por %p65, %p66
    %p68 = scmp.ne.s32.totalorder %s59, %s60
    %p69 = scmp.eq.s32.totalorder %s14, 0
    %p70 = por %p68, %p69
    %p71 = scmp.ne.s32.totalorder %s59, %s60
    %p72 = scmp.eq.s32.totalorder %s15, 3
    %p73 = por %p71, %p72
    %p75 = scmp.ne.s32.totalorder %s60, %s74
    %p76 = scmp.eq.s32.totalorder %s15, 0
    %p77 = por %p75, %p76
    %s79 = sadd.s32 %s78, 1
    %p82 = scmp.eq.s32.totalorder %s9, 3
    %p83 = scmp.ne.s32.totalorder %s78, %s80
    %p84 = scmp.eq.s32.totalorder %s9, 0
    %p85 = por %p83, %p84
    %p86 = scmp.ne.s32.totalorder %s78, %s80
    %p87 = scmp.eq.s32.totalorder %s14, 3
    %p88 = por %p86, %p87
    %p89 = scmp.ne.s32.totalorder %s80, %s81
    %p90 = scmp.eq.s32.totalorder %s14, 0
    %p91 = por %p89, %p90
    %p92 = scmp.ne.s32.totalorder %s80, %s81
    %p93 = scmp.eq.s32.totalorder %s15, 3
    %p94 = por %p92, %p93
    %p96 = scmp.ne.s32.totalorder %s81, %s95
    %p97 = scmp.eq.s32.totalorder %s15, 0
    %p98 = por %p96, %p97
    %s99 = ssub.s32 %s16, %s28
    %s100 = ssub.s32 %s17, %s24
    %s101 = sor.u32 %s99, %s100
    %p102 = scmp.eq.s32.totalorder %s101, 0
    %s104 = sadd.s32 %s103, 1
    %s105 = scalar_select %p102, %s103, %s104
    %p108 = pneg %p102
    %p109 = scmp.eq.s32.totalorder %s9, 3
    %p110 = por %p108, %p109
    %p111 = scmp.ne.s32.totalorder %s103, %s106
    %p112 = scmp.eq.s32.totalorder %s9, 0
    %p113 = por %p111, %p112
    %p114 = scmp.ne.s32.totalorder %s103, %s106
    %p115 = scmp.eq.s32.totalorder %s14, 3
    %p116 = por %p114, %p115
    %p117 = scmp.ne.s32.totalorder %s106, %s107
    %p118 = scmp.eq.s32.totalorder %s14, 0
    %p119 = por %p117, %p118
    %p120 = scmp.ne.s32.totalorder %s106, %s107
    %p121 = scmp.eq.s32.totalorder %s15, 3
    %p122 = por %p120, %p121
    %p124 = scmp.ne.s32.totalorder %s107, %s123
    %p125 = scmp.eq.s32.totalorder %s15, 0
    %p126 = por %p124, %p125
    %p127 = scmp.le.s32.totalorder 1, %s9
    %p128 = scmp.lt.s32.totalorder %s9, 5
    %p129 = pnand %p127, %p128
    %p130 = pneg %p129
    // Predicated region
    $region9: #{cifar10_forward.5} parent=5 // pred_check
      _
    $region10: #{cifar10_forward.5} parent=5 // pred_check_branch
      %132 = sbr.rel (%p129) target = $region12
    $region11: #{cifar10_forward.5} parent=5 // pred_region
      %s133 = ssub.s32 %s9, 1
      // Predicated region
      $region13: #{cifar10_forward.5} parent=11 // pred_check
        %p134 = pneg %p70
      $region14: #{cifar10_forward.5} parent=11 // pred_check_branch
        %136 = sbr.rel (%p134) target = $region16
      $region15: #{cifar10_forward.5} parent=11 // pred_region
        _
      $region16: #{cifar10_forward.5} parent=11 // pred_fallthru
        _
      // Predicated region
      $region17: #{cifar10_forward.5} parent=11 // pred_check
        %p137 = pneg %p91
      $region18: #{cifar10_forward.5} parent=11 // pred_check_branch
        %139 = sbr.rel (%p137) target = $region20
      $region19: #{cifar10_forward.5} parent=11 // pred_region
        _
      $region20: #{cifar10_forward.5} parent=11 // pred_fallthru
        _
    $region12: #{cifar10_forward.5} parent=5 // pred_fallthru
      _
    %p140 = scmp.lt.s32.totalorder %s9, 4
    // Predicated region
    $region21: #{cifar10_forward.5} parent=5 // pred_check
      %p141 = pneg %p140
    $region22: #{cifar10_forward.5} parent=5 // pred_check_branch
      %143 = sbr.rel (%p141) target = $region24
    $region23: #{cifar10_forward.5} parent=5 // pred_region
      // Predicated region
      $region25: #{cifar10_forward.5} parent=23 // pred_check
        %p144 = pneg %p43
      $region26: #{cifar10_forward.5} parent=23 // pred_check_branch
        %146 = sbr.rel (%p144) target = $region28
      $region27: #{cifar10_forward.5} parent=23 // pred_region
        %s147 = smul.u32 36, %s17
        %p148 = scmp.lt.s32.totalorder %s16, 1
        %s149 = scalar_select %p148, %s16, 1
        %p150 = scmp.lt.s32.totalorder %s147, 71
        %s151 = scalar_select %p150, %s147, 71
        %s152 = smul.addr %s149, 72
        %s153 = sadd.s32 %s151, %s152
        %s154 = smul.addr %s153, 4
        %s155 = scalar_lea.vmem %s0, %s154
        %s156 = smul.u32 36, %s17
      $region28: #{cifar10_forward.5} parent=23 // pred_fallthru
        _
    $region24: #{cifar10_forward.5} parent=5 // pred_fallthru
      _
    %p157 = scmp.le.s32.totalorder 1, %s9
    %p158 = scmp.lt.s32.totalorder %s9, 5
    %p159 = pnand %p157, %p158
    %p160 = pneg %p159
    // Predicated region
    $region29: #{cifar10_forward.5} parent=5 // pred_check
      _
    $region30: #{cifar10_forward.5} parent=5 // pred_check_branch
      %162 = sbr.rel (%p159) target = $region32
    $region31: #{cifar10_forward.5} parent=5 // pred_region
      %s163 = ssub.s32 %s9, 1
      %s164 = smul.u32 36, %s19
      %p165 = scmp.lt.s32.totalorder %s18, 1
      %s166 = scalar_select %p165, %s18, 1
      %p167 = scmp.lt.s32.totalorder %s164, 71
      %s168 = scalar_select %p167, %s164, 71
      %s169 = smul.addr %s166, 72
      %s170 = sadd.s32 %s168, %s169
      %s171 = smul.addr %s170, 4
      %s172 = scalar_lea.vmem %s0, %s171
      %p173 = pneg %p49
      %p174 = pneg %p46
      %p175 = pneg %p70
      %p176 = pneg %p67
      %p177 = pneg %p91
      %p178 = pneg %p88
      %p179 = pneg %p119
      %p180 = pneg %p116
      %s181 = smul.u32 36, %s19
      %p182 = scmp.lt.s32.totalorder %s18, 1
      %s183 = scalar_select %p182, %s18, 1
      %p184 = scmp.lt.s32.totalorder %s181, 71
      %s185 = scalar_select %p184, %s181, 71
      %s186 = smul.addr %s183, 72
      %s187 = sadd.s32 %s185, %s186
      %s188 = smul.addr %s187, 4
      %s189 = scalar_lea.vmem %s3, %s188
      %s190 = smul.u32 36, %s19
      %p191 = scmp.lt.s32.totalorder %s18, 1
      %s192 = scalar_select %p191, %s18, 1
      %p193 = scmp.lt.s32.totalorder %s190, 71
      %s194 = scalar_select %p193, %s190, 71
      %s195 = smul.addr %s192, 72
      %s196 = sadd.s32 %s194, %s195
      %s197 = smul.addr %s196, 4
      %s198 = scalar_lea.vmem %s0, %s197
      %s199 = smul.u32 36, %s19
      %s200 = smul.u32 36, %s19
      %p201 = scmp.lt.s32.totalorder %s18, 1
      %s202 = scalar_select %p201, %s18, 1
      %p203 = scmp.lt.s32.totalorder %s200, 71
      %s204 = scalar_select %p203, %s200, 71
      %s205 = smul.addr %s202, 72
      %s206 = sadd.s32 %s204, %s205
      %s207 = smul.addr %s206, 4
      %s208 = scalar_lea.vmem %s3, %s207
      %s209 = smul.u32 36, %s19
      %v211 = vld [vmem:[%s198] sm:$0xf]
      %v212 = vld [vmem:[%s198 + $0x4] sm:$0xf]
      %v213 = vld [vmem:[%s198 + $0x8] sm:$0xf]
      %v214 = vld [vmem:[%s198 + $0xc] sm:$0xf]
      %v215 = vld [vmem:[%s198 + $0x10] sm:$0xf]
      %v216 = vld [vmem:[%s198 + $0x14] sm:$0xf]
      %v217 = vld [vmem:[%s198 + $0x18] sm:$0xf]
      %v218 = vld [vmem:[%s198 + $0x1c] sm:$0xf]
      %v219 = vld [vmem:[%s198 + $0x20] sm:$0xf]
      %v220 = vld [vmem:[%s198 + $0x24] sm:$0xf]
      %v221 = vld [vmem:[%s198 + $0x28] sm:$0xf]
      %v222 = vld [vmem:[%s198 + $0x2c] sm:$0xf]
      %v223 = vld [vmem:[%s198 + $0x30] sm:$0xf]
      %v224 = vld [vmem:[%s198 + $0x34] sm:$0xf]
      %v225 = vld [vmem:[%s198 + $0x38] sm:$0xf]
      %v226 = vld [vmem:[%s198 + $0x3c] sm:$0xf]
      %v227 = vld [vmem:[%s198 + $0x40] sm:$0xf]
      %v228 = vld [vmem:[%s198 + $0x44] sm:$0xf]
      %v229 = vld [vmem:[%s198 + $0x48] sm:$0xf]
      %v230 = vld [vmem:[%s198 + $0x4c] sm:$0xf]
      %v231 = vld [vmem:[%s198 + $0x50] sm:$0xf]
      %v232 = vld [vmem:[%s198 + $0x54] sm:$0xf]
      %v233 = vld [vmem:[%s198 + $0x58] sm:$0xf]
      %v234 = vld [vmem:[%s198 + $0x5c] sm:$0xf]
      %v235 = vld [vmem:[%s198 + $0x60] sm:$0xf]
      %v236 = vld [vmem:[%s198 + $0x64] sm:$0xf]
      %v237 = vld [vmem:[%s198 + $0x68] sm:$0xf]
      %v238 = vld [vmem:[%s198 + $0x6c] sm:$0xf]
      %v239 = vld [vmem:[%s198 + $0x70] sm:$0xf]
      %v240 = vld [vmem:[%s198 + $0x74] sm:$0xf]
      %v241 = vld [vmem:[%s198 + $0x78] sm:$0xf]
      %v242 = vld [vmem:[%s198 + $0x7c] sm:$0xf]
      %v243 = vld [vmem:[%s198 + $0x80] sm:$0xf]
      %v244 = vld [vmem:[%s198 + $0x84] sm:$0xf]
      %v245 = vld [vmem:[%s198 + $0x88] sm:$0xf]
      %v246 = vld [vmem:[%s198 + $0x8c] sm:$0xf]
      %v247 = vld [vmem:[%s1] sm:$0xf]
      %v248 = vld [vmem:[%s1 + $0x4] sm:$0xf]
      %v249 = vld [vmem:[%s1 + $0x8] sm:$0xf]
      %v250 = vld [vmem:[%s1 + $0xc] sm:$0xf]
      %v251 = vld [vmem:[%s1 + $0x10] sm:$0xf]
      %v252 = vld [vmem:[%s1 + $0x14] sm:$0xf]
      %v253 = vld [vmem:[%s1 + $0x18] sm:$0xf]
      %v254 = vld [vmem:[%s1 + $0x1c] sm:$0xf]
      %v255 = vld [vmem:[%s1 + $0x20] sm:$0xf]
      %v256 = vld [vmem:[%s1 + $0x24] sm:$0x3]
      %v257 = vld [vmem:[%s2] sm:$0x1]
      %v259 = vlaneseq
      %v260 = vshrl.u32 %v259, 7
      %v261 = vsub.s32 0, %v260
      %v262 = vrot.slane %v257, %v261
      %v300 = vunpack.c.l.b16 %v211
      %v301 = vunpack.c.l.b16 %v212
      %v302 = vunpack.c.l.b16 %v213
      %v303 = vunpack.c.l.b16 %v214
      %v304 = vunpack.c.l.b16 %v215
      %v305 = vunpack.c.l.b16 %v216
      %v306 = vunpack.c.l.b16 %v217
      %v307 = vunpack.c.l.b16 %v218
      %v308 = vunpack.c.l.b16 %v219
      %v309 = vunpack.c.l.b16 %v220
      %v310 = vunpack.c.l.b16 %v221
      %v311 = vunpack.c.l.b16 %v222
      %v312 = vunpack.c.l.b16 %v223
      %v313 = vunpack.c.l.b16 %v224
      %v314 = vunpack.c.l.b16 %v225
      %v315 = vunpack.c.l.b16 %v226
      %v316 = vunpack.c.l.b16 %v227
      %v317 = vunpack.c.l.b16 %v228
      %v318 = vunpack.c.l.b16 %v229
      %v319 = vunpack.c.l.b16 %v230
      %v320 = vunpack.c.l.b16 %v231
      %v321 = vunpack.c.l.b16 %v232
      %v322 = vunpack.c.l.b16 %v233
      %v323 = vunpack.c.l.b16 %v234
      %v324 = vunpack.c.l.b16 %v235
      %v325 = vunpack.c.l.b16 %v236
      %v326 = vunpack.c.l.b16 %v237
      %v327 = vunpack.c.l.b16 %v238
      %v328 = vunpack.c.l.b16 %v239
      %v329 = vunpack.c.l.b16 %v240
      %v330 = vunpack.c.l.b16 %v241
      %v331 = vunpack.c.l.b16 %v242
      %v332 = vunpack.c.l.b16 %v243
      %v333 = vunpack.c.l.b16 %v244
      %v334 = vunpack.c.l.b16 %v245
      %v335 = vunpack.c.l.b16 %v246
      %v336 = vpack.c.b16 %v301, %v300
      %v337 = vpack.c.b16 %v303, %v302
      %v338 = vpack.c.b16 %v305, %v304
      %v339 = vpack.c.b16 %v307, %v306
      %v340 = vpack.c.b16 %v309, %v308
      %v341 = vpack.c.b16 %v311, %v310
      %v342 = vpack.c.b16 %v313, %v312
      %v343 = vpack.c.b16 %v315, %v314
      %v344 = vpack.c.b16 %v317, %v316
      %v345 = vpack.c.b16 %v319, %v318
      %v346 = vpack.c.b16 %v321, %v320
      %v347 = vpack.c.b16 %v323, %v322
      %v348 = vpack.c.b16 %v325, %v324
      %v349 = vpack.c.b16 %v327, %v326
      %v350 = vpack.c.b16 %v329, %v328
      %v351 = vpack.c.b16 %v331, %v330
      %v352 = vpack.c.b16 %v333, %v332
      %v353 = vpack.c.b16 %v335, %v334
      %v364 = vunpack.c.l.b16 %v247
      %v365 = vunpack.c.l.b16 %v248
      %v366 = vunpack.c.l.b16 %v249
      %v367 = vunpack.c.l.b16 %v250
      %v368 = vunpack.c.l.b16 %v251
      %v369 = vunpack.c.l.b16 %v252
      %v370 = vunpack.c.l.b16 %v253
      %v371 = vunpack.c.l.b16 %v254
      %v372 = vunpack.c.l.b16 %v255
      %v373 = vunpack.c.l.b16 %v256
      %v374 = vpack.c.b16 %v365, %v364
      %v375 = vpack.c.b16 %v367, %v366
      %v376 = vpack.c.b16 %v369, %v368
      %v377 = vpack.c.b16 %v371, %v370
      %v378 = vpack.c.b16 %v373, %v372
      %vm383 = vcmask 613376
      %v385 = vsel %vm383, %v336, 0
      %v388 = vsel %vm383, %v337, 0
      %v391 = vsel %vm383, %v338, 0
      %v394 = vsel %vm383, %v339, 0
      %v397 = vsel %vm383, %v340, 0
      %v400 = vsel %vm383, %v341, 0
      %v403 = vsel %vm383, %v342, 0
      %v406 = vsel %vm383, %v343, 0
      %v409 = vsel %vm383, %v344, 0
      %v412 = vsel %vm383, %v345, 0
      %v415 = vsel %vm383, %v346, 0
      %v418 = vsel %vm383, %v347, 0
      %v421 = vsel %vm383, %v348, 0
      %v424 = vsel %vm383, %v349, 0
      %v427 = vsel %vm383, %v350, 0
      %v430 = vsel %vm383, %v351, 0
      %v433 = vsel %vm383, %v352, 0
      %v436 = vsel %vm383, %v353, 0
      %vm438 = vcmask 1044480
      %vm439 = vcmask 1045504
      %v440 = vsel %vm438, 4294967295, 65535
      %v441 = vsel %vm439, %v440, 0
      %v443 = vand.u32 %v378, %v441
      %445 = vmatprep.subr.bf16.mxu0 0
      %446 = vmatpush1.bf16.msra.mxu0 %v374
      %447 = vmatprep.subr.bf16.mxu0 0
      %448 = vmatpush1.bf16.msra.mxu0 %v375
      %449 = vmatprep.subr.bf16.mxu0 0
      %450 = vmatpush1.bf16.msra.mxu0 %v376
      %451 = vmatprep.subr.bf16.mxu0 0
      %452 = vmatpush1.bf16.msra.mxu0 %v377
      %453 = vmatprep.subr.bf16.mxu0 0
      %454 = vmatpush1.bf16.msra.mxu0 %v443
      %455 = vmatprep.subr.bf16.mxu0 0
      %456 = vmatpush1.bf16.msra.mxu0 0
      %457 = vmatprep.subr.bf16.mxu0 0
      %458 = vmatpush1.bf16.msra.mxu0 0
      %459 = vmatprep.subr.bf16.mxu0 0
      %460 = vmatpush1.bf16.msra.mxu0 0
      %461 = vmatprep.subr.bf16.mxu0 0
      %462 = vmatpush1.bf16.msra.mxu0 0
      %463 = vmatprep.subr.bf16.mxu0 0
      %464 = vmatpush1.bf16.msra.mxu0 0
      %465 = vmatprep.subr.bf16.mxu0 0
      %466 = vmatpush1.bf16.msra.mxu0 0
      %467 = vmatprep.subr.bf16.mxu0 0
      %468 = vmatpush1.bf16.msra.mxu0 0
      %469 = vmatprep.subr.bf16.mxu0 0
      %470 = vmatpush1.bf16.msra.mxu0 0
      %471 = vmatprep.subr.bf16.mxu0 0
      %472 = vmatpush1.bf16.msra.mxu0 0
      %473 = vmatprep.subr.bf16.mxu0 0
      %474 = vmatpush1.bf16.msra.mxu0 0
      %475 = vmatprep.subr.bf16.mxu0 0
      %476 = vmatpush1.bf16.msra.mxu0 0
      %477 = vmatprep.mubr.bf16.mxu0 0
      %478 = vmatmul.mubr.bf16.gmra.mrb[0].mxu0 %v385
      %v479 = vpop.f32.mrb[0].mxu0
      %v480 = vadd.f32 %v262, %v479
      %v481 = vpop.f32.mrb[0].mxu0
      %v482 = vpop.f32.mrb[0].mxu0
      %v483 = vadd.f32 %v262, %v482
      %v484 = vpop.f32.mrb[0].mxu0
      %485 = vmatprep.mubr.bf16.mxu0 0
      %486 = vmatmul.mubr.bf16.gmra.mrb[0].mxu0 %v388
      %v487 = vpop.f32.mrb[0].mxu0
      %v488 = vadd.f32 %v262, %v487
      %v489 = vpop.f32.mrb[0].mxu0
      %v490 = vpop.f32.mrb[0].mxu0
      %v491 = vadd.f32 %v262, %v490
      %v492 = vpop.f32.mrb[0].mxu0
      %493 = vmatprep.mubr.bf16.mxu0 0
      %494 = vmatmul.mubr.bf16.gmra.mrb[0].mxu0 %v391
      %v495 = vpop.f32.mrb[0].mxu0
      %v496 = vadd.f32 %v262, %v495
      %v497 = vpop.f32.mrb[0].mxu0
      %v498 = vpop.f32.mrb[0].mxu0
      %v499 = vadd.f32 %v262, %v498
      %v500 = vpop.f32.mrb[0].mxu0
      %501 = vmatprep.mubr.bf16.mxu0 0
      %502 = vmatmul.mubr.bf16.gmra.mrb[0].mxu0 %v394
      %v503 = vpop.f32.mrb[0].mxu0
      %v504 = vadd.f32 %v262, %v503
      %v505 = vpop.f32.mrb[0].mxu0
      %v506 = vpop.f32.mrb[0].mxu0
      %v507 = vadd.f32 %v262, %v506
      %v508 = vpop.f32.mrb[0].mxu0
      %509 = vmatprep.mubr.bf16.mxu0 0
      %510 = vmatmul.mubr.bf16.gmra.mrb[0].mxu0 %v397
      %v511 = vpop.f32.mrb[0].mxu0
      %v512 = vadd.f32 %v262, %v511
      %v513 = vpop.f32.mrb[0].mxu0
      %v514 = vpop.f32.mrb[0].mxu0
      %v515 = vadd.f32 %v262, %v514
      %v516 = vpop.f32.mrb[0].mxu0
      %517 = vmatprep.mubr.bf16.mxu0 0
      %518 = vmatmul.mubr.bf16.gmra.mrb[0].mxu0 %v400
      %v519 = vpop.f32.mrb[0].mxu0
      %v520 = vadd.f32 %v262, %v519
      %v521 = vpop.f32.mrb[0].mxu0
      %v522 = vpop.f32.mrb[0].mxu0
      %v523 = vadd.f32 %v262, %v522
      %v524 = vpop.f32.mrb[0].mxu0
      %525 = vmatprep.mubr.bf16.mxu0 0
      %526 = vmatmul.mubr.bf16.gmra.mrb[0].mxu0 %v403
      %v527 = vpop.f32.mrb[0].mxu0
      %v528 = vadd.f32 %v262, %v527
      %v529 = vpop.f32.mrb[0].mxu0
      %v530 = vpop.f32.mrb[0].mxu0
      %v531 = vadd.f32 %v262, %v530
      %v532 = vpop.f32.mrb[0].mxu0
      %533 = vmatprep.mubr.bf16.mxu0 0
      %534 = vmatmul.mubr.bf16.gmra.mrb[0].mxu0 %v406
      %v535 = vpop.f32.mrb[0].mxu0
      %v536 = vadd.f32 %v262, %v535
      %v537 = vpop.f32.mrb[0].mxu0
      %v538 = vpop.f32.mrb[0].mxu0
      %v539 = vadd.f32 %v262, %v538
      %v540 = vpop.f32.mrb[0].mxu0
      %541 = vmatprep.mubr.bf16.mxu0 0
      %542 = vmatmul.mubr.bf16.gmra.mrb[0].mxu0 %v409
      %v543 = vpop.f32.mrb[0].mxu0
      %v544 = vadd.f32 %v262, %v543
      %v545 = vpop.f32.mrb[0].mxu0
      %v546 = vpop.f32.mrb[0].mxu0
      %v547 = vadd.f32 %v262, %v546
      %v548 = vpop.f32.mrb[0].mxu0
      %549 = vmatprep.mubr.bf16.mxu0 0
      %550 = vmatmul.mubr.bf16.gmra.mrb[0].mxu0 %v412
      %v551 = vpop.f32.mrb[0].mxu0
      %v552 = vadd.f32 %v262, %v551
      %v553 = vpop.f32.mrb[0].mxu0
      %v554 = vpop.f32.mrb[0].mxu0
      %v555 = vadd.f32 %v262, %v554
      %v556 = vpop.f32.mrb[0].mxu0
      %557 = vmatprep.mubr.bf16.mxu0 0
      %558 = vmatmul.mubr.bf16.gmra.mrb[0].mxu0 %v415
      %v559 = vpop.f32.mrb[0].mxu0
      %v560 = vadd.f32 %v262, %v559
      %v561 = vpop.f32.mrb[0].mxu0
      %v562 = vpop.f32.mrb[0].mxu0
      %v563 = vadd.f32 %v262, %v562
      %v564 = vpop.f32.mrb[0].mxu0
      %565 = vmatprep.mubr.bf16.mxu0 0
      %566 = vmatmul.mubr.bf16.gmra.mrb[0].mxu0 %v418
      %v567 = vpop.f32.mrb[0].mxu0
      %v568 = vadd.f32 %v262, %v567
      %v569 = vpop.f32.mrb[0].mxu0
      %v570 = vpop.f32.mrb[0].mxu0
      %v571 = vadd.f32 %v262, %v570
      %v572 = vpop.f32.mrb[0].mxu0
      %573 = vmatprep.mubr.bf16.mxu0 0
      %574 = vmatmul.mubr.bf16.gmra.mrb[0].mxu0 %v421
      %v575 = vpop.f32.mrb[0].mxu0
      %v576 = vadd.f32 %v262, %v575
      %v577 = vpop.f32.mrb[0].mxu0
      %v578 = vpop.f32.mrb[0].mxu0
      %v579 = vadd.f32 %v262, %v578
      %v580 = vpop.f32.mrb[0].mxu0
      %581 = vmatprep.mubr.bf16.mxu0 0
      %582 = vmatmul.mubr.bf16.gmra.mrb[0].mxu0 %v424
      %v583 = vpop.f32.mrb[0].mxu0
      %v584 = vadd.f32 %v262, %v583
      %v585 = vpop.f32.mrb[0].mxu0
      %v586 = vpop.f32.mrb[0].mxu0
      %v587 = vadd.f32 %v262, %v586
      %v588 = vpop.f32.mrb[0].mxu0
      %589 = vmatprep.mubr.bf16.mxu0 0
      %590 = vmatmul.mubr.bf16.gmra.mrb[0].mxu0 %v427
      %v591 = vpop.f32.mrb[0].mxu0
      %v592 = vadd.f32 %v262, %v591
      %v593 = vpop.f32.mrb[0].mxu0
      %v594 = vpop.f32.mrb[0].mxu0
      %v595 = vadd.f32 %v262, %v594
      %v596 = vpop.f32.mrb[0].mxu0
      %597 = vmatprep.mubr.bf16.mxu0 0
      %598 = vmatmul.mubr.bf16.gmra.mrb[0].mxu0 %v430
      %v599 = vpop.f32.mrb[0].mxu0
      %v600 = vadd.f32 %v262, %v599
      %v601 = vpop.f32.mrb[0].mxu0
      %v602 = vpop.f32.mrb[0].mxu0
      %v603 = vadd.f32 %v262, %v602
      %v604 = vpop.f32.mrb[0].mxu0
      %605 = vmatprep.mubr.bf16.mxu0 0
      %606 = vmatmul.mubr.bf16.gmra.mrb[0].mxu0 %v433
      %v607 = vpop.f32.mrb[0].mxu0
      %v608 = vadd.f32 %v262, %v607
      %v609 = vpop.f32.mrb[0].mxu0
      %v610 = vpop.f32.mrb[0].mxu0
      %v611 = vadd.f32 %v262, %v610
      %v612 = vpop.f32.mrb[0].mxu0
      %613 = vmatprep.mubr.bf16.mxu0 0
      %614 = vmatmul.mubr.bf16.gmra.mrb[0].mxu0 %v436
      %v615 = vpop.f32.mrb[0].mxu0
      %v616 = vadd.f32 %v262, %v615
      %v617 = vpop.f32.mrb[0].mxu0
      %v618 = vpop.f32.mrb[0].mxu0
      %v619 = vadd.f32 %v262, %v618
      %v620 = vpop.f32.mrb[0].mxu0
      %621 = vdwg.mxu0
      %v622 = vmax.f32 %v480, 0.0
      %v623 = vmax.f32 %v483, 0.0
      %v624 = vmax.f32 %v488, 0.0
      %v625 = vmax.f32 %v491, 0.0
      %v626 = vmax.f32 %v496, 0.0
      %v627 = vmax.f32 %v499, 0.0
      %v628 = vmax.f32 %v504, 0.0
      %v629 = vmax.f32 %v507, 0.0
      %v630 = vmax.f32 %v512, 0.0
      %v631 = vmax.f32 %v515, 0.0
      %v632 = vmax.f32 %v520, 0.0
      %v633 = vmax.f32 %v523, 0.0
      %v634 = vmax.f32 %v528, 0.0
      %v635 = vmax.f32 %v531, 0.0
      %v636 = vmax.f32 %v536, 0.0
      %v637 = vmax.f32 %v539, 0.0
      %v638 = vmax.f32 %v544, 0.0
      %v639 = vmax.f32 %v547, 0.0
      %v640 = vmax.f32 %v552, 0.0
      %v641 = vmax.f32 %v555, 0.0
      %v642 = vmax.f32 %v560, 0.0
      %v643 = vmax.f32 %v563, 0.0
      %v644 = vmax.f32 %v568, 0.0
      %v645 = vmax.f32 %v571, 0.0
      %v646 = vmax.f32 %v576, 0.0
      %v647 = vmax.f32 %v579, 0.0
      %v648 = vmax.f32 %v584, 0.0
      %v649 = vmax.f32 %v587, 0.0
      %v650 = vmax.f32 %v592, 0.0
      %v651 = vmax.f32 %v595, 0.0
      %v652 = vmax.f32 %v600, 0.0
      %v653 = vmax.f32 %v603, 0.0
      %v654 = vmax.f32 %v608, 0.0
      %v655 = vmax.f32 %v611, 0.0
      %v656 = vmax.f32 %v616, 0.0
      %v657 = vmax.f32 %v619, 0.0
      %v658 = vpack.c.bf16 %v623, %v622
      %v659 = vpack.c.bf16 %v625, %v624
      %v660 = vpack.c.bf16 %v627, %v626
      %v661 = vpack.c.bf16 %v629, %v628
      %v662 = vpack.c.bf16 %v631, %v630
      %v663 = vpack.c.bf16 %v633, %v632
      %v664 = vpack.c.bf16 %v635, %v634
      %v665 = vpack.c.bf16 %v637, %v636
      %v666 = vpack.c.bf16 %v639, %v638
      %v667 = vpack.c.bf16 %v641, %v640
      %v668 = vpack.c.bf16 %v643, %v642
      %v669 = vpack.c.bf16 %v645, %v644
      %v670 = vpack.c.bf16 %v647, %v646
      %v671 = vpack.c.bf16 %v649, %v648
      %v672 = vpack.c.bf16 %v651, %v650
      %v673 = vpack.c.bf16 %v653, %v652
      %v674 = vpack.c.bf16 %v655, %v654
      %v675 = vpack.c.bf16 %v657, %v656
      %v694 = vunpack.c.l.b16 %v658
      %v695 = vunpack.c.h.b16 %v658
      %v696 = vunpack.c.l.b16 %v659
      %v697 = vunpack.c.h.b16 %v659
      %v698 = vunpack.c.l.b16 %v660
      %v699 = vunpack.c.h.b16 %v660
      %v700 = vunpack.c.l.b16 %v661
      %v701 = vunpack.c.h.b16 %v661
      %v702 = vunpack.c.l.b16 %v662
      %v703 = vunpack.c.h.b16 %v662
      %v704 = vunpack.c.l.b16 %v663
      %v705 = vunpack.c.h.b16 %v663
      %v706 = vunpack.c.l.b16 %v664
      %v707 = vunpack.c.h.b16 %v664
      %v708 = vunpack.c.l.b16 %v665
      %v709 = vunpack.c.h.b16 %v665
      %v710 = vunpack.c.l.b16 %v666
      %v711 = vunpack.c.h.b16 %v666
      %v712 = vunpack.c.l.b16 %v667
      %v713 = vunpack.c.h.b16 %v667
      %v714 = vunpack.c.l.b16 %v668
      %v715 = vunpack.c.h.b16 %v668
      %v716 = vunpack.c.l.b16 %v669
      %v717 = vunpack.c.h.b16 %v669
      %v718 = vunpack.c.l.b16 %v670
      %v719 = vunpack.c.h.b16 %v670
      %v720 = vunpack.c.l.b16 %v671
      %v721 = vunpack.c.h.b16 %v671
      %v722 = vunpack.c.l.b16 %v672
      %v723 = vunpack.c.h.b16 %v672
      %v724 = vunpack.c.l.b16 %v673
      %v725 = vunpack.c.h.b16 %v673
      %v726 = vunpack.c.l.b16 %v674
      %v727 = vunpack.c.h.b16 %v674
      %v728 = vunpack.c.l.b16 %v675
      %v729 = vunpack.c.h.b16 %v675
      %v730 = vpack.c.b16 %v694, %v694
      %v731 = vpack.c.b16 %v695, %v695
      %v732 = vpack.c.b16 %v696, %v696
      %v733 = vpack.c.b16 %v697, %v697
      %v734 = vpack.c.b16 %v698, %v698
      %v735 = vpack.c.b16 %v699, %v699
      %v736 = vpack.c.b16 %v700, %v700
      %v737 = vpack.c.b16 %v701, %v701
      %v738 = vpack.c.b16 %v702, %v702
      %v739 = vpack.c.b16 %v703, %v703
      %v740 = vpack.c.b16 %v704, %v704
      %v741 = vpack.c.b16 %v705, %v705
      %v742 = vpack.c.b16 %v706, %v706
      %v743 = vpack.c.b16 %v707, %v707
      %v744 = vpack.c.b16 %v708, %v708
      %v745 = vpack.c.b16 %v709, %v709
      %v746 = vpack.c.b16 %v710, %v710
      %v747 = vpack.c.b16 %v711, %v711
      %v748 = vpack.c.b16 %v712, %v712
      %v749 = vpack.c.b16 %v713, %v713
      %v750 = vpack.c.b16 %v714, %v714
      %v751 = vpack.c.b16 %v715, %v715
      %v752 = vpack.c.b16 %v716, %v716
      %v753 = vpack.c.b16 %v717, %v717
      %v754 = vpack.c.b16 %v718, %v718
      %v755 = vpack.c.b16 %v719, %v719
      %v756 = vpack.c.b16 %v720, %v720
      %v757 = vpack.c.b16 %v721, %v721
      %v758 = vpack.c.b16 %v722, %v722
      %v759 = vpack.c.b16 %v723, %v723
      %v760 = vpack.c.b16 %v724, %v724
      %v761 = vpack.c.b16 %v725, %v725
      %v762 = vpack.c.b16 %v726, %v726
      %v763 = vpack.c.b16 %v727, %v727
      %v764 = vpack.c.b16 %v728, %v728
      %v765 = vpack.c.b16 %v729, %v729
      %vm802 = vcmask 519168
      %803 = vst.msk [vmem:[%s208] sm:$0xf] %vm802, %v730
      %804 = vst.msk [vmem:[%s208 + $0x4] sm:$0xf] %vm802, %v731
      %805 = vst.msk [vmem:[%s208 + $0x8] sm:$0xf] %vm802, %v732
      %806 = vst.msk [vmem:[%s208 + $0xc] sm:$0xf] %vm802, %v733
      %807 = vst.msk [vmem:[%s208 + $0x10] sm:$0xf] %vm802, %v734
      %808 = vst.msk [vmem:[%s208 + $0x14] sm:$0xf] %vm802, %v735
      %809 = vst.msk [vmem:[%s208 + $0x18] sm:$0xf] %vm802, %v736
      %810 = vst.msk [vmem:[%s208 + $0x1c] sm:$0xf] %vm802, %v737
      %811 = vst.msk [vmem:[%s208 + $0x20] sm:$0xf] %vm802, %v738
      %812 = vst.msk [vmem:[%s208 + $0x24] sm:$0xf] %vm802, %v739
      %813 = vst.msk [vmem:[%s208 + $0x28] sm:$0xf] %vm802, %v740
      %814 = vst.msk [vmem:[%s208 + $0x2c] sm:$0xf] %vm802, %v741
      %815 = vst.msk [vmem:[%s208 + $0x30] sm:$0xf] %vm802, %v742
      %816 = vst.msk [vmem:[%s208 + $0x34] sm:$0xf] %vm802, %v743
      %817 = vst.msk [vmem:[%s208 + $0x38] sm:$0xf] %vm802, %v744
      %818 = vst.msk [vmem:[%s208 + $0x3c] sm:$0xf] %vm802, %v745
      %819 = vst.msk [vmem:[%s208 + $0x40] sm:$0xf] %vm802, %v746
      %820 = vst.msk [vmem:[%s208 + $0x44] sm:$0xf] %vm802, %v747
      %821 = vst.msk [vmem:[%s208 + $0x48] sm:$0xf] %vm802, %v748
      %822 = vst.msk [vmem:[%s208 + $0x4c] sm:$0xf] %vm802, %v749
      %823 = vst.msk [vmem:[%s208 + $0x50] sm:$0xf] %vm802, %v750
      %824 = vst.msk [vmem:[%s208 + $0x54] sm:$0xf] %vm802, %v751
      %825 = vst.msk [vmem:[%s208 + $0x58] sm:$0xf] %vm802, %v752
      %826 = vst.msk [vmem:[%s208 + $0x5c] sm:$0xf] %vm802, %v753
      %827 = vst.msk [vmem:[%s208 + $0x60] sm:$0xf] %vm802, %v754
      %828 = vst.msk [vmem:[%s208 + $0x64] sm:$0xf] %vm802, %v755
      %829 = vst.msk [vmem:[%s208 + $0x68] sm:$0xf] %vm802, %v756
      %830 = vst.msk [vmem:[%s208 + $0x6c] sm:$0xf] %vm802, %v757
      %831 = vst.msk [vmem:[%s208 + $0x70] sm:$0xf] %vm802, %v758
      %832 = vst.msk [vmem:[%s208 + $0x74] sm:$0xf] %vm802, %v759
      %833 = vst.msk [vmem:[%s208 + $0x78] sm:$0xf] %vm802, %v760
      %834 = vst.msk [vmem:[%s208 + $0x7c] sm:$0xf] %vm802, %v761
      %835 = vst.msk [vmem:[%s208 + $0x80] sm:$0xf] %vm802, %v762
      %836 = vst.msk [vmem:[%s208 + $0x84] sm:$0xf] %vm802, %v763
      %837 = vst.msk [vmem:[%s208 + $0x88] sm:$0xf] %vm802, %v764
      %838 = vst.msk [vmem:[%s208 + $0x8c] sm:$0xf] %vm802, %v765
      %s839 = smul.u32 36, %s19
      %p840 = scmp.lt.s32.totalorder %s18, 1
      %s841 = scalar_select %p840, %s18, 1
      %p842 = scmp.lt.s32.totalorder %s839, 71
      %s843 = scalar_select %p842, %s839, 71
      %s844 = smul.addr %s841, 72
      %s845 = sadd.s32 %s843, %s844
      %s846 = smul.addr %s845, 4
      %s847 = scalar_lea.vmem %s3, %s846
      // Predicated region
      $region33: #{cifar10_forward.5} parent=31 // pred_check
        %p848 = pneg %p116
      $region34: #{cifar10_forward.5} parent=31 // pred_check_branch
        %850 = sbr.rel (%p848) target = $region36
      $region35: #{cifar10_forward.5} parent=31 // pred_region
        %s851 = smul.u32 36, %s19
      $region36: #{cifar10_forward.5} parent=31 // pred_fallthru
        _
    $region32: #{cifar10_forward.5} parent=5 // pred_fallthru
      _
    %p852 = scmp.le.s32.totalorder 2, %s9
    // Predicated region
    $region37: #{cifar10_forward.5} parent=5 // pred_check
      %p853 = pneg %p852
    $region38: #{cifar10_forward.5} parent=5 // pred_check_branch
      %855 = sbr.rel (%p853) target = $region40
    $region39: #{cifar10_forward.5} parent=5 // pred_region
      %s856 = ssub.s32 %s9, 2
      // Predicated region
      $region41: #{cifar10_forward.5} parent=39 // pred_check
        %p857 = pneg %p122
      $region42: #{cifar10_forward.5} parent=39 // pred_check_branch
        %859 = sbr.rel (%p857) target = $region44
      $region43: #{cifar10_forward.5} parent=39 // pred_region
        %s860 = smul.u32 36, %s21
        %p861 = scmp.lt.s32.totalorder %s20, 1
        %s862 = scalar_select %p861, %s20, 1
        %p863 = scmp.lt.s32.totalorder %s860, 71
        %s864 = scalar_select %p863, %s860, 71
        %s865 = smul.addr %s862, 72
        %s866 = sadd.s32 %s864, %s865
        %s867 = smul.addr %s866, 4
        %s868 = scalar_lea.vmem %s3, %s867
      $region44: #{cifar10_forward.5} parent=39 // pred_fallthru
        _
    $region40: #{cifar10_forward.5} parent=5 // pred_fallthru
      _
  $region6: #{cifar10_forward.5} parent=0 // loop_footer
    %s13 = sadd.s32 1, %s9
  $region7: #{cifar10_forward.5} parent=0 // loop_footer_branch
    %8 = sbr.rel target = $region3
  $region8: #{cifar10_forward.5} parent=0 // loop_exit
    _

// kernel: cifar10_forward.6
$region0: #{cifar10_forward.6}
  #allocation0 [shape = 'u32[]', space=smem, size = 0x4, offset = 0x4, fixed_abs, tag = 'smem constant byte address 0x4 - core index']
  #allocation1 [shape = 'u32[144,128]{1,0:T(1,128)}', space=vmem, size = 0x12000, scoped, tag = 'internal scratch']
  %s0 = inlined_call_operand.vmem [shape: bf16[9,144,128], index: 0, kind: input, shape index: {}]
  %s1 = inlined_call_operand.vmem [shape: bf16[144,128], index: 1, kind: output, shape index: {}]
  %s2 = sld [smem:[#allocation0]]
  $region14: #{cifar10_forward.6} parent=0
    _
  %s4 = ssub.s32 1, %s2
  %s5 = scalar_select 0, %s4, %s2
  // Predicated region
  $region2: #{cifar10_forward.6} parent=0 // pred_check
    _
  $region3: #{cifar10_forward.6} parent=0 // pred_check_branch
    %7 = sbr.rel (0) target = $region5
  $region4: #{cifar10_forward.6} parent=0 // pred_region
    _
  $region5: #{cifar10_forward.6} parent=0 // pred_fallthru
    _
  %v9 = vld [vmem:[%s0] sm:$0xf]
  %v10 = vld [vmem:[%s0 + $0x4] sm:$0xf]
  %v11 = vld [vmem:[%s0 + $0x8] sm:$0xf]
  %v12 = vld [vmem:[%s0 + $0xc] sm:$0xf]
  %v13 = vld [vmem:[%s0 + $0x10] sm:$0xf]
  %v14 = vld [vmem:[%s0 + $0x14] sm:$0xf]
  %v15 = vld [vmem:[%s0 + $0x18] sm:$0xf]
  %v16 = vld [vmem:[%s0 + $0x1c] sm:$0xf]
  %v17 = vld [vmem:[%s0 + $0x20] sm:$0xf]
  %v18 = vld [vmem:[%s0 + $0x24] sm:$0xf]
  %v19 = vld [vmem:[%s0 + $0x28] sm:$0xf]
  %v20 = vld [vmem:[%s0 + $0x2c] sm:$0xf]
  %v21 = vld [vmem:[%s0 + $0x30] sm:$0xf]
  %v22 = vld [vmem:[%s0 + $0x34] sm:$0xf]
  %v23 = vld [vmem:[%s0 + $0x38] sm:$0xf]
  %v24 = vld [vmem:[%s0 + $0x3c] sm:$0xf]
  %v25 = vld [vmem:[%s0 + $0x40] sm:$0xf]
  %v26 = vld [vmem:[%s0 + $0x44] sm:$0xf]
  %v27 = vld [vmem:[%s0 + $0x48] sm:$0xf]
  %v28 = vld [vmem:[%s0 + $0x4c] sm:$0xf]
  %v29 = vld [vmem:[%s0 + $0x50] sm:$0xf]
  %v30 = vld [vmem:[%s0 + $0x54] sm:$0xf]
  %v31 = vld [vmem:[%s0 + $0x58] sm:$0xf]
  %v32 = vld [vmem:[%s0 + $0x5c] sm:$0xf]
  %v33 = vld [vmem:[%s0 + $0x60] sm:$0xf]
  %v34 = vld [vmem:[%s0 + $0x64] sm:$0xf]
  %v35 = vld [vmem:[%s0 + $0x68] sm:$0xf]
  %v36 = vld [vmem:[%s0 + $0x6c] sm:$0xf]
  %v37 = vld [vmem:[%s0 + $0x70] sm:$0xf]
  %v38 = vld [vmem:[%s0 + $0x74] sm:$0xf]
  %v39 = vld [vmem:[%s0 + $0x78] sm:$0xf]
  %v40 = vld [vmem:[%s0 + $0x7c] sm:$0xf]
  %v41 = vld [vmem:[%s0 + $0x80] sm:$0xf]
  %v42 = vld [vmem:[%s0 + $0x84] sm:$0xf]
  %v43 = vld [vmem:[%s0 + $0x88] sm:$0xf]
  %v44 = vld [vmem:[%s0 + $0x8c] sm:$0xf]
  %v45 = vld [vmem:[%s0 + $0x90] sm:$0xf]
  %v46 = vld [vmem:[%s0 + $0x94] sm:$0xf]
  %v47 = vld [vmem:[%s0 + $0x98] sm:$0xf]
  %v48 = vld [vmem:[%s0 + $0x9c] sm:$0xf]
  %v49 = vld [vmem:[%s0 + $0xa0] sm:$0xf]
  %v50 = vld [vmem:[%s0 + $0xa4] sm:$0xf]
  %v51 = vld [vmem:[%s0 + $0xa8] sm:$0xf]
  %v52 = vld [vmem:[%s0 + $0xac] sm:$0xf]
  %v53 = vld [vmem:[%s0 + $0xb0] sm:$0xf]
  %v54 = vld [vmem:[%s0 + $0xb4] sm:$0xf]
  %v55 = vld [vmem:[%s0 + $0xb8] sm:$0xf]
  %v56 = vld [vmem:[%s0 + $0xbc] sm:$0xf]
  %v57 = vld [vmem:[%s0 + $0xc0] sm:$0xf]
  %v58 = vld [vmem:[%s0 + $0xc4] sm:$0xf]
  %v59 = vld [vmem:[%s0 + $0xc8] sm:$0xf]
  %v60 = vld [vmem:[%s0 + $0xcc] sm:$0xf]
  %v61 = vld [vmem:[%s0 + $0xd0] sm:$0xf]
  %v62 = vld [vmem:[%s0 + $0xd4] sm:$0xf]
  %v63 = vld [vmem:[%s0 + $0xd8] sm:$0xf]
  %v64 = vld [vmem:[%s0 + $0xdc] sm:$0xf]
  %v65 = vld [vmem:[%s0 + $0xe0] sm:$0xf]
  %v66 = vld [vmem:[%s0 + $0xe4] sm:$0xf]
  %v67 = vld [vmem:[%s0 + $0xe8] sm:$0xf]
  %v68 = vld [vmem:[%s0 + $0xec] sm:$0xf]
  %v69 = vld [vmem:[%s0 + $0xf0] sm:$0xf]
  %v70 = vld [vmem:[%s0 + $0xf4] sm:$0xf]
  %v71 = vld [vmem:[%s0 + $0xf8] sm:$0xf]
  %v72 = vld [vmem:[%s0 + $0xfc] sm:$0xf]
  %v73 = vld [vmem:[%s0 + $0x100] sm:$0xf]
  %v74 = vld [vmem:[%s0 + $0x104] sm:$0xf]
  %v75 = vld [vmem:[%s0 + $0x108] sm:$0xf]
  %v76 = vld [vmem:[%s0 + $0x10c] sm:$0xf]
  %v77 = vld [vmem:[%s0 + $0x110] sm:$0xf]
  %v78 = vld [vmem:[%s0 + $0x114] sm:$0xf]
  %v79 = vld [vmem:[%s0 + $0x118] sm:$0xf]
  %v80 = vld [vmem:[%s0 + $0x11c] sm:$0xf]
  %v81 = vld [vmem:[%s0 + $0x120] sm:$0xf]
  %v82 = vld [vmem:[%s0 + $0x124] sm:$0xf]
  %v83 = vld [vmem:[%s0 + $0x128] sm:$0xf]
  %v84 = vld [vmem:[%s0 + $0x12c] sm:$0xf]
  %v85 = vld [vmem:[%s0 + $0x130] sm:$0xf]
  %v86 = vld [vmem:[%s0 + $0x134] sm:$0xf]
  %v87 = vld [vmem:[%s0 + $0x138] sm:$0xf]
  %v88 = vld [vmem:[%s0 + $0x13c] sm:$0xf]
  %v89 = vld [vmem:[%s0 + $0x140] sm:$0xf]
  %v90 = vld [vmem:[%s0 + $0x144] sm:$0xf]
  %v91 = vld [vmem:[%s0 + $0x148] sm:$0xf]
  %v92 = vld [vmem:[%s0 + $0x14c] sm:$0xf]
  %v93 = vld [vmem:[%s0 + $0x150] sm:$0xf]
  %v94 = vld [vmem:[%s0 + $0x154] sm:$0xf]
  %v95 = vld [vmem:[%s0 + $0x158] sm:$0xf]
  %v96 = vld [vmem:[%s0 + $0x15c] sm:$0xf]
  %v97 = vld [vmem:[%s0 + $0x160] sm:$0xf]
  %v98 = vld [vmem:[%s0 + $0x164] sm:$0xf]
  %v99 = vld [vmem:[%s0 + $0x168] sm:$0xf]
  %v100 = vld [vmem:[%s0 + $0x16c] sm:$0xf]
  %v101 = vld [vmem:[%s0 + $0x170] sm:$0xf]
  %v102 = vld [vmem:[%s0 + $0x174] sm:$0xf]
  %v103 = vld [vmem:[%s0 + $0x178] sm:$0xf]
  %v104 = vld [vmem:[%s0 + $0x17c] sm:$0xf]
  %v105 = vld [vmem:[%s0 + $0x180] sm:$0xf]
  %v106 = vld [vmem:[%s0 + $0x184] sm:$0xf]
  %v107 = vld [vmem:[%s0 + $0x188] sm:$0xf]
  %v108 = vld [vmem:[%s0 + $0x18c] sm:$0xf]
  %v109 = vld [vmem:[%s0 + $0x190] sm:$0xf]
  %v110 = vld [vmem:[%s0 + $0x194] sm:$0xf]
  %v111 = vld [vmem:[%s0 + $0x198] sm:$0xf]
  %v112 = vld [vmem:[%s0 + $0x19c] sm:$0xf]
  %v113 = vld [vmem:[%s0 + $0x1a0] sm:$0xf]
  %v114 = vld [vmem:[%s0 + $0x1a4] sm:$0xf]
  %v115 = vld [vmem:[%s0 + $0x1a8] sm:$0xf]
  %v116 = vld [vmem:[%s0 + $0x1ac] sm:$0xf]
  %v117 = vld [vmem:[%s0 + $0x1b0] sm:$0xf]
  %v118 = vld [vmem:[%s0 + $0x1b4] sm:$0xf]
  %v119 = vld [vmem:[%s0 + $0x1b8] sm:$0xf]
  %v120 = vld [vmem:[%s0 + $0x1bc] sm:$0xf]
  %v121 = vld [vmem:[%s0 + $0x1c0] sm:$0xf]
  %v122 = vld [vmem:[%s0 + $0x1c4] sm:$0xf]
  %v123 = vld [vmem:[%s0 + $0x1c8] sm:$0xf]
  %v124 = vld [vmem:[%s0 + $0x1cc] sm:$0xf]
  %v125 = vld [vmem:[%s0 + $0x1d0] sm:$0xf]
  %v126 = vld [vmem:[%s0 + $0x1d4] sm:$0xf]
  %v127 = vld [vmem:[%s0 + $0x1d8] sm:$0xf]
  %v128 = vld [vmem:[%s0 + $0x1dc] sm:$0xf]
  %v129 = vld [vmem:[%s0 + $0x1e0] sm:$0xf]
  %v130 = vld [vmem:[%s0 + $0x1e4] sm:$0xf]
  %v131 = vld [vmem:[%s0 + $0x1e8] sm:$0xf]
  %v132 = vld [vmem:[%s0 + $0x1ec] sm:$0xf]
  %v133 = vld [vmem:[%s0 + $0x1f0] sm:$0xf]
  %v134 = vld [vmem:[%s0 + $0x1f4] sm:$0xf]
  %v135 = vld [vmem:[%s0 + $0x1f8] sm:$0xf]
  %v136 = vld [vmem:[%s0 + $0x1fc] sm:$0xf]
  %v137 = vld [vmem:[%s0 + $0x200] sm:$0xf]
  %v138 = vld [vmem:[%s0 + $0x204] sm:$0xf]
  %v139 = vld [vmem:[%s0 + $0x208] sm:$0xf]
  %v140 = vld [vmem:[%s0 + $0x20c] sm:$0xf]
  %v141 = vld [vmem:[%s0 + $0x210] sm:$0xf]
  %v142 = vld [vmem:[%s0 + $0x214] sm:$0xf]
  %v143 = vld [vmem:[%s0 + $0x218] sm:$0xf]
  %v144 = vld [vmem:[%s0 + $0x21c] sm:$0xf]
  %v145 = vld [vmem:[%s0 + $0x220] sm:$0xf]
  %v146 = vld [vmem:[%s0 + $0x224] sm:$0xf]
  %v147 = vld [vmem:[%s0 + $0x228] sm:$0xf]
  %v148 = vld [vmem:[%s0 + $0x22c] sm:$0xf]
  %v149 = vld [vmem:[%s0 + $0x230] sm:$0xf]
  %v150 = vld [vmem:[%s0 + $0x234] sm:$0xf]
  %v151 = vld [vmem:[%s0 + $0x238] sm:$0xf]
  %v152 = vld [vmem:[%s0 + $0x23c] sm:$0xf]
  %v153 = vld [vmem:[%s0 + $0x240] sm:$0xf]
  %v154 = vld [vmem:[%s0 + $0x244] sm:$0xf]
  %v155 = vld [vmem:[%s0 + $0x248] sm:$0xf]
  %v156 = vld [vmem:[%s0 + $0x24c] sm:$0xf]
  %v157 = vld [vmem:[%s0 + $0x250] sm:$0xf]
  %v158 = vld [vmem:[%s0 + $0x254] sm:$0xf]
  %v159 = vld [vmem:[%s0 + $0x258] sm:$0xf]
  %v160 = vld [vmem:[%s0 + $0x25c] sm:$0xf]
  %v161 = vld [vmem:[%s0 + $0x260] sm:$0xf]
  %v162 = vld [vmem:[%s0 + $0x264] sm:$0xf]
  %v163 = vld [vmem:[%s0 + $0x268] sm:$0xf]
  %v164 = vld [vmem:[%s0 + $0x26c] sm:$0xf]
  %v165 = vld [vmem:[%s0 + $0x270] sm:$0xf]
  %v166 = vld [vmem:[%s0 + $0x274] sm:$0xf]
  %v167 = vld [vmem:[%s0 + $0x278] sm:$0xf]
  %v168 = vld [vmem:[%s0 + $0x27c] sm:$0xf]
  %v169 = vld [vmem:[%s0 + $0x280] sm:$0xf]
  %v170 = vld [vmem:[%s0 + $0x284] sm:$0xf]
  %vm171 = vcmask 1043456
  %v174 = vsel %vm171, %v9, 4286644096
  %v177 = vsel %vm171, %v27, 4286644096
  %v179 = vmax.bf16 %v174, %v177
  %v181 = vsel %vm171, %v45, 4286644096
  %v183 = vmax.bf16 %v179, %v181
  %v185 = vsel %vm171, %v63, 4286644096
  %v187 = vmax.bf16 %v183, %v185
  %v189 = vsel %vm171, %v81, 4286644096
  %v191 = vmax.bf16 %v187, %v189
  %v193 = vsel %vm171, %v99, 4286644096
  %v195 = vmax.bf16 %v191, %v193
  %v197 = vsel %vm171, %v117, 4286644096
  %v199 = vmax.bf16 %v195, %v197
  %v201 = vsel %vm171, %v135, 4286644096
  %v203 = vmax.bf16 %v199, %v201
  %v205 = vsel %vm171, %v153, 4286644096
  %v207 = vmax.bf16 %v203, %v205
  %v209 = vsel %vm171, %v10, 4286644096
  %v212 = vsel %vm171, %v28, 4286644096
  %v214 = vmax.bf16 %v209, %v212
  %v216 = vsel %vm171, %v46, 4286644096
  %v218 = vmax.bf16 %v214, %v216
  %v220 = vsel %vm171, %v64, 4286644096
  %v222 = vmax.bf16 %v218, %v220
  %v224 = vsel %vm171, %v82, 4286644096
  %v226 = vmax.bf16 %v222, %v224
  %v228 = vsel %vm171, %v100, 4286644096
  %v230 = vmax.bf16 %v226, %v228
  %v232 = vsel %vm171, %v118, 4286644096
  %v234 = vmax.bf16 %v230, %v232
  %v236 = vsel %vm171, %v136, 4286644096
  %v238 = vmax.bf16 %v234, %v236
  %v240 = vsel %vm171, %v154, 4286644096
  %v242 = vmax.bf16 %v238, %v240
  %v244 = vsel %vm171, %v11, 4286644096
  %v247 = vsel %vm171, %v29, 4286644096
  %v249 = vmax.bf16 %v244, %v247
  %v251 = vsel %vm171, %v47, 4286644096
  %v253 = vmax.bf16 %v249, %v251
  %v255 = vsel %vm171, %v65, 4286644096
  %v257 = vmax.bf16 %v253, %v255
  %v259 = vsel %vm171, %v83, 4286644096
  %v261 = vmax.bf16 %v257, %v259
  %v263 = vsel %vm171, %v101, 4286644096
  %v265 = vmax.bf16 %v261, %v263
  %v267 = vsel %vm171, %v119, 4286644096
  %v269 = vmax.bf16 %v265, %v267
  %v271 = vsel %vm171, %v137, 4286644096
  %v273 = vmax.bf16 %v269, %v271
  %v275 = vsel %vm171, %v155, 4286644096
  %v277 = vmax.bf16 %v273, %v275
  %v279 = vsel %vm171, %v12, 4286644096
  %v282 = vsel %vm171, %v30, 4286644096
  %v284 = vmax.bf16 %v279, %v282
  %v286 = vsel %vm171, %v48, 4286644096
  %v288 = vmax.bf16 %v284, %v286
  %v290 = vsel %vm171, %v66, 4286644096
  %v292 = vmax.bf16 %v288, %v290
  %v294 = vsel %vm171, %v84, 4286644096
  %v296 = vmax.bf16 %v292, %v294
  %v298 = vsel %vm171, %v102, 4286644096
  %v300 = vmax.bf16 %v296, %v298
  %v302 = vsel %vm171, %v120, 4286644096
  %v304 = vmax.bf16 %v300, %v302
  %v306 = vsel %vm171, %v138, 4286644096
  %v308 = vmax.bf16 %v304, %v306
  %v310 = vsel %vm171, %v156, 4286644096
  %v312 = vmax.bf16 %v308, %v310
  %v314 = vsel %vm171, %v13, 4286644096
  %v317 = vsel %vm171, %v31, 4286644096
  %v319 = vmax.bf16 %v314, %v317
  %v321 = vsel %vm171, %v49, 4286644096
  %v323 = vmax.bf16 %v319, %v321
  %v325 = vsel %vm171, %v67, 4286644096
  %v327 = vmax.bf16 %v323, %v325
  %v329 = vsel %vm171, %v85, 4286644096
  %v331 = vmax.bf16 %v327, %v329
  %v333 = vsel %vm171, %v103, 4286644096
  %v335 = vmax.bf16 %v331, %v333
  %v337 = vsel %vm171, %v121, 4286644096
  %v339 = vmax.bf16 %v335, %v337
  %v341 = vsel %vm171, %v139, 4286644096
  %v343 = vmax.bf16 %v339, %v341
  %v345 = vsel %vm171, %v157, 4286644096
  %v347 = vmax.bf16 %v343, %v345
  %v349 = vsel %vm171, %v14, 4286644096
  %v352 = vsel %vm171, %v32, 4286644096
  %v354 = vmax.bf16 %v349, %v352
  %v356 = vsel %vm171, %v50, 4286644096
  %v358 = vmax.bf16 %v354, %v356
  %v360 = vsel %vm171, %v68, 4286644096
  %v362 = vmax.bf16 %v358, %v360
  %v364 = vsel %vm171, %v86, 4286644096
  %v366 = vmax.bf16 %v362, %v364
  %v368 = vsel %vm171, %v104, 4286644096
  %v370 = vmax.bf16 %v366, %v368
  %v372 = vsel %vm171, %v122, 4286644096
  %v374 = vmax.bf16 %v370, %v372
  %v376 = vsel %vm171, %v140, 4286644096
  %v378 = vmax.bf16 %v374, %v376
  %v380 = vsel %vm171, %v158, 4286644096
  %v382 = vmax.bf16 %v378, %v380
  %v384 = vsel %vm171, %v15, 4286644096
  %v387 = vsel %vm171, %v33, 4286644096
  %v389 = vmax.bf16 %v384, %v387
  %v391 = vsel %vm171, %v51, 4286644096
  %v393 = vmax.bf16 %v389, %v391
  %v395 = vsel %vm171, %v69, 4286644096
  %v397 = vmax.bf16 %v393, %v395
  %v399 = vsel %vm171, %v87, 4286644096
  %v401 = vmax.bf16 %v397, %v399
  %v403 = vsel %vm171, %v105, 4286644096
  %v405 = vmax.bf16 %v401, %v403
  %v407 = vsel %vm171, %v123, 4286644096
  %v409 = vmax.bf16 %v405, %v407
  %v411 = vsel %vm171, %v141, 4286644096
  %v413 = vmax.bf16 %v409, %v411
  %v415 = vsel %vm171, %v159, 4286644096
  %v417 = vmax.bf16 %v413, %v415
  %v419 = vsel %vm171, %v16, 4286644096
  %v422 = vsel %vm171, %v34, 4286644096
  %v424 = vmax.bf16 %v419, %v422
  %v426 = vsel %vm171, %v52, 4286644096
  %v428 = vmax.bf16 %v424, %v426
  %v430 = vsel %vm171, %v70, 4286644096
  %v432 = vmax.bf16 %v428, %v430
  %v434 = vsel %vm171, %v88, 4286644096
  %v436 = vmax.bf16 %v432, %v434
  %v438 = vsel %vm171, %v106, 4286644096
  %v440 = vmax.bf16 %v436, %v438
  %v442 = vsel %vm171, %v124, 4286644096
  %v444 = vmax.bf16 %v440, %v442
  %v446 = vsel %vm171, %v142, 4286644096
  %v448 = vmax.bf16 %v444, %v446
  %v450 = vsel %vm171, %v160, 4286644096
  %v452 = vmax.bf16 %v448, %v450
  %v454 = vsel %vm171, %v17, 4286644096
  %v457 = vsel %vm171, %v35, 4286644096
  %v459 = vmax.bf16 %v454, %v457
  %v461 = vsel %vm171, %v53, 4286644096
  %v463 = vmax.bf16 %v459, %v461
  %v465 = vsel %vm171, %v71, 4286644096
  %v467 = vmax.bf16 %v463, %v465
  %v469 = vsel %vm171, %v89, 4286644096
  %v471 = vmax.bf16 %v467, %v469
  %v473 = vsel %vm171, %v107, 4286644096
  %v475 = vmax.bf16 %v471, %v473
  %v477 = vsel %vm171, %v125, 4286644096
  %v479 = vmax.bf16 %v475, %v477
  %v481 = vsel %vm171, %v143, 4286644096
  %v483 = vmax.bf16 %v479, %v481
  %v485 = vsel %vm171, %v161, 4286644096
  %v487 = vmax.bf16 %v483, %v485
  %v489 = vsel %vm171, %v18, 4286644096
  %v492 = vsel %vm171, %v36, 4286644096
  %v494 = vmax.bf16 %v489, %v492
  %v496 = vsel %vm171, %v54, 4286644096
  %v498 = vmax.bf16 %v494, %v496
  %v500 = vsel %vm171, %v72, 4286644096
  %v502 = vmax.bf16 %v498, %v500
  %v504 = vsel %vm171, %v90, 4286644096
  %v506 = vmax.bf16 %v502, %v504
  %v508 = vsel %vm171, %v108, 4286644096
  %v510 = vmax.bf16 %v506, %v508
  %v512 = vsel %vm171, %v126, 4286644096
  %v514 = vmax.bf16 %v510, %v512
  %v516 = vsel %vm171, %v144, 4286644096
  %v518 = vmax.bf16 %v514, %v516
  %v520 = vsel %vm171, %v162, 4286644096
  %v522 = vmax.bf16 %v518, %v520
  %v524 = vsel %vm171, %v19, 4286644096
  %v527 = vsel %vm171, %v37, 4286644096
  %v529 = vmax.bf16 %v524, %v527
  %v531 = vsel %vm171, %v55, 4286644096
  %v533 = vmax.bf16 %v529, %v531
  %v535 = vsel %vm171, %v73, 4286644096
  %v537 = vmax.bf16 %v533, %v535
  %v539 = vsel %vm171, %v91, 4286644096
  %v541 = vmax.bf16 %v537, %v539
  %v543 = vsel %vm171, %v109, 4286644096
  %v545 = vmax.bf16 %v541, %v543
  %v547 = vsel %vm171, %v127, 4286644096
  %v549 = vmax.bf16 %v545, %v547
  %v551 = vsel %vm171, %v145, 4286644096
  %v553 = vmax.bf16 %v549, %v551
  %v555 = vsel %vm171, %v163, 4286644096
  %v557 = vmax.bf16 %v553, %v555
  %v559 = vsel %vm171, %v20, 4286644096
  %v562 = vsel %vm171, %v38, 4286644096
  %v564 = vmax.bf16 %v559, %v562
  %v566 = vsel %vm171, %v56, 4286644096
  %v568 = vmax.bf16 %v564, %v566
  %v570 = vsel %vm171, %v74, 4286644096
  %v572 = vmax.bf16 %v568, %v570
  %v574 = vsel %vm171, %v92, 4286644096
  %v576 = vmax.bf16 %v572, %v574
  %v578 = vsel %vm171, %v110, 4286644096
  %v580 = vmax.bf16 %v576, %v578
  %v582 = vsel %vm171, %v128, 4286644096
  %v584 = vmax.bf16 %v580, %v582
  %v586 = vsel %vm171, %v146, 4286644096
  %v588 = vmax.bf16 %v584, %v586
  %v590 = vsel %vm171, %v164, 4286644096
  %v592 = vmax.bf16 %v588, %v590
  %v594 = vsel %vm171, %v21, 4286644096
  %v597 = vsel %vm171, %v39, 4286644096
  %v599 = vmax.bf16 %v594, %v597
  %v601 = vsel %vm171, %v57, 4286644096
  %v603 = vmax.bf16 %v599, %v601
  %v605 = vsel %vm171, %v75, 4286644096
  %v607 = vmax.bf16 %v603, %v605
  %v609 = vsel %vm171, %v93, 4286644096
  %v611 = vmax.bf16 %v607, %v609
  %v613 = vsel %vm171, %v111, 4286644096
  %v615 = vmax.bf16 %v611, %v613
  %v617 = vsel %vm171, %v129, 4286644096
  %v619 = vmax.bf16 %v615, %v617
  %v621 = vsel %vm171, %v147, 4286644096
  %v623 = vmax.bf16 %v619, %v621
  %v625 = vsel %vm171, %v165, 4286644096
  %v627 = vmax.bf16 %v623, %v625
  %v629 = vsel %vm171, %v22, 4286644096
  %v632 = vsel %vm171, %v40, 4286644096
  %v634 = vmax.bf16 %v629, %v632
  %v636 = vsel %vm171, %v58, 4286644096
  %v638 = vmax.bf16 %v634, %v636
  %v640 = vsel %vm171, %v76, 4286644096
  %v642 = vmax.bf16 %v638, %v640
  %v644 = vsel %vm171, %v94, 4286644096
  %v646 = vmax.bf16 %v642, %v644
  %v648 = vsel %vm171, %v112, 4286644096
  %v650 = vmax.bf16 %v646, %v648
  %v652 = vsel %vm171, %v130, 4286644096
  %v654 = vmax.bf16 %v650, %v652
  %v656 = vsel %vm171, %v148, 4286644096
  %v658 = vmax.bf16 %v654, %v656
  %v660 = vsel %vm171, %v166, 4286644096
  %v662 = vmax.bf16 %v658, %v660
  %v664 = vsel %vm171, %v23, 4286644096
  %v667 = vsel %vm171, %v41, 4286644096
  %v669 = vmax.bf16 %v664, %v667
  %v671 = vsel %vm171, %v59, 4286644096
  %v673 = vmax.bf16 %v669, %v671
  %v675 = vsel %vm171, %v77, 4286644096
  %v677 = vmax.bf16 %v673, %v675
  %v679 = vsel %vm171, %v95, 4286644096
  %v681 = vmax.bf16 %v677, %v679
  %v683 = vsel %vm171, %v113, 4286644096
  %v685 = vmax.bf16 %v681, %v683
  %v687 = vsel %vm171, %v131, 4286644096
  %v689 = vmax.bf16 %v685, %v687
  %v691 = vsel %vm171, %v149, 4286644096
  %v693 = vmax.bf16 %v689, %v691
  %v695 = vsel %vm171, %v167, 4286644096
  %v697 = vmax.bf16 %v693, %v695
  %v699 = vsel %vm171, %v24, 4286644096
  %v702 = vsel %vm171, %v42, 4286644096
  %v704 = vmax.bf16 %v699, %v702
  %v706 = vsel %vm171, %v60, 4286644096
  %v708 = vmax.bf16 %v704, %v706
  %v710 = vsel %vm171, %v78, 4286644096
  %v712 = vmax.bf16 %v708, %v710
  %v714 = vsel %vm171, %v96, 4286644096
  %v716 = vmax.bf16 %v712, %v714
  %v718 = vsel %vm171, %v114, 4286644096
  %v720 = vmax.bf16 %v716, %v718
  %v722 = vsel %vm171, %v132, 4286644096
  %v724 = vmax.bf16 %v720, %v722
  %v726 = vsel %vm171, %v150, 4286644096
  %v728 = vmax.bf16 %v724, %v726
  %v730 = vsel %vm171, %v168, 4286644096
  %v732 = vmax.bf16 %v728, %v730
  %v734 = vsel %vm171, %v25, 4286644096
  %v737 = vsel %vm171, %v43, 4286644096
  %v739 = vmax.bf16 %v734, %v737
  %v741 = vsel %vm171, %v61, 4286644096
  %v743 = vmax.bf16 %v739, %v741
  %v745 = vsel %vm171, %v79, 4286644096
  %v747 = vmax.bf16 %v743, %v745
  %v749 = vsel %vm171, %v97, 4286644096
  %v751 = vmax.bf16 %v747, %v749
  %v753 = vsel %vm171, %v115, 4286644096
  %v755 = vmax.bf16 %v751, %v753
  %v757 = vsel %vm171, %v133, 4286644096
  %v759 = vmax.bf16 %v755, %v757
  %v761 = vsel %vm171, %v151, 4286644096
  %v763 = vmax.bf16 %v759, %v761
  %v765 = vsel %vm171, %v169, 4286644096
  %v767 = vmax.bf16 %v763, %v765
  %v769 = vsel %vm171, %v26, 4286644096
  %v772 = vsel %vm171, %v44, 4286644096
  %v774 = vmax.bf16 %v769, %v772
  %v776 = vsel %vm171, %v62, 4286644096
  %v778 = vmax.bf16 %v774, %v776
  %v780 = vsel %vm171, %v80, 4286644096
  %v782 = vmax.bf16 %v778, %v780
  %v784 = vsel %vm171, %v98, 4286644096
  %v786 = vmax.bf16 %v782, %v784
  %v788 = vsel %vm171, %v116, 4286644096
  %v790 = vmax.bf16 %v786, %v788
  %v792 = vsel %vm171, %v134, 4286644096
  %v794 = vmax.bf16 %v790, %v792
  %v796 = vsel %vm171, %v152, 4286644096
  %v798 = vmax.bf16 %v794, %v796
  %v800 = vsel %vm171, %v170, 4286644096
  %v802 = vmax.bf16 %v798, %v800
  %803 = vst [vmem:[%s1] sm:$0xf] %v207
  %804 = vst [vmem:[%s1 + $0x4] sm:$0xf] %v242
  %805 = vst [vmem:[%s1 + $0x8] sm:$0xf] %v277
  %806 = vst [vmem:[%s1 + $0xc] sm:$0xf] %v312
  %807 = vst [vmem:[%s1 + $0x10] sm:$0xf] %v347
  %808 = vst [vmem:[%s1 + $0x14] sm:$0xf] %v382
  %809 = vst [vmem:[%s1 + $0x18] sm:$0xf] %v417
  %810 = vst [vmem:[%s1 + $0x1c] sm:$0xf] %v452
  %811 = vst [vmem:[%s1 + $0x20] sm:$0xf] %v487
  %812 = vst [vmem:[%s1 + $0x24] sm:$0xf] %v522
  %813 = vst [vmem:[%s1 + $0x28] sm:$0xf] %v557
  %814 = vst [vmem:[%s1 + $0x2c] sm:$0xf] %v592
  %815 = vst [vmem:[%s1 + $0x30] sm:$0xf] %v627
  %816 = vst [vmem:[%s1 + $0x34] sm:$0xf] %v662
  %817 = vst [vmem:[%s1 + $0x38] sm:$0xf] %v697
  %818 = vst [vmem:[%s1 + $0x3c] sm:$0xf] %v732
  %819 = vst [vmem:[%s1 + $0x40] sm:$0xf] %v767
  %820 = vst [vmem:[%s1 + $0x44] sm:$0xf] %v802
  // Predicated region
  $region6: #{cifar10_forward.6} parent=0 // pred_check
    _
  $region7: #{cifar10_forward.6} parent=0 // pred_check_branch
    %822 = sbr.rel (0) target = $region9
  $region8: #{cifar10_forward.6} parent=0 // pred_region
    _
  $region9: #{cifar10_forward.6} parent=0 // pred_fallthru
    _
  // Predicated region
  $region10: #{cifar10_forward.6} parent=0 // pred_check
    _
  $region11: #{cifar10_forward.6} parent=0 // pred_check_branch
    %824 = sbr.rel (0) target = $region13
  $region12: #{cifar10_forward.6} parent=0 // pred_region
    _
  $region13: #{cifar10_forward.6} parent=0 // pred_fallthru
    _

// kernel: cifar10_forward.7
$region0: #{cifar10_forward.7}
  #allocation0 [shape = 'u32[]', space=smem, size = 0x4, offset = 0x4, fixed_abs, tag = 'smem constant byte address 0x4 - core index']
  #allocation1 [shape = 'u32[144,128]{1,0:T(1,128)}', space=vmem, size = 0x12000, scoped, tag = 'internal scratch']
  %s0 = inlined_call_operand.vmem [shape: bf16[2,144,1600], index: 0, kind: input, shape index: {}]
  %s1 = inlined_call_operand.vmem [shape: bf16[1600,64], index: 1, kind: input, shape index: {}]
  %s2 = inlined_call_operand.vmem [shape: f32[1,64], index: 2, kind: input, shape index: {}]
  %s3 = inlined_call_operand.vmem [shape: bf16[2,144,64], index: 3, kind: output, shape index: {}]
  %s4 = sld [smem:[#allocation0]]
  $region45: #{cifar10_forward.7} parent=0
    _
  %s6 = ssub.s32 1, %s4
  %s7 = scalar_select 0, %s6, %s4
  loop: start=0, step=1, limit=4
  $region2: #{cifar10_forward.7} parent=0 // loop_pre_header
    _
  $region3: #{cifar10_forward.7} parent=0 // loop_header
    %s9 = sphi 0, %s13
    %p10 = scmp.ge.s32.totalorder %s9, 4
    %s16 = sphi 0, %s28
    %s17 = sphi 0, %s24
    %s18 = sphi 0, %s16
    %s19 = sphi 0, %s17
    %s20 = sphi 0, %s18
    %s21 = sphi 0, %s19
    %s33 = sphi 0, %s35
    %s36 = sphi 0, %s33
    %s37 = sphi 0, %s36
    %s53 = sphi 0, %s37
    %s57 = sphi 0, %s57
    %s59 = sphi 0, %s57
    %s60 = sphi 0, %s59
    %s74 = sphi 0, %s60
    %s78 = sphi 0, %s78
    %s80 = sphi 0, %s78
    %s81 = sphi 0, %s80
    %s95 = sphi 0, %s81
    %s103 = sphi 0, %s105
    %s106 = sphi 0, %s103
    %s107 = sphi 0, %s106
    %s123 = sphi 0, %s107
  $region4: #{cifar10_forward.7} parent=0 // loop_header_branch
    %12 = sbr.rel (%p10) target = $region8
  $region5: #{cifar10_forward.7} parent=0 // loop_body
    %s14 = ssub.s32 %s9, 1
    %s15 = ssub.s32 %s9, 2
    %s22 = sadd.s32 1, %s17
    %p23 = scmp.ge.s32.totalorder %s22, 1
    %s24 = scalar_select %p23, 0, %s22
    %s25 = sadd.s32 1, %s16
    %s26 = scalar_select %p23, %s25, %s16
    %p27 = scmp.ge.s32.totalorder %s26, 2
    %s28 = scalar_select %p27, 0, %s26
    %s29 = ssub.s32 %s16, %s28
    %s30 = ssub.s32 %s17, %s24
    %s31 = sor.u32 %s29, %s30
    %p32 = scmp.eq.s32.totalorder %s31, 0
    %s34 = sadd.s32 %s33, 1
    %s35 = scalar_select %p32, %s33, %s34
    %p38 = pneg %p32
    %p39 = scmp.eq.s32.totalorder %s9, 1
    %p40 = por %p38, %p39
    %p41 = scmp.ne.s32.totalorder %s33, %s36
    %p42 = scmp.eq.s32.totalorder %s9, 0
    %p43 = por %p41, %p42
    %p44 = scmp.ne.s32.totalorder %s33, %s36
    %p45 = scmp.eq.s32.totalorder %s14, 1
    %p46 = por %p44, %p45
    %p47 = scmp.ne.s32.totalorder %s36, %s37
    %p48 = scmp.eq.s32.totalorder %s14, 0
    %p49 = por %p47, %p48
    %p50 = scmp.ne.s32.totalorder %s36, %s37
    %p51 = scmp.eq.s32.totalorder %s15, 1
    %p52 = por %p50, %p51
    %p54 = scmp.ne.s32.totalorder %s37, %s53
    %p55 = scmp.eq.s32.totalorder %s15, 0
    %p56 = por %p54, %p55
    %s58 = sadd.s32 %s57, 1
    %p61 = scmp.eq.s32.totalorder %s9, 1
    %p62 = scmp.ne.s32.totalorder %s57, %s59
    %p63 = scmp.eq.s32.totalorder %s9, 0
    %p64 = por %p62, %p63
    %p65 = scmp.ne.s32.totalorder %s57, %s59
    %p66 = scmp.eq.s32.totalorder %s14, 1
    %p67 = por %p65, %p66
    %p68 = scmp.ne.s32.totalorder %s59, %s60
    %p69 = scmp.eq.s32.totalorder %s14, 0
    %p70 = por %p68, %p69
    %p71 = scmp.ne.s32.totalorder %s59, %s60
    %p72 = scmp.eq.s32.totalorder %s15, 1
    %p73 = por %p71, %p72
    %p75 = scmp.ne.s32.totalorder %s60, %s74
    %p76 = scmp.eq.s32.totalorder %s15, 0
    %p77 = por %p75, %p76
    %s79 = sadd.s32 %s78, 1
    %p82 = scmp.eq.s32.totalorder %s9, 1
    %p83 = scmp.ne.s32.totalorder %s78, %s80
    %p84 = scmp.eq.s32.totalorder %s9, 0
    %p85 = por %p83, %p84
    %p86 = scmp.ne.s32.totalorder %s78, %s80
    %p87 = scmp.eq.s32.totalorder %s14, 1
    %p88 = por %p86, %p87
    %p89 = scmp.ne.s32.totalorder %s80, %s81
    %p90 = scmp.eq.s32.totalorder %s14, 0
    %p91 = por %p89, %p90
    %p92 = scmp.ne.s32.totalorder %s80, %s81
    %p93 = scmp.eq.s32.totalorder %s15, 1
    %p94 = por %p92, %p93
    %p96 = scmp.ne.s32.totalorder %s81, %s95
    %p97 = scmp.eq.s32.totalorder %s15, 0
    %p98 = por %p96, %p97
    %s99 = ssub.s32 %s16, %s28
    %s100 = ssub.s32 %s17, %s24
    %s101 = sor.u32 %s99, %s100
    %p102 = scmp.eq.s32.totalorder %s101, 0
    %s104 = sadd.s32 %s103, 1
    %s105 = scalar_select %p102, %s103, %s104
    %p108 = pneg %p102
    %p109 = scmp.eq.s32.totalorder %s9, 1
    %p110 = por %p108, %p109
    %p111 = scmp.ne.s32.totalorder %s103, %s106
    %p112 = scmp.eq.s32.totalorder %s9, 0
    %p113 = por %p111, %p112
    %p114 = scmp.ne.s32.totalorder %s103, %s106
    %p115 = scmp.eq.s32.totalorder %s14, 1
    %p116 = por %p114, %p115
    %p117 = scmp.ne.s32.totalorder %s106, %s107
    %p118 = scmp.eq.s32.totalorder %s14, 0
    %p119 = por %p117, %p118
    %p120 = scmp.ne.s32.totalorder %s106, %s107
    %p121 = scmp.eq.s32.totalorder %s15, 1
    %p122 = por %p120, %p121
    %p124 = scmp.ne.s32.totalorder %s107, %s123
    %p125 = scmp.eq.s32.totalorder %s15, 0
    %p126 = por %p124, %p125
    %p127 = scmp.le.s32.totalorder 1, %s9
    %p128 = scmp.lt.s32.totalorder %s9, 3
    %p129 = pnand %p127, %p128
    %p130 = pneg %p129
    // Predicated region
    $region9: #{cifar10_forward.7} parent=5 // pred_check
      _
    $region10: #{cifar10_forward.7} parent=5 // pred_check_branch
      %132 = sbr.rel (%p129) target = $region12
    $region11: #{cifar10_forward.7} parent=5 // pred_region
      %s133 = ssub.s32 %s9, 1
      // Predicated region
      $region13: #{cifar10_forward.7} parent=11 // pred_check
        %p134 = pneg %p70
      $region14: #{cifar10_forward.7} parent=11 // pred_check_branch
        %136 = sbr.rel (%p134) target = $region16
      $region15: #{cifar10_forward.7} parent=11 // pred_region
        _
      $region16: #{cifar10_forward.7} parent=11 // pred_fallthru
        _
      // Predicated region
      $region17: #{cifar10_forward.7} parent=11 // pred_check
        %p137 = pneg %p91
      $region18: #{cifar10_forward.7} parent=11 // pred_check_branch
        %139 = sbr.rel (%p137) target = $region20
      $region19: #{cifar10_forward.7} parent=11 // pred_region
        _
      $region20: #{cifar10_forward.7} parent=11 // pred_fallthru
        _
    $region12: #{cifar10_forward.7} parent=5 // pred_fallthru
      _
    %p140 = scmp.lt.s32.totalorder %s9, 2
    // Predicated region
    $region21: #{cifar10_forward.7} parent=5 // pred_check
      %p141 = pneg %p140
    $region22: #{cifar10_forward.7} parent=5 // pred_check_branch
      %143 = sbr.rel (%p141) target = $region24
    $region23: #{cifar10_forward.7} parent=5 // pred_region
      // Predicated region
      $region25: #{cifar10_forward.7} parent=23 // pred_check
        %p144 = pneg %p43
      $region26: #{cifar10_forward.7} parent=23 // pred_check_branch
        %146 = sbr.rel (%p144) target = $region28
      $region27: #{cifar10_forward.7} parent=23 // pred_region
        %s147 = smul.u32 18, %s17
        %p148 = scmp.lt.s32.totalorder %s16, 1
        %s149 = scalar_select %p148, %s16, 1
        %p150 = scmp.lt.s32.totalorder %s147, 17
        %s151 = scalar_select %p150, %s147, 17
        %s152 = smul.addr %s151, 13
        %s153 = smul.addr %s149, 234
        %s154 = sadd.s32 %s152, %s153
        %s155 = smul.addr %s154, 4
        %s156 = scalar_lea.vmem %s0, %s155
        %s157 = smul.u32 18, %s17
      $region28: #{cifar10_forward.7} parent=23 // pred_fallthru
        _
    $region24: #{cifar10_forward.7} parent=5 // pred_fallthru
      _
    %p158 = scmp.le.s32.totalorder 1, %s9
    %p159 = scmp.lt.s32.totalorder %s9, 3
    %p160 = pnand %p158, %p159
    %p161 = pneg %p160
    // Predicated region
    $region29: #{cifar10_forward.7} parent=5 // pred_check
      _
    $region30: #{cifar10_forward.7} parent=5 // pred_check_branch
      %163 = sbr.rel (%p160) target = $region32
    $region31: #{cifar10_forward.7} parent=5 // pred_region
      %s164 = ssub.s32 %s9, 1
      %s165 = smul.u32 18, %s19
      %p166 = scmp.lt.s32.totalorder %s18, 1
      %s167 = scalar_select %p166, %s18, 1
      %p168 = scmp.lt.s32.totalorder %s165, 17
      %s169 = scalar_select %p168, %s165, 17
      %s170 = smul.addr %s169, 13
      %s171 = smul.addr %s167, 234
      %s172 = sadd.s32 %s170, %s171
      %s173 = smul.addr %s172, 4
      %s174 = scalar_lea.vmem %s0, %s173
      %p175 = pneg %p49
      %p176 = pneg %p46
      %p177 = pneg %p70
      %p178 = pneg %p67
      %p179 = pneg %p91
      %p180 = pneg %p88
      %p181 = pneg %p119
      %p182 = pneg %p116
      %s183 = smul.u32 18, %s19
      %p184 = scmp.lt.s32.totalorder %s18, 1
      %s185 = scalar_select %p184, %s18, 1
      %p186 = scmp.lt.s32.totalorder %s183, 17
      %s187 = scalar_select %p186, %s183, 17
      %s188 = smul.addr %s185, 18
      %s189 = sadd.s32 %s187, %s188
      %s190 = smul.addr %s189, 4
      %s191 = scalar_lea.vmem %s3, %s190
      %s192 = smul.u32 18, %s19
      %p193 = scmp.lt.s32.totalorder %s18, 1
      %s194 = scalar_select %p193, %s18, 1
      %p195 = scmp.lt.s32.totalorder %s192, 17
      %s196 = scalar_select %p195, %s192, 17
      %s197 = smul.addr %s196, 13
      %s198 = smul.addr %s194, 234
      %s199 = sadd.s32 %s197, %s198
      %s200 = smul.addr %s199, 4
      %s201 = scalar_lea.vmem %s0, %s200
      %s202 = smul.u32 18, %s19
      %s203 = smul.u32 18, %s19
      %p204 = scmp.lt.s32.totalorder %s18, 1
      %s205 = scalar_select %p204, %s18, 1
      %p206 = scmp.lt.s32.totalorder %s203, 17
      %s207 = scalar_select %p206, %s203, 17
      %s208 = smul.addr %s205, 18
      %s209 = sadd.s32 %s207, %s208
      %s210 = smul.addr %s209, 4
      %s211 = scalar_lea.vmem %s3, %s210
      %s212 = smul.u32 18, %s19
      %v214 = vld [vmem:[%s201] sm:$0xff]
      %v215 = vld [vmem:[%s201 + $0x8] sm:$0xff]
      %v216 = vld [vmem:[%s201 + $0x10] sm:$0xff]
      %v217 = vld [vmem:[%s201 + $0x18] sm:$0xff]
      %v218 = vld [vmem:[%s201 + $0x20] sm:$0xff]
      %v219 = vld [vmem:[%s201 + $0x28] sm:$0xff]
      %v220 = vld [vmem:[%s201 + $0x30] sm:$0xf]
      %v221 = vld [vmem:[%s201 + $0x34] sm:$0xff]
      %v222 = vld [vmem:[%s201 + $0x3c] sm:$0xff]
      %v223 = vld [vmem:[%s201 + $0x44] sm:$0xff]
      %v224 = vld [vmem:[%s201 + $0x4c] sm:$0xff]
      %v225 = vld [vmem:[%s201 + $0x54] sm:$0xff]
      %v226 = vld [vmem:[%s201 + $0x5c] sm:$0xff]
      %v227 = vld [vmem:[%s201 + $0x64] sm:$0xf]
      %v228 = vld [vmem:[%s201 + $0x68] sm:$0xff]
      %v229 = vld [vmem:[%s201 + $0x70] sm:$0xff]
      %v230 = vld [vmem:[%s201 + $0x78] sm:$0xff]
      %v231 = vld [vmem:[%s201 + $0x80] sm:$0xff]
      %v232 = vld [vmem:[%s201 + $0x88] sm:$0xff]
      %v233 = vld [vmem:[%s201 + $0x90] sm:$0xff]
      %v234 = vld [vmem:[%s201 + $0x98] sm:$0xf]
      %v235 = vld [vmem:[%s201 + $0x9c] sm:$0xff]
      %v236 = vld [vmem:[%s201 + $0xa4] sm:$0xff]
      %v237 = vld [vmem:[%s201 + $0xac] sm:$0xff]
      %v238 = vld [vmem:[%s201 + $0xb4] sm:$0xff]
      %v239 = vld [vmem:[%s201 + $0xbc] sm:$0xff]
      %v240 = vld [vmem:[%s201 + $0xc4] sm:$0xff]
      %v241 = vld [vmem:[%s201 + $0xcc] sm:$0xf]
      %v242 = vld [vmem:[%s201 + $0xd0] sm:$0xff]
      %v243 = vld [vmem:[%s201 + $0xd8] sm:$0xff]
      %v244 = vld [vmem:[%s201 + $0xe0] sm:$0xff]
      %v245 = vld [vmem:[%s201 + $0xe8] sm:$0xff]
      %v246 = vld [vmem:[%s201 + $0xf0] sm:$0xff]
      %v247 = vld [vmem:[%s201 + $0xf8] sm:$0xff]
      %v248 = vld [vmem:[%s201 + $0x100] sm:$0xf]
      %v249 = vld [vmem:[%s201 + $0x104] sm:$0xff]
      %v250 = vld [vmem:[%s201 + $0x10c] sm:$0xff]
      %v251 = vld [vmem:[%s201 + $0x114] sm:$0xff]
      %v252 = vld [vmem:[%s201 + $0x11c] sm:$0xff]
      %v253 = vld [vmem:[%s201 + $0x124] sm:$0xff]
      %v254 = vld [vmem:[%s201 + $0x12c] sm:$0xff]
      %v255 = vld [vmem:[%s201 + $0x134] sm:$0xf]
      %v256 = vld [vmem:[%s201 + $0x138] sm:$0xff]
      %v257 = vld [vmem:[%s201 + $0x140] sm:$0xff]
      %v258 = vld [vmem:[%s201 + $0x148] sm:$0xff]
      %v259 = vld [vmem:[%s201 + $0x150] sm:$0xff]
      %v260 = vld [vmem:[%s201 + $0x158] sm:$0xff]
      %v261 = vld [vmem:[%s201 + $0x160] sm:$0xff]
      %v262 = vld [vmem:[%s201 + $0x168] sm:$0xf]
      %v263 = vld [vmem:[%s201 + $0x16c] sm:$0xff]
      %v264 = vld [vmem:[%s201 + $0x174] sm:$0xff]
      %v265 = vld [vmem:[%s201 + $0x17c] sm:$0xff]
      %v266 = vld [vmem:[%s201 + $0x184] sm:$0xff]
      %v267 = vld [vmem:[%s201 + $0x18c] sm:$0xff]
      %v268 = vld [vmem:[%s201 + $0x194] sm:$0xff]
      %v269 = vld [vmem:[%s201 + $0x19c] sm:$0xf]
      %v270 = vld [vmem:[%s201 + $0x1a0] sm:$0xff]
      %v271 = vld [vmem:[%s201 + $0x1a8] sm:$0xff]
      %v272 = vld [vmem:[%s201 + $0x1b0] sm:$0xff]
      %v273 = vld [vmem:[%s201 + $0x1b8] sm:$0xff]
      %v274 = vld [vmem:[%s201 + $0x1c0] sm:$0xff]
      %v275 = vld [vmem:[%s201 + $0x1c8] sm:$0xff]
      %v276 = vld [vmem:[%s201 + $0x1d0] sm:$0xf]
      %v277 = vld [vmem:[%s201 + $0x1d4] sm:$0xff]
      %v278 = vld [vmem:[%s201 + $0x1dc] sm:$0xff]
      %v279 = vld [vmem:[%s201 + $0x1e4] sm:$0xff]
      %v280 = vld [vmem:[%s201 + $0x1ec] sm:$0xff]
      %v281 = vld [vmem:[%s201 + $0x1f4] sm:$0xff]
      %v282 = vld [vmem:[%s201 + $0x1fc] sm:$0xff]
      %v283 = vld [vmem:[%s201 + $0x204] sm:$0xf]
      %v284 = vld [vmem:[%s201 + $0x208] sm:$0xff]
      %v285 = vld [vmem:[%s201 + $0x210] sm:$0xff]
      %v286 = vld [vmem:[%s201 + $0x218] sm:$0xff]
      %v287 = vld [vmem:[%s201 + $0x220] sm:$0xff]
      %v288 = vld [vmem:[%s201 + $0x228] sm:$0xff]
      %v289 = vld [vmem:[%s201 + $0x230] sm:$0xff]
      %v290 = vld [vmem:[%s201 + $0x238] sm:$0xf]
      %v291 = vld [vmem:[%s201 + $0x23c] sm:$0xff]
      %v292 = vld [vmem:[%s201 + $0x244] sm:$0xff]
      %v293 = vld [vmem:[%s201 + $0x24c] sm:$0xff]
      %v294 = vld [vmem:[%s201 + $0x254] sm:$0xff]
      %v295 = vld [vmem:[%s201 + $0x25c] sm:$0xff]
      %v296 = vld [vmem:[%s201 + $0x264] sm:$0xff]
      %v297 = vld [vmem:[%s201 + $0x26c] sm:$0xf]
      %v298 = vld [vmem:[%s201 + $0x270] sm:$0xff]
      %v299 = vld [vmem:[%s201 + $0x278] sm:$0xff]
      %v300 = vld [vmem:[%s201 + $0x280] sm:$0xff]
      %v301 = vld [vmem:[%s201 + $0x288] sm:$0xff]
      %v302 = vld [vmem:[%s201 + $0x290] sm:$0xff]
      %v303 = vld [vmem:[%s201 + $0x298] sm:$0xff]
      %v304 = vld [vmem:[%s201 + $0x2a0] sm:$0xf]
      %v305 = vld [vmem:[%s201 + $0x2a4] sm:$0xff]
      %v306 = vld [vmem:[%s201 + $0x2ac] sm:$0xff]
      %v307 = vld [vmem:[%s201 + $0x2b4] sm:$0xff]
      %v308 = vld [vmem:[%s201 + $0x2bc] sm:$0xff]
      %v309 = vld [vmem:[%s201 + $0x2c4] sm:$0xff]
      %v310 = vld [vmem:[%s201 + $0x2cc] sm:$0xff]
      %v311 = vld [vmem:[%s201 + $0x2d4] sm:$0xf]
      %v312 = vld [vmem:[%s201 + $0x2d8] sm:$0xff]
      %v313 = vld [vmem:[%s201 + $0x2e0] sm:$0xff]
      %v314 = vld [vmem:[%s201 + $0x2e8] sm:$0xff]
      %v315 = vld [vmem:[%s201 + $0x2f0] sm:$0xff]
      %v316 = vld [vmem:[%s201 + $0x2f8] sm:$0xff]
      %v317 = vld [vmem:[%s201 + $0x300] sm:$0xff]
      %v318 = vld [vmem:[%s201 + $0x308] sm:$0xf]
      %v319 = vld [vmem:[%s201 + $0x30c] sm:$0xff]
      %v320 = vld [vmem:[%s201 + $0x314] sm:$0xff]
      %v321 = vld [vmem:[%s201 + $0x31c] sm:$0xff]
      %v322 = vld [vmem:[%s201 + $0x324] sm:$0xff]
      %v323 = vld [vmem:[%s201 + $0x32c] sm:$0xff]
      %v324 = vld [vmem:[%s201 + $0x334] sm:$0xff]
      %v325 = vld [vmem:[%s201 + $0x33c] sm:$0xf]
      %v326 = vld [vmem:[%s201 + $0x340] sm:$0xff]
      %v327 = vld [vmem:[%s201 + $0x348] sm:$0xff]
      %v328 = vld [vmem:[%s201 + $0x350] sm:$0xff]
      %v329 = vld [vmem:[%s201 + $0x358] sm:$0xff]
      %v330 = vld [vmem:[%s201 + $0x360] sm:$0xff]
      %v331 = vld [vmem:[%s201 + $0x368] sm:$0xff]
      %v332 = vld [vmem:[%s201 + $0x370] sm:$0xf]
      %v333 = vld [vmem:[%s201 + $0x374] sm:$0xff]
      %v334 = vld [vmem:[%s201 + $0x37c] sm:$0xff]
      %v335 = vld [vmem:[%s201 + $0x384] sm:$0xff]
      %v336 = vld [vmem:[%s201 + $0x38c] sm:$0xff]
      %v337 = vld [vmem:[%s201 + $0x394] sm:$0xff]
      %v338 = vld [vmem:[%s201 + $0x39c] sm:$0xff]
      %v339 = vld [vmem:[%s201 + $0x3a4] sm:$0xf]
      %v340 = vld [vmem:[%s1] sm:$0xf]
      %v341 = vld [vmem:[%s1 + $0x4] sm:$0xf]
      %v342 = vld [vmem:[%s1 + $0x8] sm:$0xf]
      %v343 = vld [vmem:[%s1 + $0xc] sm:$0xf]
      %v344 = vld [vmem:[%s1 + $0x10] sm:$0xf]
      %v345 = vld [vmem:[%s1 + $0x14] sm:$0xf]
      %v346 = vld [vmem:[%s1 + $0x18] sm:$0xf]
      %v347 = vld [vmem:[%s1 + $0x1c] sm:$0xf]
      %v348 = vld [vmem:[%s1 + $0x20] sm:$0xf]
      %v349 = vld [vmem:[%s1 + $0x24] sm:$0xf]
      %v350 = vld [vmem:[%s1 + $0x28] sm:$0xf]
      %v351 = vld [vmem:[%s1 + $0x2c] sm:$0xf]
      %v352 = vld [vmem:[%s1 + $0x30] sm:$0xf]
      %v353 = vld [vmem:[%s1 + $0x34] sm:$0xf]
      %v354 = vld [vmem:[%s1 + $0x38] sm:$0xf]
      %v355 = vld [vmem:[%s1 + $0x3c] sm:$0xf]
      %v356 = vld [vmem:[%s1 + $0x40] sm:$0xf]
      %v357 = vld [vmem:[%s1 + $0x44] sm:$0xf]
      %v358 = vld [vmem:[%s1 + $0x48] sm:$0xf]
      %v359 = vld [vmem:[%s1 + $0x4c] sm:$0xf]
      %v360 = vld [vmem:[%s1 + $0x50] sm:$0xf]
      %v361 = vld [vmem:[%s1 + $0x54] sm:$0xf]
      %v362 = vld [vmem:[%s1 + $0x58] sm:$0xf]
      %v363 = vld [vmem:[%s1 + $0x5c] sm:$0xf]
      %v364 = vld [vmem:[%s1 + $0x60] sm:$0xf]
      %v365 = vld [vmem:[%s1 + $0x64] sm:$0xf]
      %v366 = vld [vmem:[%s1 + $0x68] sm:$0xf]
      %v367 = vld [vmem:[%s1 + $0x6c] sm:$0xf]
      %v368 = vld [vmem:[%s1 + $0x70] sm:$0xf]
      %v369 = vld [vmem:[%s1 + $0x74] sm:$0xf]
      %v370 = vld [vmem:[%s1 + $0x78] sm:$0xf]
      %v371 = vld [vmem:[%s1 + $0x7c] sm:$0xf]
      %v372 = vld [vmem:[%s1 + $0x80] sm:$0xf]
      %v373 = vld [vmem:[%s1 + $0x84] sm:$0xf]
      %v374 = vld [vmem:[%s1 + $0x88] sm:$0xf]
      %v375 = vld [vmem:[%s1 + $0x8c] sm:$0xf]
      %v376 = vld [vmem:[%s1 + $0x90] sm:$0xf]
      %v377 = vld [vmem:[%s1 + $0x94] sm:$0xf]
      %v378 = vld [vmem:[%s1 + $0x98] sm:$0xf]
      %v379 = vld [vmem:[%s1 + $0x9c] sm:$0xf]
      %v380 = vld [vmem:[%s1 + $0xa0] sm:$0xf]
      %v381 = vld [vmem:[%s1 + $0xa4] sm:$0xf]
      %v382 = vld [vmem:[%s1 + $0xa8] sm:$0xf]
      %v383 = vld [vmem:[%s1 + $0xac] sm:$0xf]
      %v384 = vld [vmem:[%s1 + $0xb0] sm:$0xf]
      %v385 = vld [vmem:[%s1 + $0xb4] sm:$0xf]
      %v386 = vld [vmem:[%s1 + $0xb8] sm:$0xf]
      %v387 = vld [vmem:[%s1 + $0xbc] sm:$0xf]
      %v388 = vld [vmem:[%s1 + $0xc0] sm:$0xf]
      %v389 = vld [vmem:[%s1 + $0xc4] sm:$0xf]
      %v390 = vld [vmem:[%s1 + $0xc8] sm:$0xf]
      %v391 = vld [vmem:[%s1 + $0xcc] sm:$0xf]
      %v392 = vld [vmem:[%s1 + $0xd0] sm:$0xf]
      %v393 = vld [vmem:[%s1 + $0xd4] sm:$0xf]
      %v394 = vld [vmem:[%s1 + $0xd8] sm:$0xf]
      %v395 = vld [vmem:[%s1 + $0xdc] sm:$0xf]
      %v396 = vld [vmem:[%s1 + $0xe0] sm:$0xf]
      %v397 = vld [vmem:[%s1 + $0xe4] sm:$0xf]
      %v398 = vld [vmem:[%s1 + $0xe8] sm:$0xf]
      %v399 = vld [vmem:[%s1 + $0xec] sm:$0xf]
      %v400 = vld [vmem:[%s1 + $0xf0] sm:$0xf]
      %v401 = vld [vmem:[%s1 + $0xf4] sm:$0xf]
      %v402 = vld [vmem:[%s1 + $0xf8] sm:$0xf]
      %v403 = vld [vmem:[%s1 + $0xfc] sm:$0xf]
      %v404 = vld [vmem:[%s1 + $0x100] sm:$0xf]
      %v405 = vld [vmem:[%s1 + $0x104] sm:$0xf]
      %v406 = vld [vmem:[%s1 + $0x108] sm:$0xf]
      %v407 = vld [vmem:[%s1 + $0x10c] sm:$0xf]
      %v408 = vld [vmem:[%s1 + $0x110] sm:$0xf]
      %v409 = vld [vmem:[%s1 + $0x114] sm:$0xf]
      %v410 = vld [vmem:[%s1 + $0x118] sm:$0xf]
      %v411 = vld [vmem:[%s1 + $0x11c] sm:$0xf]
      %v412 = vld [vmem:[%s1 + $0x120] sm:$0xf]
      %v413 = vld [vmem:[%s1 + $0x124] sm:$0xf]
      %v414 = vld [vmem:[%s1 + $0x128] sm:$0xf]
      %v415 = vld [vmem:[%s1 + $0x12c] sm:$0xf]
      %v416 = vld [vmem:[%s1 + $0x130] sm:$0xf]
      %v417 = vld [vmem:[%s1 + $0x134] sm:$0xf]
      %v418 = vld [vmem:[%s1 + $0x138] sm:$0xf]
      %v419 = vld [vmem:[%s1 + $0x13c] sm:$0xf]
      %v420 = vld [vmem:[%s1 + $0x140] sm:$0xf]
      %v421 = vld [vmem:[%s1 + $0x144] sm:$0xf]
      %v422 = vld [vmem:[%s1 + $0x148] sm:$0xf]
      %v423 = vld [vmem:[%s1 + $0x14c] sm:$0xf]
      %v424 = vld [vmem:[%s1 + $0x150] sm:$0xf]
      %v425 = vld [vmem:[%s1 + $0x154] sm:$0xf]
      %v426 = vld [vmem:[%s1 + $0x158] sm:$0xf]
      %v427 = vld [vmem:[%s1 + $0x15c] sm:$0xf]
      %v428 = vld [vmem:[%s1 + $0x160] sm:$0xf]
      %v429 = vld [vmem:[%s1 + $0x164] sm:$0xf]
      %v430 = vld [vmem:[%s1 + $0x168] sm:$0xf]
      %v431 = vld [vmem:[%s1 + $0x16c] sm:$0xf]
      %v432 = vld [vmem:[%s1 + $0x170] sm:$0xf]
      %v433 = vld [vmem:[%s1 + $0x174] sm:$0xf]
      %v434 = vld [vmem:[%s1 + $0x178] sm:$0xf]
      %v435 = vld [vmem:[%s1 + $0x17c] sm:$0xf]
      %v436 = vld [vmem:[%s1 + $0x180] sm:$0xf]
      %v437 = vld [vmem:[%s1 + $0x184] sm:$0xf]
      %v438 = vld [vmem:[%s1 + $0x188] sm:$0xf]
      %v439 = vld [vmem:[%s1 + $0x18c] sm:$0xf]
      %v440 = vld [vmem:[%s1 + $0x190] sm:$0xf]
      %v441 = vld [vmem:[%s1 + $0x194] sm:$0xf]
      %v442 = vld [vmem:[%s1 + $0x198] sm:$0xf]
      %v443 = vld [vmem:[%s1 + $0x19c] sm:$0xf]
      %v444 = vld [vmem:[%s1 + $0x1a0] sm:$0xf]
      %v445 = vld [vmem:[%s1 + $0x1a4] sm:$0xf]
      %v446 = vld [vmem:[%s1 + $0x1a8] sm:$0xf]
      %v447 = vld [vmem:[%s1 + $0x1ac] sm:$0xf]
      %v448 = vld [vmem:[%s1 + $0x1b0] sm:$0xf]
      %v449 = vld [vmem:[%s1 + $0x1b4] sm:$0xf]
      %v450 = vld [vmem:[%s1 + $0x1b8] sm:$0xf]
      %v451 = vld [vmem:[%s1 + $0x1bc] sm:$0xf]
      %v452 = vld [vmem:[%s1 + $0x1c0] sm:$0xf]
      %v453 = vld [vmem:[%s1 + $0x1c4] sm:$0xf]
      %v454 = vld [vmem:[%s1 + $0x1c8] sm:$0xf]
      %v455 = vld [vmem:[%s1 + $0x1cc] sm:$0xf]
      %v456 = vld [vmem:[%s1 + $0x1d0] sm:$0xf]
      %v457 = vld [vmem:[%s1 + $0x1d4] sm:$0xf]
      %v458 = vld [vmem:[%s1 + $0x1d8] sm:$0xf]
      %v459 = vld [vmem:[%s1 + $0x1dc] sm:$0xf]
      %v460 = vld [vmem:[%s1 + $0x1e0] sm:$0xf]
      %v461 = vld [vmem:[%s1 + $0x1e4] sm:$0xf]
      %v462 = vld [vmem:[%s1 + $0x1e8] sm:$0xf]
      %v463 = vld [vmem:[%s1 + $0x1ec] sm:$0xf]
      %v464 = vld [vmem:[%s1 + $0x1f0] sm:$0xf]
      %v465 = vld [vmem:[%s1 + $0x1f4] sm:$0xf]
      %v466 = vld [vmem:[%s1 + $0x1f8] sm:$0xf]
      %v467 = vld [vmem:[%s1 + $0x1fc] sm:$0xf]
      %v468 = vld [vmem:[%s1 + $0x200] sm:$0xf]
      %v469 = vld [vmem:[%s1 + $0x204] sm:$0xf]
      %v470 = vld [vmem:[%s1 + $0x208] sm:$0xf]
      %v471 = vld [vmem:[%s1 + $0x20c] sm:$0xf]
      %v472 = vld [vmem:[%s1 + $0x210] sm:$0xf]
      %v473 = vld [vmem:[%s1 + $0x214] sm:$0xf]
      %v474 = vld [vmem:[%s1 + $0x218] sm:$0xf]
      %v475 = vld [vmem:[%s1 + $0x21c] sm:$0xf]
      %v476 = vld [vmem:[%s1 + $0x220] sm:$0xf]
      %v477 = vld [vmem:[%s1 + $0x224] sm:$0xf]
      %v478 = vld [vmem:[%s1 + $0x228] sm:$0xf]
      %v479 = vld [vmem:[%s1 + $0x22c] sm:$0xf]
      %v480 = vld [vmem:[%s1 + $0x230] sm:$0xf]
      %v481 = vld [vmem:[%s1 + $0x234] sm:$0xf]
      %v482 = vld [vmem:[%s1 + $0x238] sm:$0xf]
      %v483 = vld [vmem:[%s1 + $0x23c] sm:$0xf]
      %v484 = vld [vmem:[%s1 + $0x240] sm:$0xf]
      %v485 = vld [vmem:[%s1 + $0x244] sm:$0xf]
      %v486 = vld [vmem:[%s1 + $0x248] sm:$0xf]
      %v487 = vld [vmem:[%s1 + $0x24c] sm:$0xf]
      %v488 = vld [vmem:[%s1 + $0x250] sm:$0xf]
      %v489 = vld [vmem:[%s1 + $0x254] sm:$0xf]
      %v490 = vld [vmem:[%s1 + $0x258] sm:$0xf]
      %v491 = vld [vmem:[%s1 + $0x25c] sm:$0xf]
      %v492 = vld [vmem:[%s1 + $0x260] sm:$0xf]
      %v493 = vld [vmem:[%s1 + $0x264] sm:$0xf]
      %v494 = vld [vmem:[%s1 + $0x268] sm:$0xf]
      %v495 = vld [vmem:[%s1 + $0x26c] sm:$0xf]
      %v496 = vld [vmem:[%s1 + $0x270] sm:$0xf]
      %v497 = vld [vmem:[%s1 + $0x274] sm:$0xf]
      %v498 = vld [vmem:[%s1 + $0x278] sm:$0xf]
      %v499 = vld [vmem:[%s1 + $0x27c] sm:$0xf]
      %v500 = vld [vmem:[%s1 + $0x280] sm:$0xf]
      %v501 = vld [vmem:[%s1 + $0x284] sm:$0xf]
      %v502 = vld [vmem:[%s1 + $0x288] sm:$0xf]
      %v503 = vld [vmem:[%s1 + $0x28c] sm:$0xf]
      %v504 = vld [vmem:[%s1 + $0x290] sm:$0xf]
      %v505 = vld [vmem:[%s1 + $0x294] sm:$0xf]
      %v506 = vld [vmem:[%s1 + $0x298] sm:$0xf]
      %v507 = vld [vmem:[%s1 + $0x29c] sm:$0xf]
      %v508 = vld [vmem:[%s1 + $0x2a0] sm:$0xf]
      %v509 = vld [vmem:[%s1 + $0x2a4] sm:$0xf]
      %v510 = vld [vmem:[%s1 + $0x2a8] sm:$0xf]
      %v511 = vld [vmem:[%s1 + $0x2ac] sm:$0xf]
      %v512 = vld [vmem:[%s1 + $0x2b0] sm:$0xf]
      %v513 = vld [vmem:[%s1 + $0x2b4] sm:$0xf]
      %v514 = vld [vmem:[%s1 + $0x2b8] sm:$0xf]
      %v515 = vld [vmem:[%s1 + $0x2bc] sm:$0xf]
      %v516 = vld [vmem:[%s1 + $0x2c0] sm:$0xf]
      %v517 = vld [vmem:[%s1 + $0x2c4] sm:$0xf]
      %v518 = vld [vmem:[%s1 + $0x2c8] sm:$0xf]
      %v519 = vld [vmem:[%s1 + $0x2cc] sm:$0xf]
      %v520 = vld [vmem:[%s1 + $0x2d0] sm:$0xf]
      %v521 = vld [vmem:[%s1 + $0x2d4] sm:$0xf]
      %v522 = vld [vmem:[%s1 + $0x2d8] sm:$0xf]
      %v523 = vld [vmem:[%s1 + $0x2dc] sm:$0xf]
      %v524 = vld [vmem:[%s1 + $0x2e0] sm:$0xf]
      %v525 = vld [vmem:[%s1 + $0x2e4] sm:$0xf]
      %v526 = vld [vmem:[%s1 + $0x2e8] sm:$0xf]
      %v527 = vld [vmem:[%s1 + $0x2ec] sm:$0xf]
      %v528 = vld [vmem:[%s1 + $0x2f0] sm:$0xf]
      %v529 = vld [vmem:[%s1 + $0x2f4] sm:$0xf]
      %v530 = vld [vmem:[%s1 + $0x2f8] sm:$0xf]
      %v531 = vld [vmem:[%s1 + $0x2fc] sm:$0xf]
      %v532 = vld [vmem:[%s1 + $0x300] sm:$0xf]
      %v533 = vld [vmem:[%s1 + $0x304] sm:$0xf]
      %v534 = vld [vmem:[%s1 + $0x308] sm:$0xf]
      %v535 = vld [vmem:[%s1 + $0x30c] sm:$0xf]
      %v536 = vld [vmem:[%s1 + $0x310] sm:$0xf]
      %v537 = vld [vmem:[%s1 + $0x314] sm:$0xf]
      %v538 = vld [vmem:[%s1 + $0x318] sm:$0xf]
      %v539 = vld [vmem:[%s1 + $0x31c] sm:$0xf]
      %v540 = vld [vmem:[%s2] sm:$0x1]
      %v542 = vlaneseq
      %v543 = vshrl.u32 %v542, 7
      %v544 = vsub.s32 0, %v543
      %v545 = vrot.slane %v540, %v544
      %v673 = vunpack.c.l.b16 %v214
      %v674 = vunpack.c.h.b16 %v214
      %v675 = vunpack.c.l.b16 %v215
      %v676 = vunpack.c.h.b16 %v215
      %v677 = vunpack.c.l.b16 %v216
      %v678 = vunpack.c.h.b16 %v216
      %v679 = vunpack.c.l.b16 %v217
      %v680 = vunpack.c.h.b16 %v217
      %v681 = vunpack.c.l.b16 %v218
      %v682 = vunpack.c.h.b16 %v218
      %v683 = vunpack.c.l.b16 %v219
      %v684 = vunpack.c.h.b16 %v219
      %v685 = vunpack.c.l.b16 %v220
      %v686 = vunpack.c.l.b16 %v221
      %v687 = vunpack.c.h.b16 %v221
      %v688 = vunpack.c.l.b16 %v222
      %v689 = vunpack.c.h.b16 %v222
      %v690 = vunpack.c.l.b16 %v223
      %v691 = vunpack.c.h.b16 %v223
      %v692 = vunpack.c.l.b16 %v224
      %v693 = vunpack.c.h.b16 %v224
      %v694 = vunpack.c.l.b16 %v225
      %v695 = vunpack.c.h.b16 %v225
      %v696 = vunpack.c.l.b16 %v226
      %v697 = vunpack.c.h.b16 %v226
      %v698 = vunpack.c.l.b16 %v227
      %v699 = vunpack.c.l.b16 %v228
      %v700 = vunpack.c.h.b16 %v228
      %v701 = vunpack.c.l.b16 %v229
      %v702 = vunpack.c.h.b16 %v229
      %v703 = vunpack.c.l.b16 %v230
      %v704 = vunpack.c.h.b16 %v230
      %v705 = vunpack.c.l.b16 %v231
      %v706 = vunpack.c.h.b16 %v231
      %v707 = vunpack.c.l.b16 %v232
      %v708 = vunpack.c.h.b16 %v232
      %v709 = vunpack.c.l.b16 %v233
      %v710 = vunpack.c.h.b16 %v233
      %v711 = vunpack.c.l.b16 %v234
      %v712 = vunpack.c.l.b16 %v235
      %v713 = vunpack.c.h.b16 %v235
      %v714 = vunpack.c.l.b16 %v236
      %v715 = vunpack.c.h.b16 %v236
      %v716 = vunpack.c.l.b16 %v237
      %v717 = vunpack.c.h.b16 %v237
      %v718 = vunpack.c.l.b16 %v238
      %v719 = vunpack.c.h.b16 %v238
      %v720 = vunpack.c.l.b16 %v239
      %v721 = vunpack.c.h.b16 %v239
      %v722 = vunpack.c.l.b16 %v240
      %v723 = vunpack.c.h.b16 %v240
      %v724 = vunpack.c.l.b16 %v241
      %v725 = vunpack.c.l.b16 %v242
      %v726 = vunpack.c.h.b16 %v242
      %v727 = vunpack.c.l.b16 %v243
      %v728 = vunpack.c.h.b16 %v243
      %v729 = vunpack.c.l.b16 %v244
      %v730 = vunpack.c.h.b16 %v244
      %v731 = vunpack.c.l.b16 %v245
      %v732 = vunpack.c.h.b16 %v245
      %v733 = vunpack.c.l.b16 %v246
      %v734 = vunpack.c.h.b16 %v246
      %v735 = vunpack.c.l.b16 %v247
      %v736 = vunpack.c.h.b16 %v247
      %v737 = vunpack.c.l.b16 %v248
      %v738 = vunpack.c.l.b16 %v249
      %v739 = vunpack.c.h.b16 %v249
      %v740 = vunpack.c.l.b16 %v250
      %v741 = vunpack.c.h.b16 %v250
      %v742 = vunpack.c.l.b16 %v251
      %v743 = vunpack.c.h.b16 %v251
      %v744 = vunpack.c.l.b16 %v252
      %v745 = vunpack.c.h.b16 %v252
      %v746 = vunpack.c.l.b16 %v253
      %v747 = vunpack.c.h.b16 %v253
      %v748 = vunpack.c.l.b16 %v254
      %v749 = vunpack.c.h.b16 %v254
      %v750 = vunpack.c.l.b16 %v255
      %v751 = vunpack.c.l.b16 %v256
      %v752 = vunpack.c.h.b16 %v256
      %v753 = vunpack.c.l.b16 %v257
      %v754 = vunpack.c.h.b16 %v257
      %v755 = vunpack.c.l.b16 %v258
      %v756 = vunpack.c.h.b16 %v258
      %v757 = vunpack.c.l.b16 %v259
      %v758 = vunpack.c.h.b16 %v259
      %v759 = vunpack.c.l.b16 %v260
      %v760 = vunpack.c.h.b16 %v260
      %v761 = vunpack.c.l.b16 %v261
      %v762 = vunpack.c.h.b16 %v261
      %v763 = vunpack.c.l.b16 %v262
      %v764 = vunpack.c.l.b16 %v263
      %v765 = vunpack.c.h.b16 %v263
      %v766 = vunpack.c.l.b16 %v264
      %v767 = vunpack.c.h.b16 %v264
      %v768 = vunpack.c.l.b16 %v265
      %v769 = vunpack.c.h.b16 %v265
      %v770 = vunpack.c.l.b16 %v266
      %v771 = vunpack.c.h.b16 %v266
      %v772 = vunpack.c.l.b16 %v267
      %v773 = vunpack.c.h.b16 %v267
      %v774 = vunpack.c.l.b16 %v268
      %v775 = vunpack.c.h.b16 %v268
      %v776 = vunpack.c.l.b16 %v269
      %v777 = vunpack.c.l.b16 %v270
      %v778 = vunpack.c.h.b16 %v270
      %v779 = vunpack.c.l.b16 %v271
      %v780 = vunpack.c.h.b16 %v271
      %v781 = vunpack.c.l.b16 %v272
      %v782 = vunpack.c.h.b16 %v272
      %v783 = vunpack.c.l.b16 %v273
      %v784 = vunpack.c.h.b16 %v273
      %v785 = vunpack.c.l.b16 %v274
      %v786 = vunpack.c.h.b16 %v274
      %v787 = vunpack.c.l.b16 %v275
      %v788 = vunpack.c.h.b16 %v275
      %v789 = vunpack.c.l.b16 %v276
      %v790 = vunpack.c.l.b16 %v277
      %v791 = vunpack.c.h.b16 %v277
      %v792 = vunpack.c.l.b16 %v278
      %v793 = vunpack.c.h.b16 %v278
      %v794 = vunpack.c.l.b16 %v279
      %v795 = vunpack.c.h.b16 %v279
      %v796 = vunpack.c.l.b16 %v280
      %v797 = vunpack.c.h.b16 %v280
      %v798 = vunpack.c.l.b16 %v281
      %v799 = vunpack.c.h.b16 %v281
      %v800 = vunpack.c.l.b16 %v282
      %v801 = vunpack.c.h.b16 %v282
      %v802 = vunpack.c.l.b16 %v283
      %v803 = vunpack.c.l.b16 %v284
      %v804 = vunpack.c.h.b16 %v284
      %v805 = vunpack.c.l.b16 %v285
      %v806 = vunpack.c.h.b16 %v285
      %v807 = vunpack.c.l.b16 %v286
      %v808 = vunpack.c.h.b16 %v286
      %v809 = vunpack.c.l.b16 %v287
      %v810 = vunpack.c.h.b16 %v287
      %v811 = vunpack.c.l.b16 %v288
      %v812 = vunpack.c.h.b16 %v288
      %v813 = vunpack.c.l.b16 %v289
      %v814 = vunpack.c.h.b16 %v289
      %v815 = vunpack.c.l.b16 %v290
      %v816 = vunpack.c.l.b16 %v291
      %v817 = vunpack.c.h.b16 %v291
      %v818 = vunpack.c.l.b16 %v292
      %v819 = vunpack.c.h.b16 %v292
      %v820 = vunpack.c.l.b16 %v293
      %v821 = vunpack.c.h.b16 %v293
      %v822 = vunpack.c.l.b16 %v294
      %v823 = vunpack.c.h.b16 %v294
      %v824 = vunpack.c.l.b16 %v295
      %v825 = vunpack.c.h.b16 %v295
      %v826 = vunpack.c.l.b16 %v296
      %v827 = vunpack.c.h.b16 %v296
      %v828 = vunpack.c.l.b16 %v297
      %v829 = vunpack.c.l.b16 %v298
      %v830 = vunpack.c.h.b16 %v298
      %v831 = vunpack.c.l.b16 %v299
      %v832 = vunpack.c.h.b16 %v299
      %v833 = vunpack.c.l.b16 %v300
      %v834 = vunpack.c.h.b16 %v300
      %v835 = vunpack.c.l.b16 %v301
      %v836 = vunpack.c.h.b16 %v301
      %v837 = vunpack.c.l.b16 %v302
      %v838 = vunpack.c.h.b16 %v302
      %v839 = vunpack.c.l.b16 %v303
      %v840 = vunpack.c.h.b16 %v303
      %v841 = vunpack.c.l.b16 %v304
      %v842 = vunpack.c.l.b16 %v305
      %v843 = vunpack.c.h.b16 %v305
      %v844 = vunpack.c.l.b16 %v306
      %v845 = vunpack.c.h.b16 %v306
      %v846 = vunpack.c.l.b16 %v307
      %v847 = vunpack.c.h.b16 %v307
      %v848 = vunpack.c.l.b16 %v308
      %v849 = vunpack.c.h.b16 %v308
      %v850 = vunpack.c.l.b16 %v309
      %v851 = vunpack.c.h.b16 %v309
      %v852 = vunpack.c.l.b16 %v310
      %v853 = vunpack.c.h.b16 %v310
      %v854 = vunpack.c.l.b16 %v311
      %v855 = vunpack.c.l.b16 %v312
      %v856 = vunpack.c.h.b16 %v312
      %v857 = vunpack.c.l.b16 %v313
      %v858 = vunpack.c.h.b16 %v313
      %v859 = vunpack.c.l.b16 %v314
      %v860 = vunpack.c.h.b16 %v314
      %v861 = vunpack.c.l.b16 %v315
      %v862 = vunpack.c.h.b16 %v315
      %v863 = vunpack.c.l.b16 %v316
      %v864 = vunpack.c.h.b16 %v316
      %v865 = vunpack.c.l.b16 %v317
      %v866 = vunpack.c.h.b16 %v317
      %v867 = vunpack.c.l.b16 %v318
      %v868 = vunpack.c.l.b16 %v319
      %v869 = vunpack.c.h.b16 %v319
      %v870 = vunpack.c.l.b16 %v320
      %v871 = vunpack.c.h.b16 %v320
      %v872 = vunpack.c.l.b16 %v321
      %v873 = vunpack.c.h.b16 %v321
      %v874 = vunpack.c.l.b16 %v322
      %v875 = vunpack.c.h.b16 %v322
      %v876 = vunpack.c.l.b16 %v323
      %v877 = vunpack.c.h.b16 %v323
      %v878 = vunpack.c.l.b16 %v324
      %v879 = vunpack.c.h.b16 %v324
      %v880 = vunpack.c.l.b16 %v325
      %v881 = vunpack.c.l.b16 %v326
      %v882 = vunpack.c.h.b16 %v326
      %v883 = vunpack.c.l.b16 %v327
      %v884 = vunpack.c.h.b16 %v327
      %v885 = vunpack.c.l.b16 %v328
      %v886 = vunpack.c.h.b16 %v328
      %v887 = vunpack.c.l.b16 %v329
      %v888 = vunpack.c.h.b16 %v329
      %v889 = vunpack.c.l.b16 %v330
      %v890 = vunpack.c.h.b16 %v330
      %v891 = vunpack.c.l.b16 %v331
      %v892 = vunpack.c.h.b16 %v331
      %v893 = vunpack.c.l.b16 %v332
      %v894 = vunpack.c.l.b16 %v333
      %v895 = vunpack.c.h.b16 %v333
      %v896 = vunpack.c.l.b16 %v334
      %v897 = vunpack.c.h.b16 %v334
      %v898 = vunpack.c.l.b16 %v335
      %v899 = vunpack.c.h.b16 %v335
      %v900 = vunpack.c.l.b16 %v336
      %v901 = vunpack.c.h.b16 %v336
      %v902 = vunpack.c.l.b16 %v337
      %v903 = vunpack.c.h.b16 %v337
      %v904 = vunpack.c.l.b16 %v338
      %v905 = vunpack.c.h.b16 %v338
      %v906 = vunpack.c.l.b16 %v339
      %v907 = vpack.c.b16 %v686, %v673
      %v908 = vpack.c.b16 %v687, %v674
      %v909 = vpack.c.b16 %v688, %v675
      %v910 = vpack.c.b16 %v689, %v676
      %v911 = vpack.c.b16 %v690, %v677
      %v912 = vpack.c.b16 %v691, %v678
      %v913 = vpack.c.b16 %v692, %v679
      %v914 = vpack.c.b16 %v693, %v680
      %v915 = vpack.c.b16 %v694, %v681
      %v916 = vpack.c.b16 %v695, %v682
      %v917 = vpack.c.b16 %v696, %v683
      %v918 = vpack.c.b16 %v697, %v684
      %v919 = vpack.c.b16 %v698, %v685
      %v920 = vpack.c.b16 %v712, %v699
      %v921 = vpack.c.b16 %v713, %v700
      %v922 = vpack.c.b16 %v714, %v701
      %v923 = vpack.c.b16 %v715, %v702
      %v924 = vpack.c.b16 %v716, %v703
      %v925 = vpack.c.b16 %v717, %v704
      %v926 = vpack.c.b16 %v718, %v705
      %v927 = vpack.c.b16 %v719, %v706
      %v928 = vpack.c.b16 %v720, %v707
      %v929 = vpack.c.b16 %v721, %v708
      %v930 = vpack.c.b16 %v722, %v709
      %v931 = vpack.c.b16 %v723, %v710
      %v932 = vpack.c.b16 %v724, %v711
      %v933 = vpack.c.b16 %v738, %v725
      %v934 = vpack.c.b16 %v739, %v726
      %v935 = vpack.c.b16 %v740, %v727
      %v936 = vpack.c.b16 %v741, %v728
      %v937 = vpack.c.b16 %v742, %v729
      %v938 = vpack.c.b16 %v743, %v730
      %v939 = vpack.c.b16 %v744, %v731
      %v940 = vpack.c.b16 %v745, %v732
      %v941 = vpack.c.b16 %v746, %v733
      %v942 = vpack.c.b16 %v747, %v734
      %v943 = vpack.c.b16 %v748, %v735
      %v944 = vpack.c.b16 %v749, %v736
      %v945 = vpack.c.b16 %v750, %v737
      %v946 = vpack.c.b16 %v764, %v751
      %v947 = vpack.c.b16 %v765, %v752
      %v948 = vpack.c.b16 %v766, %v753
      %v949 = vpack.c.b16 %v767, %v754
      %v950 = vpack.c.b16 %v768, %v755
      %v951 = vpack.c.b16 %v769, %v756
      %v952 = vpack.c.b16 %v770, %v757
      %v953 = vpack.c.b16 %v771, %v758
      %v954 = vpack.c.b16 %v772, %v759
      %v955 = vpack.c.b16 %v773, %v760
      %v956 = vpack.c.b16 %v774, %v761
      %v957 = vpack.c.b16 %v775, %v762
      %v958 = vpack.c.b16 %v776, %v763
      %v959 = vpack.c.b16 %v790, %v777
      %v960 = vpack.c.b16 %v791, %v778
      %v961 = vpack.c.b16 %v792, %v779
      %v962 = vpack.c.b16 %v793, %v780
      %v963 = vpack.c.b16 %v794, %v781
      %v964 = vpack.c.b16 %v795, %v782
      %v965 = vpack.c.b16 %v796, %v783
      %v966 = vpack.c.b16 %v797, %v784
      %v967 = vpack.c.b16 %v798, %v785
      %v968 = vpack.c.b16 %v799, %v786
      %v969 = vpack.c.b16 %v800, %v787
      %v970 = vpack.c.b16 %v801, %v788
      %v971 = vpack.c.b16 %v802, %v789
      %v972 = vpack.c.b16 %v816, %v803
      %v973 = vpack.c.b16 %v817, %v804
      %v974 = vpack.c.b16 %v818, %v805
      %v975 = vpack.c.b16 %v819, %v806
      %v976 = vpack.c.b16 %v820, %v807
      %v977 = vpack.c.b16 %v821, %v808
      %v978 = vpack.c.b16 %v822, %v809
      %v979 = vpack.c.b16 %v823, %v810
      %v980 = vpack.c.b16 %v824, %v811
      %v981 = vpack.c.b16 %v825, %v812
      %v982 = vpack.c.b16 %v826, %v813
      %v983 = vpack.c.b16 %v827, %v814
      %v984 = vpack.c.b16 %v828, %v815
      %v985 = vpack.c.b16 %v842, %v829
      %v986 = vpack.c.b16 %v843, %v830
      %v987 = vpack.c.b16 %v844, %v831
      %v988 = vpack.c.b16 %v845, %v832
      %v989 = vpack.c.b16 %v846, %v833
      %v990 = vpack.c.b16 %v847, %v834
      %v991 = vpack.c.b16 %v848, %v835
      %v992 = vpack.c.b16 %v849, %v836
      %v993 = vpack.c.b16 %v850, %v837
      %v994 = vpack.c.b16 %v851, %v838
      %v995 = vpack.c.b16 %v852, %v839
      %v996 = vpack.c.b16 %v853, %v840
      %v997 = vpack.c.b16 %v854, %v841
      %v998 = vpack.c.b16 %v868, %v855
      %v999 = vpack.c.b16 %v869, %v856
      %v1000 = vpack.c.b16 %v870, %v857
      %v1001 = vpack.c.b16 %v871, %v858
      %v1002 = vpack.c.b16 %v872, %v859
      %v1003 = vpack.c.b16 %v873, %v860
      %v1004 = vpack.c.b16 %v874, %v861
      %v1005 = vpack.c.b16 %v875, %v862
      %v1006 = vpack.c.b16 %v876, %v863
      %v1007 = vpack.c.b16 %v877, %v864
      %v1008 = vpack.c.b16 %v878, %v865
      %v1009 = vpack.c.b16 %v879, %v866
      %v1010 = vpack.c.b16 %v880, %v867
      %v1011 = vpack.c.b16 %v894, %v881
      %v1012 = vpack.c.b16 %v895, %v882
      %v1013 = vpack.c.b16 %v896, %v883
      %v1014 = vpack.c.b16 %v897, %v884
      %v1015 = vpack.c.b16 %v898, %v885
      %v1016 = vpack.c.b16 %v899, %v886
      %v1017 = vpack.c.b16 %v900, %v887
      %v1018 = vpack.c.b16 %v901, %v888
      %v1019 = vpack.c.b16 %v902, %v889
      %v1020 = vpack.c.b16 %v903, %v890
      %v1021 = vpack.c.b16 %v904, %v891
      %v1022 = vpack.c.b16 %v905, %v892
      %v1023 = vpack.c.b16 %v906, %v893
      %v1332 = vunpack.c.l.b16 %v340
      %v1333 = vunpack.c.l.b16 %v341
      %v1334 = vunpack.c.l.b16 %v342
      %v1335 = vunpack.c.l.b16 %v343
      %v1336 = vunpack.c.l.b16 %v344
      %v1337 = vunpack.c.l.b16 %v345
      %v1338 = vunpack.c.l.b16 %v346
      %v1339 = vunpack.c.l.b16 %v347
      %v1340 = vunpack.c.l.b16 %v348
      %v1341 = vunpack.c.l.b16 %v349
      %v1342 = vunpack.c.l.b16 %v350
      %v1343 = vunpack.c.l.b16 %v351
      %v1344 = vunpack.c.l.b16 %v352
      %v1345 = vunpack.c.l.b16 %v353
      %v1346 = vunpack.c.l.b16 %v354
      %v1347 = vunpack.c.l.b16 %v355
      %v1348 = vunpack.c.l.b16 %v356
      %v1349 = vunpack.c.l.b16 %v357
      %v1350 = vunpack.c.l.b16 %v358
      %v1351 = vunpack.c.l.b16 %v359
      %v1352 = vunpack.c.l.b16 %v360
      %v1353 = vunpack.c.l.b16 %v361
      %v1354 = vunpack.c.l.b16 %v362
      %v1355 = vunpack.c.l.b16 %v363
      %v1356 = vunpack.c.l.b16 %v364
      %v1357 = vunpack.c.l.b16 %v365
      %v1358 = vunpack.c.l.b16 %v366
      %v1359 = vunpack.c.l.b16 %v367
      %v1360 = vunpack.c.l.b16 %v368
      %v1361 = vunpack.c.l.b16 %v369
      %v1362 = vunpack.c.l.b16 %v370
      %v1363 = vunpack.c.l.b16 %v371
      %v1364 = vunpack.c.l.b16 %v372
      %v1365 = vunpack.c.l.b16 %v373
      %v1366 = vunpack.c.l.b16 %v374
      %v1367 = vunpack.c.l.b16 %v375
      %v1368 = vunpack.c.l.b16 %v376
      %v1369 = vunpack.c.l.b16 %v377
      %v1370 = vunpack.c.l.b16 %v378
      %v1371 = vunpack.c.l.b16 %v379
      %v1372 = vunpack.c.l.b16 %v380
      %v1373 = vunpack.c.l.b16 %v381
      %v1374 = vunpack.c.l.b16 %v382
      %v1375 = vunpack.c.l.b16 %v383
      %v1376 = vunpack.c.l.b16 %v384
      %v1377 = vunpack.c.l.b16 %v385
      %v1378 = vunpack.c.l.b16 %v386
      %v1379 = vunpack.c.l.b16 %v387
      %v1380 = vunpack.c.l.b16 %v388
      %v1381 = vunpack.c.l.b16 %v389
      %v1382 = vunpack.c.l.b16 %v390
      %v1383 = vunpack.c.l.b16 %v391
      %v1384 = vunpack.c.l.b16 %v392
      %v1385 = vunpack.c.l.b16 %v393
      %v1386 = vunpack.c.l.b16 %v394
      %v1387 = vunpack.c.l.b16 %v395
      %v1388 = vunpack.c.l.b16 %v396
      %v1389 = vunpack.c.l.b16 %v397
      %v1390 = vunpack.c.l.b16 %v398
      %v1391 = vunpack.c.l.b16 %v399
      %v1392 = vunpack.c.l.b16 %v400
      %v1393 = vunpack.c.l.b16 %v401
      %v1394 = vunpack.c.l.b16 %v402
      %v1395 = vunpack.c.l.b16 %v403
      %v1396 = vunpack.c.l.b16 %v404
      %v1397 = vunpack.c.l.b16 %v405
      %v1398 = vunpack.c.l.b16 %v406
      %v1399 = vunpack.c.l.b16 %v407
      %v1400 = vunpack.c.l.b16 %v408
      %v1401 = vunpack.c.l.b16 %v409
      %v1402 = vunpack.c.l.b16 %v410
      %v1403 = vunpack.c.l.b16 %v411
      %v1404 = vunpack.c.l.b16 %v412
      %v1405 = vunpack.c.l.b16 %v413
      %v1406 = vunpack.c.l.b16 %v414
      %v1407 = vunpack.c.l.b16 %v415
      %v1408 = vunpack.c.l.b16 %v416
      %v1409 = vunpack.c.l.b16 %v417
      %v1410 = vunpack.c.l.b16 %v418
      %v1411 = vunpack.c.l.b16 %v419
      %v1412 = vunpack.c.l.b16 %v420
      %v1413 = vunpack.c.l.b16 %v421
      %v1414 = vunpack.c.l.b16 %v422
      %v1415 = vunpack.c.l.b16 %v423
      %v1416 = vunpack.c.l.b16 %v424
      %v1417 = vunpack.c.l.b16 %v425
      %v1418 = vunpack.c.l.b16 %v426
      %v1419 = vunpack.c.l.b16 %v427
      %v1420 = vunpack.c.l.b16 %v428
      %v1421 = vunpack.c.l.b16 %v429
      %v1422 = vunpack.c.l.b16 %v430
      %v1423 = vunpack.c.l.b16 %v431
      %v1424 = vunpack.c.l.b16 %v432
      %v1425 = vunpack.c.l.b16 %v433
      %v1426 = vunpack.c.l.b16 %v434
      %v1427 = vunpack.c.l.b16 %v435
      %v1428 = vunpack.c.l.b16 %v436
      %v1429 = vunpack.c.l.b16 %v437
      %v1430 = vunpack.c.l.b16 %v438
      %v1431 = vunpack.c.l.b16 %v439
      %v1432 = vunpack.c.l.b16 %v440
      %v1433 = vunpack.c.l.b16 %v441
      %v1434 = vunpack.c.l.b16 %v442
      %v1435 = vunpack.c.l.b16 %v443
      %v1436 = vunpack.c.l.b16 %v444
      %v1437 = vunpack.c.l.b16 %v445
      %v1438 = vunpack.c.l.b16 %v446
      %v1439 = vunpack.c.l.b16 %v447
      %v1440 = vunpack.c.l.b16 %v448
      %v1441 = vunpack.c.l.b16 %v449
      %v1442 = vunpack.c.l.b16 %v450
      %v1443 = vunpack.c.l.b16 %v451
      %v1444 = vunpack.c.l.b16 %v452
      %v1445 = vunpack.c.l.b16 %v453
      %v1446 = vunpack.c.l.b16 %v454
      %v1447 = vunpack.c.l.b16 %v455
      %v1448 = vunpack.c.l.b16 %v456
      %v1449 = vunpack.c.l.b16 %v457
      %v1450 = vunpack.c.l.b16 %v458
      %v1451 = vunpack.c.l.b16 %v459
      %v1452 = vunpack.c.l.b16 %v460
      %v1453 = vunpack.c.l.b16 %v461
      %v1454 = vunpack.c.l.b16 %v462
      %v1455 = vunpack.c.l.b16 %v463
      %v1456 = vunpack.c.l.b16 %v464
      %v1457 = vunpack.c.l.b16 %v465
      %v1458 = vunpack.c.l.b16 %v466
      %v1459 = vunpack.c.l.b16 %v467
      %v1460 = vunpack.c.l.b16 %v468
      %v1461 = vunpack.c.l.b16 %v469
      %v1462 = vunpack.c.l.b16 %v470
      %v1463 = vunpack.c.l.b16 %v471
      %v1464 = vunpack.c.l.b16 %v472
      %v1465 = vunpack.c.l.b16 %v473
      %v1466 = vunpack.c.l.b16 %v474
      %v1467 = vunpack.c.l.b16 %v475
      %v1468 = vunpack.c.l.b16 %v476
      %v1469 = vunpack.c.l.b16 %v477
      %v1470 = vunpack.c.l.b16 %v478
      %v1471 = vunpack.c.l.b16 %v479
      %v1472 = vunpack.c.l.b16 %v480
      %v1473 = vunpack.c.l.b16 %v481
      %v1474 = vunpack.c.l.b16 %v482
      %v1475 = vunpack.c.l.b16 %v483
      %v1476 = vunpack.c.l.b16 %v484
      %v1477 = vunpack.c.l.b16 %v485
      %v1478 = vunpack.c.l.b16 %v486
      %v1479 = vunpack.c.l.b16 %v487
      %v1480 = vunpack.c.l.b16 %v488
      %v1481 = vunpack.c.l.b16 %v489
      %v1482 = vunpack.c.l.b16 %v490
      %v1483 = vunpack.c.l.b16 %v491
      %v1484 = vunpack.c.l.b16 %v492
      %v1485 = vunpack.c.l.b16 %v493
      %v1486 = vunpack.c.l.b16 %v494
      %v1487 = vunpack.c.l.b16 %v495
      %v1488 = vunpack.c.l.b16 %v496
      %v1489 = vunpack.c.l.b16 %v497
      %v1490 = vunpack.c.l.b16 %v498
      %v1491 = vunpack.c.l.b16 %v499
      %v1492 = vunpack.c.l.b16 %v500
      %v1493 = vunpack.c.l.b16 %v501
      %v1494 = vunpack.c.l.b16 %v502
      %v1495 = vunpack.c.l.b16 %v503
      %v1496 = vunpack.c.l.b16 %v504
      %v1497 = vunpack.c.l.b16 %v505
      %v1498 = vunpack.c.l.b16 %v506
      %v1499 = vunpack.c.l.b16 %v507
      %v1500 = vunpack.c.l.b16 %v508
      %v1501 = vunpack.c.l.b16 %v509
      %v1502 = vunpack.c.l.b16 %v510
      %v1503 = vunpack.c.l.b16 %v511
      %v1504 = vunpack.c.l.b16 %v512
      %v1505 = vunpack.c.l.b16 %v513
      %v1506 = vunpack.c.l.b16 %v514
      %v1507 = vunpack.c.l.b16 %v515
      %v1508 = vunpack.c.l.b16 %v516
      %v1509 = vunpack.c.l.b16 %v517
      %v1510 = vunpack.c.l.b16 %v518
      %v1511 = vunpack.c.l.b16 %v519
      %v1512 = vunpack.c.l.b16 %v520
      %v1513 = vunpack.c.l.b16 %v521
      %v1514 = vunpack.c.l.b16 %v522
      %v1515 = vunpack.c.l.b16 %v523
      %v1516 = vunpack.c.l.b16 %v524
      %v1517 = vunpack.c.l.b16 %v525
      %v1518 = vunpack.c.l.b16 %v526
      %v1519 = vunpack.c.l.b16 %v527
      %v1520 = vunpack.c.l.b16 %v528
      %v1521 = vunpack.c.l.b16 %v529
      %v1522 = vunpack.c.l.b16 %v530
      %v1523 = vunpack.c.l.b16 %v531
      %v1524 = vunpack.c.l.b16 %v532
      %v1525 = vunpack.c.l.b16 %v533
      %v1526 = vunpack.c.l.b16 %v534
      %v1527 = vunpack.c.l.b16 %v535
      %v1528 = vunpack.c.l.b16 %v536
      %v1529 = vunpack.c.l.b16 %v537
      %v1530 = vunpack.c.l.b16 %v538
      %v1531 = vunpack.c.l.b16 %v539
      %v1532 = vpack.c.b16 %v1333, %v1332
      %v1533 = vpack.c.b16 %v1335, %v1334
      %v1534 = vpack.c.b16 %v1337, %v1336
      %v1535 = vpack.c.b16 %v1339, %v1338
      %v1536 = vpack.c.b16 %v1341, %v1340
      %v1537 = vpack.c.b16 %v1343, %v1342
      %v1538 = vpack.c.b16 %v1345, %v1344
      %v1539 = vpack.c.b16 %v1347, %v1346
      %v1540 = vpack.c.b16 %v1349, %v1348
      %v1541 = vpack.c.b16 %v1351, %v1350
      %v1542 = vpack.c.b16 %v1353, %v1352
      %v1543 = vpack.c.b16 %v1355, %v1354
      %v1544 = vpack.c.b16 %v1357, %v1356
      %v1545 = vpack.c.b16 %v1359, %v1358
      %v1546 = vpack.c.b16 %v1361, %v1360
      %v1547 = vpack.c.b16 %v1363, %v1362
      %v1548 = vpack.c.b16 %v1365, %v1364
      %v1549 = vpack.c.b16 %v1367, %v1366
      %v1550 = vpack.c.b16 %v1369, %v1368
      %v1551 = vpack.c.b16 %v1371, %v1370
      %v1552 = vpack.c.b16 %v1373, %v1372
      %v1553 = vpack.c.b16 %v1375, %v1374
      %v1554 = vpack.c.b16 %v1377, %v1376
      %v1555 = vpack.c.b16 %v1379, %v1378
      %v1556 = vpack.c.b16 %v1381, %v1380
      %v1557 = vpack.c.b16 %v1383, %v1382
      %v1558 = vpack.c.b16 %v1385, %v1384
      %v1559 = vpack.c.b16 %v1387, %v1386
      %v1560 = vpack.c.b16 %v1389, %v1388
      %v1561 = vpack.c.b16 %v1391, %v1390
      %v1562 = vpack.c.b16 %v1393, %v1392
      %v1563 = vpack.c.b16 %v1395, %v1394
      %v1564 = vpack.c.b16 %v1397, %v1396
      %v1565 = vpack.c.b16 %v1399, %v1398
      %v1566 = vpack.c.b16 %v1401, %v1400
      %v1567 = vpack.c.b16 %v1403, %v1402
      %v1568 = vpack.c.b16 %v1405, %v1404
      %v1569 = vpack.c.b16 %v1407, %v1406
      %v1570 = vpack.c.b16 %v1409, %v1408
      %v1571 = vpack.c.b16 %v1411, %v1410
      %v1572 = vpack.c.b16 %v1413, %v1412
      %v1573 = vpack.c.b16 %v1415, %v1414
      %v1574 = vpack.c.b16 %v1417, %v1416
      %v1575 = vpack.c.b16 %v1419, %v1418
      %v1576 = vpack.c.b16 %v1421, %v1420
      %v1577 = vpack.c.b16 %v1423, %v1422
      %v1578 = vpack.c.b16 %v1425, %v1424
      %v1579 = vpack.c.b16 %v1427, %v1426
      %v1580 = vpack.c.b16 %v1429, %v1428
      %v1581 = vpack.c.b16 %v1431, %v1430
      %v1582 = vpack.c.b16 %v1433, %v1432
      %v1583 = vpack.c.b16 %v1435, %v1434
      %v1584 = vpack.c.b16 %v1437, %v1436
      %v1585 = vpack.c.b16 %v1439, %v1438
      %v1586 = vpack.c.b16 %v1441, %v1440
      %v1587 = vpack.c.b16 %v1443, %v1442
      %v1588 = vpack.c.b16 %v1445, %v1444
      %v1589 = vpack.c.b16 %v1447, %v1446
      %v1590 = vpack.c.b16 %v1449, %v1448
      %v1591 = vpack.c.b16 %v1451, %v1450
      %v1592 = vpack.c.b16 %v1453, %v1452
      %v1593 = vpack.c.b16 %v1455, %v1454
      %v1594 = vpack.c.b16 %v1457, %v1456
      %v1595 = vpack.c.b16 %v1459, %v1458
      %v1596 = vpack.c.b16 %v1461, %v1460
      %v1597 = vpack.c.b16 %v1463, %v1462
      %v1598 = vpack.c.b16 %v1465, %v1464
      %v1599 = vpack.c.b16 %v1467, %v1466
      %v1600 = vpack.c.b16 %v1469, %v1468
      %v1601 = vpack.c.b16 %v1471, %v1470
      %v1602 = vpack.c.b16 %v1473, %v1472
      %v1603 = vpack.c.b16 %v1475, %v1474
      %v1604 = vpack.c.b16 %v1477, %v1476
      %v1605 = vpack.c.b16 %v1479, %v1478
      %v1606 = vpack.c.b16 %v1481, %v1480
      %v1607 = vpack.c.b16 %v1483, %v1482
      %v1608 = vpack.c.b16 %v1485, %v1484
      %v1609 = vpack.c.b16 %v1487, %v1486
      %v1610 = vpack.c.b16 %v1489, %v1488
      %v1611 = vpack.c.b16 %v1491, %v1490
      %v1612 = vpack.c.b16 %v1493, %v1492
      %v1613 = vpack.c.b16 %v1495, %v1494
      %v1614 = vpack.c.b16 %v1497, %v1496
      %v1615 = vpack.c.b16 %v1499, %v1498
      %v1616 = vpack.c.b16 %v1501, %v1500
      %v1617 = vpack.c.b16 %v1503, %v1502
      %v1618 = vpack.c.b16 %v1505, %v1504
      %v1619 = vpack.c.b16 %v1507, %v1506
      %v1620 = vpack.c.b16 %v1509, %v1508
      %v1621 = vpack.c.b16 %v1511, %v1510
      %v1622 = vpack.c.b16 %v1513, %v1512
      %v1623 = vpack.c.b16 %v1515, %v1514
      %v1624 = vpack.c.b16 %v1517, %v1516
      %v1625 = vpack.c.b16 %v1519, %v1518
      %v1626 = vpack.c.b16 %v1521, %v1520
      %v1627 = vpack.c.b16 %v1523, %v1522
      %v1628 = vpack.c.b16 %v1525, %v1524
      %v1629 = vpack.c.b16 %v1527, %v1526
      %v1630 = vpack.c.b16 %v1529, %v1528
      %v1631 = vpack.c.b16 %v1531, %v1530
      %vm1732 = vcmask 523264
      %v1734 = vsel %vm1732, %v919, 0
      %v1737 = vsel %vm1732, %v932, 0
      %v1740 = vsel %vm1732, %v945, 0
      %v1743 = vsel %vm1732, %v958, 0
      %v1746 = vsel %vm1732, %v971, 0
      %v1749 = vsel %vm1732, %v984, 0
      %v1752 = vsel %vm1732, %v997, 0
      %v1755 = vsel %vm1732, %v1010, 0
      %v1758 = vsel %vm1732, %v1023, 0
      %1760 = vmatprep.subr.bf16.mxu0 0
      %1761 = vmatpush1.bf16.msra.mxu0 %v1532
      %1762 = vmatprep.subr.bf16.mxu0 0
      %1763 = vmatpush1.bf16.msra.mxu0 %v1533
      %1764 = vmatprep.subr.bf16.mxu0 0
      %1765 = vmatpush1.bf16.msra.mxu0 %v1534
      %1766 = vmatprep.subr.bf16.mxu0 0
      %1767 = vmatpush1.bf16.msra.mxu0 %v1535
      %1768 = vmatprep.subr.bf16.mxu0 0
      %1769 = vmatpush1.bf16.msra.mxu0 %v1536
      %1770 = vmatprep.subr.bf16.mxu0 0
      %1771 = vmatpush1.bf16.msra.mxu0 %v1537
      %1772 = vmatprep.subr.bf16.mxu0 0
      %1773 = vmatpush1.bf16.msra.mxu0 %v1538
      %1774 = vmatprep.subr.bf16.mxu0 0
      %1775 = vmatpush1.bf16.msra.mxu0 %v1539
      %1776 = vmatprep.subr.bf16.mxu0 0
      %1777 = vmatpush1.bf16.msra.mxu0 %v1540
      %1778 = vmatprep.subr.bf16.mxu0 0
      %1779 = vmatpush1.bf16.msra.mxu0 %v1541
      %1780 = vmatprep.subr.bf16.mxu0 0
      %1781 = vmatpush1.bf16.msra.mxu0 %v1542
      %1782 = vmatprep.subr.bf16.mxu0 0
      %1783 = vmatpush1.bf16.msra.mxu0 %v1543
      %1784 = vmatprep.subr.bf16.mxu0 0
      %1785 = vmatpush1.bf16.msra.mxu0 %v1544
      %1786 = vmatprep.subr.bf16.mxu0 0
      %1787 = vmatpush1.bf16.msra.mxu0 %v1545
      %1788 = vmatprep.subr.bf16.mxu0 0
      %1789 = vmatpush1.bf16.msra.mxu0 %v1546
      %1790 = vmatprep.subr.bf16.mxu0 0
      %1791 = vmatpush1.bf16.msra.mxu0 %v1547
      %1792 = vmatprep.mubr.bf16.mxu0 %v908
      %1793 = vmatmul.mubr.bf16.gmra.mrb[0].mxu0 %v907
      %v1794 = vpop.f32.mrb[0].mxu0
      %v1795 = vadd.f32 %v545, %v1794
      %v1796 = vpop.f32.mrb[0].mxu0
      %v1797 = vpop.f32.mrb[0].mxu0
      %v1798 = vadd.f32 %v545, %v1797
      %v1799 = vpop.f32.mrb[0].mxu0
      %1800 = vmatprep.mubr.bf16.mxu0 %v921
      %1801 = vmatmul.mubr.bf16.gmra.mrb[0].mxu0 %v920
      %v1802 = vpop.f32.mrb[0].mxu0
      %v1803 = vadd.f32 %v545, %v1802
      %v1804 = vpop.f32.mrb[0].mxu0
      %v1805 = vpop.f32.mrb[0].mxu0
      %v1806 = vadd.f32 %v545, %v1805
      %v1807 = vpop.f32.mrb[0].mxu0
      %1808 = vmatprep.mubr.bf16.mxu0 %v934
      %1809 = vmatmul.mubr.bf16.gmra.mrb[0].mxu0 %v933
      %v1810 = vpop.f32.mrb[0].mxu0
      %v1811 = vadd.f32 %v545, %v1810
      %v1812 = vpop.f32.mrb[0].mxu0
      %v1813 = vpop.f32.mrb[0].mxu0
      %v1814 = vadd.f32 %v545, %v1813
      %v1815 = vpop.f32.mrb[0].mxu0
      %1816 = vmatprep.mubr.bf16.mxu0 %v947
      %1817 = vmatmul.mubr.bf16.gmra.mrb[0].mxu0 %v946
      %v1818 = vpop.f32.mrb[0].mxu0
      %v1819 = vadd.f32 %v545, %v1818
      %v1820 = vpop.f32.mrb[0].mxu0
      %v1821 = vpop.f32.mrb[0].mxu0
      %v1822 = vadd.f32 %v545, %v1821
      %v1823 = vpop.f32.mrb[0].mxu0
      %1824 = vmatprep.mubr.bf16.mxu0 %v960
      %1825 = vmatmul.mubr.bf16.gmra.mrb[0].mxu0 %v959
      %v1826 = vpop.f32.mrb[0].mxu0
      %v1827 = vadd.f32 %v545, %v1826
      %v1828 = vpop.f32.mrb[0].mxu0
      %v1829 = vpop.f32.mrb[0].mxu0
      %v1830 = vadd.f32 %v545, %v1829
      %v1831 = vpop.f32.mrb[0].mxu0
      %1832 = vmatprep.mubr.bf16.mxu0 %v973
      %1833 = vmatmul.mubr.bf16.gmra.mrb[0].mxu0 %v972
      %v1834 = vpop.f32.mrb[0].mxu0
      %v1835 = vadd.f32 %v545, %v1834
      %v1836 = vpop.f32.mrb[0].mxu0
      %v1837 = vpop.f32.mrb[0].mxu0
      %v1838 = vadd.f32 %v545, %v1837
      %v1839 = vpop.f32.mrb[0].mxu0
      %1840 = vmatprep.mubr.bf16.mxu0 %v986
      %1841 = vmatmul.mubr.bf16.gmra.mrb[0].mxu0 %v985
      %v1842 = vpop.f32.mrb[0].mxu0
      %v1843 = vadd.f32 %v545, %v1842
      %v1844 = vpop.f32.mrb[0].mxu0
      %v1845 = vpop.f32.mrb[0].mxu0
      %v1846 = vadd.f32 %v545, %v1845
      %v1847 = vpop.f32.mrb[0].mxu0
      %1848 = vmatprep.mubr.bf16.mxu0 %v999
      %1849 = vmatmul.mubr.bf16.gmra.mrb[0].mxu0 %v998
      %v1850 = vpop.f32.mrb[0].mxu0
      %v1851 = vadd.f32 %v545, %v1850
      %v1852 = vpop.f32.mrb[0].mxu0
      %v1853 = vpop.f32.mrb[0].mxu0
      %v1854 = vadd.f32 %v545, %v1853
      %v1855 = vpop.f32.mrb[0].mxu0
      %1856 = vmatprep.mubr.bf16.mxu0 %v1012
      %1857 = vmatmul.mubr.bf16.gmra.mrb[0].mxu0 %v1011
      %v1858 = vpop.f32.mrb[0].mxu0
      %v1859 = vadd.f32 %v545, %v1858
      %v1860 = vpop.f32.mrb[0].mxu0
      %v1861 = vpop.f32.mrb[0].mxu0
      %v1862 = vadd.f32 %v545, %v1861
      %v1863 = vpop.f32.mrb[0].mxu0
      %1864 = vdwg.mxu0
      %1865 = vmatprep.subr.bf16.mxu0 0
      %1866 = vmatpush1.bf16.msra.mxu0 %v1548
      %1867 = vmatprep.subr.bf16.mxu0 0
      %1868 = vmatpush1.bf16.msra.mxu0 %v1549
      %1869 = vmatprep.subr.bf16.mxu0 0
      %1870 = vmatpush1.bf16.msra.mxu0 %v1550
      %1871 = vmatprep.subr.bf16.mxu0 0
      %1872 = vmatpush1.bf16.msra.mxu0 %v1551
      %1873 = vmatprep.subr.bf16.mxu0 0
      %1874 = vmatpush1.bf16.msra.mxu0 %v1552
      %1875 = vmatprep.subr.bf16.mxu0 0
      %1876 = vmatpush1.bf16.msra.mxu0 %v1553
      %1877 = vmatprep.subr.bf16.mxu0 0
      %1878 = vmatpush1.bf16.msra.mxu0 %v1554
      %1879 = vmatprep.subr.bf16.mxu0 0
      %1880 = vmatpush1.bf16.msra.mxu0 %v1555
      %1881 = vmatprep.subr.bf16.mxu0 0
      %1882 = vmatpush1.bf16.msra.mxu0 %v1556
      %1883 = vmatprep.subr.bf16.mxu0 0
      %1884 = vmatpush1.bf16.msra.mxu0 %v1557
      %1885 = vmatprep.subr.bf16.mxu0 0
      %1886 = vmatpush1.bf16.msra.mxu0 %v1558
      %1887 = vmatprep.subr.bf16.mxu0 0
      %1888 = vmatpush1.bf16.msra.mxu0 %v1559
      %1889 = vmatprep.subr.bf16.mxu0 0
      %1890 = vmatpush1.bf16.msra.mxu0 %v1560
      %1891 = vmatprep.subr.bf16.mxu0 0
      %1892 = vmatpush1.bf16.msra.mxu0 %v1561
      %1893 = vmatprep.subr.bf16.mxu0 0
      %1894 = vmatpush1.bf16.msra.mxu0 %v1562
      %1895 = vmatprep.subr.bf16.mxu0 0
      %1896 = vmatpush1.bf16.msra.mxu0 %v1563
      %1897 = vmatprep.mubr.bf16.mxu0 %v910
      %1898 = vmatmul.mubr.bf16.gmra.mrb[0].mxu0 %v909
      %v1899 = vpop.f32.mrb[0].mxu0
      %v1900 = vadd.f32 %v1795, %v1899
      %v1901 = vpop.f32.mrb[0].mxu0
      %v1902 = vpop.f32.mrb[0].mxu0
      %v1903 = vadd.f32 %v1798, %v1902
      %v1904 = vpop.f32.mrb[0].mxu0
      %1905 = vmatprep.mubr.bf16.mxu0 %v923
      %1906 = vmatmul.mubr.bf16.gmra.mrb[0].mxu0 %v922
      %v1907 = vpop.f32.mrb[0].mxu0
      %v1908 = vadd.f32 %v1803, %v1907
      %v1909 = vpop.f32.mrb[0].mxu0
      %v1910 = vpop.f32.mrb[0].mxu0
      %v1911 = vadd.f32 %v1806, %v1910
      %v1912 = vpop.f32.mrb[0].mxu0
      %1913 = vmatprep.mubr.bf16.mxu0 %v936
      %1914 = vmatmul.mubr.bf16.gmra.mrb[0].mxu0 %v935
      %v1915 = vpop.f32.mrb[0].mxu0
      %v1916 = vadd.f32 %v1811, %v1915
      %v1917 = vpop.f32.mrb[0].mxu0
      %v1918 = vpop.f32.mrb[0].mxu0
      %v1919 = vadd.f32 %v1814, %v1918
      %v1920 = vpop.f32.mrb[0].mxu0
      %1921 = vmatprep.mubr.bf16.mxu0 %v949
      %1922 = vmatmul.mubr.bf16.gmra.mrb[0].mxu0 %v948
      %v1923 = vpop.f32.mrb[0].mxu0
      %v1924 = vadd.f32 %v1819, %v1923
      %v1925 = vpop.f32.mrb[0].mxu0
      %v1926 = vpop.f32.mrb[0].mxu0
      %v1927 = vadd.f32 %v1822, %v1926
      %v1928 = vpop.f32.mrb[0].mxu0
      %1929 = vmatprep.mubr.bf16.mxu0 %v962
      %1930 = vmatmul.mubr.bf16.gmra.mrb[0].mxu0 %v961
      %v1931 = vpop.f32.mrb[0].mxu0
      %v1932 = vadd.f32 %v1827, %v1931
      %v1933 = vpop.f32.mrb[0].mxu0
      %v1934 = vpop.f32.mrb[0].mxu0
      %v1935 = vadd.f32 %v1830, %v1934
      %v1936 = vpop.f32.mrb[0].mxu0
      %1937 = vmatprep.mubr.bf16.mxu0 %v975
      %1938 = vmatmul.mubr.bf16.gmra.mrb[0].mxu0 %v974
      %v1939 = vpop.f32.mrb[0].mxu0
      %v1940 = vadd.f32 %v1835, %v1939
      %v1941 = vpop.f32.mrb[0].mxu0
      %v1942 = vpop.f32.mrb[0].mxu0
      %v1943 = vadd.f32 %v1838, %v1942
      %v1944 = vpop.f32.mrb[0].mxu0
      %1945 = vmatprep.mubr.bf16.mxu0 %v988
      %1946 = vmatmul.mubr.bf16.gmra.mrb[0].mxu0 %v987
      %v1947 = vpop.f32.mrb[0].mxu0
      %v1948 = vadd.f32 %v1843, %v1947
      %v1949 = vpop.f32.mrb[0].mxu0
      %v1950 = vpop.f32.mrb[0].mxu0
      %v1951 = vadd.f32 %v1846, %v1950
      %v1952 = vpop.f32.mrb[0].mxu0
      %1953 = vmatprep.mubr.bf16.mxu0 %v1001
      %1954 = vmatmul.mubr.bf16.gmra.mrb[0].mxu0 %v1000
      %v1955 = vpop.f32.mrb[0].mxu0
      %v1956 = vadd.f32 %v1851, %v1955
      %v1957 = vpop.f32.mrb[0].mxu0
      %v1958 = vpop.f32.mrb[0].mxu0
      %v1959 = vadd.f32 %v1854, %v1958
      %v1960 = vpop.f32.mrb[0].mxu0
      %1961 = vmatprep.mubr.bf16.mxu0 %v1014
      %1962 = vmatmul.mubr.bf16.gmra.mrb[0].mxu0 %v1013
      %v1963 = vpop.f32.mrb[0].mxu0
      %v1964 = vadd.f32 %v1859, %v1963
      %v1965 = vpop.f32.mrb[0].mxu0
      %v1966 = vpop.f32.mrb[0].mxu0
      %v1967 = vadd.f32 %v1862, %v1966
      %v1968 = vpop.f32.mrb[0].mxu0
      %1969 = vdwg.mxu0
      %1970 = vmatprep.subr.bf16.mxu0 0
      %1971 = vmatpush1.bf16.msra.mxu0 %v1564
      %1972 = vmatprep.subr.bf16.mxu0 0
      %1973 = vmatpush1.bf16.msra.mxu0 %v1565
      %1974 = vmatprep.subr.bf16.mxu0 0
      %1975 = vmatpush1.bf16.msra.mxu0 %v1566
      %1976 = vmatprep.subr.bf16.mxu0 0
      %1977 = vmatpush1.bf16.msra.mxu0 %v1567
      %1978 = vmatprep.subr.bf16.mxu0 0
      %1979 = vmatpush1.bf16.msra.mxu0 %v1568
      %1980 = vmatprep.subr.bf16.mxu0 0
      %1981 = vmatpush1.bf16.msra.mxu0 %v1569
      %1982 = vmatprep.subr.bf16.mxu0 0
      %1983 = vmatpush1.bf16.msra.mxu0 %v1570
      %1984 = vmatprep.subr.bf16.mxu0 0
      %1985 = vmatpush1.bf16.msra.mxu0 %v1571
      %1986 = vmatprep.subr.bf16.mxu0 0
      %1987 = vmatpush1.bf16.msra.mxu0 %v1572
      %1988 = vmatprep.subr.bf16.mxu0 0
      %1989 = vmatpush1.bf16.msra.mxu0 %v1573
      %1990 = vmatprep.subr.bf16.mxu0 0
      %1991 = vmatpush1.bf16.msra.mxu0 %v1574
      %1992 = vmatprep.subr.bf16.mxu0 0
      %1993 = vmatpush1.bf16.msra.mxu0 %v1575
      %1994 = vmatprep.subr.bf16.mxu0 0
      %1995 = vmatpush1.bf16.msra.mxu0 %v1576
      %1996 = vmatprep.subr.bf16.mxu0 0
      %1997 = vmatpush1.bf16.msra.mxu0 %v1577
      %1998 = vmatprep.subr.bf16.mxu0 0
      %1999 = vmatpush1.bf16.msra.mxu0 %v1578
      %2000 = vmatprep.subr.bf16.mxu0 0
      %2001 = vmatpush1.bf16.msra.mxu0 %v1579
      %2002 = vmatprep.mubr.bf16.mxu0 %v912
      %2003 = vmatmul.mubr.bf16.gmra.mrb[0].mxu0 %v911
      %v2004 = vpop.f32.mrb[0].mxu0
      %v2005 = vadd.f32 %v1900, %v2004
      %v2006 = vpop.f32.mrb[0].mxu0
      %v2007 = vpop.f32.mrb[0].mxu0
      %v2008 = vadd.f32 %v1903, %v2007
      %v2009 = vpop.f32.mrb[0].mxu0
      %2010 = vmatprep.mubr.bf16.mxu0 %v925
      %2011 = vmatmul.mubr.bf16.gmra.mrb[0].mxu0 %v924
      %v2012 = vpop.f32.mrb[0].mxu0
      %v2013 = vadd.f32 %v1908, %v2012
      %v2014 = vpop.f32.mrb[0].mxu0
      %v2015 = vpop.f32.mrb[0].mxu0
      %v2016 = vadd.f32 %v1911, %v2015
      %v2017 = vpop.f32.mrb[0].mxu0
      %2018 = vmatprep.mubr.bf16.mxu0 %v938
      %2019 = vmatmul.mubr.bf16.gmra.mrb[0].mxu0 %v937
      %v2020 = vpop.f32.mrb[0].mxu0
      %v2021 = vadd.f32 %v1916, %v2020
      %v2022 = vpop.f32.mrb[0].mxu0
      %v2023 = vpop.f32.mrb[0].mxu0
      %v2024 = vadd.f32 %v1919, %v2023
      %v2025 = vpop.f32.mrb[0].mxu0
      %2026 = vmatprep.mubr.bf16.mxu0 %v951
      %2027 = vmatmul.mubr.bf16.gmra.mrb[0].mxu0 %v950
      %v2028 = vpop.f32.mrb[0].mxu0
      %v2029 = vadd.f32 %v1924, %v2028
      %v2030 = vpop.f32.mrb[0].mxu0
      %v2031 = vpop.f32.mrb[0].mxu0
      %v2032 = vadd.f32 %v1927, %v2031
      %v2033 = vpop.f32.mrb[0].mxu0
      %2034 = vmatprep.mubr.bf16.mxu0 %v964
      %2035 = vmatmul.mubr.bf16.gmra.mrb[0].mxu0 %v963
      %v2036 = vpop.f32.mrb[0].mxu0
      %v2037 = vadd.f32 %v1932, %v2036
      %v2038 = vpop.f32.mrb[0].mxu0
      %v2039 = vpop.f32.mrb[0].mxu0
      %v2040 = vadd.f32 %v1935, %v2039
      %v2041 = vpop.f32.mrb[0].mxu0
      %2042 = vmatprep.mubr.bf16.mxu0 %v977
      %2043 = vmatmul.mubr.bf16.gmra.mrb[0].mxu0 %v976
      %v2044 = vpop.f32.mrb[0].mxu0
      %v2045 = vadd.f32 %v1940, %v2044
      %v2046 = vpop.f32.mrb[0].mxu0
      %v2047 = vpop.f32.mrb[0].mxu0
      %v2048 = vadd.f32 %v1943, %v2047
      %v2049 = vpop.f32.mrb[0].mxu0
      %2050 = vmatprep.mubr.bf16.mxu0 %v990
      %2051 = vmatmul.mubr.bf16.gmra.mrb[0].mxu0 %v989
      %v2052 = vpop.f32.mrb[0].mxu0
      %v2053 = vadd.f32 %v1948, %v2052
      %v2054 = vpop.f32.mrb[0].mxu0
      %v2055 = vpop.f32.mrb[0].mxu0
      %v2056 = vadd.f32 %v1951, %v2055
      %v2057 = vpop.f32.mrb[0].mxu0
      %2058 = vmatprep.mubr.bf16.mxu0 %v1003
      %2059 = vmatmul.mubr.bf16.gmra.mrb[0].mxu0 %v1002
      %v2060 = vpop.f32.mrb[0].mxu0
      %v2061 = vadd.f32 %v1956, %v2060
      %v2062 = vpop.f32.mrb[0].mxu0
      %v2063 = vpop.f32.mrb[0].mxu0
      %v2064 = vadd.f32 %v1959, %v2063
      %v2065 = vpop.f32.mrb[0].mxu0
      %2066 = vmatprep.mubr.bf16.mxu0 %v1016
      %2067 = vmatmul.mubr.bf16.gmra.mrb[0].mxu0 %v1015
      %v2068 = vpop.f32.mrb[0].mxu0
      %v2069 = vadd.f32 %v1964, %v2068
      %v2070 = vpop.f32.mrb[0].mxu0
      %v2071 = vpop.f32.mrb[0].mxu0
      %v2072 = vadd.f32 %v1967, %v2071
      %v2073 = vpop.f32.mrb[0].mxu0
      %2074 = vdwg.mxu0
      %2075 = vmatprep.subr.bf16.mxu0 0
      %2076 = vmatpush1.bf16.msra.mxu0 %v1580
      %2077 = vmatprep.subr.bf16.mxu0 0
      %2078 = vmatpush1.bf16.msra.mxu0 %v1581
      %2079 = vmatprep.subr.bf16.mxu0 0
      %2080 = vmatpush1.bf16.msra.mxu0 %v1582
      %2081 = vmatprep.subr.bf16.mxu0 0
      %2082 = vmatpush1.bf16.msra.mxu0 %v1583
      %2083 = vmatprep.subr.bf16.mxu0 0
      %2084 = vmatpush1.bf16.msra.mxu0 %v1584
      %2085 = vmatprep.subr.bf16.mxu0 0
      %2086 = vmatpush1.bf16.msra.mxu0 %v1585
      %2087 = vmatprep.subr.bf16.mxu0 0
      %2088 = vmatpush1.bf16.msra.mxu0 %v1586
      %2089 = vmatprep.subr.bf16.mxu0 0
      %2090 = vmatpush1.bf16.msra.mxu0 %v1587
      %2091 = vmatprep.subr.bf16.mxu0 0
      %2092 = vmatpush1.bf16.msra.mxu0 %v1588
      %2093 = vmatprep.subr.bf16.mxu0 0
      %2094 = vmatpush1.bf16.msra.mxu0 %v1589
      %2095 = vmatprep.subr.bf16.mxu0 0
      %2096 = vmatpush1.bf16.msra.mxu0 %v1590
      %2097 = vmatprep.subr.bf16.mxu0 0
      %2098 = vmatpush1.bf16.msra.mxu0 %v1591
      %2099 = vmatprep.subr.bf16.mxu0 0
      %2100 = vmatpush1.bf16.msra.mxu0 %v1592
      %2101 = vmatprep.subr.bf16.mxu0 0
      %2102 = vmatpush1.bf16.msra.mxu0 %v1593
      %2103 = vmatprep.subr.bf16.mxu0 0
      %2104 = vmatpush1.bf16.msra.mxu0 %v1594
      %2105 = vmatprep.subr.bf16.mxu0 0
      %2106 = vmatpush1.bf16.msra.mxu0 %v1595
      %2107 = vmatprep.mubr.bf16.mxu0 %v914
      %2108 = vmatmul.mubr.bf16.gmra.mrb[0].mxu0 %v913
      %v2109 = vpop.f32.mrb[0].mxu0
      %v2110 = vadd.f32 %v2005, %v2109
      %v2111 = vpop.f32.mrb[0].mxu0
      %v2112 = vpop.f32.mrb[0].mxu0
      %v2113 = vadd.f32 %v2008, %v2112
      %v2114 = vpop.f32.mrb[0].mxu0
      %2115 = vmatprep.mubr.bf16.mxu0 %v927
      %2116 = vmatmul.mubr.bf16.gmra.mrb[0].mxu0 %v926
      %v2117 = vpop.f32.mrb[0].mxu0
      %v2118 = vadd.f32 %v2013, %v2117
      %v2119 = vpop.f32.mrb[0].mxu0
      %v2120 = vpop.f32.mrb[0].mxu0
      %v2121 = vadd.f32 %v2016, %v2120
      %v2122 = vpop.f32.mrb[0].mxu0
      %2123 = vmatprep.mubr.bf16.mxu0 %v940
      %2124 = vmatmul.mubr.bf16.gmra.mrb[0].mxu0 %v939
      %v2125 = vpop.f32.mrb[0].mxu0
      %v2126 = vadd.f32 %v2021, %v2125
      %v2127 = vpop.f32.mrb[0].mxu0
      %v2128 = vpop.f32.mrb[0].mxu0
      %v2129 = vadd.f32 %v2024, %v2128
      %v2130 = vpop.f32.mrb[0].mxu0
      %2131 = vmatprep.mubr.bf16.mxu0 %v953
      %2132 = vmatmul.mubr.bf16.gmra.mrb[0].mxu0 %v952
      %v2133 = vpop.f32.mrb[0].mxu0
      %v2134 = vadd.f32 %v2029, %v2133
      %v2135 = vpop.f32.mrb[0].mxu0
      %v2136 = vpop.f32.mrb[0].mxu0
      %v2137 = vadd.f32 %v2032, %v2136
      %v2138 = vpop.f32.mrb[0].mxu0
      %2139 = vmatprep.mubr.bf16.mxu0 %v966
      %2140 = vmatmul.mubr.bf16.gmra.mrb[0].mxu0 %v965
      %v2141 = vpop.f32.mrb[0].mxu0
      %v2142 = vadd.f32 %v2037, %v2141
      %v2143 = vpop.f32.mrb[0].mxu0
      %v2144 = vpop.f32.mrb[0].mxu0
      %v2145 = vadd.f32 %v2040, %v2144
      %v2146 = vpop.f32.mrb[0].mxu0
      %2147 = vmatprep.mubr.bf16.mxu0 %v979
      %2148 = vmatmul.mubr.bf16.gmra.mrb[0].mxu0 %v978
      %v2149 = vpop.f32.mrb[0].mxu0
      %v2150 = vadd.f32 %v2045, %v2149
      %v2151 = vpop.f32.mrb[0].mxu0
      %v2152 = vpop.f32.mrb[0].mxu0
      %v2153 = vadd.f32 %v2048, %v2152
      %v2154 = vpop.f32.mrb[0].mxu0
      %2155 = vmatprep.mubr.bf16.mxu0 %v992
      %2156 = vmatmul.mubr.bf16.gmra.mrb[0].mxu0 %v991
      %v2157 = vpop.f32.mrb[0].mxu0
      %v2158 = vadd.f32 %v2053, %v2157
      %v2159 = vpop.f32.mrb[0].mxu0
      %v2160 = vpop.f32.mrb[0].mxu0
      %v2161 = vadd.f32 %v2056, %v2160
      %v2162 = vpop.f32.mrb[0].mxu0
      %2163 = vmatprep.mubr.bf16.mxu0 %v1005
      %2164 = vmatmul.mubr.bf16.gmra.mrb[0].mxu0 %v1004
      %v2165 = vpop.f32.mrb[0].mxu0
      %v2166 = vadd.f32 %v2061, %v2165
      %v2167 = vpop.f32.mrb[0].mxu0
      %v2168 = vpop.f32.mrb[0].mxu0
      %v2169 = vadd.f32 %v2064, %v2168
      %v2170 = vpop.f32.mrb[0].mxu0
      %2171 = vmatprep.mubr.bf16.mxu0 %v1018
      %2172 = vmatmul.mubr.bf16.gmra.mrb[0].mxu0 %v1017
      %v2173 = vpop.f32.mrb[0].mxu0
      %v2174 = vadd.f32 %v2069, %v2173
      %v2175 = vpop.f32.mrb[0].mxu0
      %v2176 = vpop.f32.mrb[0].mxu0
      %v2177 = vadd.f32 %v2072, %v2176
      %v2178 = vpop.f32.mrb[0].mxu0
      %2179 = vdwg.mxu0
      %2180 = vmatprep.subr.bf16.mxu0 0
      %2181 = vmatpush1.bf16.msra.mxu0 %v1596
      %2182 = vmatprep.subr.bf16.mxu0 0
      %2183 = vmatpush1.bf16.msra.mxu0 %v1597
      %2184 = vmatprep.subr.bf16.mxu0 0
      %2185 = vmatpush1.bf16.msra.mxu0 %v1598
      %2186 = vmatprep.subr.bf16.mxu0 0
      %2187 = vmatpush1.bf16.msra.mxu0 %v1599
      %2188 = vmatprep.subr.bf16.mxu0 0
      %2189 = vmatpush1.bf16.msra.mxu0 %v1600
      %2190 = vmatprep.subr.bf16.mxu0 0
      %2191 = vmatpush1.bf16.msra.mxu0 %v1601
      %2192 = vmatprep.subr.bf16.mxu0 0
      %2193 = vmatpush1.bf16.msra.mxu0 %v1602
      %2194 = vmatprep.subr.bf16.mxu0 0
      %2195 = vmatpush1.bf16.msra.mxu0 %v1603
      %2196 = vmatprep.subr.bf16.mxu0 0
      %2197 = vmatpush1.bf16.msra.mxu0 %v1604
      %2198 = vmatprep.subr.bf16.mxu0 0
      %2199 = vmatpush1.bf16.msra.mxu0 %v1605
      %2200 = vmatprep.subr.bf16.mxu0 0
      %2201 = vmatpush1.bf16.msra.mxu0 %v1606
      %2202 = vmatprep.subr.bf16.mxu0 0
      %2203 = vmatpush1.bf16.msra.mxu0 %v1607
      %2204 = vmatprep.subr.bf16.mxu0 0
      %2205 = vmatpush1.bf16.msra.mxu0 %v1608
      %2206 = vmatprep.subr.bf16.mxu0 0
      %2207 = vmatpush1.bf16.msra.mxu0 %v1609
      %2208 = vmatprep.subr.bf16.mxu0 0
      %2209 = vmatpush1.bf16.msra.mxu0 %v1610
      %2210 = vmatprep.subr.bf16.mxu0 0
      %2211 = vmatpush1.bf16.msra.mxu0 %v1611
      %2212 = vmatprep.mubr.bf16.mxu0 %v916
      %2213 = vmatmul.mubr.bf16.gmra.mrb[0].mxu0 %v915
      %v2214 = vpop.f32.mrb[0].mxu0
      %v2215 = vadd.f32 %v2110, %v2214
      %v2216 = vpop.f32.mrb[0].mxu0
      %v2217 = vpop.f32.mrb[0].mxu0
      %v2218 = vadd.f32 %v2113, %v2217
      %v2219 = vpop.f32.mrb[0].mxu0
      %2220 = vmatprep.mubr.bf16.mxu0 %v929
      %2221 = vmatmul.mubr.bf16.gmra.mrb[0].mxu0 %v928
      %v2222 = vpop.f32.mrb[0].mxu0
      %v2223 = vadd.f32 %v2118, %v2222
      %v2224 = vpop.f32.mrb[0].mxu0
      %v2225 = vpop.f32.mrb[0].mxu0
      %v2226 = vadd.f32 %v2121, %v2225
      %v2227 = vpop.f32.mrb[0].mxu0
      %2228 = vmatprep.mubr.bf16.mxu0 %v942
      %2229 = vmatmul.mubr.bf16.gmra.mrb[0].mxu0 %v941
      %v2230 = vpop.f32.mrb[0].mxu0
      %v2231 = vadd.f32 %v2126, %v2230
      %v2232 = vpop.f32.mrb[0].mxu0
      %v2233 = vpop.f32.mrb[0].mxu0
      %v2234 = vadd.f32 %v2129, %v2233
      %v2235 = vpop.f32.mrb[0].mxu0
      %2236 = vmatprep.mubr.bf16.mxu0 %v955
      %2237 = vmatmul.mubr.bf16.gmra.mrb[0].mxu0 %v954
      %v2238 = vpop.f32.mrb[0].mxu0
      %v2239 = vadd.f32 %v2134, %v2238
      %v2240 = vpop.f32.mrb[0].mxu0
      %v2241 = vpop.f32.mrb[0].mxu0
      %v2242 = vadd.f32 %v2137, %v2241
      %v2243 = vpop.f32.mrb[0].mxu0
      %2244 = vmatprep.mubr.bf16.mxu0 %v968
      %2245 = vmatmul.mubr.bf16.gmra.mrb[0].mxu0 %v967
      %v2246 = vpop.f32.mrb[0].mxu0
      %v2247 = vadd.f32 %v2142, %v2246
      %v2248 = vpop.f32.mrb[0].mxu0
      %v2249 = vpop.f32.mrb[0].mxu0
      %v2250 = vadd.f32 %v2145, %v2249
      %v2251 = vpop.f32.mrb[0].mxu0
      %2252 = vmatprep.mubr.bf16.mxu0 %v981
      %2253 = vmatmul.mubr.bf16.gmra.mrb[0].mxu0 %v980
      %v2254 = vpop.f32.mrb[0].mxu0
      %v2255 = vadd.f32 %v2150, %v2254
      %v2256 = vpop.f32.mrb[0].mxu0
      %v2257 = vpop.f32.mrb[0].mxu0
      %v2258 = vadd.f32 %v2153, %v2257
      %v2259 = vpop.f32.mrb[0].mxu0
      %2260 = vmatprep.mubr.bf16.mxu0 %v994
      %2261 = vmatmul.mubr.bf16.gmra.mrb[0].mxu0 %v993
      %v2262 = vpop.f32.mrb[0].mxu0
      %v2263 = vadd.f32 %v2158, %v2262
      %v2264 = vpop.f32.mrb[0].mxu0
      %v2265 = vpop.f32.mrb[0].mxu0
      %v2266 = vadd.f32 %v2161, %v2265
      %v2267 = vpop.f32.mrb[0].mxu0
      %2268 = vmatprep.mubr.bf16.mxu0 %v1007
      %2269 = vmatmul.mubr.bf16.gmra.mrb[0].mxu0 %v1006
      %v2270 = vpop.f32.mrb[0].mxu0
      %v2271 = vadd.f32 %v2166, %v2270
      %v2272 = vpop.f32.mrb[0].mxu0
      %v2273 = vpop.f32.mrb[0].mxu0
      %v2274 = vadd.f32 %v2169, %v2273
      %v2275 = vpop.f32.mrb[0].mxu0
      %2276 = vmatprep.mubr.bf16.mxu0 %v1020
      %2277 = vmatmul.mubr.bf16.gmra.mrb[0].mxu0 %v1019
      %v2278 = vpop.f32.mrb[0].mxu0
      %v2279 = vadd.f32 %v2174, %v2278
      %v2280 = vpop.f32.mrb[0].mxu0
      %v2281 = vpop.f32.mrb[0].mxu0
      %v2282 = vadd.f32 %v2177, %v2281
      %v2283 = vpop.f32.mrb[0].mxu0
      %2284 = vdwg.mxu0
      %2285 = vmatprep.subr.bf16.mxu0 0
      %2286 = vmatpush1.bf16.msra.mxu0 %v1612
      %2287 = vmatprep.subr.bf16.mxu0 0
      %2288 = vmatpush1.bf16.msra.mxu0 %v1613
      %2289 = vmatprep.subr.bf16.mxu0 0
      %2290 = vmatpush1.bf16.msra.mxu0 %v1614
      %2291 = vmatprep.subr.bf16.mxu0 0
      %2292 = vmatpush1.bf16.msra.mxu0 %v1615
      %2293 = vmatprep.subr.bf16.mxu0 0
      %2294 = vmatpush1.bf16.msra.mxu0 %v1616
      %2295 = vmatprep.subr.bf16.mxu0 0
      %2296 = vmatpush1.bf16.msra.mxu0 %v1617
      %2297 = vmatprep.subr.bf16.mxu0 0
      %2298 = vmatpush1.bf16.msra.mxu0 %v1618
      %2299 = vmatprep.subr.bf16.mxu0 0
      %2300 = vmatpush1.bf16.msra.mxu0 %v1619
      %2301 = vmatprep.subr.bf16.mxu0 0
      %2302 = vmatpush1.bf16.msra.mxu0 %v1620
      %2303 = vmatprep.subr.bf16.mxu0 0
      %2304 = vmatpush1.bf16.msra.mxu0 %v1621
      %2305 = vmatprep.subr.bf16.mxu0 0
      %2306 = vmatpush1.bf16.msra.mxu0 %v1622
      %2307 = vmatprep.subr.bf16.mxu0 0
      %2308 = vmatpush1.bf16.msra.mxu0 %v1623
      %2309 = vmatprep.subr.bf16.mxu0 0
      %2310 = vmatpush1.bf16.msra.mxu0 %v1624
      %2311 = vmatprep.subr.bf16.mxu0 0
      %2312 = vmatpush1.bf16.msra.mxu0 %v1625
      %2313 = vmatprep.subr.bf16.mxu0 0
      %2314 = vmatpush1.bf16.msra.mxu0 %v1626
      %2315 = vmatprep.subr.bf16.mxu0 0
      %2316 = vmatpush1.bf16.msra.mxu0 %v1627
      %2317 = vmatprep.mubr.bf16.mxu0 %v918
      %2318 = vmatmul.mubr.bf16.gmra.mrb[0].mxu0 %v917
      %v2319 = vpop.f32.mrb[0].mxu0
      %v2320 = vadd.f32 %v2215, %v2319
      %v2321 = vpop.f32.mrb[0].mxu0
      %v2322 = vpop.f32.mrb[0].mxu0
      %v2323 = vadd.f32 %v2218, %v2322
      %v2324 = vpop.f32.mrb[0].mxu0
      %2325 = vmatprep.mubr.bf16.mxu0 %v931
      %2326 = vmatmul.mubr.bf16.gmra.mrb[0].mxu0 %v930
      %v2327 = vpop.f32.mrb[0].mxu0
      %v2328 = vadd.f32 %v2223, %v2327
      %v2329 = vpop.f32.mrb[0].mxu0
      %v2330 = vpop.f32.mrb[0].mxu0
      %v2331 = vadd.f32 %v2226, %v2330
      %v2332 = vpop.f32.mrb[0].mxu0
      %2333 = vmatprep.mubr.bf16.mxu0 %v944
      %2334 = vmatmul.mubr.bf16.gmra.mrb[0].mxu0 %v943
      %v2335 = vpop.f32.mrb[0].mxu0
      %v2336 = vadd.f32 %v2231, %v2335
      %v2337 = vpop.f32.mrb[0].mxu0
      %v2338 = vpop.f32.mrb[0].mxu0
      %v2339 = vadd.f32 %v2234, %v2338
      %v2340 = vpop.f32.mrb[0].mxu0
      %2341 = vmatprep.mubr.bf16.mxu0 %v957
      %2342 = vmatmul.mubr.bf16.gmra.mrb[0].mxu0 %v956
      %v2343 = vpop.f32.mrb[0].mxu0
      %v2344 = vadd.f32 %v2239, %v2343
      %v2345 = vpop.f32.mrb[0].mxu0
      %v2346 = vpop.f32.mrb[0].mxu0
      %v2347 = vadd.f32 %v2242, %v2346
      %v2348 = vpop.f32.mrb[0].mxu0
      %2349 = vmatprep.mubr.bf16.mxu0 %v970
      %2350 = vmatmul.mubr.bf16.gmra.mrb[0].mxu0 %v969
      %v2351 = vpop.f32.mrb[0].mxu0
      %v2352 = vadd.f32 %v2247, %v2351
      %v2353 = vpop.f32.mrb[0].mxu0
      %v2354 = vpop.f32.mrb[0].mxu0
      %v2355 = vadd.f32 %v2250, %v2354
      %v2356 = vpop.f32.mrb[0].mxu0
      %2357 = vmatprep.mubr.bf16.mxu0 %v983
      %2358 = vmatmul.mubr.bf16.gmra.mrb[0].mxu0 %v982
      %v2359 = vpop.f32.mrb[0].mxu0
      %v2360 = vadd.f32 %v2255, %v2359
      %v2361 = vpop.f32.mrb[0].mxu0
      %v2362 = vpop.f32.mrb[0].mxu0
      %v2363 = vadd.f32 %v2258, %v2362
      %v2364 = vpop.f32.mrb[0].mxu0
      %2365 = vmatprep.mubr.bf16.mxu0 %v996
      %2366 = vmatmul.mubr.bf16.gmra.mrb[0].mxu0 %v995
      %v2367 = vpop.f32.mrb[0].mxu0
      %v2368 = vadd.f32 %v2263, %v2367
      %v2369 = vpop.f32.mrb[0].mxu0
      %v2370 = vpop.f32.mrb[0].mxu0
      %v2371 = vadd.f32 %v2266, %v2370
      %v2372 = vpop.f32.mrb[0].mxu0
      %2373 = vmatprep.mubr.bf16.mxu0 %v1009
      %2374 = vmatmul.mubr.bf16.gmra.mrb[0].mxu0 %v1008
      %v2375 = vpop.f32.mrb[0].mxu0
      %v2376 = vadd.f32 %v2271, %v2375
      %v2377 = vpop.f32.mrb[0].mxu0
      %v2378 = vpop.f32.mrb[0].mxu0
      %v2379 = vadd.f32 %v2274, %v2378
      %v2380 = vpop.f32.mrb[0].mxu0
      %2381 = vmatprep.mubr.bf16.mxu0 %v1022
      %2382 = vmatmul.mubr.bf16.gmra.mrb[0].mxu0 %v1021
      %v2383 = vpop.f32.mrb[0].mxu0
      %v2384 = vadd.f32 %v2279, %v2383
      %v2385 = vpop.f32.mrb[0].mxu0
      %v2386 = vpop.f32.mrb[0].mxu0
      %v2387 = vadd.f32 %v2282, %v2386
      %v2388 = vpop.f32.mrb[0].mxu0
      %2389 = vdwg.mxu0
      %2390 = vmatprep.subr.bf16.mxu0 0
      %2391 = vmatpush1.bf16.msra.mxu0 %v1628
      %2392 = vmatprep.subr.bf16.mxu0 0
      %2393 = vmatpush1.bf16.msra.mxu0 %v1629
      %2394 = vmatprep.subr.bf16.mxu0 0
      %2395 = vmatpush1.bf16.msra.mxu0 %v1630
      %2396 = vmatprep.subr.bf16.mxu0 0
      %2397 = vmatpush1.bf16.msra.mxu0 %v1631
      %2398 = vmatprep.subr.bf16.mxu0 0
      %2399 = vmatpush1.bf16.msra.mxu0 0
      %2400 = vmatprep.subr.bf16.mxu0 0
      %2401 = vmatpush1.bf16.msra.mxu0 0
      %2402 = vmatprep.subr.bf16.mxu0 0
      %2403 = vmatpush1.bf16.msra.mxu0 0
      %2404 = vmatprep.subr.bf16.mxu0 0
      %2405 = vmatpush1.bf16.msra.mxu0 0
      %2406 = vmatprep.subr.bf16.mxu0 0
      %2407 = vmatpush1.bf16.msra.mxu0 0
      %2408 = vmatprep.subr.bf16.mxu0 0
      %2409 = vmatpush1.bf16.msra.mxu0 0
      %2410 = vmatprep.subr.bf16.mxu0 0
      %2411 = vmatpush1.bf16.msra.mxu0 0
      %2412 = vmatprep.subr.bf16.mxu0 0
      %2413 = vmatpush1.bf16.msra.mxu0 0
      %2414 = vmatprep.subr.bf16.mxu0 0
      %2415 = vmatpush1.bf16.msra.mxu0 0
      %2416 = vmatprep.subr.bf16.mxu0 0
      %2417 = vmatpush1.bf16.msra.mxu0 0
      %2418 = vmatprep.subr.bf16.mxu0 0
      %2419 = vmatpush1.bf16.msra.mxu0 0
      %2420 = vmatprep.subr.bf16.mxu0 0
      %2421 = vmatpush1.bf16.msra.mxu0 0
      %2422 = vmatprep.mubr.bf16.mxu0 0
      %2423 = vmatmul.mubr.bf16.gmra.mrb[0].mxu0 %v1734
      %v2424 = vpop.f32.mrb[0].mxu0
      %v2425 = vadd.f32 %v2320, %v2424
      %v2426 = vpop.f32.mrb[0].mxu0
      %v2427 = vpop.f32.mrb[0].mxu0
      %v2428 = vadd.f32 %v2323, %v2427
      %v2429 = vpop.f32.mrb[0].mxu0
      %2430 = vmatprep.mubr.bf16.mxu0 0
      %2431 = vmatmul.mubr.bf16.gmra.mrb[0].mxu0 %v1737
      %v2432 = vpop.f32.mrb[0].mxu0
      %v2433 = vadd.f32 %v2328, %v2432
      %v2434 = vpop.f32.mrb[0].mxu0
      %v2435 = vpop.f32.mrb[0].mxu0
      %v2436 = vadd.f32 %v2331, %v2435
      %v2437 = vpop.f32.mrb[0].mxu0
      %2438 = vmatprep.mubr.bf16.mxu0 0
      %2439 = vmatmul.mubr.bf16.gmra.mrb[0].mxu0 %v1740
      %v2440 = vpop.f32.mrb[0].mxu0
      %v2441 = vadd.f32 %v2336, %v2440
      %v2442 = vpop.f32.mrb[0].mxu0
      %v2443 = vpop.f32.mrb[0].mxu0
      %v2444 = vadd.f32 %v2339, %v2443
      %v2445 = vpop.f32.mrb[0].mxu0
      %2446 = vmatprep.mubr.bf16.mxu0 0
      %2447 = vmatmul.mubr.bf16.gmra.mrb[0].mxu0 %v1743
      %v2448 = vpop.f32.mrb[0].mxu0
      %v2449 = vadd.f32 %v2344, %v2448
      %v2450 = vpop.f32.mrb[0].mxu0
      %v2451 = vpop.f32.mrb[0].mxu0
      %v2452 = vadd.f32 %v2347, %v2451
      %v2453 = vpop.f32.mrb[0].mxu0
      %2454 = vmatprep.mubr.bf16.mxu0 0
      %2455 = vmatmul.mubr.bf16.gmra.mrb[0].mxu0 %v1746
      %v2456 = vpop.f32.mrb[0].mxu0
      %v2457 = vadd.f32 %v2352, %v2456
      %v2458 = vpop.f32.mrb[0].mxu0
      %v2459 = vpop.f32.mrb[0].mxu0
      %v2460 = vadd.f32 %v2355, %v2459
      %v2461 = vpop.f32.mrb[0].mxu0
      %2462 = vmatprep.mubr.bf16.mxu0 0
      %2463 = vmatmul.mubr.bf16.gmra.mrb[0].mxu0 %v1749
      %v2464 = vpop.f32.mrb[0].mxu0
      %v2465 = vadd.f32 %v2360, %v2464
      %v2466 = vpop.f32.mrb[0].mxu0
      %v2467 = vpop.f32.mrb[0].mxu0
      %v2468 = vadd.f32 %v2363, %v2467
      %v2469 = vpop.f32.mrb[0].mxu0
      %2470 = vmatprep.mubr.bf16.mxu0 0
      %2471 = vmatmul.mubr.bf16.gmra.mrb[0].mxu0 %v1752
      %v2472 = vpop.f32.mrb[0].mxu0
      %v2473 = vadd.f32 %v2368, %v2472
      %v2474 = vpop.f32.mrb[0].mxu0
      %v2475 = vpop.f32.mrb[0].mxu0
      %v2476 = vadd.f32 %v2371, %v2475
      %v2477 = vpop.f32.mrb[0].mxu0
      %2478 = vmatprep.mubr.bf16.mxu0 0
      %2479 = vmatmul.mubr.bf16.gmra.mrb[0].mxu0 %v1755
      %v2480 = vpop.f32.mrb[0].mxu0
      %v2481 = vadd.f32 %v2376, %v2480
      %v2482 = vpop.f32.mrb[0].mxu0
      %v2483 = vpop.f32.mrb[0].mxu0
      %v2484 = vadd.f32 %v2379, %v2483
      %v2485 = vpop.f32.mrb[0].mxu0
      %2486 = vmatprep.mubr.bf16.mxu0 0
      %2487 = vmatmul.mubr.bf16.gmra.mrb[0].mxu0 %v1758
      %v2488 = vpop.f32.mrb[0].mxu0
      %v2489 = vadd.f32 %v2384, %v2488
      %v2490 = vpop.f32.mrb[0].mxu0
      %v2491 = vpop.f32.mrb[0].mxu0
      %v2492 = vadd.f32 %v2387, %v2491
      %v2493 = vpop.f32.mrb[0].mxu0
      %2494 = vdwg.mxu0
      %v2495 = vmax.f32 %v2425, 0.0
      %v2496 = vmax.f32 %v2428, 0.0
      %v2497 = vmax.f32 %v2433, 0.0
      %v2498 = vmax.f32 %v2436, 0.0
      %v2499 = vmax.f32 %v2441, 0.0
      %v2500 = vmax.f32 %v2444, 0.0
      %v2501 = vmax.f32 %v2449, 0.0
      %v2502 = vmax.f32 %v2452, 0.0
      %v2503 = vmax.f32 %v2457, 0.0
      %v2504 = vmax.f32 %v2460, 0.0
      %v2505 = vmax.f32 %v2465, 0.0
      %v2506 = vmax.f32 %v2468, 0.0
      %v2507 = vmax.f32 %v2473, 0.0
      %v2508 = vmax.f32 %v2476, 0.0
      %v2509 = vmax.f32 %v2481, 0.0
      %v2510 = vmax.f32 %v2484, 0.0
      %v2511 = vmax.f32 %v2489, 0.0
      %v2512 = vmax.f32 %v2492, 0.0
      %v2513 = vpack.c.bf16 %v2496, %v2495
      %v2514 = vpack.c.bf16 %v2498, %v2497
      %v2515 = vpack.c.bf16 %v2500, %v2499
      %v2516 = vpack.c.bf16 %v2502, %v2501
      %v2517 = vpack.c.bf16 %v2504, %v2503
      %v2518 = vpack.c.bf16 %v2506, %v2505
      %v2519 = vpack.c.bf16 %v2508, %v2507
      %v2520 = vpack.c.bf16 %v2510, %v2509
      %v2521 = vpack.c.bf16 %v2512, %v2511
      %v2531 = vunpack.c.l.b16 %v2513
      %v2532 = vunpack.c.h.b16 %v2513
      %v2533 = vunpack.c.l.b16 %v2514
      %v2534 = vunpack.c.h.b16 %v2514
      %v2535 = vunpack.c.l.b16 %v2515
      %v2536 = vunpack.c.h.b16 %v2515
      %v2537 = vunpack.c.l.b16 %v2516
      %v2538 = vunpack.c.h.b16 %v2516
      %v2539 = vunpack.c.l.b16 %v2517
      %v2540 = vunpack.c.h.b16 %v2517
      %v2541 = vunpack.c.l.b16 %v2518
      %v2542 = vunpack.c.h.b16 %v2518
      %v2543 = vunpack.c.l.b16 %v2519
      %v2544 = vunpack.c.h.b16 %v2519
      %v2545 = vunpack.c.l.b16 %v2520
      %v2546 = vunpack.c.h.b16 %v2520
      %v2547 = vunpack.c.l.b16 %v2521
      %v2548 = vunpack.c.h.b16 %v2521
      %v2549 = vpack.c.b16 %v2531, %v2531
      %v2550 = vpack.c.b16 %v2532, %v2532
      %v2551 = vpack.c.b16 %v2533, %v2533
      %v2552 = vpack.c.b16 %v2534, %v2534
      %v2553 = vpack.c.b16 %v2535, %v2535
      %v2554 = vpack.c.b16 %v2536, %v2536
      %v2555 = vpack.c.b16 %v2537, %v2537
      %v2556 = vpack.c.b16 %v2538, %v2538
      %v2557 = vpack.c.b16 %v2539, %v2539
      %v2558 = vpack.c.b16 %v2540, %v2540
      %v2559 = vpack.c.b16 %v2541, %v2541
      %v2560 = vpack.c.b16 %v2542, %v2542
      %v2561 = vpack.c.b16 %v2543, %v2543
      %v2562 = vpack.c.b16 %v2544, %v2544
      %v2563 = vpack.c.b16 %v2545, %v2545
      %v2564 = vpack.c.b16 %v2546, %v2546
      %v2565 = vpack.c.b16 %v2547, %v2547
      %v2566 = vpack.c.b16 %v2548, %v2548
      %vm2585 = vcmask 519168
      %2586 = vst.msk [vmem:[%s211] sm:$0xf] %vm2585, %v2549
      %2587 = vst.msk [vmem:[%s211 + $0x4] sm:$0xf] %vm2585, %v2550
      %2588 = vst.msk [vmem:[%s211 + $0x8] sm:$0xf] %vm2585, %v2551
      %2589 = vst.msk [vmem:[%s211 + $0xc] sm:$0xf] %vm2585, %v2552
      %2590 = vst.msk [vmem:[%s211 + $0x10] sm:$0xf] %vm2585, %v2553
      %2591 = vst.msk [vmem:[%s211 + $0x14] sm:$0xf] %vm2585, %v2554
      %2592 = vst.msk [vmem:[%s211 + $0x18] sm:$0xf] %vm2585, %v2555
      %2593 = vst.msk [vmem:[%s211 + $0x1c] sm:$0xf] %vm2585, %v2556
      %2594 = vst.msk [vmem:[%s211 + $0x20] sm:$0xf] %vm2585, %v2557
      %2595 = vst.msk [vmem:[%s211 + $0x24] sm:$0xf] %vm2585, %v2558
      %2596 = vst.msk [vmem:[%s211 + $0x28] sm:$0xf] %vm2585, %v2559
      %2597 = vst.msk [vmem:[%s211 + $0x2c] sm:$0xf] %vm2585, %v2560
      %2598 = vst.msk [vmem:[%s211 + $0x30] sm:$0xf] %vm2585, %v2561
      %2599 = vst.msk [vmem:[%s211 + $0x34] sm:$0xf] %vm2585, %v2562
      %2600 = vst.msk [vmem:[%s211 + $0x38] sm:$0xf] %vm2585, %v2563
      %2601 = vst.msk [vmem:[%s211 + $0x3c] sm:$0xf] %vm2585, %v2564
      %2602 = vst.msk [vmem:[%s211 + $0x40] sm:$0xf] %vm2585, %v2565
      %2603 = vst.msk [vmem:[%s211 + $0x44] sm:$0xf] %vm2585, %v2566
      %s2604 = smul.u32 18, %s19
      %p2605 = scmp.lt.s32.totalorder %s18, 1
      %s2606 = scalar_select %p2605, %s18, 1
      %p2607 = scmp.lt.s32.totalorder %s2604, 17
      %s2608 = scalar_select %p2607, %s2604, 17
      %s2609 = smul.addr %s2606, 18
      %s2610 = sadd.s32 %s2608, %s2609
      %s2611 = smul.addr %s2610, 4
      %s2612 = scalar_lea.vmem %s3, %s2611
      // Predicated region
      $region33: #{cifar10_forward.7} parent=31 // pred_check
        %p2613 = pneg %p116
      $region34: #{cifar10_forward.7} parent=31 // pred_check_branch
        %2615 = sbr.rel (%p2613) target = $region36
      $region35: #{cifar10_forward.7} parent=31 // pred_region
        %s2616 = smul.u32 18, %s19
      $region36: #{cifar10_forward.7} parent=31 // pred_fallthru
        _
    $region32: #{cifar10_forward.7} parent=5 // pred_fallthru
      _
    %p2617 = scmp.le.s32.totalorder 2, %s9
    // Predicated region
    $region37: #{cifar10_forward.7} parent=5 // pred_check
      %p2618 = pneg %p2617
    $region38: #{cifar10_forward.7} parent=5 // pred_check_branch
      %2620 = sbr.rel (%p2618) target = $region40
    $region39: #{cifar10_forward.7} parent=5 // pred_region
      %s2621 = ssub.s32 %s9, 2
      // Predicated region
      $region41: #{cifar10_forward.7} parent=39 // pred_check
        %p2622 = pneg %p122
      $region42: #{cifar10_forward.7} parent=39 // pred_check_branch
        %2624 = sbr.rel (%p2622) target = $region44
      $region43: #{cifar10_forward.7} parent=39 // pred_region
        %s2625 = smul.u32 18, %s21
        %p2626 = scmp.lt.s32.totalorder %s20, 1
        %s2627 = scalar_select %p2626, %s20, 1
        %p2628 = scmp.lt.s32.totalorder %s2625, 17
        %s2629 = scalar_select %p2628, %s2625, 17
        %s2630 = smul.addr %s2627, 18
        %s2631 = sadd.s32 %s2629, %s2630
        %s2632 = smul.addr %s2631, 4
        %s2633 = scalar_lea.vmem %s3, %s2632
      $region44: #{cifar10_forward.7} parent=39 // pred_fallthru
        _
    $region40: #{cifar10_forward.7} parent=5 // pred_fallthru
      _
  $region6: #{cifar10_forward.7} parent=0 // loop_footer
    %s13 = sadd.s32 1, %s9
  $region7: #{cifar10_forward.7} parent=0 // loop_footer_branch
    %8 = sbr.rel target = $region3
  $region8: #{cifar10_forward.7} parent=0 // loop_exit
    _

// kernel: cifar10_forward.8
$region0: #{cifar10_forward.8}
  #allocation0 [shape = 'u32[]', space=smem, size = 0x4, offset = 0x4, fixed_abs, tag = 'smem constant byte address 0x4 - core index']
  #allocation1 [shape = 'u32[144,128]{1,0:T(1,128)}', space=vmem, size = 0x12000, scoped, tag = 'internal scratch']
  %s0 = inlined_call_operand.vmem [shape: bf16[9,36,128], index: 0, kind: input, shape index: {}]
  %s1 = inlined_call_operand.vmem [shape: bf16[36,128], index: 1, kind: output, shape index: {}]
  %s2 = sld [smem:[#allocation0]]
  $region14: #{cifar10_forward.8} parent=0
    _
  %s4 = ssub.s32 1, %s2
  %s5 = scalar_select 0, %s4, %s2
  // Predicated region
  $region2: #{cifar10_forward.8} parent=0 // pred_check
    _
  $region3: #{cifar10_forward.8} parent=0 // pred_check_branch
    %7 = sbr.rel (0) target = $region5
  $region4: #{cifar10_forward.8} parent=0 // pred_region
    _
  $region5: #{cifar10_forward.8} parent=0 // pred_fallthru
    _
  %v9 = vld [vmem:[%s0] sm:$0xf]
  %v10 = vld [vmem:[%s0 + $0x4] sm:$0xf]
  %v11 = vld [vmem:[%s0 + $0x8] sm:$0xf]
  %v12 = vld [vmem:[%s0 + $0xc] sm:$0xf]
  %v13 = vld [vmem:[%s0 + $0x10] sm:$0x3]
  %v14 = vld [vmem:[%s0 + $0x14] sm:$0xf]
  %v15 = vld [vmem:[%s0 + $0x18] sm:$0xf]
  %v16 = vld [vmem:[%s0 + $0x1c] sm:$0xf]
  %v17 = vld [vmem:[%s0 + $0x20] sm:$0xf]
  %v18 = vld [vmem:[%s0 + $0x24] sm:$0x3]
  %v19 = vld [vmem:[%s0 + $0x28] sm:$0xf]
  %v20 = vld [vmem:[%s0 + $0x2c] sm:$0xf]
  %v21 = vld [vmem:[%s0 + $0x30] sm:$0xf]
  %v22 = vld [vmem:[%s0 + $0x34] sm:$0xf]
  %v23 = vld [vmem:[%s0 + $0x38] sm:$0x3]
  %v24 = vld [vmem:[%s0 + $0x3c] sm:$0xf]
  %v25 = vld [vmem:[%s0 + $0x40] sm:$0xf]
  %v26 = vld [vmem:[%s0 + $0x44] sm:$0xf]
  %v27 = vld [vmem:[%s0 + $0x48] sm:$0xf]
  %v28 = vld [vmem:[%s0 + $0x4c] sm:$0x3]
  %v29 = vld [vmem:[%s0 + $0x50] sm:$0xf]
  %v30 = vld [vmem:[%s0 + $0x54] sm:$0xf]
  %v31 = vld [vmem:[%s0 + $0x58] sm:$0xf]
  %v32 = vld [vmem:[%s0 + $0x5c] sm:$0xf]
  %v33 = vld [vmem:[%s0 + $0x60] sm:$0x3]
  %v34 = vld [vmem:[%s0 + $0x64] sm:$0xf]
  %v35 = vld [vmem:[%s0 + $0x68] sm:$0xf]
  %v36 = vld [vmem:[%s0 + $0x6c] sm:$0xf]
  %v37 = vld [vmem:[%s0 + $0x70] sm:$0xf]
  %v38 = vld [vmem:[%s0 + $0x74] sm:$0x3]
  %v39 = vld [vmem:[%s0 + $0x78] sm:$0xf]
  %v40 = vld [vmem:[%s0 + $0x7c] sm:$0xf]
  %v41 = vld [vmem:[%s0 + $0x80] sm:$0xf]
  %v42 = vld [vmem:[%s0 + $0x84] sm:$0xf]
  %v43 = vld [vmem:[%s0 + $0x88] sm:$0x3]
  %v44 = vld [vmem:[%s0 + $0x8c] sm:$0xf]
  %v45 = vld [vmem:[%s0 + $0x90] sm:$0xf]
  %v46 = vld [vmem:[%s0 + $0x94] sm:$0xf]
  %v47 = vld [vmem:[%s0 + $0x98] sm:$0xf]
  %v48 = vld [vmem:[%s0 + $0x9c] sm:$0x3]
  %v49 = vld [vmem:[%s0 + $0xa0] sm:$0xf]
  %v50 = vld [vmem:[%s0 + $0xa4] sm:$0xf]
  %v51 = vld [vmem:[%s0 + $0xa8] sm:$0xf]
  %v52 = vld [vmem:[%s0 + $0xac] sm:$0xf]
  %v53 = vld [vmem:[%s0 + $0xb0] sm:$0x3]
  %vm54 = vcmask 1043456
  %v57 = vsel %vm54, %v9, 4286644096
  %v60 = vsel %vm54, %v14, 4286644096
  %v62 = vmax.bf16 %v57, %v60
  %v64 = vsel %vm54, %v19, 4286644096
  %v66 = vmax.bf16 %v62, %v64
  %v68 = vsel %vm54, %v24, 4286644096
  %v70 = vmax.bf16 %v66, %v68
  %v72 = vsel %vm54, %v29, 4286644096
  %v74 = vmax.bf16 %v70, %v72
  %v76 = vsel %vm54, %v34, 4286644096
  %v78 = vmax.bf16 %v74, %v76
  %v80 = vsel %vm54, %v39, 4286644096
  %v82 = vmax.bf16 %v78, %v80
  %v84 = vsel %vm54, %v44, 4286644096
  %v86 = vmax.bf16 %v82, %v84
  %v88 = vsel %vm54, %v49, 4286644096
  %v90 = vmax.bf16 %v86, %v88
  %v92 = vsel %vm54, %v10, 4286644096
  %v95 = vsel %vm54, %v15, 4286644096
  %v97 = vmax.bf16 %v92, %v95
  %v99 = vsel %vm54, %v20, 4286644096
  %v101 = vmax.bf16 %v97, %v99
  %v103 = vsel %vm54, %v25, 4286644096
  %v105 = vmax.bf16 %v101, %v103
  %v107 = vsel %vm54, %v30, 4286644096
  %v109 = vmax.bf16 %v105, %v107
  %v111 = vsel %vm54, %v35, 4286644096
  %v113 = vmax.bf16 %v109, %v111
  %v115 = vsel %vm54, %v40, 4286644096
  %v117 = vmax.bf16 %v113, %v115
  %v119 = vsel %vm54, %v45, 4286644096
  %v121 = vmax.bf16 %v117, %v119
  %v123 = vsel %vm54, %v50, 4286644096
  %v125 = vmax.bf16 %v121, %v123
  %v127 = vsel %vm54, %v11, 4286644096
  %v130 = vsel %vm54, %v16, 4286644096
  %v132 = vmax.bf16 %v127, %v130
  %v134 = vsel %vm54, %v21, 4286644096
  %v136 = vmax.bf16 %v132, %v134
  %v138 = vsel %vm54, %v26, 4286644096
  %v140 = vmax.bf16 %v136, %v138
  %v142 = vsel %vm54, %v31, 4286644096
  %v144 = vmax.bf16 %v140, %v142
  %v146 = vsel %vm54, %v36, 4286644096
  %v148 = vmax.bf16 %v144, %v146
  %v150 = vsel %vm54, %v41, 4286644096
  %v152 = vmax.bf16 %v148, %v150
  %v154 = vsel %vm54, %v46, 4286644096
  %v156 = vmax.bf16 %v152, %v154
  %v158 = vsel %vm54, %v51, 4286644096
  %v160 = vmax.bf16 %v156, %v158
  %v162 = vsel %vm54, %v12, 4286644096
  %v165 = vsel %vm54, %v17, 4286644096
  %v167 = vmax.bf16 %v162, %v165
  %v169 = vsel %vm54, %v22, 4286644096
  %v171 = vmax.bf16 %v167, %v169
  %v173 = vsel %vm54, %v27, 4286644096
  %v175 = vmax.bf16 %v171, %v173
  %v177 = vsel %vm54, %v32, 4286644096
  %v179 = vmax.bf16 %v175, %v177
  %v181 = vsel %vm54, %v37, 4286644096
  %v183 = vmax.bf16 %v179, %v181
  %v185 = vsel %vm54, %v42, 4286644096
  %v187 = vmax.bf16 %v183, %v185
  %v189 = vsel %vm54, %v47, 4286644096
  %v191 = vmax.bf16 %v187, %v189
  %v193 = vsel %vm54, %v52, 4286644096
  %v195 = vmax.bf16 %v191, %v193
  %vm196 = vcmask 1041408
  %v198 = vsel %vm196, %v13, 4286644096
  %v201 = vsel %vm196, %v18, 4286644096
  %v203 = vmax.bf16 %v198, %v201
  %v205 = vsel %vm196, %v23, 4286644096
  %v207 = vmax.bf16 %v203, %v205
  %v209 = vsel %vm196, %v28, 4286644096
  %v211 = vmax.bf16 %v207, %v209
  %v213 = vsel %vm196, %v33, 4286644096
  %v215 = vmax.bf16 %v211, %v213
  %v217 = vsel %vm196, %v38, 4286644096
  %v219 = vmax.bf16 %v215, %v217
  %v221 = vsel %vm196, %v43, 4286644096
  %v223 = vmax.bf16 %v219, %v221
  %v225 = vsel %vm196, %v48, 4286644096
  %v227 = vmax.bf16 %v223, %v225
  %v229 = vsel %vm196, %v53, 4286644096
  %v231 = vmax.bf16 %v227, %v229
  %232 = vst [vmem:[%s1] sm:$0xf] %v90
  %233 = vst [vmem:[%s1 + $0x4] sm:$0xf] %v125
  %234 = vst [vmem:[%s1 + $0x8] sm:$0xf] %v160
  %235 = vst [vmem:[%s1 + $0xc] sm:$0xf] %v195
  %236 = vst [vmem:[%s1 + $0x10] sm:$0x3] %v231
  // Predicated region
  $region6: #{cifar10_forward.8} parent=0 // pred_check
    _
  $region7: #{cifar10_forward.8} parent=0 // pred_check_branch
    %238 = sbr.rel (0) target = $region9
  $region8: #{cifar10_forward.8} parent=0 // pred_region
    _
  $region9: #{cifar10_forward.8} parent=0 // pred_fallthru
    _
  // Predicated region
  $region10: #{cifar10_forward.8} parent=0 // pred_check
    _
  $region11: #{cifar10_forward.8} parent=0 // pred_check_branch
    %240 = sbr.rel (0) target = $region13
  $region12: #{cifar10_forward.8} parent=0 // pred_region
    _
  $region13: #{cifar10_forward.8} parent=0 // pred_fallthru
    _

// kernel: cifar10_forward.9
$region0: #{cifar10_forward.9}
  #allocation0 [shape = 'u32[]', space=smem, size = 0x4, offset = 0x4, fixed_abs, tag = 'smem constant byte address 0x4 - core index']
  #allocation1 [shape = 'u32[144,128]{1,0:T(1,128)}', space=vmem, size = 0x12000, scoped, tag = 'internal scratch']
  %s0 = inlined_call_operand.vmem [shape: bf16[2,2304], index: 0, kind: input, shape index: {}]
  %s1 = inlined_call_operand.vmem [shape: bf16[2304,384], index: 1, kind: input, shape index: {}]
  %s2 = inlined_call_operand.vmem [shape: f32[1,384], index: 2, kind: input, shape index: {}]
  %s3 = inlined_call_operand.vmem [shape: bf16[384,192], index: 3, kind: input, shape index: {}]
  %s4 = inlined_call_operand.vmem [shape: f32[1,192], index: 4, kind: input, shape index: {}]
  %s5 = inlined_call_operand.vmem [shape: bf16[192,10], index: 5, kind: input, shape index: {}]
  %s6 = inlined_call_operand.vmem [shape: f32[1,10], index: 6, kind: input, shape index: {}]
  %s7 = inlined_call_operand.hbm [shape: f32[2,10], index: 7, kind: output, shape index: {}]
  %s8 = sld [smem:[#allocation0]]
  $region38: #{cifar10_forward.9} parent=0
    _
  %s10 = ssub.s32 1, %s8
  %s11 = scalar_select 0, %s10, %s8
  $region1: #{cifar10_forward.9} parent=0
    #allocation2 [shape = 'u8[1024]{0}', space=vmem, size = 0x400, scoped, tag = 'output window, operand 0, single buffered']
    #allocation3 [shape = 's32[1]{0}', space=sflag, size = 0x4, scoped, tag = 'scoped memory for cifar10_forward.9']
    %12 = vsyncpa [#allocation3], 0
    // Predicated region
    $region2: #{cifar10_forward.9} parent=1 // pred_check
      _
    $region3: #{cifar10_forward.9} parent=1 // pred_check_branch
      %14 = sbr.rel (0) target = $region5
    $region4: #{cifar10_forward.9} parent=1 // pred_region
      _
    $region5: #{cifar10_forward.9} parent=1 // pred_fallthru
      _
    // Predicated region
    $region6: #{cifar10_forward.9} parent=1 // pred_check
      _
    $region7: #{cifar10_forward.9} parent=1 // pred_check_branch
      %16 = sbr.rel (0) target = $region9
    $region8: #{cifar10_forward.9} parent=1 // pred_region
      _
    $region9: #{cifar10_forward.9} parent=1 // pred_fallthru
      _
    // Predicated region
    $region10: #{cifar10_forward.9} parent=1 // pred_check
      _
    $region11: #{cifar10_forward.9} parent=1 // pred_check_branch
      %18 = sbr.rel (0) target = $region13
    $region12: #{cifar10_forward.9} parent=1 // pred_region
      _
    $region13: #{cifar10_forward.9} parent=1 // pred_fallthru
      _
    // Predicated region
    $region14: #{cifar10_forward.9} parent=1 // pred_check
      _
    $region15: #{cifar10_forward.9} parent=1 // pred_check_branch
      %20 = sbr.rel (0) target = $region17
    $region16: #{cifar10_forward.9} parent=1 // pred_region
      _
    $region17: #{cifar10_forward.9} parent=1 // pred_fallthru
      _
    // Predicated region
    $region18: #{cifar10_forward.9} parent=1 // pred_check
      _
    $region19: #{cifar10_forward.9} parent=1 // pred_check_branch
      %22 = sbr.rel (0) target = $region21
    $region20: #{cifar10_forward.9} parent=1 // pred_region
      _
    $region21: #{cifar10_forward.9} parent=1 // pred_fallthru
      _
    // Predicated region
    $region22: #{cifar10_forward.9} parent=1 // pred_check
      _
    $region23: #{cifar10_forward.9} parent=1 // pred_check_branch
      %24 = sbr.rel (0) target = $region25
    $region24: #{cifar10_forward.9} parent=1 // pred_region
      _
    $region25: #{cifar10_forward.9} parent=1 // pred_fallthru
      _
    // Predicated region
    $region26: #{cifar10_forward.9} parent=1 // pred_check
      _
    $region27: #{cifar10_forward.9} parent=1 // pred_check_branch
      %26 = sbr.rel (0) target = $region29
    $region28: #{cifar10_forward.9} parent=1 // pred_region
      _
    $region29: #{cifar10_forward.9} parent=1 // pred_fallthru
      _
    %v28 = vld [vmem:[%s0] sm:$0xff]
    %v29 = vld [vmem:[%s0 + $0x8] sm:$0xff]
    %v30 = vld [vmem:[%s0 + $0x10] sm:$0x3]
    %v31 = vld [vmem:[%s1] sm:$0xff]
    %v32 = vld [vmem:[%s1 + $0x8] sm:$0xf]
    %v33 = vld [vmem:[%s1 + $0xc] sm:$0xff]
    %v34 = vld [vmem:[%s1 + $0x14] sm:$0xf]
    %v35 = vld [vmem:[%s1 + $0x18] sm:$0xff]
    %v36 = vld [vmem:[%s1 + $0x20] sm:$0xf]
    %v37 = vld [vmem:[%s1 + $0x24] sm:$0xff]
    %v38 = vld [vmem:[%s1 + $0x2c] sm:$0xf]
    %v39 = vld [vmem:[%s1 + $0x30] sm:$0xff]
    %v40 = vld [vmem:[%s1 + $0x38] sm:$0xf]
    %v41 = vld [vmem:[%s1 + $0x3c] sm:$0xff]
    %v42 = vld [vmem:[%s1 + $0x44] sm:$0xf]
    %v43 = vld [vmem:[%s1 + $0x48] sm:$0xff]
    %v44 = vld [vmem:[%s1 + $0x50] sm:$0xf]
    %v45 = vld [vmem:[%s1 + $0x54] sm:$0xff]
    %v46 = vld [vmem:[%s1 + $0x5c] sm:$0xf]
    %v47 = vld [vmem:[%s1 + $0x60] sm:$0xff]
    %v48 = vld [vmem:[%s1 + $0x68] sm:$0xf]
    %v49 = vld [vmem:[%s1 + $0x6c] sm:$0xff]
    %v50 = vld [vmem:[%s1 + $0x74] sm:$0xf]
    %v51 = vld [vmem:[%s1 + $0x78] sm:$0xff]
    %v52 = vld [vmem:[%s1 + $0x80] sm:$0xf]
    %v53 = vld [vmem:[%s1 + $0x84] sm:$0xff]
    %v54 = vld [vmem:[%s1 + $0x8c] sm:$0xf]
    %v55 = vld [vmem:[%s1 + $0x90] sm:$0xff]
    %v56 = vld [vmem:[%s1 + $0x98] sm:$0xf]
    %v57 = vld [vmem:[%s1 + $0x9c] sm:$0xff]
    %v58 = vld [vmem:[%s1 + $0xa4] sm:$0xf]
    %v59 = vld [vmem:[%s1 + $0xa8] sm:$0xff]
    %v60 = vld [vmem:[%s1 + $0xb0] sm:$0xf]
    %v61 = vld [vmem:[%s1 + $0xb4] sm:$0xff]
    %v62 = vld [vmem:[%s1 + $0xbc] sm:$0xf]
    %v63 = vld [vmem:[%s1 + $0xc0] sm:$0xff]
    %v64 = vld [vmem:[%s1 + $0xc8] sm:$0xf]
    %v65 = vld [vmem:[%s1 + $0xcc] sm:$0xff]
    %v66 = vld [vmem:[%s1 + $0xd4] sm:$0xf]
    %v67 = vld [vmem:[%s1 + $0xd8] sm:$0xff]
    %v68 = vld [vmem:[%s1 + $0xe0] sm:$0xf]
    %v69 = vld [vmem:[%s1 + $0xe4] sm:$0xff]
    %v70 = vld [vmem:[%s1 + $0xec] sm:$0xf]
    %v71 = vld [vmem:[%s1 + $0xf0] sm:$0xff]
    %v72 = vld [vmem:[%s1 + $0xf8] sm:$0xf]
    %v73 = vld [vmem:[%s1 + $0xfc] sm:$0xff]
    %v74 = vld [vmem:[%s1 + $0x104] sm:$0xf]
    %v75 = vld [vmem:[%s1 + $0x108] sm:$0xff]
    %v76 = vld [vmem:[%s1 + $0x110] sm:$0xf]
    %v77 = vld [vmem:[%s1 + $0x114] sm:$0xff]
    %v78 = vld [vmem:[%s1 + $0x11c] sm:$0xf]
    %v79 = vld [vmem:[%s1 + $0x120] sm:$0xff]
    %v80 = vld [vmem:[%s1 + $0x128] sm:$0xf]
    %v81 = vld [vmem:[%s1 + $0x12c] sm:$0xff]
    %v82 = vld [vmem:[%s1 + $0x134] sm:$0xf]
    %v83 = vld [vmem:[%s1 + $0x138] sm:$0xff]
    %v84 = vld [vmem:[%s1 + $0x140] sm:$0xf]
    %v85 = vld [vmem:[%s1 + $0x144] sm:$0xff]
    %v86 = vld [vmem:[%s1 + $0x14c] sm:$0xf]
    %v87 = vld [vmem:[%s1 + $0x150] sm:$0xff]
    %v88 = vld [vmem:[%s1 + $0x158] sm:$0xf]
    %v89 = vld [vmem:[%s1 + $0x15c] sm:$0xff]
    %v90 = vld [vmem:[%s1 + $0x164] sm:$0xf]
    %v91 = vld [vmem:[%s1 + $0x168] sm:$0xff]
    %v92 = vld [vmem:[%s1 + $0x170] sm:$0xf]
    %v93 = vld [vmem:[%s1 + $0x174] sm:$0xff]
    %v94 = vld [vmem:[%s1 + $0x17c] sm:$0xf]
    %v95 = vld [vmem:[%s1 + $0x180] sm:$0xff]
    %v96 = vld [vmem:[%s1 + $0x188] sm:$0xf]
    %v97 = vld [vmem:[%s1 + $0x18c] sm:$0xff]
    %v98 = vld [vmem:[%s1 + $0x194] sm:$0xf]
    %v99 = vld [vmem:[%s1 + $0x198] sm:$0xff]
    %v100 = vld [vmem:[%s1 + $0x1a0] sm:$0xf]
    %v101 = vld [vmem:[%s1 + $0x1a4] sm:$0xff]
    %v102 = vld [vmem:[%s1 + $0x1ac] sm:$0xf]
    %v103 = vld [vmem:[%s1 + $0x1b0] sm:$0xff]
    %v104 = vld [vmem:[%s1 + $0x1b8] sm:$0xf]
    %v105 = vld [vmem:[%s1 + $0x1bc] sm:$0xff]
    %v106 = vld [vmem:[%s1 + $0x1c4] sm:$0xf]
    %v107 = vld [vmem:[%s1 + $0x1c8] sm:$0xff]
    %v108 = vld [vmem:[%s1 + $0x1d0] sm:$0xf]
    %v109 = vld [vmem:[%s1 + $0x1d4] sm:$0xff]
    %v110 = vld [vmem:[%s1 + $0x1dc] sm:$0xf]
    %v111 = vld [vmem:[%s1 + $0x1e0] sm:$0xff]
    %v112 = vld [vmem:[%s1 + $0x1e8] sm:$0xf]
    %v113 = vld [vmem:[%s1 + $0x1ec] sm:$0xff]
    %v114 = vld [vmem:[%s1 + $0x1f4] sm:$0xf]
    %v115 = vld [vmem:[%s1 + $0x1f8] sm:$0xff]
    %v116 = vld [vmem:[%s1 + $0x200] sm:$0xf]
    %v117 = vld [vmem:[%s1 + $0x204] sm:$0xff]
    %v118 = vld [vmem:[%s1 + $0x20c] sm:$0xf]
    %v119 = vld [vmem:[%s1 + $0x210] sm:$0xff]
    %v120 = vld [vmem:[%s1 + $0x218] sm:$0xf]
    %v121 = vld [vmem:[%s1 + $0x21c] sm:$0xff]
    %v122 = vld [vmem:[%s1 + $0x224] sm:$0xf]
    %v123 = vld [vmem:[%s1 + $0x228] sm:$0xff]
    %v124 = vld [vmem:[%s1 + $0x230] sm:$0xf]
    %v125 = vld [vmem:[%s1 + $0x234] sm:$0xff]
    %v126 = vld [vmem:[%s1 + $0x23c] sm:$0xf]
    %v127 = vld [vmem:[%s1 + $0x240] sm:$0xff]
    %v128 = vld [vmem:[%s1 + $0x248] sm:$0xf]
    %v129 = vld [vmem:[%s1 + $0x24c] sm:$0xff]
    %v130 = vld [vmem:[%s1 + $0x254] sm:$0xf]
    %v131 = vld [vmem:[%s1 + $0x258] sm:$0xff]
    %v132 = vld [vmem:[%s1 + $0x260] sm:$0xf]
    %v133 = vld [vmem:[%s1 + $0x264] sm:$0xff]
    %v134 = vld [vmem:[%s1 + $0x26c] sm:$0xf]
    %v135 = vld [vmem:[%s1 + $0x270] sm:$0xff]
    %v136 = vld [vmem:[%s1 + $0x278] sm:$0xf]
    %v137 = vld [vmem:[%s1 + $0x27c] sm:$0xff]
    %v138 = vld [vmem:[%s1 + $0x284] sm:$0xf]
    %v139 = vld [vmem:[%s1 + $0x288] sm:$0xff]
    %v140 = vld [vmem:[%s1 + $0x290] sm:$0xf]
    %v141 = vld [vmem:[%s1 + $0x294] sm:$0xff]
    %v142 = vld [vmem:[%s1 + $0x29c] sm:$0xf]
    %v143 = vld [vmem:[%s1 + $0x2a0] sm:$0xff]
    %v144 = vld [vmem:[%s1 + $0x2a8] sm:$0xf]
    %v145 = vld [vmem:[%s1 + $0x2ac] sm:$0xff]
    %v146 = vld [vmem:[%s1 + $0x2b4] sm:$0xf]
    %v147 = vld [vmem:[%s1 + $0x2b8] sm:$0xff]
    %v148 = vld [vmem:[%s1 + $0x2c0] sm:$0xf]
    %v149 = vld [vmem:[%s1 + $0x2c4] sm:$0xff]
    %v150 = vld [vmem:[%s1 + $0x2cc] sm:$0xf]
    %v151 = vld [vmem:[%s1 + $0x2d0] sm:$0xff]
    %v152 = vld [vmem:[%s1 + $0x2d8] sm:$0xf]
    %v153 = vld [vmem:[%s1 + $0x2dc] sm:$0xff]
    %v154 = vld [vmem:[%s1 + $0x2e4] sm:$0xf]
    %v155 = vld [vmem:[%s1 + $0x2e8] sm:$0xff]
    %v156 = vld [vmem:[%s1 + $0x2f0] sm:$0xf]
    %v157 = vld [vmem:[%s1 + $0x2f4] sm:$0xff]
    %v158 = vld [vmem:[%s1 + $0x2fc] sm:$0xf]
    %v159 = vld [vmem:[%s1 + $0x300] sm:$0xff]
    %v160 = vld [vmem:[%s1 + $0x308] sm:$0xf]
    %v161 = vld [vmem:[%s1 + $0x30c] sm:$0xff]
    %v162 = vld [vmem:[%s1 + $0x314] sm:$0xf]
    %v163 = vld [vmem:[%s1 + $0x318] sm:$0xff]
    %v164 = vld [vmem:[%s1 + $0x320] sm:$0xf]
    %v165 = vld [vmem:[%s1 + $0x324] sm:$0xff]
    %v166 = vld [vmem:[%s1 + $0x32c] sm:$0xf]
    %v167 = vld [vmem:[%s1 + $0x330] sm:$0xff]
    %v168 = vld [vmem:[%s1 + $0x338] sm:$0xf]
    %v169 = vld [vmem:[%s1 + $0x33c] sm:$0xff]
    %v170 = vld [vmem:[%s1 + $0x344] sm:$0xf]
    %v171 = vld [vmem:[%s1 + $0x348] sm:$0xff]
    %v172 = vld [vmem:[%s1 + $0x350] sm:$0xf]
    %v173 = vld [vmem:[%s1 + $0x354] sm:$0xff]
    %v174 = vld [vmem:[%s1 + $0x35c] sm:$0xf]
    %v175 = vld [vmem:[%s1 + $0x360] sm:$0xff]
    %v176 = vld [vmem:[%s1 + $0x368] sm:$0xf]
    %v177 = vld [vmem:[%s1 + $0x36c] sm:$0xff]
    %v178 = vld [vmem:[%s1 + $0x374] sm:$0xf]
    %v179 = vld [vmem:[%s1 + $0x378] sm:$0xff]
    %v180 = vld [vmem:[%s1 + $0x380] sm:$0xf]
    %v181 = vld [vmem:[%s1 + $0x384] sm:$0xff]
    %v182 = vld [vmem:[%s1 + $0x38c] sm:$0xf]
    %v183 = vld [vmem:[%s1 + $0x390] sm:$0xff]
    %v184 = vld [vmem:[%s1 + $0x398] sm:$0xf]
    %v185 = vld [vmem:[%s1 + $0x39c] sm:$0xff]
    %v186 = vld [vmem:[%s1 + $0x3a4] sm:$0xf]
    %v187 = vld [vmem:[%s1 + $0x3a8] sm:$0xff]
    %v188 = vld [vmem:[%s1 + $0x3b0] sm:$0xf]
    %v189 = vld [vmem:[%s1 + $0x3b4] sm:$0xff]
    %v190 = vld [vmem:[%s1 + $0x3bc] sm:$0xf]
    %v191 = vld [vmem:[%s1 + $0x3c0] sm:$0xff]
    %v192 = vld [vmem:[%s1 + $0x3c8] sm:$0xf]
    %v193 = vld [vmem:[%s1 + $0x3cc] sm:$0xff]
    %v194 = vld [vmem:[%s1 + $0x3d4] sm:$0xf]
    %v195 = vld [vmem:[%s1 + $0x3d8] sm:$0xff]
    %v196 = vld [vmem:[%s1 + $0x3e0] sm:$0xf]
    %v197 = vld [vmem:[%s1 + $0x3e4] sm:$0xff]
    %v198 = vld [vmem:[%s1 + $0x3ec] sm:$0xf]
    %v199 = vld [vmem:[%s1 + $0x3f0] sm:$0xff]
    %v200 = vld [vmem:[%s1 + $0x3f8] sm:$0xf]
    %v201 = vld [vmem:[%s1 + $0x3fc] sm:$0xff]
    %v202 = vld [vmem:[%s1 + $0x404] sm:$0xf]
    %v203 = vld [vmem:[%s1 + $0x408] sm:$0xff]
    %v204 = vld [vmem:[%s1 + $0x410] sm:$0xf]
    %v205 = vld [vmem:[%s1 + $0x414] sm:$0xff]
    %v206 = vld [vmem:[%s1 + $0x41c] sm:$0xf]
    %v207 = vld [vmem:[%s1 + $0x420] sm:$0xff]
    %v208 = vld [vmem:[%s1 + $0x428] sm:$0xf]
    %v209 = vld [vmem:[%s1 + $0x42c] sm:$0xff]
    %v210 = vld [vmem:[%s1 + $0x434] sm:$0xf]
    %v211 = vld [vmem:[%s1 + $0x438] sm:$0xff]
    %v212 = vld [vmem:[%s1 + $0x440] sm:$0xf]
    %v213 = vld [vmem:[%s1 + $0x444] sm:$0xff]
    %v214 = vld [vmem:[%s1 + $0x44c] sm:$0xf]
    %v215 = vld [vmem:[%s1 + $0x450] sm:$0xff]
    %v216 = vld [vmem:[%s1 + $0x458] sm:$0xf]
    %v217 = vld [vmem:[%s1 + $0x45c] sm:$0xff]
    %v218 = vld [vmem:[%s1 + $0x464] sm:$0xf]
    %v219 = vld [vmem:[%s1 + $0x468] sm:$0xff]
    %v220 = vld [vmem:[%s1 + $0x470] sm:$0xf]
    %v221 = vld [vmem:[%s1 + $0x474] sm:$0xff]
    %v222 = vld [vmem:[%s1 + $0x47c] sm:$0xf]
    %v223 = vld [vmem:[%s1 + $0x480] sm:$0xff]
    %v224 = vld [vmem:[%s1 + $0x488] sm:$0xf]
    %v225 = vld [vmem:[%s1 + $0x48c] sm:$0xff]
    %v226 = vld [vmem:[%s1 + $0x494] sm:$0xf]
    %v227 = vld [vmem:[%s1 + $0x498] sm:$0xff]
    %v228 = vld [vmem:[%s1 + $0x4a0] sm:$0xf]
    %v229 = vld [vmem:[%s1 + $0x4a4] sm:$0xff]
    %v230 = vld [vmem:[%s1 + $0x4ac] sm:$0xf]
    %v231 = vld [vmem:[%s1 + $0x4b0] sm:$0xff]
    %v232 = vld [vmem:[%s1 + $0x4b8] sm:$0xf]
    %v233 = vld [vmem:[%s1 + $0x4bc] sm:$0xff]
    %v234 = vld [vmem:[%s1 + $0x4c4] sm:$0xf]
    %v235 = vld [vmem:[%s1 + $0x4c8] sm:$0xff]
    %v236 = vld [vmem:[%s1 + $0x4d0] sm:$0xf]
    %v237 = vld [vmem:[%s1 + $0x4d4] sm:$0xff]
    %v238 = vld [vmem:[%s1 + $0x4dc] sm:$0xf]
    %v239 = vld [vmem:[%s1 + $0x4e0] sm:$0xff]
    %v240 = vld [vmem:[%s1 + $0x4e8] sm:$0xf]
    %v241 = vld [vmem:[%s1 + $0x4ec] sm:$0xff]
    %v242 = vld [vmem:[%s1 + $0x4f4] sm:$0xf]
    %v243 = vld [vmem:[%s1 + $0x4f8] sm:$0xff]
    %v244 = vld [vmem:[%s1 + $0x500] sm:$0xf]
    %v245 = vld [vmem:[%s1 + $0x504] sm:$0xff]
    %v246 = vld [vmem:[%s1 + $0x50c] sm:$0xf]
    %v247 = vld [vmem:[%s1 + $0x510] sm:$0xff]
    %v248 = vld [vmem:[%s1 + $0x518] sm:$0xf]
    %v249 = vld [vmem:[%s1 + $0x51c] sm:$0xff]
    %v250 = vld [vmem:[%s1 + $0x524] sm:$0xf]
    %v251 = vld [vmem:[%s1 + $0x528] sm:$0xff]
    %v252 = vld [vmem:[%s1 + $0x530] sm:$0xf]
    %v253 = vld [vmem:[%s1 + $0x534] sm:$0xff]
    %v254 = vld [vmem:[%s1 + $0x53c] sm:$0xf]
    %v255 = vld [vmem:[%s1 + $0x540] sm:$0xff]
    %v256 = vld [vmem:[%s1 + $0x548] sm:$0xf]
    %v257 = vld [vmem:[%s1 + $0x54c] sm:$0xff]
    %v258 = vld [vmem:[%s1 + $0x554] sm:$0xf]
    %v259 = vld [vmem:[%s1 + $0x558] sm:$0xff]
    %v260 = vld [vmem:[%s1 + $0x560] sm:$0xf]
    %v261 = vld [vmem:[%s1 + $0x564] sm:$0xff]
    %v262 = vld [vmem:[%s1 + $0x56c] sm:$0xf]
    %v263 = vld [vmem:[%s1 + $0x570] sm:$0xff]
    %v264 = vld [vmem:[%s1 + $0x578] sm:$0xf]
    %v265 = vld [vmem:[%s1 + $0x57c] sm:$0xff]
    %v266 = vld [vmem:[%s1 + $0x584] sm:$0xf]
    %v267 = vld [vmem:[%s1 + $0x588] sm:$0xff]
    %v268 = vld [vmem:[%s1 + $0x590] sm:$0xf]
    %v269 = vld [vmem:[%s1 + $0x594] sm:$0xff]
    %v270 = vld [vmem:[%s1 + $0x59c] sm:$0xf]
    %v271 = vld [vmem:[%s1 + $0x5a0] sm:$0xff]
    %v272 = vld [vmem:[%s1 + $0x5a8] sm:$0xf]
    %v273 = vld [vmem:[%s1 + $0x5ac] sm:$0xff]
    %v274 = vld [vmem:[%s1 + $0x5b4] sm:$0xf]
    %v275 = vld [vmem:[%s1 + $0x5b8] sm:$0xff]
    %v276 = vld [vmem:[%s1 + $0x5c0] sm:$0xf]
    %v277 = vld [vmem:[%s1 + $0x5c4] sm:$0xff]
    %v278 = vld [vmem:[%s1 + $0x5cc] sm:$0xf]
    %v279 = vld [vmem:[%s1 + $0x5d0] sm:$0xff]
    %v280 = vld [vmem:[%s1 + $0x5d8] sm:$0xf]
    %v281 = vld [vmem:[%s1 + $0x5dc] sm:$0xff]
    %v282 = vld [vmem:[%s1 + $0x5e4] sm:$0xf]
    %v283 = vld [vmem:[%s1 + $0x5e8] sm:$0xff]
    %v284 = vld [vmem:[%s1 + $0x5f0] sm:$0xf]
    %v285 = vld [vmem:[%s1 + $0x5f4] sm:$0xff]
    %v286 = vld [vmem:[%s1 + $0x5fc] sm:$0xf]
    %v287 = vld [vmem:[%s1 + $0x600] sm:$0xff]
    %v288 = vld [vmem:[%s1 + $0x608] sm:$0xf]
    %v289 = vld [vmem:[%s1 + $0x60c] sm:$0xff]
    %v290 = vld [vmem:[%s1 + $0x614] sm:$0xf]
    %v291 = vld [vmem:[%s1 + $0x618] sm:$0xff]
    %v292 = vld [vmem:[%s1 + $0x620] sm:$0xf]
    %v293 = vld [vmem:[%s1 + $0x624] sm:$0xff]
    %v294 = vld [vmem:[%s1 + $0x62c] sm:$0xf]
    %v295 = vld [vmem:[%s1 + $0x630] sm:$0xff]
    %v296 = vld [vmem:[%s1 + $0x638] sm:$0xf]
    %v297 = vld [vmem:[%s1 + $0x63c] sm:$0xff]
    %v298 = vld [vmem:[%s1 + $0x644] sm:$0xf]
    %v299 = vld [vmem:[%s1 + $0x648] sm:$0xff]
    %v300 = vld [vmem:[%s1 + $0x650] sm:$0xf]
    %v301 = vld [vmem:[%s1 + $0x654] sm:$0xff]
    %v302 = vld [vmem:[%s1 + $0x65c] sm:$0xf]
    %v303 = vld [vmem:[%s1 + $0x660] sm:$0xff]
    %v304 = vld [vmem:[%s1 + $0x668] sm:$0xf]
    %v305 = vld [vmem:[%s1 + $0x66c] sm:$0xff]
    %v306 = vld [vmem:[%s1 + $0x674] sm:$0xf]
    %v307 = vld [vmem:[%s1 + $0x678] sm:$0xff]
    %v308 = vld [vmem:[%s1 + $0x680] sm:$0xf]
    %v309 = vld [vmem:[%s1 + $0x684] sm:$0xff]
    %v310 = vld [vmem:[%s1 + $0x68c] sm:$0xf]
    %v311 = vld [vmem:[%s1 + $0x690] sm:$0xff]
    %v312 = vld [vmem:[%s1 + $0x698] sm:$0xf]
    %v313 = vld [vmem:[%s1 + $0x69c] sm:$0xff]
    %v314 = vld [vmem:[%s1 + $0x6a4] sm:$0xf]
    %v315 = vld [vmem:[%s1 + $0x6a8] sm:$0xff]
    %v316 = vld [vmem:[%s1 + $0x6b0] sm:$0xf]
    %v317 = vld [vmem:[%s1 + $0x6b4] sm:$0xff]
    %v318 = vld [vmem:[%s1 + $0x6bc] sm:$0xf]
    %v319 = vld [vmem:[%s1 + $0x6c0] sm:$0xff]
    %v320 = vld [vmem:[%s1 + $0x6c8] sm:$0xf]
    %v321 = vld [vmem:[%s1 + $0x6cc] sm:$0xff]
    %v322 = vld [vmem:[%s1 + $0x6d4] sm:$0xf]
    %v323 = vld [vmem:[%s1 + $0x6d8] sm:$0xff]
    %v324 = vld [vmem:[%s1 + $0x6e0] sm:$0xf]
    %v325 = vld [vmem:[%s1 + $0x6e4] sm:$0xff]
    %v326 = vld [vmem:[%s1 + $0x6ec] sm:$0xf]
    %v327 = vld [vmem:[%s1 + $0x6f0] sm:$0xff]
    %v328 = vld [vmem:[%s1 + $0x6f8] sm:$0xf]
    %v329 = vld [vmem:[%s1 + $0x6fc] sm:$0xff]
    %v330 = vld [vmem:[%s1 + $0x704] sm:$0xf]
    %v331 = vld [vmem:[%s1 + $0x708] sm:$0xff]
    %v332 = vld [vmem:[%s1 + $0x710] sm:$0xf]
    %v333 = vld [vmem:[%s1 + $0x714] sm:$0xff]
    %v334 = vld [vmem:[%s1 + $0x71c] sm:$0xf]
    %v335 = vld [vmem:[%s1 + $0x720] sm:$0xff]
    %v336 = vld [vmem:[%s1 + $0x728] sm:$0xf]
    %v337 = vld [vmem:[%s1 + $0x72c] sm:$0xff]
    %v338 = vld [vmem:[%s1 + $0x734] sm:$0xf]
    %v339 = vld [vmem:[%s1 + $0x738] sm:$0xff]
    %v340 = vld [vmem:[%s1 + $0x740] sm:$0xf]
    %v341 = vld [vmem:[%s1 + $0x744] sm:$0xff]
    %v342 = vld [vmem:[%s1 + $0x74c] sm:$0xf]
    %v343 = vld [vmem:[%s1 + $0x750] sm:$0xff]
    %v344 = vld [vmem:[%s1 + $0x758] sm:$0xf]
    %v345 = vld [vmem:[%s1 + $0x75c] sm:$0xff]
    %v346 = vld [vmem:[%s1 + $0x764] sm:$0xf]
    %v347 = vld [vmem:[%s1 + $0x768] sm:$0xff]
    %v348 = vld [vmem:[%s1 + $0x770] sm:$0xf]
    %v349 = vld [vmem:[%s1 + $0x774] sm:$0xff]
    %v350 = vld [vmem:[%s1 + $0x77c] sm:$0xf]
    %v351 = vld [vmem:[%s1 + $0x780] sm:$0xff]
    %v352 = vld [vmem:[%s1 + $0x788] sm:$0xf]
    %v353 = vld [vmem:[%s1 + $0x78c] sm:$0xff]
    %v354 = vld [vmem:[%s1 + $0x794] sm:$0xf]
    %v355 = vld [vmem:[%s1 + $0x798] sm:$0xff]
    %v356 = vld [vmem:[%s1 + $0x7a0] sm:$0xf]
    %v357 = vld [vmem:[%s1 + $0x7a4] sm:$0xff]
    %v358 = vld [vmem:[%s1 + $0x7ac] sm:$0xf]
    %v359 = vld [vmem:[%s1 + $0x7b0] sm:$0xff]
    %v360 = vld [vmem:[%s1 + $0x7b8] sm:$0xf]
    %v361 = vld [vmem:[%s1 + $0x7bc] sm:$0xff]
    %v362 = vld [vmem:[%s1 + $0x7c4] sm:$0xf]
    %v363 = vld [vmem:[%s1 + $0x7c8] sm:$0xff]
    %v364 = vld [vmem:[%s1 + $0x7d0] sm:$0xf]
    %v365 = vld [vmem:[%s1 + $0x7d4] sm:$0xff]
    %v366 = vld [vmem:[%s1 + $0x7dc] sm:$0xf]
    %v367 = vld [vmem:[%s1 + $0x7e0] sm:$0xff]
    %v368 = vld [vmem:[%s1 + $0x7e8] sm:$0xf]
    %v369 = vld [vmem:[%s1 + $0x7ec] sm:$0xff]
    %v370 = vld [vmem:[%s1 + $0x7f4] sm:$0xf]
    %v371 = vld [vmem:[%s1 + $0x7f8] sm:$0xff]
    %v372 = vld [vmem:[%s1 + $0x800] sm:$0xf]
    %v373 = vld [vmem:[%s1 + $0x804] sm:$0xff]
    %v374 = vld [vmem:[%s1 + $0x80c] sm:$0xf]
    %v375 = vld [vmem:[%s1 + $0x810] sm:$0xff]
    %v376 = vld [vmem:[%s1 + $0x818] sm:$0xf]
    %v377 = vld [vmem:[%s1 + $0x81c] sm:$0xff]
    %v378 = vld [vmem:[%s1 + $0x824] sm:$0xf]
    %v379 = vld [vmem:[%s1 + $0x828] sm:$0xff]
    %v380 = vld [vmem:[%s1 + $0x830] sm:$0xf]
    %v381 = vld [vmem:[%s1 + $0x834] sm:$0xff]
    %v382 = vld [vmem:[%s1 + $0x83c] sm:$0xf]
    %v383 = vld [vmem:[%s1 + $0x840] sm:$0xff]
    %v384 = vld [vmem:[%s1 + $0x848] sm:$0xf]
    %v385 = vld [vmem:[%s1 + $0x84c] sm:$0xff]
    %v386 = vld [vmem:[%s1 + $0x854] sm:$0xf]
    %v387 = vld [vmem:[%s1 + $0x858] sm:$0xff]
    %v388 = vld [vmem:[%s1 + $0x860] sm:$0xf]
    %v389 = vld [vmem:[%s1 + $0x864] sm:$0xff]
    %v390 = vld [vmem:[%s1 + $0x86c] sm:$0xf]
    %v391 = vld [vmem:[%s1 + $0x870] sm:$0xff]
    %v392 = vld [vmem:[%s1 + $0x878] sm:$0xf]
    %v393 = vld [vmem:[%s1 + $0x87c] sm:$0xff]
    %v394 = vld [vmem:[%s1 + $0x884] sm:$0xf]
    %v395 = vld [vmem:[%s1 + $0x888] sm:$0xff]
    %v396 = vld [vmem:[%s1 + $0x890] sm:$0xf]
    %v397 = vld [vmem:[%s1 + $0x894] sm:$0xff]
    %v398 = vld [vmem:[%s1 + $0x89c] sm:$0xf]
    %v399 = vld [vmem:[%s1 + $0x8a0] sm:$0xff]
    %v400 = vld [vmem:[%s1 + $0x8a8] sm:$0xf]
    %v401 = vld [vmem:[%s1 + $0x8ac] sm:$0xff]
    %v402 = vld [vmem:[%s1 + $0x8b4] sm:$0xf]
    %v403 = vld [vmem:[%s1 + $0x8b8] sm:$0xff]
    %v404 = vld [vmem:[%s1 + $0x8c0] sm:$0xf]
    %v405 = vld [vmem:[%s1 + $0x8c4] sm:$0xff]
    %v406 = vld [vmem:[%s1 + $0x8cc] sm:$0xf]
    %v407 = vld [vmem:[%s1 + $0x8d0] sm:$0xff]
    %v408 = vld [vmem:[%s1 + $0x8d8] sm:$0xf]
    %v409 = vld [vmem:[%s1 + $0x8dc] sm:$0xff]
    %v410 = vld [vmem:[%s1 + $0x8e4] sm:$0xf]
    %v411 = vld [vmem:[%s1 + $0x8e8] sm:$0xff]
    %v412 = vld [vmem:[%s1 + $0x8f0] sm:$0xf]
    %v413 = vld [vmem:[%s1 + $0x8f4] sm:$0xff]
    %v414 = vld [vmem:[%s1 + $0x8fc] sm:$0xf]
    %v415 = vld [vmem:[%s1 + $0x900] sm:$0xff]
    %v416 = vld [vmem:[%s1 + $0x908] sm:$0xf]
    %v417 = vld [vmem:[%s1 + $0x90c] sm:$0xff]
    %v418 = vld [vmem:[%s1 + $0x914] sm:$0xf]
    %v419 = vld [vmem:[%s1 + $0x918] sm:$0xff]
    %v420 = vld [vmem:[%s1 + $0x920] sm:$0xf]
    %v421 = vld [vmem:[%s1 + $0x924] sm:$0xff]
    %v422 = vld [vmem:[%s1 + $0x92c] sm:$0xf]
    %v423 = vld [vmem:[%s1 + $0x930] sm:$0xff]
    %v424 = vld [vmem:[%s1 + $0x938] sm:$0xf]
    %v425 = vld [vmem:[%s1 + $0x93c] sm:$0xff]
    %v426 = vld [vmem:[%s1 + $0x944] sm:$0xf]
    %v427 = vld [vmem:[%s1 + $0x948] sm:$0xff]
    %v428 = vld [vmem:[%s1 + $0x950] sm:$0xf]
    %v429 = vld [vmem:[%s1 + $0x954] sm:$0xff]
    %v430 = vld [vmem:[%s1 + $0x95c] sm:$0xf]
    %v431 = vld [vmem:[%s1 + $0x960] sm:$0xff]
    %v432 = vld [vmem:[%s1 + $0x968] sm:$0xf]
    %v433 = vld [vmem:[%s1 + $0x96c] sm:$0xff]
    %v434 = vld [vmem:[%s1 + $0x974] sm:$0xf]
    %v435 = vld [vmem:[%s1 + $0x978] sm:$0xff]
    %v436 = vld [vmem:[%s1 + $0x980] sm:$0xf]
    %v437 = vld [vmem:[%s1 + $0x984] sm:$0xff]
    %v438 = vld [vmem:[%s1 + $0x98c] sm:$0xf]
    %v439 = vld [vmem:[%s1 + $0x990] sm:$0xff]
    %v440 = vld [vmem:[%s1 + $0x998] sm:$0xf]
    %v441 = vld [vmem:[%s1 + $0x99c] sm:$0xff]
    %v442 = vld [vmem:[%s1 + $0x9a4] sm:$0xf]
    %v443 = vld [vmem:[%s1 + $0x9a8] sm:$0xff]
    %v444 = vld [vmem:[%s1 + $0x9b0] sm:$0xf]
    %v445 = vld [vmem:[%s1 + $0x9b4] sm:$0xff]
    %v446 = vld [vmem:[%s1 + $0x9bc] sm:$0xf]
    %v447 = vld [vmem:[%s1 + $0x9c0] sm:$0xff]
    %v448 = vld [vmem:[%s1 + $0x9c8] sm:$0xf]
    %v449 = vld [vmem:[%s1 + $0x9cc] sm:$0xff]
    %v450 = vld [vmem:[%s1 + $0x9d4] sm:$0xf]
    %v451 = vld [vmem:[%s1 + $0x9d8] sm:$0xff]
    %v452 = vld [vmem:[%s1 + $0x9e0] sm:$0xf]
    %v453 = vld [vmem:[%s1 + $0x9e4] sm:$0xff]
    %v454 = vld [vmem:[%s1 + $0x9ec] sm:$0xf]
    %v455 = vld [vmem:[%s1 + $0x9f0] sm:$0xff]
    %v456 = vld [vmem:[%s1 + $0x9f8] sm:$0xf]
    %v457 = vld [vmem:[%s1 + $0x9fc] sm:$0xff]
    %v458 = vld [vmem:[%s1 + $0xa04] sm:$0xf]
    %v459 = vld [vmem:[%s1 + $0xa08] sm:$0xff]
    %v460 = vld [vmem:[%s1 + $0xa10] sm:$0xf]
    %v461 = vld [vmem:[%s1 + $0xa14] sm:$0xff]
    %v462 = vld [vmem:[%s1 + $0xa1c] sm:$0xf]
    %v463 = vld [vmem:[%s1 + $0xa20] sm:$0xff]
    %v464 = vld [vmem:[%s1 + $0xa28] sm:$0xf]
    %v465 = vld [vmem:[%s1 + $0xa2c] sm:$0xff]
    %v466 = vld [vmem:[%s1 + $0xa34] sm:$0xf]
    %v467 = vld [vmem:[%s1 + $0xa38] sm:$0xff]
    %v468 = vld [vmem:[%s1 + $0xa40] sm:$0xf]
    %v469 = vld [vmem:[%s1 + $0xa44] sm:$0xff]
    %v470 = vld [vmem:[%s1 + $0xa4c] sm:$0xf]
    %v471 = vld [vmem:[%s1 + $0xa50] sm:$0xff]
    %v472 = vld [vmem:[%s1 + $0xa58] sm:$0xf]
    %v473 = vld [vmem:[%s1 + $0xa5c] sm:$0xff]
    %v474 = vld [vmem:[%s1 + $0xa64] sm:$0xf]
    %v475 = vld [vmem:[%s1 + $0xa68] sm:$0xff]
    %v476 = vld [vmem:[%s1 + $0xa70] sm:$0xf]
    %v477 = vld [vmem:[%s1 + $0xa74] sm:$0xff]
    %v478 = vld [vmem:[%s1 + $0xa7c] sm:$0xf]
    %v479 = vld [vmem:[%s1 + $0xa80] sm:$0xff]
    %v480 = vld [vmem:[%s1 + $0xa88] sm:$0xf]
    %v481 = vld [vmem:[%s1 + $0xa8c] sm:$0xff]
    %v482 = vld [vmem:[%s1 + $0xa94] sm:$0xf]
    %v483 = vld [vmem:[%s1 + $0xa98] sm:$0xff]
    %v484 = vld [vmem:[%s1 + $0xaa0] sm:$0xf]
    %v485 = vld [vmem:[%s1 + $0xaa4] sm:$0xff]
    %v486 = vld [vmem:[%s1 + $0xaac] sm:$0xf]
    %v487 = vld [vmem:[%s1 + $0xab0] sm:$0xff]
    %v488 = vld [vmem:[%s1 + $0xab8] sm:$0xf]
    %v489 = vld [vmem:[%s1 + $0xabc] sm:$0xff]
    %v490 = vld [vmem:[%s1 + $0xac4] sm:$0xf]
    %v491 = vld [vmem:[%s1 + $0xac8] sm:$0xff]
    %v492 = vld [vmem:[%s1 + $0xad0] sm:$0xf]
    %v493 = vld [vmem:[%s1 + $0xad4] sm:$0xff]
    %v494 = vld [vmem:[%s1 + $0xadc] sm:$0xf]
    %v495 = vld [vmem:[%s1 + $0xae0] sm:$0xff]
    %v496 = vld [vmem:[%s1 + $0xae8] sm:$0xf]
    %v497 = vld [vmem:[%s1 + $0xaec] sm:$0xff]
    %v498 = vld [vmem:[%s1 + $0xaf4] sm:$0xf]
    %v499 = vld [vmem:[%s1 + $0xaf8] sm:$0xff]
    %v500 = vld [vmem:[%s1 + $0xb00] sm:$0xf]
    %v501 = vld [vmem:[%s1 + $0xb04] sm:$0xff]
    %v502 = vld [vmem:[%s1 + $0xb0c] sm:$0xf]
    %v503 = vld [vmem:[%s1 + $0xb10] sm:$0xff]
    %v504 = vld [vmem:[%s1 + $0xb18] sm:$0xf]
    %v505 = vld [vmem:[%s1 + $0xb1c] sm:$0xff]
    %v506 = vld [vmem:[%s1 + $0xb24] sm:$0xf]
    %v507 = vld [vmem:[%s1 + $0xb28] sm:$0xff]
    %v508 = vld [vmem:[%s1 + $0xb30] sm:$0xf]
    %v509 = vld [vmem:[%s1 + $0xb34] sm:$0xff]
    %v510 = vld [vmem:[%s1 + $0xb3c] sm:$0xf]
    %v511 = vld [vmem:[%s1 + $0xb40] sm:$0xff]
    %v512 = vld [vmem:[%s1 + $0xb48] sm:$0xf]
    %v513 = vld [vmem:[%s1 + $0xb4c] sm:$0xff]
    %v514 = vld [vmem:[%s1 + $0xb54] sm:$0xf]
    %v515 = vld [vmem:[%s1 + $0xb58] sm:$0xff]
    %v516 = vld [vmem:[%s1 + $0xb60] sm:$0xf]
    %v517 = vld [vmem:[%s1 + $0xb64] sm:$0xff]
    %v518 = vld [vmem:[%s1 + $0xb6c] sm:$0xf]
    %v519 = vld [vmem:[%s1 + $0xb70] sm:$0xff]
    %v520 = vld [vmem:[%s1 + $0xb78] sm:$0xf]
    %v521 = vld [vmem:[%s1 + $0xb7c] sm:$0xff]
    %v522 = vld [vmem:[%s1 + $0xb84] sm:$0xf]
    %v523 = vld [vmem:[%s1 + $0xb88] sm:$0xff]
    %v524 = vld [vmem:[%s1 + $0xb90] sm:$0xf]
    %v525 = vld [vmem:[%s1 + $0xb94] sm:$0xff]
    %v526 = vld [vmem:[%s1 + $0xb9c] sm:$0xf]
    %v527 = vld [vmem:[%s1 + $0xba0] sm:$0xff]
    %v528 = vld [vmem:[%s1 + $0xba8] sm:$0xf]
    %v529 = vld [vmem:[%s1 + $0xbac] sm:$0xff]
    %v530 = vld [vmem:[%s1 + $0xbb4] sm:$0xf]
    %v531 = vld [vmem:[%s1 + $0xbb8] sm:$0xff]
    %v532 = vld [vmem:[%s1 + $0xbc0] sm:$0xf]
    %v533 = vld [vmem:[%s1 + $0xbc4] sm:$0xff]
    %v534 = vld [vmem:[%s1 + $0xbcc] sm:$0xf]
    %v535 = vld [vmem:[%s1 + $0xbd0] sm:$0xff]
    %v536 = vld [vmem:[%s1 + $0xbd8] sm:$0xf]
    %v537 = vld [vmem:[%s1 + $0xbdc] sm:$0xff]
    %v538 = vld [vmem:[%s1 + $0xbe4] sm:$0xf]
    %v539 = vld [vmem:[%s1 + $0xbe8] sm:$0xff]
    %v540 = vld [vmem:[%s1 + $0xbf0] sm:$0xf]
    %v541 = vld [vmem:[%s1 + $0xbf4] sm:$0xff]
    %v542 = vld [vmem:[%s1 + $0xbfc] sm:$0xf]
    %v543 = vld [vmem:[%s1 + $0xc00] sm:$0xff]
    %v544 = vld [vmem:[%s1 + $0xc08] sm:$0xf]
    %v545 = vld [vmem:[%s1 + $0xc0c] sm:$0xff]
    %v546 = vld [vmem:[%s1 + $0xc14] sm:$0xf]
    %v547 = vld [vmem:[%s1 + $0xc18] sm:$0xff]
    %v548 = vld [vmem:[%s1 + $0xc20] sm:$0xf]
    %v549 = vld [vmem:[%s1 + $0xc24] sm:$0xff]
    %v550 = vld [vmem:[%s1 + $0xc2c] sm:$0xf]
    %v551 = vld [vmem:[%s1 + $0xc30] sm:$0xff]
    %v552 = vld [vmem:[%s1 + $0xc38] sm:$0xf]
    %v553 = vld [vmem:[%s1 + $0xc3c] sm:$0xff]
    %v554 = vld [vmem:[%s1 + $0xc44] sm:$0xf]
    %v555 = vld [vmem:[%s1 + $0xc48] sm:$0xff]
    %v556 = vld [vmem:[%s1 + $0xc50] sm:$0xf]
    %v557 = vld [vmem:[%s1 + $0xc54] sm:$0xff]
    %v558 = vld [vmem:[%s1 + $0xc5c] sm:$0xf]
    %v559 = vld [vmem:[%s1 + $0xc60] sm:$0xff]
    %v560 = vld [vmem:[%s1 + $0xc68] sm:$0xf]
    %v561 = vld [vmem:[%s1 + $0xc6c] sm:$0xff]
    %v562 = vld [vmem:[%s1 + $0xc74] sm:$0xf]
    %v563 = vld [vmem:[%s1 + $0xc78] sm:$0xff]
    %v564 = vld [vmem:[%s1 + $0xc80] sm:$0xf]
    %v565 = vld [vmem:[%s1 + $0xc84] sm:$0xff]
    %v566 = vld [vmem:[%s1 + $0xc8c] sm:$0xf]
    %v567 = vld [vmem:[%s1 + $0xc90] sm:$0xff]
    %v568 = vld [vmem:[%s1 + $0xc98] sm:$0xf]
    %v569 = vld [vmem:[%s1 + $0xc9c] sm:$0xff]
    %v570 = vld [vmem:[%s1 + $0xca4] sm:$0xf]
    %v571 = vld [vmem:[%s1 + $0xca8] sm:$0xff]
    %v572 = vld [vmem:[%s1 + $0xcb0] sm:$0xf]
    %v573 = vld [vmem:[%s1 + $0xcb4] sm:$0xff]
    %v574 = vld [vmem:[%s1 + $0xcbc] sm:$0xf]
    %v575 = vld [vmem:[%s1 + $0xcc0] sm:$0xff]
    %v576 = vld [vmem:[%s1 + $0xcc8] sm:$0xf]
    %v577 = vld [vmem:[%s1 + $0xccc] sm:$0xff]
    %v578 = vld [vmem:[%s1 + $0xcd4] sm:$0xf]
    %v579 = vld [vmem:[%s1 + $0xcd8] sm:$0xff]
    %v580 = vld [vmem:[%s1 + $0xce0] sm:$0xf]
    %v581 = vld [vmem:[%s1 + $0xce4] sm:$0xff]
    %v582 = vld [vmem:[%s1 + $0xcec] sm:$0xf]
    %v583 = vld [vmem:[%s1 + $0xcf0] sm:$0xff]
    %v584 = vld [vmem:[%s1 + $0xcf8] sm:$0xf]
    %v585 = vld [vmem:[%s1 + $0xcfc] sm:$0xff]
    %v586 = vld [vmem:[%s1 + $0xd04] sm:$0xf]
    %v587 = vld [vmem:[%s1 + $0xd08] sm:$0xff]
    %v588 = vld [vmem:[%s1 + $0xd10] sm:$0xf]
    %v589 = vld [vmem:[%s1 + $0xd14] sm:$0xff]
    %v590 = vld [vmem:[%s1 + $0xd1c] sm:$0xf]
    %v591 = vld [vmem:[%s1 + $0xd20] sm:$0xff]
    %v592 = vld [vmem:[%s1 + $0xd28] sm:$0xf]
    %v593 = vld [vmem:[%s1 + $0xd2c] sm:$0xff]
    %v594 = vld [vmem:[%s1 + $0xd34] sm:$0xf]
    %v595 = vld [vmem:[%s1 + $0xd38] sm:$0xff]
    %v596 = vld [vmem:[%s1 + $0xd40] sm:$0xf]
    %v597 = vld [vmem:[%s1 + $0xd44] sm:$0xff]
    %v598 = vld [vmem:[%s1 + $0xd4c] sm:$0xf]
    %v599 = vld [vmem:[%s1 + $0xd50] sm:$0xff]
    %v600 = vld [vmem:[%s1 + $0xd58] sm:$0xf]
    %v601 = vld [vmem:[%s1 + $0xd5c] sm:$0xff]
    %v602 = vld [vmem:[%s1 + $0xd64] sm:$0xf]
    %v603 = vld [vmem:[%s1 + $0xd68] sm:$0xff]
    %v604 = vld [vmem:[%s1 + $0xd70] sm:$0xf]
    %v605 = vld [vmem:[%s1 + $0xd74] sm:$0xff]
    %v606 = vld [vmem:[%s1 + $0xd7c] sm:$0xf]
    %v607 = vld [vmem:[%s2] sm:$0x7]
    %v609 = vlaneseq
    %v610 = vshrl.u32 %v609, 7
    %v611 = vsub.s32 0, %v610
    %v612 = vrot.slane %v607, %v611
    %v613 = vlaneseq
    %v614 = vshrl.u32 %v613, 7
    %v615 = vsub.s32 1, %v614
    %v616 = vrot.slane %v607, %v615
    %v617 = vlaneseq
    %v618 = vshrl.u32 %v617, 7
    %v619 = vsub.s32 2, %v618
    %v620 = vrot.slane %v607, %v619
    %v627 = vcombine.high %v28, %v28
    %v629 = vunpack.c.l.s4 1966171168
    %v630 = vunpack.c.0.s8 %v629
    %v631 = vlaneseq
    %v632 = vshrl.u32 %v631, 7
    %v633 = vsub.s32 %v630, %v632
    %v634 = vrot.slane %v28, %v633
    %v636 = vunpack.c.l.s4 1966171168
    %v637 = vunpack.c.0.s8 %v636
    %v638 = vlaneseq
    %v639 = vshrl.u32 %v638, 7
    %v640 = vsub.s32 %v637, %v639
    %v641 = vrot.slane %v627, %v640
    %v642 = vcombine.high %v634, %v634
    %v643 = vcombine.high %v641, %v641
    %v645 = vunpack.c.l.s4 1966171168
    %v646 = vunpack.c.0.s8 %v645
    %v647 = vlaneseq
    %v648 = vshrl.u32 %v647, 7
    %v649 = vsub.s32 %v646, %v648
    %v650 = vrot.slane %v634, %v649
    %v652 = vunpack.c.l.s4 1966171168
    %v653 = vunpack.c.0.s8 %v652
    %v654 = vlaneseq
    %v655 = vshrl.u32 %v654, 7
    %v656 = vsub.s32 %v653, %v655
    %v657 = vrot.slane %v641, %v656
    %v659 = vunpack.c.l.s4 1966171168
    %v660 = vunpack.c.0.s8 %v659
    %v661 = vlaneseq
    %v662 = vshrl.u32 %v661, 7
    %v663 = vsub.s32 %v660, %v662
    %v664 = vrot.slane %v642, %v663
    %v666 = vunpack.c.l.s4 1966171168
    %v667 = vunpack.c.0.s8 %v666
    %v668 = vlaneseq
    %v669 = vshrl.u32 %v668, 7
    %v670 = vsub.s32 %v667, %v669
    %v671 = vrot.slane %v643, %v670
    %v672 = vcombine.high %v650, %v650
    %v673 = vcombine.high %v657, %v657
    %v674 = vcombine.high %v664, %v664
    %v675 = vcombine.high %v671, %v671
    %v676 = vcombine.high %v29, %v29
    %v678 = vunpack.c.l.s4 1966171168
    %v679 = vunpack.c.0.s8 %v678
    %v680 = vlaneseq
    %v681 = vshrl.u32 %v680, 7
    %v682 = vsub.s32 %v679, %v681
    %v683 = vrot.slane %v29, %v682
    %v685 = vunpack.c.l.s4 1966171168
    %v686 = vunpack.c.0.s8 %v685
    %v687 = vlaneseq
    %v688 = vshrl.u32 %v687, 7
    %v689 = vsub.s32 %v686, %v688
    %v690 = vrot.slane %v676, %v689
    %v691 = vcombine.high %v683, %v683
    %v692 = vcombine.high %v690, %v690
    %v694 = vunpack.c.l.s4 1966171168
    %v695 = vunpack.c.0.s8 %v694
    %v696 = vlaneseq
    %v697 = vshrl.u32 %v696, 7
    %v698 = vsub.s32 %v695, %v697
    %v699 = vrot.slane %v683, %v698
    %v701 = vunpack.c.l.s4 1966171168
    %v702 = vunpack.c.0.s8 %v701
    %v703 = vlaneseq
    %v704 = vshrl.u32 %v703, 7
    %v705 = vsub.s32 %v702, %v704
    %v706 = vrot.slane %v690, %v705
    %v708 = vunpack.c.l.s4 1966171168
    %v709 = vunpack.c.0.s8 %v708
    %v710 = vlaneseq
    %v711 = vshrl.u32 %v710, 7
    %v712 = vsub.s32 %v709, %v711
    %v713 = vrot.slane %v691, %v712
    %v715 = vunpack.c.l.s4 1966171168
    %v716 = vunpack.c.0.s8 %v715
    %v717 = vlaneseq
    %v718 = vshrl.u32 %v717, 7
    %v719 = vsub.s32 %v716, %v718
    %v720 = vrot.slane %v692, %v719
    %v721 = vcombine.high %v699, %v699
    %v722 = vcombine.high %v706, %v706
    %v723 = vcombine.high %v713, %v713
    %v724 = vcombine.high %v720, %v720
    %v726 = vunpack.c.l.s4 1966171168
    %v727 = vunpack.c.0.s8 %v726
    %v728 = vlaneseq
    %v729 = vshrl.u32 %v728, 7
    %v730 = vsub.s32 %v727, %v729
    %v731 = vrot.slane %v30, %v730
    %v732 = vcombine.high %v731, %v731
    %v734 = vunpack.c.l.s4 1966171168
    %v735 = vunpack.c.0.s8 %v734
    %v736 = vlaneseq
    %v737 = vshrl.u32 %v736, 7
    %v738 = vsub.s32 %v735, %v737
    %v739 = vrot.slane %v731, %v738
    %v741 = vunpack.c.l.s4 1966171168
    %v742 = vunpack.c.0.s8 %v741
    %v743 = vlaneseq
    %v744 = vshrl.u32 %v743, 7
    %v745 = vsub.s32 %v742, %v744
    %v746 = vrot.slane %v732, %v745
    %v1341 = vunpack.c.l.b16 %v31
    %v1342 = vunpack.c.h.b16 %v31
    %v1343 = vunpack.c.l.b16 %v32
    %v1344 = vunpack.c.l.b16 %v33
    %v1345 = vunpack.c.h.b16 %v33
    %v1346 = vunpack.c.l.b16 %v34
    %v1347 = vunpack.c.l.b16 %v35
    %v1348 = vunpack.c.h.b16 %v35
    %v1349 = vunpack.c.l.b16 %v36
    %v1350 = vunpack.c.l.b16 %v37
    %v1351 = vunpack.c.h.b16 %v37
    %v1352 = vunpack.c.l.b16 %v38
    %v1353 = vunpack.c.l.b16 %v39
    %v1354 = vunpack.c.h.b16 %v39
    %v1355 = vunpack.c.l.b16 %v40
    %v1356 = vunpack.c.l.b16 %v41
    %v1357 = vunpack.c.h.b16 %v41
    %v1358 = vunpack.c.l.b16 %v42
    %v1359 = vunpack.c.l.b16 %v43
    %v1360 = vunpack.c.h.b16 %v43
    %v1361 = vunpack.c.l.b16 %v44
    %v1362 = vunpack.c.l.b16 %v45
    %v1363 = vunpack.c.h.b16 %v45
    %v1364 = vunpack.c.l.b16 %v46
    %v1365 = vunpack.c.l.b16 %v47
    %v1366 = vunpack.c.h.b16 %v47
    %v1367 = vunpack.c.l.b16 %v48
    %v1368 = vunpack.c.l.b16 %v49
    %v1369 = vunpack.c.h.b16 %v49
    %v1370 = vunpack.c.l.b16 %v50
    %v1371 = vunpack.c.l.b16 %v51
    %v1372 = vunpack.c.h.b16 %v51
    %v1373 = vunpack.c.l.b16 %v52
    %v1374 = vunpack.c.l.b16 %v53
    %v1375 = vunpack.c.h.b16 %v53
    %v1376 = vunpack.c.l.b16 %v54
    %v1377 = vunpack.c.l.b16 %v55
    %v1378 = vunpack.c.h.b16 %v55
    %v1379 = vunpack.c.l.b16 %v56
    %v1380 = vunpack.c.l.b16 %v57
    %v1381 = vunpack.c.h.b16 %v57
    %v1382 = vunpack.c.l.b16 %v58
    %v1383 = vunpack.c.l.b16 %v59
    %v1384 = vunpack.c.h.b16 %v59
    %v1385 = vunpack.c.l.b16 %v60
    %v1386 = vunpack.c.l.b16 %v61
    %v1387 = vunpack.c.h.b16 %v61
    %v1388 = vunpack.c.l.b16 %v62
    %v1389 = vunpack.c.l.b16 %v63
    %v1390 = vunpack.c.h.b16 %v63
    %v1391 = vunpack.c.l.b16 %v64
    %v1392 = vunpack.c.l.b16 %v65
    %v1393 = vunpack.c.h.b16 %v65
    %v1394 = vunpack.c.l.b16 %v66
    %v1395 = vunpack.c.l.b16 %v67
    %v1396 = vunpack.c.h.b16 %v67
    %v1397 = vunpack.c.l.b16 %v68
    %v1398 = vunpack.c.l.b16 %v69
    %v1399 = vunpack.c.h.b16 %v69
    %v1400 = vunpack.c.l.b16 %v70
    %v1401 = vunpack.c.l.b16 %v71
    %v1402 = vunpack.c.h.b16 %v71
    %v1403 = vunpack.c.l.b16 %v72
    %v1404 = vunpack.c.l.b16 %v73
    %v1405 = vunpack.c.h.b16 %v73
    %v1406 = vunpack.c.l.b16 %v74
    %v1407 = vunpack.c.l.b16 %v75
    %v1408 = vunpack.c.h.b16 %v75
    %v1409 = vunpack.c.l.b16 %v76
    %v1410 = vunpack.c.l.b16 %v77
    %v1411 = vunpack.c.h.b16 %v77
    %v1412 = vunpack.c.l.b16 %v78
    %v1413 = vunpack.c.l.b16 %v79
    %v1414 = vunpack.c.h.b16 %v79
    %v1415 = vunpack.c.l.b16 %v80
    %v1416 = vunpack.c.l.b16 %v81
    %v1417 = vunpack.c.h.b16 %v81
    %v1418 = vunpack.c.l.b16 %v82
    %v1419 = vunpack.c.l.b16 %v83
    %v1420 = vunpack.c.h.b16 %v83
    %v1421 = vunpack.c.l.b16 %v84
    %v1422 = vunpack.c.l.b16 %v85
    %v1423 = vunpack.c.h.b16 %v85
    %v1424 = vunpack.c.l.b16 %v86
    %v1425 = vunpack.c.l.b16 %v87
    %v1426 = vunpack.c.h.b16 %v87
    %v1427 = vunpack.c.l.b16 %v88
    %v1428 = vunpack.c.l.b16 %v89
    %v1429 = vunpack.c.h.b16 %v89
    %v1430 = vunpack.c.l.b16 %v90
    %v1431 = vunpack.c.l.b16 %v91
    %v1432 = vunpack.c.h.b16 %v91
    %v1433 = vunpack.c.l.b16 %v92
    %v1434 = vunpack.c.l.b16 %v93
    %v1435 = vunpack.c.h.b16 %v93
    %v1436 = vunpack.c.l.b16 %v94
    %v1437 = vunpack.c.l.b16 %v95
    %v1438 = vunpack.c.h.b16 %v95
    %v1439 = vunpack.c.l.b16 %v96
    %v1440 = vunpack.c.l.b16 %v97
    %v1441 = vunpack.c.h.b16 %v97
    %v1442 = vunpack.c.l.b16 %v98
    %v1443 = vunpack.c.l.b16 %v99
    %v1444 = vunpack.c.h.b16 %v99
    %v1445 = vunpack.c.l.b16 %v100
    %v1446 = vunpack.c.l.b16 %v101
    %v1447 = vunpack.c.h.b16 %v101
    %v1448 = vunpack.c.l.b16 %v102
    %v1449 = vunpack.c.l.b16 %v103
    %v1450 = vunpack.c.h.b16 %v103
    %v1451 = vunpack.c.l.b16 %v104
    %v1452 = vunpack.c.l.b16 %v105
    %v1453 = vunpack.c.h.b16 %v105
    %v1454 = vunpack.c.l.b16 %v106
    %v1455 = vunpack.c.l.b16 %v107
    %v1456 = vunpack.c.h.b16 %v107
    %v1457 = vunpack.c.l.b16 %v108
    %v1458 = vunpack.c.l.b16 %v109
    %v1459 = vunpack.c.h.b16 %v109
    %v1460 = vunpack.c.l.b16 %v110
    %v1461 = vunpack.c.l.b16 %v111
    %v1462 = vunpack.c.h.b16 %v111
    %v1463 = vunpack.c.l.b16 %v112
    %v1464 = vunpack.c.l.b16 %v113
    %v1465 = vunpack.c.h.b16 %v113
    %v1466 = vunpack.c.l.b16 %v114
    %v1467 = vunpack.c.l.b16 %v115
    %v1468 = vunpack.c.h.b16 %v115
    %v1469 = vunpack.c.l.b16 %v116
    %v1470 = vunpack.c.l.b16 %v117
    %v1471 = vunpack.c.h.b16 %v117
    %v1472 = vunpack.c.l.b16 %v118
    %v1473 = vunpack.c.l.b16 %v119
    %v1474 = vunpack.c.h.b16 %v119
    %v1475 = vunpack.c.l.b16 %v120
    %v1476 = vunpack.c.l.b16 %v121
    %v1477 = vunpack.c.h.b16 %v121
    %v1478 = vunpack.c.l.b16 %v122
    %v1479 = vunpack.c.l.b16 %v123
    %v1480 = vunpack.c.h.b16 %v123
    %v1481 = vunpack.c.l.b16 %v124
    %v1482 = vunpack.c.l.b16 %v125
    %v1483 = vunpack.c.h.b16 %v125
    %v1484 = vunpack.c.l.b16 %v126
    %v1485 = vunpack.c.l.b16 %v127
    %v1486 = vunpack.c.h.b16 %v127
    %v1487 = vunpack.c.l.b16 %v128
    %v1488 = vunpack.c.l.b16 %v129
    %v1489 = vunpack.c.h.b16 %v129
    %v1490 = vunpack.c.l.b16 %v130
    %v1491 = vunpack.c.l.b16 %v131
    %v1492 = vunpack.c.h.b16 %v131
    %v1493 = vunpack.c.l.b16 %v132
    %v1494 = vunpack.c.l.b16 %v133
    %v1495 = vunpack.c.h.b16 %v133
    %v1496 = vunpack.c.l.b16 %v134
    %v1497 = vunpack.c.l.b16 %v135
    %v1498 = vunpack.c.h.b16 %v135
    %v1499 = vunpack.c.l.b16 %v136
    %v1500 = vunpack.c.l.b16 %v137
    %v1501 = vunpack.c.h.b16 %v137
    %v1502 = vunpack.c.l.b16 %v138
    %v1503 = vunpack.c.l.b16 %v139
    %v1504 = vunpack.c.h.b16 %v139
    %v1505 = vunpack.c.l.b16 %v140
    %v1506 = vunpack.c.l.b16 %v141
    %v1507 = vunpack.c.h.b16 %v141
    %v1508 = vunpack.c.l.b16 %v142
    %v1509 = vunpack.c.l.b16 %v143
    %v1510 = vunpack.c.h.b16 %v143
    %v1511 = vunpack.c.l.b16 %v144
    %v1512 = vunpack.c.l.b16 %v145
    %v1513 = vunpack.c.h.b16 %v145
    %v1514 = vunpack.c.l.b16 %v146
    %v1515 = vunpack.c.l.b16 %v147
    %v1516 = vunpack.c.h.b16 %v147
    %v1517 = vunpack.c.l.b16 %v148
    %v1518 = vunpack.c.l.b16 %v149
    %v1519 = vunpack.c.h.b16 %v149
    %v1520 = vunpack.c.l.b16 %v150
    %v1521 = vunpack.c.l.b16 %v151
    %v1522 = vunpack.c.h.b16 %v151
    %v1523 = vunpack.c.l.b16 %v152
    %v1524 = vunpack.c.l.b16 %v153
    %v1525 = vunpack.c.h.b16 %v153
    %v1526 = vunpack.c.l.b16 %v154
    %v1527 = vunpack.c.l.b16 %v155
    %v1528 = vunpack.c.h.b16 %v155
    %v1529 = vunpack.c.l.b16 %v156
    %v1530 = vunpack.c.l.b16 %v157
    %v1531 = vunpack.c.h.b16 %v157
    %v1532 = vunpack.c.l.b16 %v158
    %v1533 = vunpack.c.l.b16 %v159
    %v1534 = vunpack.c.h.b16 %v159
    %v1535 = vunpack.c.l.b16 %v160
    %v1536 = vunpack.c.l.b16 %v161
    %v1537 = vunpack.c.h.b16 %v161
    %v1538 = vunpack.c.l.b16 %v162
    %v1539 = vunpack.c.l.b16 %v163
    %v1540 = vunpack.c.h.b16 %v163
    %v1541 = vunpack.c.l.b16 %v164
    %v1542 = vunpack.c.l.b16 %v165
    %v1543 = vunpack.c.h.b16 %v165
    %v1544 = vunpack.c.l.b16 %v166
    %v1545 = vunpack.c.l.b16 %v167
    %v1546 = vunpack.c.h.b16 %v167
    %v1547 = vunpack.c.l.b16 %v168
    %v1548 = vunpack.c.l.b16 %v169
    %v1549 = vunpack.c.h.b16 %v169
    %v1550 = vunpack.c.l.b16 %v170
    %v1551 = vunpack.c.l.b16 %v171
    %v1552 = vunpack.c.h.b16 %v171
    %v1553 = vunpack.c.l.b16 %v172
    %v1554 = vunpack.c.l.b16 %v173
    %v1555 = vunpack.c.h.b16 %v173
    %v1556 = vunpack.c.l.b16 %v174
    %v1557 = vunpack.c.l.b16 %v175
    %v1558 = vunpack.c.h.b16 %v175
    %v1559 = vunpack.c.l.b16 %v176
    %v1560 = vunpack.c.l.b16 %v177
    %v1561 = vunpack.c.h.b16 %v177
    %v1562 = vunpack.c.l.b16 %v178
    %v1563 = vunpack.c.l.b16 %v179
    %v1564 = vunpack.c.h.b16 %v179
    %v1565 = vunpack.c.l.b16 %v180
    %v1566 = vunpack.c.l.b16 %v181
    %v1567 = vunpack.c.h.b16 %v181
    %v1568 = vunpack.c.l.b16 %v182
    %v1569 = vunpack.c.l.b16 %v183
    %v1570 = vunpack.c.h.b16 %v183
    %v1571 = vunpack.c.l.b16 %v184
    %v1572 = vunpack.c.l.b16 %v185
    %v1573 = vunpack.c.h.b16 %v185
    %v1574 = vunpack.c.l.b16 %v186
    %v1575 = vunpack.c.l.b16 %v187
    %v1576 = vunpack.c.h.b16 %v187
    %v1577 = vunpack.c.l.b16 %v188
    %v1578 = vunpack.c.l.b16 %v189
    %v1579 = vunpack.c.h.b16 %v189
    %v1580 = vunpack.c.l.b16 %v190
    %v1581 = vunpack.c.l.b16 %v191
    %v1582 = vunpack.c.h.b16 %v191
    %v1583 = vunpack.c.l.b16 %v192
    %v1584 = vunpack.c.l.b16 %v193
    %v1585 = vunpack.c.h.b16 %v193
    %v1586 = vunpack.c.l.b16 %v194
    %v1587 = vunpack.c.l.b16 %v195
    %v1588 = vunpack.c.h.b16 %v195
    %v1589 = vunpack.c.l.b16 %v196
    %v1590 = vunpack.c.l.b16 %v197
    %v1591 = vunpack.c.h.b16 %v197
    %v1592 = vunpack.c.l.b16 %v198
    %v1593 = vunpack.c.l.b16 %v199
    %v1594 = vunpack.c.h.b16 %v199
    %v1595 = vunpack.c.l.b16 %v200
    %v1596 = vunpack.c.l.b16 %v201
    %v1597 = vunpack.c.h.b16 %v201
    %v1598 = vunpack.c.l.b16 %v202
    %v1599 = vunpack.c.l.b16 %v203
    %v1600 = vunpack.c.h.b16 %v203
    %v1601 = vunpack.c.l.b16 %v204
    %v1602 = vunpack.c.l.b16 %v205
    %v1603 = vunpack.c.h.b16 %v205
    %v1604 = vunpack.c.l.b16 %v206
    %v1605 = vunpack.c.l.b16 %v207
    %v1606 = vunpack.c.h.b16 %v207
    %v1607 = vunpack.c.l.b16 %v208
    %v1608 = vunpack.c.l.b16 %v209
    %v1609 = vunpack.c.h.b16 %v209
    %v1610 = vunpack.c.l.b16 %v210
    %v1611 = vunpack.c.l.b16 %v211
    %v1612 = vunpack.c.h.b16 %v211
    %v1613 = vunpack.c.l.b16 %v212
    %v1614 = vunpack.c.l.b16 %v213
    %v1615 = vunpack.c.h.b16 %v213
    %v1616 = vunpack.c.l.b16 %v214
    %v1617 = vunpack.c.l.b16 %v215
    %v1618 = vunpack.c.h.b16 %v215
    %v1619 = vunpack.c.l.b16 %v216
    %v1620 = vunpack.c.l.b16 %v217
    %v1621 = vunpack.c.h.b16 %v217
    %v1622 = vunpack.c.l.b16 %v218
    %v1623 = vunpack.c.l.b16 %v219
    %v1624 = vunpack.c.h.b16 %v219
    %v1625 = vunpack.c.l.b16 %v220
    %v1626 = vunpack.c.l.b16 %v221
    %v1627 = vunpack.c.h.b16 %v221
    %v1628 = vunpack.c.l.b16 %v222
    %v1629 = vunpack.c.l.b16 %v223
    %v1630 = vunpack.c.h.b16 %v223
    %v1631 = vunpack.c.l.b16 %v224
    %v1632 = vunpack.c.l.b16 %v225
    %v1633 = vunpack.c.h.b16 %v225
    %v1634 = vunpack.c.l.b16 %v226
    %v1635 = vunpack.c.l.b16 %v227
    %v1636 = vunpack.c.h.b16 %v227
    %v1637 = vunpack.c.l.b16 %v228
    %v1638 = vunpack.c.l.b16 %v229
    %v1639 = vunpack.c.h.b16 %v229
    %v1640 = vunpack.c.l.b16 %v230
    %v1641 = vunpack.c.l.b16 %v231
    %v1642 = vunpack.c.h.b16 %v231
    %v1643 = vunpack.c.l.b16 %v232
    %v1644 = vunpack.c.l.b16 %v233
    %v1645 = vunpack.c.h.b16 %v233
    %v1646 = vunpack.c.l.b16 %v234
    %v1647 = vunpack.c.l.b16 %v235
    %v1648 = vunpack.c.h.b16 %v235
    %v1649 = vunpack.c.l.b16 %v236
    %v1650 = vunpack.c.l.b16 %v237
    %v1651 = vunpack.c.h.b16 %v237
    %v1652 = vunpack.c.l.b16 %v238
    %v1653 = vunpack.c.l.b16 %v239
    %v1654 = vunpack.c.h.b16 %v239
    %v1655 = vunpack.c.l.b16 %v240
    %v1656 = vunpack.c.l.b16 %v241
    %v1657 = vunpack.c.h.b16 %v241
    %v1658 = vunpack.c.l.b16 %v242
    %v1659 = vunpack.c.l.b16 %v243
    %v1660 = vunpack.c.h.b16 %v243
    %v1661 = vunpack.c.l.b16 %v244
    %v1662 = vunpack.c.l.b16 %v245
    %v1663 = vunpack.c.h.b16 %v245
    %v1664 = vunpack.c.l.b16 %v246
    %v1665 = vunpack.c.l.b16 %v247
    %v1666 = vunpack.c.h.b16 %v247
    %v1667 = vunpack.c.l.b16 %v248
    %v1668 = vunpack.c.l.b16 %v249
    %v1669 = vunpack.c.h.b16 %v249
    %v1670 = vunpack.c.l.b16 %v250
    %v1671 = vunpack.c.l.b16 %v251
    %v1672 = vunpack.c.h.b16 %v251
    %v1673 = vunpack.c.l.b16 %v252
    %v1674 = vunpack.c.l.b16 %v253
    %v1675 = vunpack.c.h.b16 %v253
    %v1676 = vunpack.c.l.b16 %v254
    %v1677 = vunpack.c.l.b16 %v255
    %v1678 = vunpack.c.h.b16 %v255
    %v1679 = vunpack.c.l.b16 %v256
    %v1680 = vunpack.c.l.b16 %v257
    %v1681 = vunpack.c.h.b16 %v257
    %v1682 = vunpack.c.l.b16 %v258
    %v1683 = vunpack.c.l.b16 %v259
    %v1684 = vunpack.c.h.b16 %v259
    %v1685 = vunpack.c.l.b16 %v260
    %v1686 = vunpack.c.l.b16 %v261
    %v1687 = vunpack.c.h.b16 %v261
    %v1688 = vunpack.c.l.b16 %v262
    %v1689 = vunpack.c.l.b16 %v263
    %v1690 = vunpack.c.h.b16 %v263
    %v1691 = vunpack.c.l.b16 %v264
    %v1692 = vunpack.c.l.b16 %v265
    %v1693 = vunpack.c.h.b16 %v265
    %v1694 = vunpack.c.l.b16 %v266
    %v1695 = vunpack.c.l.b16 %v267
    %v1696 = vunpack.c.h.b16 %v267
    %v1697 = vunpack.c.l.b16 %v268
    %v1698 = vunpack.c.l.b16 %v269
    %v1699 = vunpack.c.h.b16 %v269
    %v1700 = vunpack.c.l.b16 %v270
    %v1701 = vunpack.c.l.b16 %v271
    %v1702 = vunpack.c.h.b16 %v271
    %v1703 = vunpack.c.l.b16 %v272
    %v1704 = vunpack.c.l.b16 %v273
    %v1705 = vunpack.c.h.b16 %v273
    %v1706 = vunpack.c.l.b16 %v274
    %v1707 = vunpack.c.l.b16 %v275
    %v1708 = vunpack.c.h.b16 %v275
    %v1709 = vunpack.c.l.b16 %v276
    %v1710 = vunpack.c.l.b16 %v277
    %v1711 = vunpack.c.h.b16 %v277
    %v1712 = vunpack.c.l.b16 %v278
    %v1713 = vunpack.c.l.b16 %v279
    %v1714 = vunpack.c.h.b16 %v279
    %v1715 = vunpack.c.l.b16 %v280
    %v1716 = vunpack.c.l.b16 %v281
    %v1717 = vunpack.c.h.b16 %v281
    %v1718 = vunpack.c.l.b16 %v282
    %v1719 = vunpack.c.l.b16 %v283
    %v1720 = vunpack.c.h.b16 %v283
    %v1721 = vunpack.c.l.b16 %v284
    %v1722 = vunpack.c.l.b16 %v285
    %v1723 = vunpack.c.h.b16 %v285
    %v1724 = vunpack.c.l.b16 %v286
    %v1725 = vunpack.c.l.b16 %v287
    %v1726 = vunpack.c.h.b16 %v287
    %v1727 = vunpack.c.l.b16 %v288
    %v1728 = vunpack.c.l.b16 %v289
    %v1729 = vunpack.c.h.b16 %v289
    %v1730 = vunpack.c.l.b16 %v290
    %v1731 = vunpack.c.l.b16 %v291
    %v1732 = vunpack.c.h.b16 %v291
    %v1733 = vunpack.c.l.b16 %v292
    %v1734 = vunpack.c.l.b16 %v293
    %v1735 = vunpack.c.h.b16 %v293
    %v1736 = vunpack.c.l.b16 %v294
    %v1737 = vunpack.c.l.b16 %v295
    %v1738 = vunpack.c.h.b16 %v295
    %v1739 = vunpack.c.l.b16 %v296
    %v1740 = vunpack.c.l.b16 %v297
    %v1741 = vunpack.c.h.b16 %v297
    %v1742 = vunpack.c.l.b16 %v298
    %v1743 = vunpack.c.l.b16 %v299
    %v1744 = vunpack.c.h.b16 %v299
    %v1745 = vunpack.c.l.b16 %v300
    %v1746 = vunpack.c.l.b16 %v301
    %v1747 = vunpack.c.h.b16 %v301
    %v1748 = vunpack.c.l.b16 %v302
    %v1749 = vunpack.c.l.b16 %v303
    %v1750 = vunpack.c.h.b16 %v303
    %v1751 = vunpack.c.l.b16 %v304
    %v1752 = vunpack.c.l.b16 %v305
    %v1753 = vunpack.c.h.b16 %v305
    %v1754 = vunpack.c.l.b16 %v306
    %v1755 = vunpack.c.l.b16 %v307
    %v1756 = vunpack.c.h.b16 %v307
    %v1757 = vunpack.c.l.b16 %v308
    %v1758 = vunpack.c.l.b16 %v309
    %v1759 = vunpack.c.h.b16 %v309
    %v1760 = vunpack.c.l.b16 %v310
    %v1761 = vunpack.c.l.b16 %v311
    %v1762 = vunpack.c.h.b16 %v311
    %v1763 = vunpack.c.l.b16 %v312
    %v1764 = vunpack.c.l.b16 %v313
    %v1765 = vunpack.c.h.b16 %v313
    %v1766 = vunpack.c.l.b16 %v314
    %v1767 = vunpack.c.l.b16 %v315
    %v1768 = vunpack.c.h.b16 %v315
    %v1769 = vunpack.c.l.b16 %v316
    %v1770 = vunpack.c.l.b16 %v317
    %v1771 = vunpack.c.h.b16 %v317
    %v1772 = vunpack.c.l.b16 %v318
    %v1773 = vunpack.c.l.b16 %v319
    %v1774 = vunpack.c.h.b16 %v319
    %v1775 = vunpack.c.l.b16 %v320
    %v1776 = vunpack.c.l.b16 %v321
    %v1777 = vunpack.c.h.b16 %v321
    %v1778 = vunpack.c.l.b16 %v322
    %v1779 = vunpack.c.l.b16 %v323
    %v1780 = vunpack.c.h.b16 %v323
    %v1781 = vunpack.c.l.b16 %v324
    %v1782 = vunpack.c.l.b16 %v325
    %v1783 = vunpack.c.h.b16 %v325
    %v1784 = vunpack.c.l.b16 %v326
    %v1785 = vunpack.c.l.b16 %v327
    %v1786 = vunpack.c.h.b16 %v327
    %v1787 = vunpack.c.l.b16 %v328
    %v1788 = vunpack.c.l.b16 %v329
    %v1789 = vunpack.c.h.b16 %v329
    %v1790 = vunpack.c.l.b16 %v330
    %v1791 = vunpack.c.l.b16 %v331
    %v1792 = vunpack.c.h.b16 %v331
    %v1793 = vunpack.c.l.b16 %v332
    %v1794 = vunpack.c.l.b16 %v333
    %v1795 = vunpack.c.h.b16 %v333
    %v1796 = vunpack.c.l.b16 %v334
    %v1797 = vunpack.c.l.b16 %v335
    %v1798 = vunpack.c.h.b16 %v335
    %v1799 = vunpack.c.l.b16 %v336
    %v1800 = vunpack.c.l.b16 %v337
    %v1801 = vunpack.c.h.b16 %v337
    %v1802 = vunpack.c.l.b16 %v338
    %v1803 = vunpack.c.l.b16 %v339
    %v1804 = vunpack.c.h.b16 %v339
    %v1805 = vunpack.c.l.b16 %v340
    %v1806 = vunpack.c.l.b16 %v341
    %v1807 = vunpack.c.h.b16 %v341
    %v1808 = vunpack.c.l.b16 %v342
    %v1809 = vunpack.c.l.b16 %v343
    %v1810 = vunpack.c.h.b16 %v343
    %v1811 = vunpack.c.l.b16 %v344
    %v1812 = vunpack.c.l.b16 %v345
    %v1813 = vunpack.c.h.b16 %v345
    %v1814 = vunpack.c.l.b16 %v346
    %v1815 = vunpack.c.l.b16 %v347
    %v1816 = vunpack.c.h.b16 %v347
    %v1817 = vunpack.c.l.b16 %v348
    %v1818 = vunpack.c.l.b16 %v349
    %v1819 = vunpack.c.h.b16 %v349
    %v1820 = vunpack.c.l.b16 %v350
    %v1821 = vunpack.c.l.b16 %v351
    %v1822 = vunpack.c.h.b16 %v351
    %v1823 = vunpack.c.l.b16 %v352
    %v1824 = vunpack.c.l.b16 %v353
    %v1825 = vunpack.c.h.b16 %v353
    %v1826 = vunpack.c.l.b16 %v354
    %v1827 = vunpack.c.l.b16 %v355
    %v1828 = vunpack.c.h.b16 %v355
    %v1829 = vunpack.c.l.b16 %v356
    %v1830 = vunpack.c.l.b16 %v357
    %v1831 = vunpack.c.h.b16 %v357
    %v1832 = vunpack.c.l.b16 %v358
    %v1833 = vunpack.c.l.b16 %v359
    %v1834 = vunpack.c.h.b16 %v359
    %v1835 = vunpack.c.l.b16 %v360
    %v1836 = vunpack.c.l.b16 %v361
    %v1837 = vunpack.c.h.b16 %v361
    %v1838 = vunpack.c.l.b16 %v362
    %v1839 = vunpack.c.l.b16 %v363
    %v1840 = vunpack.c.h.b16 %v363
    %v1841 = vunpack.c.l.b16 %v364
    %v1842 = vunpack.c.l.b16 %v365
    %v1843 = vunpack.c.h.b16 %v365
    %v1844 = vunpack.c.l.b16 %v366
    %v1845 = vunpack.c.l.b16 %v367
    %v1846 = vunpack.c.h.b16 %v367
    %v1847 = vunpack.c.l.b16 %v368
    %v1848 = vunpack.c.l.b16 %v369
    %v1849 = vunpack.c.h.b16 %v369
    %v1850 = vunpack.c.l.b16 %v370
    %v1851 = vunpack.c.l.b16 %v371
    %v1852 = vunpack.c.h.b16 %v371
    %v1853 = vunpack.c.l.b16 %v372
    %v1854 = vunpack.c.l.b16 %v373
    %v1855 = vunpack.c.h.b16 %v373
    %v1856 = vunpack.c.l.b16 %v374
    %v1857 = vunpack.c.l.b16 %v375
    %v1858 = vunpack.c.h.b16 %v375
    %v1859 = vunpack.c.l.b16 %v376
    %v1860 = vunpack.c.l.b16 %v377
    %v1861 = vunpack.c.h.b16 %v377
    %v1862 = vunpack.c.l.b16 %v378
    %v1863 = vunpack.c.l.b16 %v379
    %v1864 = vunpack.c.h.b16 %v379
    %v1865 = vunpack.c.l.b16 %v380
    %v1866 = vunpack.c.l.b16 %v381
    %v1867 = vunpack.c.h.b16 %v381
    %v1868 = vunpack.c.l.b16 %v382
    %v1869 = vunpack.c.l.b16 %v383
    %v1870 = vunpack.c.h.b16 %v383
    %v1871 = vunpack.c.l.b16 %v384
    %v1872 = vunpack.c.l.b16 %v385
    %v1873 = vunpack.c.h.b16 %v385
    %v1874 = vunpack.c.l.b16 %v386
    %v1875 = vunpack.c.l.b16 %v387
    %v1876 = vunpack.c.h.b16 %v387
    %v1877 = vunpack.c.l.b16 %v388
    %v1878 = vunpack.c.l.b16 %v389
    %v1879 = vunpack.c.h.b16 %v389
    %v1880 = vunpack.c.l.b16 %v390
    %v1881 = vunpack.c.l.b16 %v391
    %v1882 = vunpack.c.h.b16 %v391
    %v1883 = vunpack.c.l.b16 %v392
    %v1884 = vunpack.c.l.b16 %v393
    %v1885 = vunpack.c.h.b16 %v393
    %v1886 = vunpack.c.l.b16 %v394
    %v1887 = vunpack.c.l.b16 %v395
    %v1888 = vunpack.c.h.b16 %v395
    %v1889 = vunpack.c.l.b16 %v396
    %v1890 = vunpack.c.l.b16 %v397
    %v1891 = vunpack.c.h.b16 %v397
    %v1892 = vunpack.c.l.b16 %v398
    %v1893 = vunpack.c.l.b16 %v399
    %v1894 = vunpack.c.h.b16 %v399
    %v1895 = vunpack.c.l.b16 %v400
    %v1896 = vunpack.c.l.b16 %v401
    %v1897 = vunpack.c.h.b16 %v401
    %v1898 = vunpack.c.l.b16 %v402
    %v1899 = vunpack.c.l.b16 %v403
    %v1900 = vunpack.c.h.b16 %v403
    %v1901 = vunpack.c.l.b16 %v404
    %v1902 = vunpack.c.l.b16 %v405
    %v1903 = vunpack.c.h.b16 %v405
    %v1904 = vunpack.c.l.b16 %v406
    %v1905 = vunpack.c.l.b16 %v407
    %v1906 = vunpack.c.h.b16 %v407
    %v1907 = vunpack.c.l.b16 %v408
    %v1908 = vunpack.c.l.b16 %v409
    %v1909 = vunpack.c.h.b16 %v409
    %v1910 = vunpack.c.l.b16 %v410
    %v1911 = vunpack.c.l.b16 %v411
    %v1912 = vunpack.c.h.b16 %v411
    %v1913 = vunpack.c.l.b16 %v412
    %v1914 = vunpack.c.l.b16 %v413
    %v1915 = vunpack.c.h.b16 %v413
    %v1916 = vunpack.c.l.b16 %v414
    %v1917 = vunpack.c.l.b16 %v415
    %v1918 = vunpack.c.h.b16 %v415
    %v1919 = vunpack.c.l.b16 %v416
    %v1920 = vunpack.c.l.b16 %v417
    %v1921 = vunpack.c.h.b16 %v417
    %v1922 = vunpack.c.l.b16 %v418
    %v1923 = vunpack.c.l.b16 %v419
    %v1924 = vunpack.c.h.b16 %v419
    %v1925 = vunpack.c.l.b16 %v420
    %v1926 = vunpack.c.l.b16 %v421
    %v1927 = vunpack.c.h.b16 %v421
    %v1928 = vunpack.c.l.b16 %v422
    %v1929 = vunpack.c.l.b16 %v423
    %v1930 = vunpack.c.h.b16 %v423
    %v1931 = vunpack.c.l.b16 %v424
    %v1932 = vunpack.c.l.b16 %v425
    %v1933 = vunpack.c.h.b16 %v425
    %v1934 = vunpack.c.l.b16 %v426
    %v1935 = vunpack.c.l.b16 %v427
    %v1936 = vunpack.c.h.b16 %v427
    %v1937 = vunpack.c.l.b16 %v428
    %v1938 = vunpack.c.l.b16 %v429
    %v1939 = vunpack.c.h.b16 %v429
    %v1940 = vunpack.c.l.b16 %v430
    %v1941 = vunpack.c.l.b16 %v431
    %v1942 = vunpack.c.h.b16 %v431
    %v1943 = vunpack.c.l.b16 %v432
    %v1944 = vunpack.c.l.b16 %v433
    %v1945 = vunpack.c.h.b16 %v433
    %v1946 = vunpack.c.l.b16 %v434
    %v1947 = vunpack.c.l.b16 %v435
    %v1948 = vunpack.c.h.b16 %v435
    %v1949 = vunpack.c.l.b16 %v436
    %v1950 = vunpack.c.l.b16 %v437
    %v1951 = vunpack.c.h.b16 %v437
    %v1952 = vunpack.c.l.b16 %v438
    %v1953 = vunpack.c.l.b16 %v439
    %v1954 = vunpack.c.h.b16 %v439
    %v1955 = vunpack.c.l.b16 %v440
    %v1956 = vunpack.c.l.b16 %v441
    %v1957 = vunpack.c.h.b16 %v441
    %v1958 = vunpack.c.l.b16 %v442
    %v1959 = vunpack.c.l.b16 %v443
    %v1960 = vunpack.c.h.b16 %v443
    %v1961 = vunpack.c.l.b16 %v444
    %v1962 = vunpack.c.l.b16 %v445
    %v1963 = vunpack.c.h.b16 %v445
    %v1964 = vunpack.c.l.b16 %v446
    %v1965 = vunpack.c.l.b16 %v447
    %v1966 = vunpack.c.h.b16 %v447
    %v1967 = vunpack.c.l.b16 %v448
    %v1968 = vunpack.c.l.b16 %v449
    %v1969 = vunpack.c.h.b16 %v449
    %v1970 = vunpack.c.l.b16 %v450
    %v1971 = vunpack.c.l.b16 %v451
    %v1972 = vunpack.c.h.b16 %v451
    %v1973 = vunpack.c.l.b16 %v452
    %v1974 = vunpack.c.l.b16 %v453
    %v1975 = vunpack.c.h.b16 %v453
    %v1976 = vunpack.c.l.b16 %v454
    %v1977 = vunpack.c.l.b16 %v455
    %v1978 = vunpack.c.h.b16 %v455
    %v1979 = vunpack.c.l.b16 %v456
    %v1980 = vunpack.c.l.b16 %v457
    %v1981 = vunpack.c.h.b16 %v457
    %v1982 = vunpack.c.l.b16 %v458
    %v1983 = vunpack.c.l.b16 %v459
    %v1984 = vunpack.c.h.b16 %v459
    %v1985 = vunpack.c.l.b16 %v460
    %v1986 = vunpack.c.l.b16 %v461
    %v1987 = vunpack.c.h.b16 %v461
    %v1988 = vunpack.c.l.b16 %v462
    %v1989 = vunpack.c.l.b16 %v463
    %v1990 = vunpack.c.h.b16 %v463
    %v1991 = vunpack.c.l.b16 %v464
    %v1992 = vunpack.c.l.b16 %v465
    %v1993 = vunpack.c.h.b16 %v465
    %v1994 = vunpack.c.l.b16 %v466
    %v1995 = vunpack.c.l.b16 %v467
    %v1996 = vunpack.c.h.b16 %v467
    %v1997 = vunpack.c.l.b16 %v468
    %v1998 = vunpack.c.l.b16 %v469
    %v1999 = vunpack.c.h.b16 %v469
    %v2000 = vunpack.c.l.b16 %v470
    %v2001 = vunpack.c.l.b16 %v471
    %v2002 = vunpack.c.h.b16 %v471
    %v2003 = vunpack.c.l.b16 %v472
    %v2004 = vunpack.c.l.b16 %v473
    %v2005 = vunpack.c.h.b16 %v473
    %v2006 = vunpack.c.l.b16 %v474
    %v2007 = vunpack.c.l.b16 %v475
    %v2008 = vunpack.c.h.b16 %v475
    %v2009 = vunpack.c.l.b16 %v476
    %v2010 = vunpack.c.l.b16 %v477
    %v2011 = vunpack.c.h.b16 %v477
    %v2012 = vunpack.c.l.b16 %v478
    %v2013 = vunpack.c.l.b16 %v479
    %v2014 = vunpack.c.h.b16 %v479
    %v2015 = vunpack.c.l.b16 %v480
    %v2016 = vunpack.c.l.b16 %v481
    %v2017 = vunpack.c.h.b16 %v481
    %v2018 = vunpack.c.l.b16 %v482
    %v2019 = vunpack.c.l.b16 %v483
    %v2020 = vunpack.c.h.b16 %v483
    %v2021 = vunpack.c.l.b16 %v484
    %v2022 = vunpack.c.l.b16 %v485
    %v2023 = vunpack.c.h.b16 %v485
    %v2024 = vunpack.c.l.b16 %v486
    %v2025 = vunpack.c.l.b16 %v487
    %v2026 = vunpack.c.h.b16 %v487
    %v2027 = vunpack.c.l.b16 %v488
    %v2028 = vunpack.c.l.b16 %v489
    %v2029 = vunpack.c.h.b16 %v489
    %v2030 = vunpack.c.l.b16 %v490
    %v2031 = vunpack.c.l.b16 %v491
    %v2032 = vunpack.c.h.b16 %v491
    %v2033 = vunpack.c.l.b16 %v492
    %v2034 = vunpack.c.l.b16 %v493
    %v2035 = vunpack.c.h.b16 %v493
    %v2036 = vunpack.c.l.b16 %v494
    %v2037 = vunpack.c.l.b16 %v495
    %v2038 = vunpack.c.h.b16 %v495
    %v2039 = vunpack.c.l.b16 %v496
    %v2040 = vunpack.c.l.b16 %v497
    %v2041 = vunpack.c.h.b16 %v497
    %v2042 = vunpack.c.l.b16 %v498
    %v2043 = vunpack.c.l.b16 %v499
    %v2044 = vunpack.c.h.b16 %v499
    %v2045 = vunpack.c.l.b16 %v500
    %v2046 = vunpack.c.l.b16 %v501
    %v2047 = vunpack.c.h.b16 %v501
    %v2048 = vunpack.c.l.b16 %v502
    %v2049 = vunpack.c.l.b16 %v503
    %v2050 = vunpack.c.h.b16 %v503
    %v2051 = vunpack.c.l.b16 %v504
    %v2052 = vunpack.c.l.b16 %v505
    %v2053 = vunpack.c.h.b16 %v505
    %v2054 = vunpack.c.l.b16 %v506
    %v2055 = vunpack.c.l.b16 %v507
    %v2056 = vunpack.c.h.b16 %v507
    %v2057 = vunpack.c.l.b16 %v508
    %v2058 = vunpack.c.l.b16 %v509
    %v2059 = vunpack.c.h.b16 %v509
    %v2060 = vunpack.c.l.b16 %v510
    %v2061 = vunpack.c.l.b16 %v511
    %v2062 = vunpack.c.h.b16 %v511
    %v2063 = vunpack.c.l.b16 %v512
    %v2064 = vunpack.c.l.b16 %v513
    %v2065 = vunpack.c.h.b16 %v513
    %v2066 = vunpack.c.l.b16 %v514
    %v2067 = vunpack.c.l.b16 %v515
    %v2068 = vunpack.c.h.b16 %v515
    %v2069 = vunpack.c.l.b16 %v516
    %v2070 = vunpack.c.l.b16 %v517
    %v2071 = vunpack.c.h.b16 %v517
    %v2072 = vunpack.c.l.b16 %v518
    %v2073 = vunpack.c.l.b16 %v519
    %v2074 = vunpack.c.h.b16 %v519
    %v2075 = vunpack.c.l.b16 %v520
    %v2076 = vunpack.c.l.b16 %v521
    %v2077 = vunpack.c.h.b16 %v521
    %v2078 = vunpack.c.l.b16 %v522
    %v2079 = vunpack.c.l.b16 %v523
    %v2080 = vunpack.c.h.b16 %v523
    %v2081 = vunpack.c.l.b16 %v524
    %v2082 = vunpack.c.l.b16 %v525
    %v2083 = vunpack.c.h.b16 %v525
    %v2084 = vunpack.c.l.b16 %v526
    %v2085 = vunpack.c.l.b16 %v527
    %v2086 = vunpack.c.h.b16 %v527
    %v2087 = vunpack.c.l.b16 %v528
    %v2088 = vunpack.c.l.b16 %v529
    %v2089 = vunpack.c.h.b16 %v529
    %v2090 = vunpack.c.l.b16 %v530
    %v2091 = vunpack.c.l.b16 %v531
    %v2092 = vunpack.c.h.b16 %v531
    %v2093 = vunpack.c.l.b16 %v532
    %v2094 = vunpack.c.l.b16 %v533
    %v2095 = vunpack.c.h.b16 %v533
    %v2096 = vunpack.c.l.b16 %v534
    %v2097 = vunpack.c.l.b16 %v535
    %v2098 = vunpack.c.h.b16 %v535
    %v2099 = vunpack.c.l.b16 %v536
    %v2100 = vunpack.c.l.b16 %v537
    %v2101 = vunpack.c.h.b16 %v537
    %v2102 = vunpack.c.l.b16 %v538
    %v2103 = vunpack.c.l.b16 %v539
    %v2104 = vunpack.c.h.b16 %v539
    %v2105 = vunpack.c.l.b16 %v540
    %v2106 = vunpack.c.l.b16 %v541
    %v2107 = vunpack.c.h.b16 %v541
    %v2108 = vunpack.c.l.b16 %v542
    %v2109 = vunpack.c.l.b16 %v543
    %v2110 = vunpack.c.h.b16 %v543
    %v2111 = vunpack.c.l.b16 %v544
    %v2112 = vunpack.c.l.b16 %v545
    %v2113 = vunpack.c.h.b16 %v545
    %v2114 = vunpack.c.l.b16 %v546
    %v2115 = vunpack.c.l.b16 %v547
    %v2116 = vunpack.c.h.b16 %v547
    %v2117 = vunpack.c.l.b16 %v548
    %v2118 = vunpack.c.l.b16 %v549
    %v2119 = vunpack.c.h.b16 %v549
    %v2120 = vunpack.c.l.b16 %v550
    %v2121 = vunpack.c.l.b16 %v551
    %v2122 = vunpack.c.h.b16 %v551
    %v2123 = vunpack.c.l.b16 %v552
    %v2124 = vunpack.c.l.b16 %v553
    %v2125 = vunpack.c.h.b16 %v553
    %v2126 = vunpack.c.l.b16 %v554
    %v2127 = vunpack.c.l.b16 %v555
    %v2128 = vunpack.c.h.b16 %v555
    %v2129 = vunpack.c.l.b16 %v556
    %v2130 = vunpack.c.l.b16 %v557
    %v2131 = vunpack.c.h.b16 %v557
    %v2132 = vunpack.c.l.b16 %v558
    %v2133 = vunpack.c.l.b16 %v559
    %v2134 = vunpack.c.h.b16 %v559
    %v2135 = vunpack.c.l.b16 %v560
    %v2136 = vunpack.c.l.b16 %v561
    %v2137 = vunpack.c.h.b16 %v561
    %v2138 = vunpack.c.l.b16 %v562
    %v2139 = vunpack.c.l.b16 %v563
    %v2140 = vunpack.c.h.b16 %v563
    %v2141 = vunpack.c.l.b16 %v564
    %v2142 = vunpack.c.l.b16 %v565
    %v2143 = vunpack.c.h.b16 %v565
    %v2144 = vunpack.c.l.b16 %v566
    %v2145 = vunpack.c.l.b16 %v567
    %v2146 = vunpack.c.h.b16 %v567
    %v2147 = vunpack.c.l.b16 %v568
    %v2148 = vunpack.c.l.b16 %v569
    %v2149 = vunpack.c.h.b16 %v569
    %v2150 = vunpack.c.l.b16 %v570
    %v2151 = vunpack.c.l.b16 %v571
    %v2152 = vunpack.c.h.b16 %v571
    %v2153 = vunpack.c.l.b16 %v572
    %v2154 = vunpack.c.l.b16 %v573
    %v2155 = vunpack.c.h.b16 %v573
    %v2156 = vunpack.c.l.b16 %v574
    %v2157 = vunpack.c.l.b16 %v575
    %v2158 = vunpack.c.h.b16 %v575
    %v2159 = vunpack.c.l.b16 %v576
    %v2160 = vunpack.c.l.b16 %v577
    %v2161 = vunpack.c.h.b16 %v577
    %v2162 = vunpack.c.l.b16 %v578
    %v2163 = vunpack.c.l.b16 %v579
    %v2164 = vunpack.c.h.b16 %v579
    %v2165 = vunpack.c.l.b16 %v580
    %v2166 = vunpack.c.l.b16 %v581
    %v2167 = vunpack.c.h.b16 %v581
    %v2168 = vunpack.c.l.b16 %v582
    %v2169 = vunpack.c.l.b16 %v583
    %v2170 = vunpack.c.h.b16 %v583
    %v2171 = vunpack.c.l.b16 %v584
    %v2172 = vunpack.c.l.b16 %v585
    %v2173 = vunpack.c.h.b16 %v585
    %v2174 = vunpack.c.l.b16 %v586
    %v2175 = vunpack.c.l.b16 %v587
    %v2176 = vunpack.c.h.b16 %v587
    %v2177 = vunpack.c.l.b16 %v588
    %v2178 = vunpack.c.l.b16 %v589
    %v2179 = vunpack.c.h.b16 %v589
    %v2180 = vunpack.c.l.b16 %v590
    %v2181 = vunpack.c.l.b16 %v591
    %v2182 = vunpack.c.h.b16 %v591
    %v2183 = vunpack.c.l.b16 %v592
    %v2184 = vunpack.c.l.b16 %v593
    %v2185 = vunpack.c.h.b16 %v593
    %v2186 = vunpack.c.l.b16 %v594
    %v2187 = vunpack.c.l.b16 %v595
    %v2188 = vunpack.c.h.b16 %v595
    %v2189 = vunpack.c.l.b16 %v596
    %v2190 = vunpack.c.l.b16 %v597
    %v2191 = vunpack.c.h.b16 %v597
    %v2192 = vunpack.c.l.b16 %v598
    %v2193 = vunpack.c.l.b16 %v599
    %v2194 = vunpack.c.h.b16 %v599
    %v2195 = vunpack.c.l.b16 %v600
    %v2196 = vunpack.c.l.b16 %v601
    %v2197 = vunpack.c.h.b16 %v601
    %v2198 = vunpack.c.l.b16 %v602
    %v2199 = vunpack.c.l.b16 %v603
    %v2200 = vunpack.c.h.b16 %v603
    %v2201 = vunpack.c.l.b16 %v604
    %v2202 = vunpack.c.l.b16 %v605
    %v2203 = vunpack.c.h.b16 %v605
    %v2204 = vunpack.c.l.b16 %v606
    %v2205 = vpack.c.b16 %v1344, %v1341
    %v2206 = vpack.c.b16 %v1345, %v1342
    %v2207 = vpack.c.b16 %v1346, %v1343
    %v2208 = vpack.c.b16 %v1350, %v1347
    %v2209 = vpack.c.b16 %v1351, %v1348
    %v2210 = vpack.c.b16 %v1352, %v1349
    %v2211 = vpack.c.b16 %v1356, %v1353
    %v2212 = vpack.c.b16 %v1357, %v1354
    %v2213 = vpack.c.b16 %v1358, %v1355
    %v2214 = vpack.c.b16 %v1362, %v1359
    %v2215 = vpack.c.b16 %v1363, %v1360
    %v2216 = vpack.c.b16 %v1364, %v1361
    %v2217 = vpack.c.b16 %v1368, %v1365
    %v2218 = vpack.c.b16 %v1369, %v1366
    %v2219 = vpack.c.b16 %v1370, %v1367
    %v2220 = vpack.c.b16 %v1374, %v1371
    %v2221 = vpack.c.b16 %v1375, %v1372
    %v2222 = vpack.c.b16 %v1376, %v1373
    %v2223 = vpack.c.b16 %v1380, %v1377
    %v2224 = vpack.c.b16 %v1381, %v1378
    %v2225 = vpack.c.b16 %v1382, %v1379
    %v2226 = vpack.c.b16 %v1386, %v1383
    %v2227 = vpack.c.b16 %v1387, %v1384
    %v2228 = vpack.c.b16 %v1388, %v1385
    %v2229 = vpack.c.b16 %v1392, %v1389
    %v2230 = vpack.c.b16 %v1393, %v1390
    %v2231 = vpack.c.b16 %v1394, %v1391
    %v2232 = vpack.c.b16 %v1398, %v1395
    %v2233 = vpack.c.b16 %v1399, %v1396
    %v2234 = vpack.c.b16 %v1400, %v1397
    %v2235 = vpack.c.b16 %v1404, %v1401
    %v2236 = vpack.c.b16 %v1405, %v1402
    %v2237 = vpack.c.b16 %v1406, %v1403
    %v2238 = vpack.c.b16 %v1410, %v1407
    %v2239 = vpack.c.b16 %v1411, %v1408
    %v2240 = vpack.c.b16 %v1412, %v1409
    %v2241 = vpack.c.b16 %v1416, %v1413
    %v2242 = vpack.c.b16 %v1417, %v1414
    %v2243 = vpack.c.b16 %v1418, %v1415
    %v2244 = vpack.c.b16 %v1422, %v1419
    %v2245 = vpack.c.b16 %v1423, %v1420
    %v2246 = vpack.c.b16 %v1424, %v1421
    %v2247 = vpack.c.b16 %v1428, %v1425
    %v2248 = vpack.c.b16 %v1429, %v1426
    %v2249 = vpack.c.b16 %v1430, %v1427
    %v2250 = vpack.c.b16 %v1434, %v1431
    %v2251 = vpack.c.b16 %v1435, %v1432
    %v2252 = vpack.c.b16 %v1436, %v1433
    %v2253 = vpack.c.b16 %v1440, %v1437
    %v2254 = vpack.c.b16 %v1441, %v1438
    %v2255 = vpack.c.b16 %v1442, %v1439
    %v2256 = vpack.c.b16 %v1446, %v1443
    %v2257 = vpack.c.b16 %v1447, %v1444
    %v2258 = vpack.c.b16 %v1448, %v1445
    %v2259 = vpack.c.b16 %v1452, %v1449
    %v2260 = vpack.c.b16 %v1453, %v1450
    %v2261 = vpack.c.b16 %v1454, %v1451
    %v2262 = vpack.c.b16 %v1458, %v1455
    %v2263 = vpack.c.b16 %v1459, %v1456
    %v2264 = vpack.c.b16 %v1460, %v1457
    %v2265 = vpack.c.b16 %v1464, %v1461
    %v2266 = vpack.c.b16 %v1465, %v1462
    %v2267 = vpack.c.b16 %v1466, %v1463
    %v2268 = vpack.c.b16 %v1470, %v1467
    %v2269 = vpack.c.b16 %v1471, %v1468
    %v2270 = vpack.c.b16 %v1472, %v1469
    %v2271 = vpack.c.b16 %v1476, %v1473
    %v2272 = vpack.c.b16 %v1477, %v1474
    %v2273 = vpack.c.b16 %v1478, %v1475
    %v2274 = vpack.c.b16 %v1482, %v1479
    %v2275 = vpack.c.b16 %v1483, %v1480
    %v2276 = vpack.c.b16 %v1484, %v1481
    %v2277 = vpack.c.b16 %v1488, %v1485
    %v2278 = vpack.c.b16 %v1489, %v1486
    %v2279 = vpack.c.b16 %v1490, %v1487
    %v2280 = vpack.c.b16 %v1494, %v1491
    %v2281 = vpack.c.b16 %v1495, %v1492
    %v2282 = vpack.c.b16 %v1496, %v1493
    %v2283 = vpack.c.b16 %v1500, %v1497
    %v2284 = vpack.c.b16 %v1501, %v1498
    %v2285 = vpack.c.b16 %v1502, %v1499
    %v2286 = vpack.c.b16 %v1506, %v1503
    %v2287 = vpack.c.b16 %v1507, %v1504
    %v2288 = vpack.c.b16 %v1508, %v1505
    %v2289 = vpack.c.b16 %v1512, %v1509
    %v2290 = vpack.c.b16 %v1513, %v1510
    %v2291 = vpack.c.b16 %v1514, %v1511
    %v2292 = vpack.c.b16 %v1518, %v1515
    %v2293 = vpack.c.b16 %v1519, %v1516
    %v2294 = vpack.c.b16 %v1520, %v1517
    %v2295 = vpack.c.b16 %v1524, %v1521
    %v2296 = vpack.c.b16 %v1525, %v1522
    %v2297 = vpack.c.b16 %v1526, %v1523
    %v2298 = vpack.c.b16 %v1530, %v1527
    %v2299 = vpack.c.b16 %v1531, %v1528
    %v2300 = vpack.c.b16 %v1532, %v1529
    %v2301 = vpack.c.b16 %v1536, %v1533
    %v2302 = vpack.c.b16 %v1537, %v1534
    %v2303 = vpack.c.b16 %v1538, %v1535
    %v2304 = vpack.c.b16 %v1542, %v1539
    %v2305 = vpack.c.b16 %v1543, %v1540
    %v2306 = vpack.c.b16 %v1544, %v1541
    %v2307 = vpack.c.b16 %v1548, %v1545
    %v2308 = vpack.c.b16 %v1549, %v1546
    %v2309 = vpack.c.b16 %v1550, %v1547
    %v2310 = vpack.c.b16 %v1554, %v1551
    %v2311 = vpack.c.b16 %v1555, %v1552
    %v2312 = vpack.c.b16 %v1556, %v1553
    %v2313 = vpack.c.b16 %v1560, %v1557
    %v2314 = vpack.c.b16 %v1561, %v1558
    %v2315 = vpack.c.b16 %v1562, %v1559
    %v2316 = vpack.c.b16 %v1566, %v1563
    %v2317 = vpack.c.b16 %v1567, %v1564
    %v2318 = vpack.c.b16 %v1568, %v1565
    %v2319 = vpack.c.b16 %v1572, %v1569
    %v2320 = vpack.c.b16 %v1573, %v1570
    %v2321 = vpack.c.b16 %v1574, %v1571
    %v2322 = vpack.c.b16 %v1578, %v1575
    %v2323 = vpack.c.b16 %v1579, %v1576
    %v2324 = vpack.c.b16 %v1580, %v1577
    %v2325 = vpack.c.b16 %v1584, %v1581
    %v2326 = vpack.c.b16 %v1585, %v1582
    %v2327 = vpack.c.b16 %v1586, %v1583
    %v2328 = vpack.c.b16 %v1590, %v1587
    %v2329 = vpack.c.b16 %v1591, %v1588
    %v2330 = vpack.c.b16 %v1592, %v1589
    %v2331 = vpack.c.b16 %v1596, %v1593
    %v2332 = vpack.c.b16 %v1597, %v1594
    %v2333 = vpack.c.b16 %v1598, %v1595
    %v2334 = vpack.c.b16 %v1602, %v1599
    %v2335 = vpack.c.b16 %v1603, %v1600
    %v2336 = vpack.c.b16 %v1604, %v1601
    %v2337 = vpack.c.b16 %v1608, %v1605
    %v2338 = vpack.c.b16 %v1609, %v1606
    %v2339 = vpack.c.b16 %v1610, %v1607
    %v2340 = vpack.c.b16 %v1614, %v1611
    %v2341 = vpack.c.b16 %v1615, %v1612
    %v2342 = vpack.c.b16 %v1616, %v1613
    %v2343 = vpack.c.b16 %v1620, %v1617
    %v2344 = vpack.c.b16 %v1621, %v1618
    %v2345 = vpack.c.b16 %v1622, %v1619
    %v2346 = vpack.c.b16 %v1626, %v1623
    %v2347 = vpack.c.b16 %v1627, %v1624
    %v2348 = vpack.c.b16 %v1628, %v1625
    %v2349 = vpack.c.b16 %v1632, %v1629
    %v2350 = vpack.c.b16 %v1633, %v1630
    %v2351 = vpack.c.b16 %v1634, %v1631
    %v2352 = vpack.c.b16 %v1638, %v1635
    %v2353 = vpack.c.b16 %v1639, %v1636
    %v2354 = vpack.c.b16 %v1640, %v1637
    %v2355 = vpack.c.b16 %v1644, %v1641
    %v2356 = vpack.c.b16 %v1645, %v1642
    %v2357 = vpack.c.b16 %v1646, %v1643
    %v2358 = vpack.c.b16 %v1650, %v1647
    %v2359 = vpack.c.b16 %v1651, %v1648
    %v2360 = vpack.c.b16 %v1652, %v1649
    %v2361 = vpack.c.b16 %v1656, %v1653
    %v2362 = vpack.c.b16 %v1657, %v1654
    %v2363 = vpack.c.b16 %v1658, %v1655
    %v2364 = vpack.c.b16 %v1662, %v1659
    %v2365 = vpack.c.b16 %v1663, %v1660
    %v2366 = vpack.c.b16 %v1664, %v1661
    %v2367 = vpack.c.b16 %v1668, %v1665
    %v2368 = vpack.c.b16 %v1669, %v1666
    %v2369 = vpack.c.b16 %v1670, %v1667
    %v2370 = vpack.c.b16 %v1674, %v1671
    %v2371 = vpack.c.b16 %v1675, %v1672
    %v2372 = vpack.c.b16 %v1676, %v1673
    %v2373 = vpack.c.b16 %v1680, %v1677
    %v2374 = vpack.c.b16 %v1681, %v1678
    %v2375 = vpack.c.b16 %v1682, %v1679
    %v2376 = vpack.c.b16 %v1686, %v1683
    %v2377 = vpack.c.b16 %v1687, %v1684
    %v2378 = vpack.c.b16 %v1688, %v1685
    %v2379 = vpack.c.b16 %v1692, %v1689
    %v2380 = vpack.c.b16 %v1693, %v1690
    %v2381 = vpack.c.b16 %v1694, %v1691
    %v2382 = vpack.c.b16 %v1698, %v1695
    %v2383 = vpack.c.b16 %v1699, %v1696
    %v2384 = vpack.c.b16 %v1700, %v1697
    %v2385 = vpack.c.b16 %v1704, %v1701
    %v2386 = vpack.c.b16 %v1705, %v1702
    %v2387 = vpack.c.b16 %v1706, %v1703
    %v2388 = vpack.c.b16 %v1710, %v1707
    %v2389 = vpack.c.b16 %v1711, %v1708
    %v2390 = vpack.c.b16 %v1712, %v1709
    %v2391 = vpack.c.b16 %v1716, %v1713
    %v2392 = vpack.c.b16 %v1717, %v1714
    %v2393 = vpack.c.b16 %v1718, %v1715
    %v2394 = vpack.c.b16 %v1722, %v1719
    %v2395 = vpack.c.b16 %v1723, %v1720
    %v2396 = vpack.c.b16 %v1724, %v1721
    %v2397 = vpack.c.b16 %v1728, %v1725
    %v2398 = vpack.c.b16 %v1729, %v1726
    %v2399 = vpack.c.b16 %v1730, %v1727
    %v2400 = vpack.c.b16 %v1734, %v1731
    %v2401 = vpack.c.b16 %v1735, %v1732
    %v2402 = vpack.c.b16 %v1736, %v1733
    %v2403 = vpack.c.b16 %v1740, %v1737
    %v2404 = vpack.c.b16 %v1741, %v1738
    %v2405 = vpack.c.b16 %v1742, %v1739
    %v2406 = vpack.c.b16 %v1746, %v1743
    %v2407 = vpack.c.b16 %v1747, %v1744
    %v2408 = vpack.c.b16 %v1748, %v1745
    %v2409 = vpack.c.b16 %v1752, %v1749
    %v2410 = vpack.c.b16 %v1753, %v1750
    %v2411 = vpack.c.b16 %v1754, %v1751
    %v2412 = vpack.c.b16 %v1758, %v1755
    %v2413 = vpack.c.b16 %v1759, %v1756
    %v2414 = vpack.c.b16 %v1760, %v1757
    %v2415 = vpack.c.b16 %v1764, %v1761
    %v2416 = vpack.c.b16 %v1765, %v1762
    %v2417 = vpack.c.b16 %v1766, %v1763
    %v2418 = vpack.c.b16 %v1770, %v1767
    %v2419 = vpack.c.b16 %v1771, %v1768
    %v2420 = vpack.c.b16 %v1772, %v1769
    %v2421 = vpack.c.b16 %v1776, %v1773
    %v2422 = vpack.c.b16 %v1777, %v1774
    %v2423 = vpack.c.b16 %v1778, %v1775
    %v2424 = vpack.c.b16 %v1782, %v1779
    %v2425 = vpack.c.b16 %v1783, %v1780
    %v2426 = vpack.c.b16 %v1784, %v1781
    %v2427 = vpack.c.b16 %v1788, %v1785
    %v2428 = vpack.c.b16 %v1789, %v1786
    %v2429 = vpack.c.b16 %v1790, %v1787
    %v2430 = vpack.c.b16 %v1794, %v1791
    %v2431 = vpack.c.b16 %v1795, %v1792
    %v2432 = vpack.c.b16 %v1796, %v1793
    %v2433 = vpack.c.b16 %v1800, %v1797
    %v2434 = vpack.c.b16 %v1801, %v1798
    %v2435 = vpack.c.b16 %v1802, %v1799
    %v2436 = vpack.c.b16 %v1806, %v1803
    %v2437 = vpack.c.b16 %v1807, %v1804
    %v2438 = vpack.c.b16 %v1808, %v1805
    %v2439 = vpack.c.b16 %v1812, %v1809
    %v2440 = vpack.c.b16 %v1813, %v1810
    %v2441 = vpack.c.b16 %v1814, %v1811
    %v2442 = vpack.c.b16 %v1818, %v1815
    %v2443 = vpack.c.b16 %v1819, %v1816
    %v2444 = vpack.c.b16 %v1820, %v1817
    %v2445 = vpack.c.b16 %v1824, %v1821
    %v2446 = vpack.c.b16 %v1825, %v1822
    %v2447 = vpack.c.b16 %v1826, %v1823
    %v2448 = vpack.c.b16 %v1830, %v1827
    %v2449 = vpack.c.b16 %v1831, %v1828
    %v2450 = vpack.c.b16 %v1832, %v1829
    %v2451 = vpack.c.b16 %v1836, %v1833
    %v2452 = vpack.c.b16 %v1837, %v1834
    %v2453 = vpack.c.b16 %v1838, %v1835
    %v2454 = vpack.c.b16 %v1842, %v1839
    %v2455 = vpack.c.b16 %v1843, %v1840
    %v2456 = vpack.c.b16 %v1844, %v1841
    %v2457 = vpack.c.b16 %v1848, %v1845
    %v2458 = vpack.c.b16 %v1849, %v1846
    %v2459 = vpack.c.b16 %v1850, %v1847
    %v2460 = vpack.c.b16 %v1854, %v1851
    %v2461 = vpack.c.b16 %v1855, %v1852
    %v2462 = vpack.c.b16 %v1856, %v1853
    %v2463 = vpack.c.b16 %v1860, %v1857
    %v2464 = vpack.c.b16 %v1861, %v1858
    %v2465 = vpack.c.b16 %v1862, %v1859
    %v2466 = vpack.c.b16 %v1866, %v1863
    %v2467 = vpack.c.b16 %v1867, %v1864
    %v2468 = vpack.c.b16 %v1868, %v1865
    %v2469 = vpack.c.b16 %v1872, %v1869
    %v2470 = vpack.c.b16 %v1873, %v1870
    %v2471 = vpack.c.b16 %v1874, %v1871
    %v2472 = vpack.c.b16 %v1878, %v1875
    %v2473 = vpack.c.b16 %v1879, %v1876
    %v2474 = vpack.c.b16 %v1880, %v1877
    %v2475 = vpack.c.b16 %v1884, %v1881
    %v2476 = vpack.c.b16 %v1885, %v1882
    %v2477 = vpack.c.b16 %v1886, %v1883
    %v2478 = vpack.c.b16 %v1890, %v1887
    %v2479 = vpack.c.b16 %v1891, %v1888
    %v2480 = vpack.c.b16 %v1892, %v1889
    %v2481 = vpack.c.b16 %v1896, %v1893
    %v2482 = vpack.c.b16 %v1897, %v1894
    %v2483 = vpack.c.b16 %v1898, %v1895
    %v2484 = vpack.c.b16 %v1902, %v1899
    %v2485 = vpack.c.b16 %v1903, %v1900
    %v2486 = vpack.c.b16 %v1904, %v1901
    %v2487 = vpack.c.b16 %v1908, %v1905
    %v2488 = vpack.c.b16 %v1909, %v1906
    %v2489 = vpack.c.b16 %v1910, %v1907
    %v2490 = vpack.c.b16 %v1914, %v1911
    %v2491 = vpack.c.b16 %v1915, %v1912
    %v2492 = vpack.c.b16 %v1916, %v1913
    %v2493 = vpack.c.b16 %v1920, %v1917
    %v2494 = vpack.c.b16 %v1921, %v1918
    %v2495 = vpack.c.b16 %v1922, %v1919
    %v2496 = vpack.c.b16 %v1926, %v1923
    %v2497 = vpack.c.b16 %v1927, %v1924
    %v2498 = vpack.c.b16 %v1928, %v1925
    %v2499 = vpack.c.b16 %v1932, %v1929
    %v2500 = vpack.c.b16 %v1933, %v1930
    %v2501 = vpack.c.b16 %v1934, %v1931
    %v2502 = vpack.c.b16 %v1938, %v1935
    %v2503 = vpack.c.b16 %v1939, %v1936
    %v2504 = vpack.c.b16 %v1940, %v1937
    %v2505 = vpack.c.b16 %v1944, %v1941
    %v2506 = vpack.c.b16 %v1945, %v1942
    %v2507 = vpack.c.b16 %v1946, %v1943
    %v2508 = vpack.c.b16 %v1950, %v1947
    %v2509 = vpack.c.b16 %v1951, %v1948
    %v2510 = vpack.c.b16 %v1952, %v1949
    %v2511 = vpack.c.b16 %v1956, %v1953
    %v2512 = vpack.c.b16 %v1957, %v1954
    %v2513 = vpack.c.b16 %v1958, %v1955
    %v2514 = vpack.c.b16 %v1962, %v1959
    %v2515 = vpack.c.b16 %v1963, %v1960
    %v2516 = vpack.c.b16 %v1964, %v1961
    %v2517 = vpack.c.b16 %v1968, %v1965
    %v2518 = vpack.c.b16 %v1969, %v1966
    %v2519 = vpack.c.b16 %v1970, %v1967
    %v2520 = vpack.c.b16 %v1974, %v1971
    %v2521 = vpack.c.b16 %v1975, %v1972
    %v2522 = vpack.c.b16 %v1976, %v1973
    %v2523 = vpack.c.b16 %v1980, %v1977
    %v2524 = vpack.c.b16 %v1981, %v1978
    %v2525 = vpack.c.b16 %v1982, %v1979
    %v2526 = vpack.c.b16 %v1986, %v1983
    %v2527 = vpack.c.b16 %v1987, %v1984
    %v2528 = vpack.c.b16 %v1988, %v1985
    %v2529 = vpack.c.b16 %v1992, %v1989
    %v2530 = vpack.c.b16 %v1993, %v1990
    %v2531 = vpack.c.b16 %v1994, %v1991
    %v2532 = vpack.c.b16 %v1998, %v1995
    %v2533 = vpack.c.b16 %v1999, %v1996
    %v2534 = vpack.c.b16 %v2000, %v1997
    %v2535 = vpack.c.b16 %v2004, %v2001
    %v2536 = vpack.c.b16 %v2005, %v2002
    %v2537 = vpack.c.b16 %v2006, %v2003
    %v2538 = vpack.c.b16 %v2010, %v2007
    %v2539 = vpack.c.b16 %v2011, %v2008
    %v2540 = vpack.c.b16 %v2012, %v2009
    %v2541 = vpack.c.b16 %v2016, %v2013
    %v2542 = vpack.c.b16 %v2017, %v2014
    %v2543 = vpack.c.b16 %v2018, %v2015
    %v2544 = vpack.c.b16 %v2022, %v2019
    %v2545 = vpack.c.b16 %v2023, %v2020
    %v2546 = vpack.c.b16 %v2024, %v2021
    %v2547 = vpack.c.b16 %v2028, %v2025
    %v2548 = vpack.c.b16 %v2029, %v2026
    %v2549 = vpack.c.b16 %v2030, %v2027
    %v2550 = vpack.c.b16 %v2034, %v2031
    %v2551 = vpack.c.b16 %v2035, %v2032
    %v2552 = vpack.c.b16 %v2036, %v2033
    %v2553 = vpack.c.b16 %v2040, %v2037
    %v2554 = vpack.c.b16 %v2041, %v2038
    %v2555 = vpack.c.b16 %v2042, %v2039
    %v2556 = vpack.c.b16 %v2046, %v2043
    %v2557 = vpack.c.b16 %v2047, %v2044
    %v2558 = vpack.c.b16 %v2048, %v2045
    %v2559 = vpack.c.b16 %v2052, %v2049
    %v2560 = vpack.c.b16 %v2053, %v2050
    %v2561 = vpack.c.b16 %v2054, %v2051
    %v2562 = vpack.c.b16 %v2058, %v2055
    %v2563 = vpack.c.b16 %v2059, %v2056
    %v2564 = vpack.c.b16 %v2060, %v2057
    %v2565 = vpack.c.b16 %v2064, %v2061
    %v2566 = vpack.c.b16 %v2065, %v2062
    %v2567 = vpack.c.b16 %v2066, %v2063
    %v2568 = vpack.c.b16 %v2070, %v2067
    %v2569 = vpack.c.b16 %v2071, %v2068
    %v2570 = vpack.c.b16 %v2072, %v2069
    %v2571 = vpack.c.b16 %v2076, %v2073
    %v2572 = vpack.c.b16 %v2077, %v2074
    %v2573 = vpack.c.b16 %v2078, %v2075
    %v2574 = vpack.c.b16 %v2082, %v2079
    %v2575 = vpack.c.b16 %v2083, %v2080
    %v2576 = vpack.c.b16 %v2084, %v2081
    %v2577 = vpack.c.b16 %v2088, %v2085
    %v2578 = vpack.c.b16 %v2089, %v2086
    %v2579 = vpack.c.b16 %v2090, %v2087
    %v2580 = vpack.c.b16 %v2094, %v2091
    %v2581 = vpack.c.b16 %v2095, %v2092
    %v2582 = vpack.c.b16 %v2096, %v2093
    %v2583 = vpack.c.b16 %v2100, %v2097
    %v2584 = vpack.c.b16 %v2101, %v2098
    %v2585 = vpack.c.b16 %v2102, %v2099
    %v2586 = vpack.c.b16 %v2106, %v2103
    %v2587 = vpack.c.b16 %v2107, %v2104
    %v2588 = vpack.c.b16 %v2108, %v2105
    %v2589 = vpack.c.b16 %v2112, %v2109
    %v2590 = vpack.c.b16 %v2113, %v2110
    %v2591 = vpack.c.b16 %v2114, %v2111
    %v2592 = vpack.c.b16 %v2118, %v2115
    %v2593 = vpack.c.b16 %v2119, %v2116
    %v2594 = vpack.c.b16 %v2120, %v2117
    %v2595 = vpack.c.b16 %v2124, %v2121
    %v2596 = vpack.c.b16 %v2125, %v2122
    %v2597 = vpack.c.b16 %v2126, %v2123
    %v2598 = vpack.c.b16 %v2130, %v2127
    %v2599 = vpack.c.b16 %v2131, %v2128
    %v2600 = vpack.c.b16 %v2132, %v2129
    %v2601 = vpack.c.b16 %v2136, %v2133
    %v2602 = vpack.c.b16 %v2137, %v2134
    %v2603 = vpack.c.b16 %v2138, %v2135
    %v2604 = vpack.c.b16 %v2142, %v2139
    %v2605 = vpack.c.b16 %v2143, %v2140
    %v2606 = vpack.c.b16 %v2144, %v2141
    %v2607 = vpack.c.b16 %v2148, %v2145
    %v2608 = vpack.c.b16 %v2149, %v2146
    %v2609 = vpack.c.b16 %v2150, %v2147
    %v2610 = vpack.c.b16 %v2154, %v2151
    %v2611 = vpack.c.b16 %v2155, %v2152
    %v2612 = vpack.c.b16 %v2156, %v2153
    %v2613 = vpack.c.b16 %v2160, %v2157
    %v2614 = vpack.c.b16 %v2161, %v2158
    %v2615 = vpack.c.b16 %v2162, %v2159
    %v2616 = vpack.c.b16 %v2166, %v2163
    %v2617 = vpack.c.b16 %v2167, %v2164
    %v2618 = vpack.c.b16 %v2168, %v2165
    %v2619 = vpack.c.b16 %v2172, %v2169
    %v2620 = vpack.c.b16 %v2173, %v2170
    %v2621 = vpack.c.b16 %v2174, %v2171
    %v2622 = vpack.c.b16 %v2178, %v2175
    %v2623 = vpack.c.b16 %v2179, %v2176
    %v2624 = vpack.c.b16 %v2180, %v2177
    %v2625 = vpack.c.b16 %v2184, %v2181
    %v2626 = vpack.c.b16 %v2185, %v2182
    %v2627 = vpack.c.b16 %v2186, %v2183
    %v2628 = vpack.c.b16 %v2190, %v2187
    %v2629 = vpack.c.b16 %v2191, %v2188
    %v2630 = vpack.c.b16 %v2192, %v2189
    %v2631 = vpack.c.b16 %v2196, %v2193
    %v2632 = vpack.c.b16 %v2197, %v2194
    %v2633 = vpack.c.b16 %v2198, %v2195
    %v2634 = vpack.c.b16 %v2202, %v2199
    %v2635 = vpack.c.b16 %v2203, %v2200
    %v2636 = vpack.c.b16 %v2204, %v2201
    %3069 = vmatprep.subr.bf16.mxu0 %v2206
    %3070 = vmatpush1.bf16.msra.mxu0 %v2205
    %3071 = vmatprep.subr.bf16.mxu0 %v2209
    %3072 = vmatpush1.bf16.msra.mxu0 %v2208
    %3073 = vmatprep.subr.bf16.mxu0 %v2212
    %3074 = vmatpush1.bf16.msra.mxu0 %v2211
    %3075 = vmatprep.subr.bf16.mxu0 %v2215
    %3076 = vmatpush1.bf16.msra.mxu0 %v2214
    %3077 = vmatprep.subr.bf16.mxu0 %v2218
    %3078 = vmatpush1.bf16.msra.mxu0 %v2217
    %3079 = vmatprep.subr.bf16.mxu0 %v2221
    %3080 = vmatpush1.bf16.msra.mxu0 %v2220
    %3081 = vmatprep.subr.bf16.mxu0 %v2224
    %3082 = vmatpush1.bf16.msra.mxu0 %v2223
    %3083 = vmatprep.subr.bf16.mxu0 %v2227
    %3084 = vmatpush1.bf16.msra.mxu0 %v2226
    %3085 = vmatprep.subr.bf16.mxu0 %v2230
    %3086 = vmatpush1.bf16.msra.mxu0 %v2229
    %3087 = vmatprep.subr.bf16.mxu0 %v2233
    %3088 = vmatpush1.bf16.msra.mxu0 %v2232
    %3089 = vmatprep.subr.bf16.mxu0 %v2236
    %3090 = vmatpush1.bf16.msra.mxu0 %v2235
    %3091 = vmatprep.subr.bf16.mxu0 %v2239
    %3092 = vmatpush1.bf16.msra.mxu0 %v2238
    %3093 = vmatprep.subr.bf16.mxu0 %v2242
    %3094 = vmatpush1.bf16.msra.mxu0 %v2241
    %3095 = vmatprep.subr.bf16.mxu0 %v2245
    %3096 = vmatpush1.bf16.msra.mxu0 %v2244
    %3097 = vmatprep.subr.bf16.mxu0 %v2248
    %3098 = vmatpush1.bf16.msra.mxu0 %v2247
    %3099 = vmatprep.subr.bf16.mxu0 %v2251
    %3100 = vmatpush1.bf16.msra.mxu0 %v2250
    %3101 = vmatprep.mubr.bf16.mxu0 %v664
    %3102 = vmatmul.mubr.bf16.gmra.mrb[0].mxu0 %v650
    %v3103 = vpop.f32.mrb[0].mxu0
    %v3104 = vadd.f32 %v612, %v3103
    %v3105 = vpop.f32.mrb[0].mxu0
    %v3106 = vadd.f32 %v616, %v3105
    %v3107 = vpop.f32.mrb[0].mxu0
    %v3108 = vpop.f32.mrb[0].mxu0
    %3109 = vdwg.mxu0
    %3110 = vmatprep.subr.bf16.mxu0 %v2254
    %3111 = vmatpush1.bf16.msra.mxu0 %v2253
    %3112 = vmatprep.subr.bf16.mxu0 %v2257
    %3113 = vmatpush1.bf16.msra.mxu0 %v2256
    %3114 = vmatprep.subr.bf16.mxu0 %v2260
    %3115 = vmatpush1.bf16.msra.mxu0 %v2259
    %3116 = vmatprep.subr.bf16.mxu0 %v2263
    %3117 = vmatpush1.bf16.msra.mxu0 %v2262
    %3118 = vmatprep.subr.bf16.mxu0 %v2266
    %3119 = vmatpush1.bf16.msra.mxu0 %v2265
    %3120 = vmatprep.subr.bf16.mxu0 %v2269
    %3121 = vmatpush1.bf16.msra.mxu0 %v2268
    %3122 = vmatprep.subr.bf16.mxu0 %v2272
    %3123 = vmatpush1.bf16.msra.mxu0 %v2271
    %3124 = vmatprep.subr.bf16.mxu0 %v2275
    %3125 = vmatpush1.bf16.msra.mxu0 %v2274
    %3126 = vmatprep.subr.bf16.mxu0 %v2278
    %3127 = vmatpush1.bf16.msra.mxu0 %v2277
    %3128 = vmatprep.subr.bf16.mxu0 %v2281
    %3129 = vmatpush1.bf16.msra.mxu0 %v2280
    %3130 = vmatprep.subr.bf16.mxu0 %v2284
    %3131 = vmatpush1.bf16.msra.mxu0 %v2283
    %3132 = vmatprep.subr.bf16.mxu0 %v2287
    %3133 = vmatpush1.bf16.msra.mxu0 %v2286
    %3134 = vmatprep.subr.bf16.mxu0 %v2290
    %3135 = vmatpush1.bf16.msra.mxu0 %v2289
    %3136 = vmatprep.subr.bf16.mxu0 %v2293
    %3137 = vmatpush1.bf16.msra.mxu0 %v2292
    %3138 = vmatprep.subr.bf16.mxu0 %v2296
    %3139 = vmatpush1.bf16.msra.mxu0 %v2295
    %3140 = vmatprep.subr.bf16.mxu0 %v2299
    %3141 = vmatpush1.bf16.msra.mxu0 %v2298
    %3142 = vmatprep.mubr.bf16.mxu0 %v674
    %3143 = vmatmul.mubr.bf16.gmra.mrb[0].mxu0 %v672
    %v3144 = vpop.f32.mrb[0].mxu0
    %v3145 = vadd.f32 %v3104, %v3144
    %v3146 = vpop.f32.mrb[0].mxu0
    %v3147 = vadd.f32 %v3106, %v3146
    %v3148 = vpop.f32.mrb[0].mxu0
    %v3149 = vpop.f32.mrb[0].mxu0
    %3150 = vdwg.mxu0
    %3151 = vmatprep.subr.bf16.mxu0 %v2302
    %3152 = vmatpush1.bf16.msra.mxu0 %v2301
    %3153 = vmatprep.subr.bf16.mxu0 %v2305
    %3154 = vmatpush1.bf16.msra.mxu0 %v2304
    %3155 = vmatprep.subr.bf16.mxu0 %v2308
    %3156 = vmatpush1.bf16.msra.mxu0 %v2307
    %3157 = vmatprep.subr.bf16.mxu0 %v2311
    %3158 = vmatpush1.bf16.msra.mxu0 %v2310
    %3159 = vmatprep.subr.bf16.mxu0 %v2314
    %3160 = vmatpush1.bf16.msra.mxu0 %v2313
    %3161 = vmatprep.subr.bf16.mxu0 %v2317
    %3162 = vmatpush1.bf16.msra.mxu0 %v2316
    %3163 = vmatprep.subr.bf16.mxu0 %v2320
    %3164 = vmatpush1.bf16.msra.mxu0 %v2319
    %3165 = vmatprep.subr.bf16.mxu0 %v2323
    %3166 = vmatpush1.bf16.msra.mxu0 %v2322
    %3167 = vmatprep.subr.bf16.mxu0 %v2326
    %3168 = vmatpush1.bf16.msra.mxu0 %v2325
    %3169 = vmatprep.subr.bf16.mxu0 %v2329
    %3170 = vmatpush1.bf16.msra.mxu0 %v2328
    %3171 = vmatprep.subr.bf16.mxu0 %v2332
    %3172 = vmatpush1.bf16.msra.mxu0 %v2331
    %3173 = vmatprep.subr.bf16.mxu0 %v2335
    %3174 = vmatpush1.bf16.msra.mxu0 %v2334
    %3175 = vmatprep.subr.bf16.mxu0 %v2338
    %3176 = vmatpush1.bf16.msra.mxu0 %v2337
    %3177 = vmatprep.subr.bf16.mxu0 %v2341
    %3178 = vmatpush1.bf16.msra.mxu0 %v2340
    %3179 = vmatprep.subr.bf16.mxu0 %v2344
    %3180 = vmatpush1.bf16.msra.mxu0 %v2343
    %3181 = vmatprep.subr.bf16.mxu0 %v2347
    %3182 = vmatpush1.bf16.msra.mxu0 %v2346
    %3183 = vmatprep.mubr.bf16.mxu0 %v671
    %3184 = vmatmul.mubr.bf16.gmra.mrb[0].mxu0 %v657
    %v3185 = vpop.f32.mrb[0].mxu0
    %v3186 = vadd.f32 %v3145, %v3185
    %v3187 = vpop.f32.mrb[0].mxu0
    %v3188 = vadd.f32 %v3147, %v3187
    %v3189 = vpop.f32.mrb[0].mxu0
    %v3190 = vpop.f32.mrb[0].mxu0
    %3191 = vdwg.mxu0
    %3192 = vmatprep.subr.bf16.mxu0 %v2350
    %3193 = vmatpush1.bf16.msra.mxu0 %v2349
    %3194 = vmatprep.subr.bf16.mxu0 %v2353
    %3195 = vmatpush1.bf16.msra.mxu0 %v2352
    %3196 = vmatprep.subr.bf16.mxu0 %v2356
    %3197 = vmatpush1.bf16.msra.mxu0 %v2355
    %3198 = vmatprep.subr.bf16.mxu0 %v2359
    %3199 = vmatpush1.bf16.msra.mxu0 %v2358
    %3200 = vmatprep.subr.bf16.mxu0 %v2362
    %3201 = vmatpush1.bf16.msra.mxu0 %v2361
    %3202 = vmatprep.subr.bf16.mxu0 %v2365
    %3203 = vmatpush1.bf16.msra.mxu0 %v2364
    %3204 = vmatprep.subr.bf16.mxu0 %v2368
    %3205 = vmatpush1.bf16.msra.mxu0 %v2367
    %3206 = vmatprep.subr.bf16.mxu0 %v2371
    %3207 = vmatpush1.bf16.msra.mxu0 %v2370
    %3208 = vmatprep.subr.bf16.mxu0 %v2374
    %3209 = vmatpush1.bf16.msra.mxu0 %v2373
    %3210 = vmatprep.subr.bf16.mxu0 %v2377
    %3211 = vmatpush1.bf16.msra.mxu0 %v2376
    %3212 = vmatprep.subr.bf16.mxu0 %v2380
    %3213 = vmatpush1.bf16.msra.mxu0 %v2379
    %3214 = vmatprep.subr.bf16.mxu0 %v2383
    %3215 = vmatpush1.bf16.msra.mxu0 %v2382
    %3216 = vmatprep.subr.bf16.mxu0 %v2386
    %3217 = vmatpush1.bf16.msra.mxu0 %v2385
    %3218 = vmatprep.subr.bf16.mxu0 %v2389
    %3219 = vmatpush1.bf16.msra.mxu0 %v2388
    %3220 = vmatprep.subr.bf16.mxu0 %v2392
    %3221 = vmatpush1.bf16.msra.mxu0 %v2391
    %3222 = vmatprep.subr.bf16.mxu0 %v2395
    %3223 = vmatpush1.bf16.msra.mxu0 %v2394
    %3224 = vmatprep.mubr.bf16.mxu0 %v675
    %3225 = vmatmul.mubr.bf16.gmra.mrb[0].mxu0 %v673
    %v3226 = vpop.f32.mrb[0].mxu0
    %v3227 = vadd.f32 %v3186, %v3226
    %v3228 = vpop.f32.mrb[0].mxu0
    %v3229 = vadd.f32 %v3188, %v3228
    %v3230 = vpop.f32.mrb[0].mxu0
    %v3231 = vpop.f32.mrb[0].mxu0
    %3232 = vdwg.mxu0
    %3233 = vmatprep.subr.bf16.mxu0 %v2398
    %3234 = vmatpush1.bf16.msra.mxu0 %v2397
    %3235 = vmatprep.subr.bf16.mxu0 %v2401
    %3236 = vmatpush1.bf16.msra.mxu0 %v2400
    %3237 = vmatprep.subr.bf16.mxu0 %v2404
    %3238 = vmatpush1.bf16.msra.mxu0 %v2403
    %3239 = vmatprep.subr.bf16.mxu0 %v2407
    %3240 = vmatpush1.bf16.msra.mxu0 %v2406
    %3241 = vmatprep.subr.bf16.mxu0 %v2410
    %3242 = vmatpush1.bf16.msra.mxu0 %v2409
    %3243 = vmatprep.subr.bf16.mxu0 %v2413
    %3244 = vmatpush1.bf16.msra.mxu0 %v2412
    %3245 = vmatprep.subr.bf16.mxu0 %v2416
    %3246 = vmatpush1.bf16.msra.mxu0 %v2415
    %3247 = vmatprep.subr.bf16.mxu0 %v2419
    %3248 = vmatpush1.bf16.msra.mxu0 %v2418
    %3249 = vmatprep.subr.bf16.mxu0 %v2422
    %3250 = vmatpush1.bf16.msra.mxu0 %v2421
    %3251 = vmatprep.subr.bf16.mxu0 %v2425
    %3252 = vmatpush1.bf16.msra.mxu0 %v2424
    %3253 = vmatprep.subr.bf16.mxu0 %v2428
    %3254 = vmatpush1.bf16.msra.mxu0 %v2427
    %3255 = vmatprep.subr.bf16.mxu0 %v2431
    %3256 = vmatpush1.bf16.msra.mxu0 %v2430
    %3257 = vmatprep.subr.bf16.mxu0 %v2434
    %3258 = vmatpush1.bf16.msra.mxu0 %v2433
    %3259 = vmatprep.subr.bf16.mxu0 %v2437
    %3260 = vmatpush1.bf16.msra.mxu0 %v2436
    %3261 = vmatprep.subr.bf16.mxu0 %v2440
    %3262 = vmatpush1.bf16.msra.mxu0 %v2439
    %3263 = vmatprep.subr.bf16.mxu0 %v2443
    %3264 = vmatpush1.bf16.msra.mxu0 %v2442
    %3265 = vmatprep.mubr.bf16.mxu0 %v713
    %3266 = vmatmul.mubr.bf16.gmra.mrb[0].mxu0 %v699
    %v3267 = vpop.f32.mrb[0].mxu0
    %v3268 = vadd.f32 %v3227, %v3267
    %v3269 = vpop.f32.mrb[0].mxu0
    %v3270 = vadd.f32 %v3229, %v3269
    %v3271 = vpop.f32.mrb[0].mxu0
    %v3272 = vpop.f32.mrb[0].mxu0
    %3273 = vdwg.mxu0
    %3274 = vmatprep.subr.bf16.mxu0 %v2446
    %3275 = vmatpush1.bf16.msra.mxu0 %v2445
    %3276 = vmatprep.subr.bf16.mxu0 %v2449
    %3277 = vmatpush1.bf16.msra.mxu0 %v2448
    %3278 = vmatprep.subr.bf16.mxu0 %v2452
    %3279 = vmatpush1.bf16.msra.mxu0 %v2451
    %3280 = vmatprep.subr.bf16.mxu0 %v2455
    %3281 = vmatpush1.bf16.msra.mxu0 %v2454
    %3282 = vmatprep.subr.bf16.mxu0 %v2458
    %3283 = vmatpush1.bf16.msra.mxu0 %v2457
    %3284 = vmatprep.subr.bf16.mxu0 %v2461
    %3285 = vmatpush1.bf16.msra.mxu0 %v2460
    %3286 = vmatprep.subr.bf16.mxu0 %v2464
    %3287 = vmatpush1.bf16.msra.mxu0 %v2463
    %3288 = vmatprep.subr.bf16.mxu0 %v2467
    %3289 = vmatpush1.bf16.msra.mxu0 %v2466
    %3290 = vmatprep.subr.bf16.mxu0 %v2470
    %3291 = vmatpush1.bf16.msra.mxu0 %v2469
    %3292 = vmatprep.subr.bf16.mxu0 %v2473
    %3293 = vmatpush1.bf16.msra.mxu0 %v2472
    %3294 = vmatprep.subr.bf16.mxu0 %v2476
    %3295 = vmatpush1.bf16.msra.mxu0 %v2475
    %3296 = vmatprep.subr.bf16.mxu0 %v2479
    %3297 = vmatpush1.bf16.msra.mxu0 %v2478
    %3298 = vmatprep.subr.bf16.mxu0 %v2482
    %3299 = vmatpush1.bf16.msra.mxu0 %v2481
    %3300 = vmatprep.subr.bf16.mxu0 %v2485
    %3301 = vmatpush1.bf16.msra.mxu0 %v2484
    %3302 = vmatprep.subr.bf16.mxu0 %v2488
    %3303 = vmatpush1.bf16.msra.mxu0 %v2487
    %3304 = vmatprep.subr.bf16.mxu0 %v2491
    %3305 = vmatpush1.bf16.msra.mxu0 %v2490
    %3306 = vmatprep.mubr.bf16.mxu0 %v723
    %3307 = vmatmul.mubr.bf16.gmra.mrb[0].mxu0 %v721
    %v3308 = vpop.f32.mrb[0].mxu0
    %v3309 = vadd.f32 %v3268, %v3308
    %v3310 = vpop.f32.mrb[0].mxu0
    %v3311 = vadd.f32 %v3270, %v3310
    %v3312 = vpop.f32.mrb[0].mxu0
    %v3313 = vpop.f32.mrb[0].mxu0
    %3314 = vdwg.mxu0
    %3315 = vmatprep.subr.bf16.mxu0 %v2494
    %3316 = vmatpush1.bf16.msra.mxu0 %v2493
    %3317 = vmatprep.subr.bf16.mxu0 %v2497
    %3318 = vmatpush1.bf16.msra.mxu0 %v2496
    %3319 = vmatprep.subr.bf16.mxu0 %v2500
    %3320 = vmatpush1.bf16.msra.mxu0 %v2499
    %3321 = vmatprep.subr.bf16.mxu0 %v2503
    %3322 = vmatpush1.bf16.msra.mxu0 %v2502
    %3323 = vmatprep.subr.bf16.mxu0 %v2506
    %3324 = vmatpush1.bf16.msra.mxu0 %v2505
    %3325 = vmatprep.subr.bf16.mxu0 %v2509
    %3326 = vmatpush1.bf16.msra.mxu0 %v2508
    %3327 = vmatprep.subr.bf16.mxu0 %v2512
    %3328 = vmatpush1.bf16.msra.mxu0 %v2511
    %3329 = vmatprep.subr.bf16.mxu0 %v2515
    %3330 = vmatpush1.bf16.msra.mxu0 %v2514
    %3331 = vmatprep.subr.bf16.mxu0 %v2518
    %3332 = vmatpush1.bf16.msra.mxu0 %v2517
    %3333 = vmatprep.subr.bf16.mxu0 %v2521
    %3334 = vmatpush1.bf16.msra.mxu0 %v2520
    %3335 = vmatprep.subr.bf16.mxu0 %v2524
    %3336 = vmatpush1.bf16.msra.mxu0 %v2523
    %3337 = vmatprep.subr.bf16.mxu0 %v2527
    %3338 = vmatpush1.bf16.msra.mxu0 %v2526
    %3339 = vmatprep.subr.bf16.mxu0 %v2530
    %3340 = vmatpush1.bf16.msra.mxu0 %v2529
    %3341 = vmatprep.subr.bf16.mxu0 %v2533
    %3342 = vmatpush1.bf16.msra.mxu0 %v2532
    %3343 = vmatprep.subr.bf16.mxu0 %v2536
    %3344 = vmatpush1.bf16.msra.mxu0 %v2535
    %3345 = vmatprep.subr.bf16.mxu0 %v2539
    %3346 = vmatpush1.bf16.msra.mxu0 %v2538
    %3347 = vmatprep.mubr.bf16.mxu0 %v720
    %3348 = vmatmul.mubr.bf16.gmra.mrb[0].mxu0 %v706
    %v3349 = vpop.f32.mrb[0].mxu0
    %v3350 = vadd.f32 %v3309, %v3349
    %v3351 = vpop.f32.mrb[0].mxu0
    %v3352 = vadd.f32 %v3311, %v3351
    %v3353 = vpop.f32.mrb[0].mxu0
    %v3354 = vpop.f32.mrb[0].mxu0
    %3355 = vdwg.mxu0
    %3356 = vmatprep.subr.bf16.mxu0 %v2542
    %3357 = vmatpush1.bf16.msra.mxu0 %v2541
    %3358 = vmatprep.subr.bf16.mxu0 %v2545
    %3359 = vmatpush1.bf16.msra.mxu0 %v2544
    %3360 = vmatprep.subr.bf16.mxu0 %v2548
    %3361 = vmatpush1.bf16.msra.mxu0 %v2547
    %3362 = vmatprep.subr.bf16.mxu0 %v2551
    %3363 = vmatpush1.bf16.msra.mxu0 %v2550
    %3364 = vmatprep.subr.bf16.mxu0 %v2554
    %3365 = vmatpush1.bf16.msra.mxu0 %v2553
    %3366 = vmatprep.subr.bf16.mxu0 %v2557
    %3367 = vmatpush1.bf16.msra.mxu0 %v2556
    %3368 = vmatprep.subr.bf16.mxu0 %v2560
    %3369 = vmatpush1.bf16.msra.mxu0 %v2559
    %3370 = vmatprep.subr.bf16.mxu0 %v2563
    %3371 = vmatpush1.bf16.msra.mxu0 %v2562
    %3372 = vmatprep.subr.bf16.mxu0 %v2566
    %3373 = vmatpush1.bf16.msra.mxu0 %v2565
    %3374 = vmatprep.subr.bf16.mxu0 %v2569
    %3375 = vmatpush1.bf16.msra.mxu0 %v2568
    %3376 = vmatprep.subr.bf16.mxu0 %v2572
    %3377 = vmatpush1.bf16.msra.mxu0 %v2571
    %3378 = vmatprep.subr.bf16.mxu0 %v2575
    %3379 = vmatpush1.bf16.msra.mxu0 %v2574
    %3380 = vmatprep.subr.bf16.mxu0 %v2578
    %3381 = vmatpush1.bf16.msra.mxu0 %v2577
    %3382 = vmatprep.subr.bf16.mxu0 %v2581
    %3383 = vmatpush1.bf16.msra.mxu0 %v2580
    %3384 = vmatprep.subr.bf16.mxu0 %v2584
    %3385 = vmatpush1.bf16.msra.mxu0 %v2583
    %3386 = vmatprep.subr.bf16.mxu0 %v2587
    %3387 = vmatpush1.bf16.msra.mxu0 %v2586
    %3388 = vmatprep.mubr.bf16.mxu0 %v724
    %3389 = vmatmul.mubr.bf16.gmra.mrb[0].mxu0 %v722
    %v3390 = vpop.f32.mrb[0].mxu0
    %v3391 = vadd.f32 %v3350, %v3390
    %v3392 = vpop.f32.mrb[0].mxu0
    %v3393 = vadd.f32 %v3352, %v3392
    %v3394 = vpop.f32.mrb[0].mxu0
    %v3395 = vpop.f32.mrb[0].mxu0
    %3396 = vdwg.mxu0
    %3397 = vmatprep.subr.bf16.mxu0 %v2590
    %3398 = vmatpush1.bf16.msra.mxu0 %v2589
    %3399 = vmatprep.subr.bf16.mxu0 %v2593
    %3400 = vmatpush1.bf16.msra.mxu0 %v2592
    %3401 = vmatprep.subr.bf16.mxu0 %v2596
    %3402 = vmatpush1.bf16.msra.mxu0 %v2595
    %3403 = vmatprep.subr.bf16.mxu0 %v2599
    %3404 = vmatpush1.bf16.msra.mxu0 %v2598
    %3405 = vmatprep.subr.bf16.mxu0 %v2602
    %3406 = vmatpush1.bf16.msra.mxu0 %v2601
    %3407 = vmatprep.subr.bf16.mxu0 %v2605
    %3408 = vmatpush1.bf16.msra.mxu0 %v2604
    %3409 = vmatprep.subr.bf16.mxu0 %v2608
    %3410 = vmatpush1.bf16.msra.mxu0 %v2607
    %3411 = vmatprep.subr.bf16.mxu0 %v2611
    %3412 = vmatpush1.bf16.msra.mxu0 %v2610
    %3413 = vmatprep.subr.bf16.mxu0 %v2614
    %3414 = vmatpush1.bf16.msra.mxu0 %v2613
    %3415 = vmatprep.subr.bf16.mxu0 %v2617
    %3416 = vmatpush1.bf16.msra.mxu0 %v2616
    %3417 = vmatprep.subr.bf16.mxu0 %v2620
    %3418 = vmatpush1.bf16.msra.mxu0 %v2619
    %3419 = vmatprep.subr.bf16.mxu0 %v2623
    %3420 = vmatpush1.bf16.msra.mxu0 %v2622
    %3421 = vmatprep.subr.bf16.mxu0 %v2626
    %3422 = vmatpush1.bf16.msra.mxu0 %v2625
    %3423 = vmatprep.subr.bf16.mxu0 %v2629
    %3424 = vmatpush1.bf16.msra.mxu0 %v2628
    %3425 = vmatprep.subr.bf16.mxu0 %v2632
    %3426 = vmatpush1.bf16.msra.mxu0 %v2631
    %3427 = vmatprep.subr.bf16.mxu0 %v2635
    %3428 = vmatpush1.bf16.msra.mxu0 %v2634
    %3429 = vmatprep.mubr.bf16.mxu0 %v746
    %3430 = vmatmul.mubr.bf16.gmra.mrb[0].mxu0 %v739
    %v3431 = vpop.f32.mrb[0].mxu0
    %v3432 = vadd.f32 %v3391, %v3431
    %v3433 = vpop.f32.mrb[0].mxu0
    %v3434 = vadd.f32 %v3393, %v3433
    %v3435 = vpop.f32.mrb[0].mxu0
    %v3436 = vpop.f32.mrb[0].mxu0
    %3437 = vdwg.mxu0
    %3438 = vmatprep.subr.bf16.mxu0 0
    %3439 = vmatpush1.bf16.msra.mxu0 %v2207
    %3440 = vmatprep.subr.bf16.mxu0 0
    %3441 = vmatpush1.bf16.msra.mxu0 %v2210
    %3442 = vmatprep.subr.bf16.mxu0 0
    %3443 = vmatpush1.bf16.msra.mxu0 %v2213
    %3444 = vmatprep.subr.bf16.mxu0 0
    %3445 = vmatpush1.bf16.msra.mxu0 %v2216
    %3446 = vmatprep.subr.bf16.mxu0 0
    %3447 = vmatpush1.bf16.msra.mxu0 %v2219
    %3448 = vmatprep.subr.bf16.mxu0 0
    %3449 = vmatpush1.bf16.msra.mxu0 %v2222
    %3450 = vmatprep.subr.bf16.mxu0 0
    %3451 = vmatpush1.bf16.msra.mxu0 %v2225
    %3452 = vmatprep.subr.bf16.mxu0 0
    %3453 = vmatpush1.bf16.msra.mxu0 %v2228
    %3454 = vmatprep.subr.bf16.mxu0 0
    %3455 = vmatpush1.bf16.msra.mxu0 %v2231
    %3456 = vmatprep.subr.bf16.mxu0 0
    %3457 = vmatpush1.bf16.msra.mxu0 %v2234
    %3458 = vmatprep.subr.bf16.mxu0 0
    %3459 = vmatpush1.bf16.msra.mxu0 %v2237
    %3460 = vmatprep.subr.bf16.mxu0 0
    %3461 = vmatpush1.bf16.msra.mxu0 %v2240
    %3462 = vmatprep.subr.bf16.mxu0 0
    %3463 = vmatpush1.bf16.msra.mxu0 %v2243
    %3464 = vmatprep.subr.bf16.mxu0 0
    %3465 = vmatpush1.bf16.msra.mxu0 %v2246
    %3466 = vmatprep.subr.bf16.mxu0 0
    %3467 = vmatpush1.bf16.msra.mxu0 %v2249
    %3468 = vmatprep.subr.bf16.mxu0 0
    %3469 = vmatpush1.bf16.msra.mxu0 %v2252
    %3470 = vmatprep.mubr.bf16.mxu0 %v664
    %3471 = vmatmul.mubr.bf16.gmra.mrb[0].mxu0 %v650
    %v3472 = vpop.f32.mrb[0].mxu0
    %v3473 = vadd.f32 %v620, %v3472
    %v3474 = vpop.f32.mrb[0].mxu0
    %v3475 = vpop.f32.mrb[0].mxu0
    %v3476 = vpop.f32.mrb[0].mxu0
    %3477 = vdwg.mxu0
    %3478 = vmatprep.subr.bf16.mxu0 0
    %3479 = vmatpush1.bf16.msra.mxu0 %v2255
    %3480 = vmatprep.subr.bf16.mxu0 0
    %3481 = vmatpush1.bf16.msra.mxu0 %v2258
    %3482 = vmatprep.subr.bf16.mxu0 0
    %3483 = vmatpush1.bf16.msra.mxu0 %v2261
    %3484 = vmatprep.subr.bf16.mxu0 0
    %3485 = vmatpush1.bf16.msra.mxu0 %v2264
    %3486 = vmatprep.subr.bf16.mxu0 0
    %3487 = vmatpush1.bf16.msra.mxu0 %v2267
    %3488 = vmatprep.subr.bf16.mxu0 0
    %3489 = vmatpush1.bf16.msra.mxu0 %v2270
    %3490 = vmatprep.subr.bf16.mxu0 0
    %3491 = vmatpush1.bf16.msra.mxu0 %v2273
    %3492 = vmatprep.subr.bf16.mxu0 0
    %3493 = vmatpush1.bf16.msra.mxu0 %v2276
    %3494 = vmatprep.subr.bf16.mxu0 0
    %3495 = vmatpush1.bf16.msra.mxu0 %v2279
    %3496 = vmatprep.subr.bf16.mxu0 0
    %3497 = vmatpush1.bf16.msra.mxu0 %v2282
    %3498 = vmatprep.subr.bf16.mxu0 0
    %3499 = vmatpush1.bf16.msra.mxu0 %v2285
    %3500 = vmatprep.subr.bf16.mxu0 0
    %3501 = vmatpush1.bf16.msra.mxu0 %v2288
    %3502 = vmatprep.subr.bf16.mxu0 0
    %3503 = vmatpush1.bf16.msra.mxu0 %v2291
    %3504 = vmatprep.subr.bf16.mxu0 0
    %3505 = vmatpush1.bf16.msra.mxu0 %v2294
    %3506 = vmatprep.subr.bf16.mxu0 0
    %3507 = vmatpush1.bf16.msra.mxu0 %v2297
    %3508 = vmatprep.subr.bf16.mxu0 0
    %3509 = vmatpush1.bf16.msra.mxu0 %v2300
    %3510 = vmatprep.mubr.bf16.mxu0 %v674
    %3511 = vmatmul.mubr.bf16.gmra.mrb[0].mxu0 %v672
    %v3512 = vpop.f32.mrb[0].mxu0
    %v3513 = vadd.f32 %v3473, %v3512
    %v3514 = vpop.f32.mrb[0].mxu0
    %v3515 = vpop.f32.mrb[0].mxu0
    %v3516 = vpop.f32.mrb[0].mxu0
    %3517 = vdwg.mxu0
    %3518 = vmatprep.subr.bf16.mxu0 0
    %3519 = vmatpush1.bf16.msra.mxu0 %v2303
    %3520 = vmatprep.subr.bf16.mxu0 0
    %3521 = vmatpush1.bf16.msra.mxu0 %v2306
    %3522 = vmatprep.subr.bf16.mxu0 0
    %3523 = vmatpush1.bf16.msra.mxu0 %v2309
    %3524 = vmatprep.subr.bf16.mxu0 0
    %3525 = vmatpush1.bf16.msra.mxu0 %v2312
    %3526 = vmatprep.subr.bf16.mxu0 0
    %3527 = vmatpush1.bf16.msra.mxu0 %v2315
    %3528 = vmatprep.subr.bf16.mxu0 0
    %3529 = vmatpush1.bf16.msra.mxu0 %v2318
    %3530 = vmatprep.subr.bf16.mxu0 0
    %3531 = vmatpush1.bf16.msra.mxu0 %v2321
    %3532 = vmatprep.subr.bf16.mxu0 0
    %3533 = vmatpush1.bf16.msra.mxu0 %v2324
    %3534 = vmatprep.subr.bf16.mxu0 0
    %3535 = vmatpush1.bf16.msra.mxu0 %v2327
    %3536 = vmatprep.subr.bf16.mxu0 0
    %3537 = vmatpush1.bf16.msra.mxu0 %v2330
    %3538 = vmatprep.subr.bf16.mxu0 0
    %3539 = vmatpush1.bf16.msra.mxu0 %v2333
    %3540 = vmatprep.subr.bf16.mxu0 0
    %3541 = vmatpush1.bf16.msra.mxu0 %v2336
    %3542 = vmatprep.subr.bf16.mxu0 0
    %3543 = vmatpush1.bf16.msra.mxu0 %v2339
    %3544 = vmatprep.subr.bf16.mxu0 0
    %3545 = vmatpush1.bf16.msra.mxu0 %v2342
    %3546 = vmatprep.subr.bf16.mxu0 0
    %3547 = vmatpush1.bf16.msra.mxu0 %v2345
    %3548 = vmatprep.subr.bf16.mxu0 0
    %3549 = vmatpush1.bf16.msra.mxu0 %v2348
    %3550 = vmatprep.mubr.bf16.mxu0 %v671
    %3551 = vmatmul.mubr.bf16.gmra.mrb[0].mxu0 %v657
    %v3552 = vpop.f32.mrb[0].mxu0
    %v3553 = vadd.f32 %v3513, %v3552
    %v3554 = vpop.f32.mrb[0].mxu0
    %v3555 = vpop.f32.mrb[0].mxu0
    %v3556 = vpop.f32.mrb[0].mxu0
    %3557 = vdwg.mxu0
    %3558 = vmatprep.subr.bf16.mxu0 0
    %3559 = vmatpush1.bf16.msra.mxu0 %v2351
    %3560 = vmatprep.subr.bf16.mxu0 0
    %3561 = vmatpush1.bf16.msra.mxu0 %v2354
    %3562 = vmatprep.subr.bf16.mxu0 0
    %3563 = vmatpush1.bf16.msra.mxu0 %v2357
    %3564 = vmatprep.subr.bf16.mxu0 0
    %3565 = vmatpush1.bf16.msra.mxu0 %v2360
    %3566 = vmatprep.subr.bf16.mxu0 0
    %3567 = vmatpush1.bf16.msra.mxu0 %v2363
    %3568 = vmatprep.subr.bf16.mxu0 0
    %3569 = vmatpush1.bf16.msra.mxu0 %v2366
    %3570 = vmatprep.subr.bf16.mxu0 0
    %3571 = vmatpush1.bf16.msra.mxu0 %v2369
    %3572 = vmatprep.subr.bf16.mxu0 0
    %3573 = vmatpush1.bf16.msra.mxu0 %v2372
    %3574 = vmatprep.subr.bf16.mxu0 0
    %3575 = vmatpush1.bf16.msra.mxu0 %v2375
    %3576 = vmatprep.subr.bf16.mxu0 0
    %3577 = vmatpush1.bf16.msra.mxu0 %v2378
    %3578 = vmatprep.subr.bf16.mxu0 0
    %3579 = vmatpush1.bf16.msra.mxu0 %v2381
    %3580 = vmatprep.subr.bf16.mxu0 0
    %3581 = vmatpush1.bf16.msra.mxu0 %v2384
    %3582 = vmatprep.subr.bf16.mxu0 0
    %3583 = vmatpush1.bf16.msra.mxu0 %v2387
    %3584 = vmatprep.subr.bf16.mxu0 0
    %3585 = vmatpush1.bf16.msra.mxu0 %v2390
    %3586 = vmatprep.subr.bf16.mxu0 0
    %3587 = vmatpush1.bf16.msra.mxu0 %v2393
    %3588 = vmatprep.subr.bf16.mxu0 0
    %3589 = vmatpush1.bf16.msra.mxu0 %v2396
    %3590 = vmatprep.mubr.bf16.mxu0 %v675
    %3591 = vmatmul.mubr.bf16.gmra.mrb[0].mxu0 %v673
    %v3592 = vpop.f32.mrb[0].mxu0
    %v3593 = vadd.f32 %v3553, %v3592
    %v3594 = vpop.f32.mrb[0].mxu0
    %v3595 = vpop.f32.mrb[0].mxu0
    %v3596 = vpop.f32.mrb[0].mxu0
    %3597 = vdwg.mxu0
    %3598 = vmatprep.subr.bf16.mxu0 0
    %3599 = vmatpush1.bf16.msra.mxu0 %v2399
    %3600 = vmatprep.subr.bf16.mxu0 0
    %3601 = vmatpush1.bf16.msra.mxu0 %v2402
    %3602 = vmatprep.subr.bf16.mxu0 0
    %3603 = vmatpush1.bf16.msra.mxu0 %v2405
    %3604 = vmatprep.subr.bf16.mxu0 0
    %3605 = vmatpush1.bf16.msra.mxu0 %v2408
    %3606 = vmatprep.subr.bf16.mxu0 0
    %3607 = vmatpush1.bf16.msra.mxu0 %v2411
    %3608 = vmatprep.subr.bf16.mxu0 0
    %3609 = vmatpush1.bf16.msra.mxu0 %v2414
    %3610 = vmatprep.subr.bf16.mxu0 0
    %3611 = vmatpush1.bf16.msra.mxu0 %v2417
    %3612 = vmatprep.subr.bf16.mxu0 0
    %3613 = vmatpush1.bf16.msra.mxu0 %v2420
    %3614 = vmatprep.subr.bf16.mxu0 0
    %3615 = vmatpush1.bf16.msra.mxu0 %v2423
    %3616 = vmatprep.subr.bf16.mxu0 0
    %3617 = vmatpush1.bf16.msra.mxu0 %v2426
    %3618 = vmatprep.subr.bf16.mxu0 0
    %3619 = vmatpush1.bf16.msra.mxu0 %v2429
    %3620 = vmatprep.subr.bf16.mxu0 0
    %3621 = vmatpush1.bf16.msra.mxu0 %v2432
    %3622 = vmatprep.subr.bf16.mxu0 0
    %3623 = vmatpush1.bf16.msra.mxu0 %v2435
    %3624 = vmatprep.subr.bf16.mxu0 0
    %3625 = vmatpush1.bf16.msra.mxu0 %v2438
    %3626 = vmatprep.subr.bf16.mxu0 0
    %3627 = vmatpush1.bf16.msra.mxu0 %v2441
    %3628 = vmatprep.subr.bf16.mxu0 0
    %3629 = vmatpush1.bf16.msra.mxu0 %v2444
    %3630 = vmatprep.mubr.bf16.mxu0 %v713
    %3631 = vmatmul.mubr.bf16.gmra.mrb[0].mxu0 %v699
    %v3632 = vpop.f32.mrb[0].mxu0
    %v3633 = vadd.f32 %v3593, %v3632
    %v3634 = vpop.f32.mrb[0].mxu0
    %v3635 = vpop.f32.mrb[0].mxu0
    %v3636 = vpop.f32.mrb[0].mxu0
    %3637 = vdwg.mxu0
    %3638 = vmatprep.subr.bf16.mxu0 0
    %3639 = vmatpush1.bf16.msra.mxu0 %v2447
    %3640 = vmatprep.subr.bf16.mxu0 0
    %3641 = vmatpush1.bf16.msra.mxu0 %v2450
    %3642 = vmatprep.subr.bf16.mxu0 0
    %3643 = vmatpush1.bf16.msra.mxu0 %v2453
    %3644 = vmatprep.subr.bf16.mxu0 0
    %3645 = vmatpush1.bf16.msra.mxu0 %v2456
    %3646 = vmatprep.subr.bf16.mxu0 0
    %3647 = vmatpush1.bf16.msra.mxu0 %v2459
    %3648 = vmatprep.subr.bf16.mxu0 0
    %3649 = vmatpush1.bf16.msra.mxu0 %v2462
    %3650 = vmatprep.subr.bf16.mxu0 0
    %3651 = vmatpush1.bf16.msra.mxu0 %v2465
    %3652 = vmatprep.subr.bf16.mxu0 0
    %3653 = vmatpush1.bf16.msra.mxu0 %v2468
    %3654 = vmatprep.subr.bf16.mxu0 0
    %3655 = vmatpush1.bf16.msra.mxu0 %v2471
    %3656 = vmatprep.subr.bf16.mxu0 0
    %3657 = vmatpush1.bf16.msra.mxu0 %v2474
    %3658 = vmatprep.subr.bf16.mxu0 0
    %3659 = vmatpush1.bf16.msra.mxu0 %v2477
    %3660 = vmatprep.subr.bf16.mxu0 0
    %3661 = vmatpush1.bf16.msra.mxu0 %v2480
    %3662 = vmatprep.subr.bf16.mxu0 0
    %3663 = vmatpush1.bf16.msra.mxu0 %v2483
    %3664 = vmatprep.subr.bf16.mxu0 0
    %3665 = vmatpush1.bf16.msra.mxu0 %v2486
    %3666 = vmatprep.subr.bf16.mxu0 0
    %3667 = vmatpush1.bf16.msra.mxu0 %v2489
    %3668 = vmatprep.subr.bf16.mxu0 0
    %3669 = vmatpush1.bf16.msra.mxu0 %v2492
    %3670 = vmatprep.mubr.bf16.mxu0 %v723
    %3671 = vmatmul.mubr.bf16.gmra.mrb[0].mxu0 %v721
    %v3672 = vpop.f32.mrb[0].mxu0
    %v3673 = vadd.f32 %v3633, %v3672
    %v3674 = vpop.f32.mrb[0].mxu0
    %v3675 = vpop.f32.mrb[0].mxu0
    %v3676 = vpop.f32.mrb[0].mxu0
    %3677 = vdwg.mxu0
    %3678 = vmatprep.subr.bf16.mxu0 0
    %3679 = vmatpush1.bf16.msra.mxu0 %v2495
    %3680 = vmatprep.subr.bf16.mxu0 0
    %3681 = vmatpush1.bf16.msra.mxu0 %v2498
    %3682 = vmatprep.subr.bf16.mxu0 0
    %3683 = vmatpush1.bf16.msra.mxu0 %v2501
    %3684 = vmatprep.subr.bf16.mxu0 0
    %3685 = vmatpush1.bf16.msra.mxu0 %v2504
    %3686 = vmatprep.subr.bf16.mxu0 0
    %3687 = vmatpush1.bf16.msra.mxu0 %v2507
    %3688 = vmatprep.subr.bf16.mxu0 0
    %3689 = vmatpush1.bf16.msra.mxu0 %v2510
    %3690 = vmatprep.subr.bf16.mxu0 0
    %3691 = vmatpush1.bf16.msra.mxu0 %v2513
    %3692 = vmatprep.subr.bf16.mxu0 0
    %3693 = vmatpush1.bf16.msra.mxu0 %v2516
    %3694 = vmatprep.subr.bf16.mxu0 0
    %3695 = vmatpush1.bf16.msra.mxu0 %v2519
    %3696 = vmatprep.subr.bf16.mxu0 0
    %3697 = vmatpush1.bf16.msra.mxu0 %v2522
    %3698 = vmatprep.subr.bf16.mxu0 0
    %3699 = vmatpush1.bf16.msra.mxu0 %v2525
    %3700 = vmatprep.subr.bf16.mxu0 0
    %3701 = vmatpush1.bf16.msra.mxu0 %v2528
    %3702 = vmatprep.subr.bf16.mxu0 0
    %3703 = vmatpush1.bf16.msra.mxu0 %v2531
    %3704 = vmatprep.subr.bf16.mxu0 0
    %3705 = vmatpush1.bf16.msra.mxu0 %v2534
    %3706 = vmatprep.subr.bf16.mxu0 0
    %3707 = vmatpush1.bf16.msra.mxu0 %v2537
    %3708 = vmatprep.subr.bf16.mxu0 0
    %3709 = vmatpush1.bf16.msra.mxu0 %v2540
    %3710 = vmatprep.mubr.bf16.mxu0 %v720
    %3711 = vmatmul.mubr.bf16.gmra.mrb[0].mxu0 %v706
    %v3712 = vpop.f32.mrb[0].mxu0
    %v3713 = vadd.f32 %v3673, %v3712
    %v3714 = vpop.f32.mrb[0].mxu0
    %v3715 = vpop.f32.mrb[0].mxu0
    %v3716 = vpop.f32.mrb[0].mxu0
    %3717 = vdwg.mxu0
    %3718 = vmatprep.subr.bf16.mxu0 0
    %3719 = vmatpush1.bf16.msra.mxu0 %v2543
    %3720 = vmatprep.subr.bf16.mxu0 0
    %3721 = vmatpush1.bf16.msra.mxu0 %v2546
    %3722 = vmatprep.subr.bf16.mxu0 0
    %3723 = vmatpush1.bf16.msra.mxu0 %v2549
    %3724 = vmatprep.subr.bf16.mxu0 0
    %3725 = vmatpush1.bf16.msra.mxu0 %v2552
    %3726 = vmatprep.subr.bf16.mxu0 0
    %3727 = vmatpush1.bf16.msra.mxu0 %v2555
    %3728 = vmatprep.subr.bf16.mxu0 0
    %3729 = vmatpush1.bf16.msra.mxu0 %v2558
    %3730 = vmatprep.subr.bf16.mxu0 0
    %3731 = vmatpush1.bf16.msra.mxu0 %v2561
    %3732 = vmatprep.subr.bf16.mxu0 0
    %3733 = vmatpush1.bf16.msra.mxu0 %v2564
    %3734 = vmatprep.subr.bf16.mxu0 0
    %3735 = vmatpush1.bf16.msra.mxu0 %v2567
    %3736 = vmatprep.subr.bf16.mxu0 0
    %3737 = vmatpush1.bf16.msra.mxu0 %v2570
    %3738 = vmatprep.subr.bf16.mxu0 0
    %3739 = vmatpush1.bf16.msra.mxu0 %v2573
    %3740 = vmatprep.subr.bf16.mxu0 0
    %3741 = vmatpush1.bf16.msra.mxu0 %v2576
    %3742 = vmatprep.subr.bf16.mxu0 0
    %3743 = vmatpush1.bf16.msra.mxu0 %v2579
    %3744 = vmatprep.subr.bf16.mxu0 0
    %3745 = vmatpush1.bf16.msra.mxu0 %v2582
    %3746 = vmatprep.subr.bf16.mxu0 0
    %3747 = vmatpush1.bf16.msra.mxu0 %v2585
    %3748 = vmatprep.subr.bf16.mxu0 0
    %3749 = vmatpush1.bf16.msra.mxu0 %v2588
    %3750 = vmatprep.mubr.bf16.mxu0 %v724
    %3751 = vmatmul.mubr.bf16.gmra.mrb[0].mxu0 %v722
    %v3752 = vpop.f32.mrb[0].mxu0
    %v3753 = vadd.f32 %v3713, %v3752
    %v3754 = vpop.f32.mrb[0].mxu0
    %v3755 = vpop.f32.mrb[0].mxu0
    %v3756 = vpop.f32.mrb[0].mxu0
    %3757 = vdwg.mxu0
    %3758 = vmatprep.subr.bf16.mxu0 0
    %3759 = vmatpush1.bf16.msra.mxu0 %v2591
    %3760 = vmatprep.subr.bf16.mxu0 0
    %3761 = vmatpush1.bf16.msra.mxu0 %v2594
    %3762 = vmatprep.subr.bf16.mxu0 0
    %3763 = vmatpush1.bf16.msra.mxu0 %v2597
    %3764 = vmatprep.subr.bf16.mxu0 0
    %3765 = vmatpush1.bf16.msra.mxu0 %v2600
    %3766 = vmatprep.subr.bf16.mxu0 0
    %3767 = vmatpush1.bf16.msra.mxu0 %v2603
    %3768 = vmatprep.subr.bf16.mxu0 0
    %3769 = vmatpush1.bf16.msra.mxu0 %v2606
    %3770 = vmatprep.subr.bf16.mxu0 0
    %3771 = vmatpush1.bf16.msra.mxu0 %v2609
    %3772 = vmatprep.subr.bf16.mxu0 0
    %3773 = vmatpush1.bf16.msra.mxu0 %v2612
    %3774 = vmatprep.subr.bf16.mxu0 0
    %3775 = vmatpush1.bf16.msra.mxu0 %v2615
    %3776 = vmatprep.subr.bf16.mxu0 0
    %3777 = vmatpush1.bf16.msra.mxu0 %v2618
    %3778 = vmatprep.subr.bf16.mxu0 0
    %3779 = vmatpush1.bf16.msra.mxu0 %v2621
    %3780 = vmatprep.subr.bf16.mxu0 0
    %3781 = vmatpush1.bf16.msra.mxu0 %v2624
    %3782 = vmatprep.subr.bf16.mxu0 0
    %3783 = vmatpush1.bf16.msra.mxu0 %v2627
    %3784 = vmatprep.subr.bf16.mxu0 0
    %3785 = vmatpush1.bf16.msra.mxu0 %v2630
    %3786 = vmatprep.subr.bf16.mxu0 0
    %3787 = vmatpush1.bf16.msra.mxu0 %v2633
    %3788 = vmatprep.subr.bf16.mxu0 0
    %3789 = vmatpush1.bf16.msra.mxu0 %v2636
    %3790 = vmatprep.mubr.bf16.mxu0 %v746
    %3791 = vmatmul.mubr.bf16.gmra.mrb[0].mxu0 %v739
    %v3792 = vpop.f32.mrb[0].mxu0
    %v3793 = vadd.f32 %v3753, %v3792
    %v3794 = vpop.f32.mrb[0].mxu0
    %v3795 = vpop.f32.mrb[0].mxu0
    %v3796 = vpop.f32.mrb[0].mxu0
    %3797 = vdwg.mxu0
    %v3798 = vmax.f32 %v3432, 0.0
    %v3799 = vmax.f32 %v3434, 0.0
    %v3800 = vmax.f32 %v3793, 0.0
    %v3801 = vpack.c.bf16 %v3798, %v3798
    %v3802 = vpack.c.bf16 %v3799, %v3799
    %v3803 = vpack.c.bf16 %v3800, %v3800
    %v3804 = vld [vmem:[%s3] sm:$0xff]
    %v3805 = vld [vmem:[%s3 + $0x8] sm:$0xff]
    %v3806 = vld [vmem:[%s3 + $0x10] sm:$0xff]
    %v3807 = vld [vmem:[%s3 + $0x18] sm:$0xff]
    %v3808 = vld [vmem:[%s3 + $0x20] sm:$0xff]
    %v3809 = vld [vmem:[%s3 + $0x28] sm:$0xff]
    %v3810 = vld [vmem:[%s3 + $0x30] sm:$0xff]
    %v3811 = vld [vmem:[%s3 + $0x38] sm:$0xff]
    %v3812 = vld [vmem:[%s3 + $0x40] sm:$0xff]
    %v3813 = vld [vmem:[%s3 + $0x48] sm:$0xff]
    %v3814 = vld [vmem:[%s3 + $0x50] sm:$0xff]
    %v3815 = vld [vmem:[%s3 + $0x58] sm:$0xff]
    %v3816 = vld [vmem:[%s3 + $0x60] sm:$0xff]
    %v3817 = vld [vmem:[%s3 + $0x68] sm:$0xff]
    %v3818 = vld [vmem:[%s3 + $0x70] sm:$0xff]
    %v3819 = vld [vmem:[%s3 + $0x78] sm:$0xff]
    %v3820 = vld [vmem:[%s3 + $0x80] sm:$0xff]
    %v3821 = vld [vmem:[%s3 + $0x88] sm:$0xff]
    %v3822 = vld [vmem:[%s3 + $0x90] sm:$0xff]
    %v3823 = vld [vmem:[%s3 + $0x98] sm:$0xff]
    %v3824 = vld [vmem:[%s3 + $0xa0] sm:$0xff]
    %v3825 = vld [vmem:[%s3 + $0xa8] sm:$0xff]
    %v3826 = vld [vmem:[%s3 + $0xb0] sm:$0xff]
    %v3827 = vld [vmem:[%s3 + $0xb8] sm:$0xff]
    %v3828 = vld [vmem:[%s3 + $0xc0] sm:$0xff]
    %v3829 = vld [vmem:[%s3 + $0xc8] sm:$0xff]
    %v3830 = vld [vmem:[%s3 + $0xd0] sm:$0xff]
    %v3831 = vld [vmem:[%s3 + $0xd8] sm:$0xff]
    %v3832 = vld [vmem:[%s3 + $0xe0] sm:$0xff]
    %v3833 = vld [vmem:[%s3 + $0xe8] sm:$0xff]
    %v3834 = vld [vmem:[%s3 + $0xf0] sm:$0xff]
    %v3835 = vld [vmem:[%s3 + $0xf8] sm:$0xff]
    %v3836 = vld [vmem:[%s3 + $0x100] sm:$0xff]
    %v3837 = vld [vmem:[%s3 + $0x108] sm:$0xff]
    %v3838 = vld [vmem:[%s3 + $0x110] sm:$0xff]
    %v3839 = vld [vmem:[%s3 + $0x118] sm:$0xff]
    %v3840 = vld [vmem:[%s3 + $0x120] sm:$0xff]
    %v3841 = vld [vmem:[%s3 + $0x128] sm:$0xff]
    %v3842 = vld [vmem:[%s3 + $0x130] sm:$0xff]
    %v3843 = vld [vmem:[%s3 + $0x138] sm:$0xff]
    %v3844 = vld [vmem:[%s3 + $0x140] sm:$0xff]
    %v3845 = vld [vmem:[%s3 + $0x148] sm:$0xff]
    %v3846 = vld [vmem:[%s3 + $0x150] sm:$0xff]
    %v3847 = vld [vmem:[%s3 + $0x158] sm:$0xff]
    %v3848 = vld [vmem:[%s3 + $0x160] sm:$0xff]
    %v3849 = vld [vmem:[%s3 + $0x168] sm:$0xff]
    %v3850 = vld [vmem:[%s3 + $0x170] sm:$0xff]
    %v3851 = vld [vmem:[%s3 + $0x178] sm:$0xff]
    %v3852 = vld [vmem:[%s4] sm:$0x3]
    %v3854 = vlaneseq
    %v3855 = vshrl.u32 %v3854, 7
    %v3856 = vsub.s32 0, %v3855
    %v3857 = vrot.slane %v3852, %v3856
    %v3858 = vlaneseq
    %v3859 = vshrl.u32 %v3858, 7
    %v3860 = vsub.s32 1, %v3859
    %v3861 = vrot.slane %v3852, %v3860
    %v3912 = vunpack.c.l.b16 %v3804
    %v3913 = vunpack.c.h.b16 %v3804
    %v3914 = vunpack.c.l.b16 %v3805
    %v3915 = vunpack.c.h.b16 %v3805
    %v3916 = vunpack.c.l.b16 %v3806
    %v3917 = vunpack.c.h.b16 %v3806
    %v3918 = vunpack.c.l.b16 %v3807
    %v3919 = vunpack.c.h.b16 %v3807
    %v3920 = vunpack.c.l.b16 %v3808
    %v3921 = vunpack.c.h.b16 %v3808
    %v3922 = vunpack.c.l.b16 %v3809
    %v3923 = vunpack.c.h.b16 %v3809
    %v3924 = vunpack.c.l.b16 %v3810
    %v3925 = vunpack.c.h.b16 %v3810
    %v3926 = vunpack.c.l.b16 %v3811
    %v3927 = vunpack.c.h.b16 %v3811
    %v3928 = vunpack.c.l.b16 %v3812
    %v3929 = vunpack.c.h.b16 %v3812
    %v3930 = vunpack.c.l.b16 %v3813
    %v3931 = vunpack.c.h.b16 %v3813
    %v3932 = vunpack.c.l.b16 %v3814
    %v3933 = vunpack.c.h.b16 %v3814
    %v3934 = vunpack.c.l.b16 %v3815
    %v3935 = vunpack.c.h.b16 %v3815
    %v3936 = vunpack.c.l.b16 %v3816
    %v3937 = vunpack.c.h.b16 %v3816
    %v3938 = vunpack.c.l.b16 %v3817
    %v3939 = vunpack.c.h.b16 %v3817
    %v3940 = vunpack.c.l.b16 %v3818
    %v3941 = vunpack.c.h.b16 %v3818
    %v3942 = vunpack.c.l.b16 %v3819
    %v3943 = vunpack.c.h.b16 %v3819
    %v3944 = vunpack.c.l.b16 %v3820
    %v3945 = vunpack.c.h.b16 %v3820
    %v3946 = vunpack.c.l.b16 %v3821
    %v3947 = vunpack.c.h.b16 %v3821
    %v3948 = vunpack.c.l.b16 %v3822
    %v3949 = vunpack.c.h.b16 %v3822
    %v3950 = vunpack.c.l.b16 %v3823
    %v3951 = vunpack.c.h.b16 %v3823
    %v3952 = vunpack.c.l.b16 %v3824
    %v3953 = vunpack.c.h.b16 %v3824
    %v3954 = vunpack.c.l.b16 %v3825
    %v3955 = vunpack.c.h.b16 %v3825
    %v3956 = vunpack.c.l.b16 %v3826
    %v3957 = vunpack.c.h.b16 %v3826
    %v3958 = vunpack.c.l.b16 %v3827
    %v3959 = vunpack.c.h.b16 %v3827
    %v3960 = vunpack.c.l.b16 %v3828
    %v3961 = vunpack.c.h.b16 %v3828
    %v3962 = vunpack.c.l.b16 %v3829
    %v3963 = vunpack.c.h.b16 %v3829
    %v3964 = vunpack.c.l.b16 %v3830
    %v3965 = vunpack.c.h.b16 %v3830
    %v3966 = vunpack.c.l.b16 %v3831
    %v3967 = vunpack.c.h.b16 %v3831
    %v3968 = vunpack.c.l.b16 %v3832
    %v3969 = vunpack.c.h.b16 %v3832
    %v3970 = vunpack.c.l.b16 %v3833
    %v3971 = vunpack.c.h.b16 %v3833
    %v3972 = vunpack.c.l.b16 %v3834
    %v3973 = vunpack.c.h.b16 %v3834
    %v3974 = vunpack.c.l.b16 %v3835
    %v3975 = vunpack.c.h.b16 %v3835
    %v3976 = vunpack.c.l.b16 %v3836
    %v3977 = vunpack.c.h.b16 %v3836
    %v3978 = vunpack.c.l.b16 %v3837
    %v3979 = vunpack.c.h.b16 %v3837
    %v3980 = vunpack.c.l.b16 %v3838
    %v3981 = vunpack.c.h.b16 %v3838
    %v3982 = vunpack.c.l.b16 %v3839
    %v3983 = vunpack.c.h.b16 %v3839
    %v3984 = vunpack.c.l.b16 %v3840
    %v3985 = vunpack.c.h.b16 %v3840
    %v3986 = vunpack.c.l.b16 %v3841
    %v3987 = vunpack.c.h.b16 %v3841
    %v3988 = vunpack.c.l.b16 %v3842
    %v3989 = vunpack.c.h.b16 %v3842
    %v3990 = vunpack.c.l.b16 %v3843
    %v3991 = vunpack.c.h.b16 %v3843
    %v3992 = vunpack.c.l.b16 %v3844
    %v3993 = vunpack.c.h.b16 %v3844
    %v3994 = vunpack.c.l.b16 %v3845
    %v3995 = vunpack.c.h.b16 %v3845
    %v3996 = vunpack.c.l.b16 %v3846
    %v3997 = vunpack.c.h.b16 %v3846
    %v3998 = vunpack.c.l.b16 %v3847
    %v3999 = vunpack.c.h.b16 %v3847
    %v4000 = vunpack.c.l.b16 %v3848
    %v4001 = vunpack.c.h.b16 %v3848
    %v4002 = vunpack.c.l.b16 %v3849
    %v4003 = vunpack.c.h.b16 %v3849
    %v4004 = vunpack.c.l.b16 %v3850
    %v4005 = vunpack.c.h.b16 %v3850
    %v4006 = vunpack.c.l.b16 %v3851
    %v4007 = vunpack.c.h.b16 %v3851
    %v4008 = vpack.c.b16 %v3914, %v3912
    %v4009 = vpack.c.b16 %v3915, %v3913
    %v4010 = vpack.c.b16 %v3918, %v3916
    %v4011 = vpack.c.b16 %v3919, %v3917
    %v4012 = vpack.c.b16 %v3922, %v3920
    %v4013 = vpack.c.b16 %v3923, %v3921
    %v4014 = vpack.c.b16 %v3926, %v3924
    %v4015 = vpack.c.b16 %v3927, %v3925
    %v4016 = vpack.c.b16 %v3930, %v3928
    %v4017 = vpack.c.b16 %v3931, %v3929
    %v4018 = vpack.c.b16 %v3934, %v3932
    %v4019 = vpack.c.b16 %v3935, %v3933
    %v4020 = vpack.c.b16 %v3938, %v3936
    %v4021 = vpack.c.b16 %v3939, %v3937
    %v4022 = vpack.c.b16 %v3942, %v3940
    %v4023 = vpack.c.b16 %v3943, %v3941
    %v4024 = vpack.c.b16 %v3946, %v3944
    %v4025 = vpack.c.b16 %v3947, %v3945
    %v4026 = vpack.c.b16 %v3950, %v3948
    %v4027 = vpack.c.b16 %v3951, %v3949
    %v4028 = vpack.c.b16 %v3954, %v3952
    %v4029 = vpack.c.b16 %v3955, %v3953
    %v4030 = vpack.c.b16 %v3958, %v3956
    %v4031 = vpack.c.b16 %v3959, %v3957
    %v4032 = vpack.c.b16 %v3962, %v3960
    %v4033 = vpack.c.b16 %v3963, %v3961
    %v4034 = vpack.c.b16 %v3966, %v3964
    %v4035 = vpack.c.b16 %v3967, %v3965
    %v4036 = vpack.c.b16 %v3970, %v3968
    %v4037 = vpack.c.b16 %v3971, %v3969
    %v4038 = vpack.c.b16 %v3974, %v3972
    %v4039 = vpack.c.b16 %v3975, %v3973
    %v4040 = vpack.c.b16 %v3978, %v3976
    %v4041 = vpack.c.b16 %v3979, %v3977
    %v4042 = vpack.c.b16 %v3982, %v3980
    %v4043 = vpack.c.b16 %v3983, %v3981
    %v4044 = vpack.c.b16 %v3986, %v3984
    %v4045 = vpack.c.b16 %v3987, %v3985
    %v4046 = vpack.c.b16 %v3990, %v3988
    %v4047 = vpack.c.b16 %v3991, %v3989
    %v4048 = vpack.c.b16 %v3994, %v3992
    %v4049 = vpack.c.b16 %v3995, %v3993
    %v4050 = vpack.c.b16 %v3998, %v3996
    %v4051 = vpack.c.b16 %v3999, %v3997
    %v4052 = vpack.c.b16 %v4002, %v4000
    %v4053 = vpack.c.b16 %v4003, %v4001
    %v4054 = vpack.c.b16 %v4006, %v4004
    %v4055 = vpack.c.b16 %v4007, %v4005
    %4104 = vmatprep.subr.bf16.mxu0 %v4009
    %4105 = vmatpush1.bf16.msra.mxu0 %v4008
    %4106 = vmatprep.subr.bf16.mxu0 %v4011
    %4107 = vmatpush1.bf16.msra.mxu0 %v4010
    %4108 = vmatprep.subr.bf16.mxu0 %v4013
    %4109 = vmatpush1.bf16.msra.mxu0 %v4012
    %4110 = vmatprep.subr.bf16.mxu0 %v4015
    %4111 = vmatpush1.bf16.msra.mxu0 %v4014
    %4112 = vmatprep.subr.bf16.mxu0 %v4017
    %4113 = vmatpush1.bf16.msra.mxu0 %v4016
    %4114 = vmatprep.subr.bf16.mxu0 %v4019
    %4115 = vmatpush1.bf16.msra.mxu0 %v4018
    %4116 = vmatprep.subr.bf16.mxu0 %v4021
    %4117 = vmatpush1.bf16.msra.mxu0 %v4020
    %4118 = vmatprep.subr.bf16.mxu0 %v4023
    %4119 = vmatpush1.bf16.msra.mxu0 %v4022
    %4120 = vmatprep.subr.bf16.mxu0 %v4025
    %4121 = vmatpush1.bf16.msra.mxu0 %v4024
    %4122 = vmatprep.subr.bf16.mxu0 %v4027
    %4123 = vmatpush1.bf16.msra.mxu0 %v4026
    %4124 = vmatprep.subr.bf16.mxu0 %v4029
    %4125 = vmatpush1.bf16.msra.mxu0 %v4028
    %4126 = vmatprep.subr.bf16.mxu0 %v4031
    %4127 = vmatpush1.bf16.msra.mxu0 %v4030
    %4128 = vmatprep.subr.bf16.mxu0 %v4033
    %4129 = vmatpush1.bf16.msra.mxu0 %v4032
    %4130 = vmatprep.subr.bf16.mxu0 %v4035
    %4131 = vmatpush1.bf16.msra.mxu0 %v4034
    %4132 = vmatprep.subr.bf16.mxu0 %v4037
    %4133 = vmatpush1.bf16.msra.mxu0 %v4036
    %4134 = vmatprep.subr.bf16.mxu0 %v4039
    %4135 = vmatpush1.bf16.msra.mxu0 %v4038
    %4136 = vmatprep.mubr.bf16.mxu0 %v3802
    %4137 = vmatmul.mubr.bf16.gmra.mrb[0].mxu0 %v3801
    %v4138 = vpop.f32.mrb[0].mxu0
    %v4139 = vadd.f32 %v3857, %v4138
    %v4140 = vpop.f32.mrb[0].mxu0
    %v4141 = vadd.f32 %v3861, %v4140
    %v4142 = vpop.f32.mrb[0].mxu0
    %v4143 = vpop.f32.mrb[0].mxu0
    %4144 = vdwg.mxu0
    %4145 = vmatprep.subr.bf16.mxu0 %v4041
    %4146 = vmatpush1.bf16.msra.mxu0 %v4040
    %4147 = vmatprep.subr.bf16.mxu0 %v4043
    %4148 = vmatpush1.bf16.msra.mxu0 %v4042
    %4149 = vmatprep.subr.bf16.mxu0 %v4045
    %4150 = vmatpush1.bf16.msra.mxu0 %v4044
    %4151 = vmatprep.subr.bf16.mxu0 %v4047
    %4152 = vmatpush1.bf16.msra.mxu0 %v4046
    %4153 = vmatprep.subr.bf16.mxu0 %v4049
    %4154 = vmatpush1.bf16.msra.mxu0 %v4048
    %4155 = vmatprep.subr.bf16.mxu0 %v4051
    %4156 = vmatpush1.bf16.msra.mxu0 %v4050
    %4157 = vmatprep.subr.bf16.mxu0 %v4053
    %4158 = vmatpush1.bf16.msra.mxu0 %v4052
    %4159 = vmatprep.subr.bf16.mxu0 %v4055
    %4160 = vmatpush1.bf16.msra.mxu0 %v4054
    %4161 = vmatprep.subr.bf16.mxu0 0
    %4162 = vmatpush1.bf16.msra.mxu0 0
    %4163 = vmatprep.subr.bf16.mxu0 0
    %4164 = vmatpush1.bf16.msra.mxu0 0
    %4165 = vmatprep.subr.bf16.mxu0 0
    %4166 = vmatpush1.bf16.msra.mxu0 0
    %4167 = vmatprep.subr.bf16.mxu0 0
    %4168 = vmatpush1.bf16.msra.mxu0 0
    %4169 = vmatprep.subr.bf16.mxu0 0
    %4170 = vmatpush1.bf16.msra.mxu0 0
    %4171 = vmatprep.subr.bf16.mxu0 0
    %4172 = vmatpush1.bf16.msra.mxu0 0
    %4173 = vmatprep.subr.bf16.mxu0 0
    %4174 = vmatpush1.bf16.msra.mxu0 0
    %4175 = vmatprep.subr.bf16.mxu0 0
    %4176 = vmatpush1.bf16.msra.mxu0 0
    %4177 = vmatprep.mubr.bf16.mxu0 0
    %4178 = vmatmul.mubr.bf16.gmra.mrb[0].mxu0 %v3803
    %v4179 = vpop.f32.mrb[0].mxu0
    %v4180 = vadd.f32 %v4139, %v4179
    %v4181 = vpop.f32.mrb[0].mxu0
    %v4182 = vadd.f32 %v4141, %v4181
    %v4183 = vpop.f32.mrb[0].mxu0
    %v4184 = vpop.f32.mrb[0].mxu0
    %4185 = vdwg.mxu0
    %v4186 = vmax.f32 %v4180, 0.0
    %v4187 = vmax.f32 %v4182, 0.0
    %v4188 = vpack.c.bf16 %v4186, %v4186
    %v4189 = vpack.c.bf16 %v4187, %v4187
    %v4190 = vld [vmem:[%s5] sm:$0xf]
    %v4191 = vld [vmem:[%s5 + $0x4] sm:$0xf]
    %v4192 = vld [vmem:[%s5 + $0x8] sm:$0xf]
    %v4193 = vld [vmem:[%s5 + $0xc] sm:$0xf]
    %v4194 = vld [vmem:[%s5 + $0x10] sm:$0xf]
    %v4195 = vld [vmem:[%s5 + $0x14] sm:$0xf]
    %v4196 = vld [vmem:[%s5 + $0x18] sm:$0xf]
    %v4197 = vld [vmem:[%s5 + $0x1c] sm:$0xf]
    %v4198 = vld [vmem:[%s5 + $0x20] sm:$0xf]
    %v4199 = vld [vmem:[%s5 + $0x24] sm:$0xf]
    %v4200 = vld [vmem:[%s5 + $0x28] sm:$0xf]
    %v4201 = vld [vmem:[%s5 + $0x2c] sm:$0xf]
    %v4202 = vld [vmem:[%s5 + $0x30] sm:$0xf]
    %v4203 = vld [vmem:[%s5 + $0x34] sm:$0xf]
    %v4204 = vld [vmem:[%s5 + $0x38] sm:$0xf]
    %v4205 = vld [vmem:[%s5 + $0x3c] sm:$0xf]
    %v4206 = vld [vmem:[%s5 + $0x40] sm:$0xf]
    %v4207 = vld [vmem:[%s5 + $0x44] sm:$0xf]
    %v4208 = vld [vmem:[%s5 + $0x48] sm:$0xf]
    %v4209 = vld [vmem:[%s5 + $0x4c] sm:$0xf]
    %v4210 = vld [vmem:[%s5 + $0x50] sm:$0xf]
    %v4211 = vld [vmem:[%s5 + $0x54] sm:$0xf]
    %v4212 = vld [vmem:[%s5 + $0x58] sm:$0xf]
    %v4213 = vld [vmem:[%s5 + $0x5c] sm:$0xf]
    %v4214 = vld [vmem:[%s6] sm:$0x1]
    %v4216 = vlaneseq
    %v4217 = vshrl.u32 %v4216, 7
    %v4218 = vsub.s32 0, %v4217
    %v4219 = vrot.slane %v4214, %v4218
    %v4245 = vunpack.c.l.b16 %v4190
    %v4246 = vunpack.c.l.b16 %v4191
    %v4247 = vunpack.c.l.b16 %v4192
    %v4248 = vunpack.c.l.b16 %v4193
    %v4249 = vunpack.c.l.b16 %v4194
    %v4250 = vunpack.c.l.b16 %v4195
    %v4251 = vunpack.c.l.b16 %v4196
    %v4252 = vunpack.c.l.b16 %v4197
    %v4253 = vunpack.c.l.b16 %v4198
    %v4254 = vunpack.c.l.b16 %v4199
    %v4255 = vunpack.c.l.b16 %v4200
    %v4256 = vunpack.c.l.b16 %v4201
    %v4257 = vunpack.c.l.b16 %v4202
    %v4258 = vunpack.c.l.b16 %v4203
    %v4259 = vunpack.c.l.b16 %v4204
    %v4260 = vunpack.c.l.b16 %v4205
    %v4261 = vunpack.c.l.b16 %v4206
    %v4262 = vunpack.c.l.b16 %v4207
    %v4263 = vunpack.c.l.b16 %v4208
    %v4264 = vunpack.c.l.b16 %v4209
    %v4265 = vunpack.c.l.b16 %v4210
    %v4266 = vunpack.c.l.b16 %v4211
    %v4267 = vunpack.c.l.b16 %v4212
    %v4268 = vunpack.c.l.b16 %v4213
    %v4269 = vpack.c.b16 %v4246, %v4245
    %v4270 = vpack.c.b16 %v4248, %v4247
    %v4271 = vpack.c.b16 %v4250, %v4249
    %v4272 = vpack.c.b16 %v4252, %v4251
    %v4273 = vpack.c.b16 %v4254, %v4253
    %v4274 = vpack.c.b16 %v4256, %v4255
    %v4275 = vpack.c.b16 %v4258, %v4257
    %v4276 = vpack.c.b16 %v4260, %v4259
    %v4277 = vpack.c.b16 %v4262, %v4261
    %v4278 = vpack.c.b16 %v4264, %v4263
    %v4279 = vpack.c.b16 %v4266, %v4265
    %v4280 = vpack.c.b16 %v4268, %v4267
    %vm4293 = vcmask 523264
    %v4295 = vsel %vm4293, %v4189, 0
    %4297 = vmatprep.subr.bf16.mxu0 0
    %4298 = vmatpush1.bf16.msra.mxu0 %v4269
    %4299 = vmatprep.subr.bf16.mxu0 0
    %4300 = vmatpush1.bf16.msra.mxu0 %v4270
    %4301 = vmatprep.subr.bf16.mxu0 0
    %4302 = vmatpush1.bf16.msra.mxu0 %v4271
    %4303 = vmatprep.subr.bf16.mxu0 0
    %4304 = vmatpush1.bf16.msra.mxu0 %v4272
    %4305 = vmatprep.subr.bf16.mxu0 0
    %4306 = vmatpush1.bf16.msra.mxu0 %v4273
    %4307 = vmatprep.subr.bf16.mxu0 0
    %4308 = vmatpush1.bf16.msra.mxu0 %v4274
    %4309 = vmatprep.subr.bf16.mxu0 0
    %4310 = vmatpush1.bf16.msra.mxu0 %v4275
    %4311 = vmatprep.subr.bf16.mxu0 0
    %4312 = vmatpush1.bf16.msra.mxu0 %v4276
    %4313 = vmatprep.subr.bf16.mxu0 0
    %4314 = vmatpush1.bf16.msra.mxu0 %v4277
    %4315 = vmatprep.subr.bf16.mxu0 0
    %4316 = vmatpush1.bf16.msra.mxu0 %v4278
    %4317 = vmatprep.subr.bf16.mxu0 0
    %4318 = vmatpush1.bf16.msra.mxu0 %v4279
    %4319 = vmatprep.subr.bf16.mxu0 0
    %4320 = vmatpush1.bf16.msra.mxu0 %v4280
    %4321 = vmatprep.subr.bf16.mxu0 0
    %4322 = vmatpush1.bf16.msra.mxu0 0
    %4323 = vmatprep.subr.bf16.mxu0 0
    %4324 = vmatpush1.bf16.msra.mxu0 0
    %4325 = vmatprep.subr.bf16.mxu0 0
    %4326 = vmatpush1.bf16.msra.mxu0 0
    %4327 = vmatprep.subr.bf16.mxu0 0
    %4328 = vmatpush1.bf16.msra.mxu0 0
    %4329 = vmatprep.mubr.bf16.mxu0 %v4295
    %4330 = vmatmul.mubr.bf16.gmra.mrb[0].mxu0 %v4188
    %v4331 = vpop.f32.mrb[0].mxu0
    %v4332 = vadd.f32 %v4219, %v4331
    %v4333 = vpop.f32.mrb[0].mxu0
    %v4334 = vpop.f32.mrb[0].mxu0
    %v4335 = vpop.f32.mrb[0].mxu0
    %4336 = vdwg.mxu0
    %vm4337 = vcmask 74752
    %4338 = vst.msk [vmem:[#allocation2] sm:$0x3] %vm4337, %v4332
    // Predicated region
    $region30: #{cifar10_forward.9} parent=1 // pred_check
      _
    $region31: #{cifar10_forward.9} parent=1 // pred_check_branch
      %4340 = sbr.rel (0) target = $region33
    $region32: #{cifar10_forward.9} parent=1 // pred_region
      %s4342 = ssub.s32 32, 32
      %4343 = vsyncadd [#allocation3], %s4342
      %s4345 = sshll.u32 [#allocation2], 4
      %s4346 = int_to_ptr.vmem [resolvable:$true] %s4345
      %4348 = dma.vmem_to_hbm [thread:$0]  %s4346, 32, %s7, [#allocation3]
    $region33: #{cifar10_forward.9} parent=1 // pred_fallthru
      _
    // Predicated region
    $region34: #{cifar10_forward.9} parent=1 // pred_check
      _
    $region35: #{cifar10_forward.9} parent=1 // pred_check_branch
      %4350 = sbr.rel (0) target = $region37
    $region36: #{cifar10_forward.9} parent=1 // pred_region
      %4351 = dma.done [#allocation3], 32
    $region37: #{cifar10_forward.9} parent=1 // pred_fallthru
      _
    %4352 = vsyncpa [#allocation3], 1

</llo_original>
